<compile_context>
chip_gen: v7x
topology: tpu7x:2x2x1
jax: 0.10.0
libtpu: 0.0.40
codegen_flags: <defaults>
</compile_context>

<pallas_src>
import functools

import numpy as np
import jax
import jax.numpy as jnp
from jax.experimental import pallas as pl
from jax.experimental.pallas import tpu as pltpu


def cab_kernel(H, W, x_ref, wb1_ref, wb2_ref, wkv_ref,
               we1_ref, we2_ref, be2_ref,
               gng_ref, gnb_ref, gm_ref, gmt_ref,
               sel_ref, wdu1_ref, wdu2_ref, out_ref):
    f32 = jnp.float32
    bf16 = jnp.bfloat16
    Bt, HW, C = x_ref.shape
    N = Bt * HW

    x_in = x_ref[...]                                    # (Bt, HW, C) f32

    # Boundary masks for horizontal (w) shifts, broadcast once to (HW, C).
    w_id = jax.lax.broadcasted_iota(jnp.int32, (HW, 1), 0) % W
    m_first = jnp.broadcast_to(w_id != 0, (HW, C))       # valid when reading w-1
    m_last = jnp.broadcast_to(w_id != W - 1, (HW, C))    # valid when reading w+1

    def row_shift(v, dh):
        # out[b, h*W+w] = v[b, (h+dh)*W+w], zeros when h+dh out of range.
        if dh == 0:
            return v
        z = jnp.zeros((Bt, W, v.shape[-1]), v.dtype)
        if dh == 1:
            return jnp.concatenate([v[:, W:, :], z], axis=1)
        return jnp.concatenate([z, v[:, :HW - W, :]], axis=1)

    def col_shift(v, dw):
        # out[b, h*W+w] = v[b, h*W+(w+dw)], zeros when w+dw out of range.
        if dw == 0:
            return v
        z = jnp.zeros((Bt, 1, v.shape[-1]), v.dtype)
        if dw == 1:
            t = jnp.concatenate([v[:, 1:, :], z], axis=1)
            return jnp.where(m_last, t, jnp.zeros_like(t))
        t = jnp.concatenate([z, v[:, :-1, :]], axis=1)
        return jnp.where(m_first, t, jnp.zeros_like(t))

    def shifts9(v):
        # Zero-padded 3x3 neighbourhood copies, k = kh*3 + kw (dh = kh-1, dw = kw-1).
        outs = []
        for dh in (-1, 0, 1):
            rv = row_shift(v, dh)
            for dw in (-1, 0, 1):
                outs.append(col_shift(rv, dw))
        return outs

    def conv3x3(v3, w_ref):
        # im2col -> single (N, 9C) @ (9C, Cout) MXU matmul in bf16, f32 accumulate.
        x9 = jnp.concatenate(shifts9(v3.astype(bf16)), axis=-1)
        return jnp.dot(x9.reshape(N, 9 * C), w_ref[...],
                       preferred_element_type=f32)

    # ---- CAB body: conv3x3 -> ReLU -> conv3x3 ----
    r = jnp.maximum(conv3x3(x_in, wb1_ref), 0.0)         # (N, C)
    r = conv3x3(r.reshape(Bt, HW, C), wb2_ref)           # (N, C)
    r3 = r.reshape(Bt, HW, C)
    r_b = r.astype(bf16)

    # ---- key_embed (grouped 3x3 conv) + conv1x1 fused into one 128-wide matmul:
    #      columns [0:C) = key_embed, columns [C:2C) = center-tap-only conv1x1 ----
    kv = conv3x3(r3, wkv_ref)                            # (N, 2C)
    kf = jnp.maximum(kv[:, :C], 0.0)                     # key_embed + ReLU
    v3 = kv[:, C:].reshape(Bt, HW, C)                    # conv1x1 output

    # ---- embed[0] fused: relu(concat([r, kf]) @ stacked weight) ----
    rk = jnp.concatenate([r_b, kf.astype(bf16)], axis=-1)           # (N, 128)
    e1 = jnp.maximum(jnp.dot(rk, we1_ref[...], preferred_element_type=f32), 0.0)
    # ---- embed[2]: 1x1 grouped conv + bias ----
    w72 = jnp.dot(e1.astype(bf16), we2_ref[...],
                  preferred_element_type=f32) + be2_ref[...]        # (N, 72)

    # ---- GroupNorm(8, 72): per-image, centered two-pass statistics in f32 ----
    w72_3 = w72.reshape(Bt, HW, 72)
    inv_cnt = 1.0 / (HW * 9.0)
    gmean = jnp.dot(jnp.sum(w72_3, axis=1), gm_ref[...],
                    preferred_element_type=f32) * inv_cnt           # (Bt, 8)
    mean_c = jnp.dot(gmean, gmt_ref[...], preferred_element_type=f32)   # (Bt, 72)
    cen = w72_3 - mean_c[:, None, :]
    gvar = jnp.dot(jnp.sum(cen * cen, axis=1), gm_ref[...],
                   preferred_element_type=f32) * inv_cnt            # (Bt, 8)
    inv_c = jnp.dot(jax.lax.rsqrt(gvar + 1e-5), gmt_ref[...],
                    preferred_element_type=f32)                     # (Bt, 72)
    w72n = cen * inv_c[:, None, :] * gng_ref[...] + gnb_ref[...]    # (Bt, HW, 72)

    # ---- LocalConvolution (CoTNet aggregation_zeropad), fused ----
    # one (N,72)@(72,576) selection matmul (result kept bf16), then 9 on-demand
    # shifted MACs (reusing one row-shifted copy per dh), f32 accumulation.
    wk = jnp.dot(w72n.reshape(N, 72).astype(bf16), sel_ref[...],
                 preferred_element_type=f32).astype(bf16)           # (N, 9C) bf16
    wk3 = wk.reshape(Bt, HW, 9 * C)
    lc = jnp.zeros((Bt, HW, C), f32)
    for dh in (-1, 0, 1):
        rv = row_shift(v3, dh)
        for dw in (-1, 0, 1):
            k = (dh + 1) * 3 + (dw + 1)
            vc = col_shift(rv, dw)
            lc = lc + wk3[:, :, k * C:(k + 1) * C].astype(f32) * vc

    # ---- channel attention: GAP -> 1x1 -> ReLU -> 1x1 -> sigmoid ----
    y = jnp.mean(lc, axis=1)                                        # (Bt, C)
    y = jnp.maximum(jnp.dot(y, wdu1_ref[...], preferred_element_type=f32), 0.0)
    y = jnp.dot(y, wdu2_ref[...], preferred_element_type=f32)
    y = pl.reciprocal(1.0 + jnp.exp(-y), approx=True)               # sigmoid

    # ---- scale + residual with the CAB input (f32) ----
    out_ref[...] = lc * y[:, None, :] + x_in


def cab_forward(x_nchw, params, block_batch=None):
    B, C, H, W = x_nchw.shape
    HW = H * W
    x = jnp.transpose(x_nchw, (0, 2, 3, 1)).reshape(B, HW, C).astype(jnp.float32)

    bf16 = jnp.bfloat16
    f32 = jnp.float32

    # 3x3 conv weights flattened to (9*Cin, Cout) for the im2col matmul.
    wb1f = params['wb1'].reshape(9 * C, C).astype(bf16)
    wb2f = params['wb2'].reshape(9 * C, C).astype(bf16)

    # Fold conv1x1 (wc1) into the key_embed weight: columns [C:2C) are zero except
    # the k=4 (center tap) row block which holds wc1.
    wkey_flat = params['wkey'].reshape(9 * C, C)
    wc1_pad = jnp.zeros((9 * C, C), f32).at[4 * C:5 * C, :].set(params['wc1'])
    wkv = jnp.concatenate([wkey_flat, wc1_pad], axis=1).astype(bf16)   # (9C, 2C)

    # Fuse embed[0]: LHS is concat([r, kf]) so stack the two weights on rows.
    we1s = jnp.concatenate([params['we1x'], params['we1k']], axis=0).astype(bf16)

    we2 = params['we2'].astype(bf16)
    be2 = params['be2'].astype(f32)
    gng = params['gng'].astype(f32)
    gnb = params['gnb'].astype(f32)
    gm = params['gm'].astype(f32)
    gmt = params['gmt'].astype(f32)
    sel_all = jnp.transpose(params['sel'], (1, 0, 2)).reshape(72, 9 * C).astype(bf16)
    wdu1 = params['wdu1'].astype(f32)
    wdu2 = params['wdu2'].astype(f32)
    weights = [wb1f, wb2f, wkv, we1s, we2, be2, gng, gnb,
               gm, gmt, sel_all, wdu1, wdu2]

    # Generation-aware tiling / VMEM limit.
    try:
        info = pltpu.get_tpu_info()
        vmem_cap = int(getattr(info, "vmem_capacity_bytes", 128 * 1024 * 1024))
    except Exception:
        vmem_cap = 128 * 1024 * 1024
    small_vmem = vmem_cap <= 80 * 1024 * 1024            # v7x-class (64 MiB / TC)
    row_cap = 2048 if small_vmem else 4096
    vmem_limit_bytes = min((48 << 20) if small_vmem else (100 << 20),
                           int(vmem_cap * 0.8))

    if block_batch is None:
        # Largest divisor of B keeping Bt*HW rows <= row_cap; on v7x also keep at
        # least 2 grid steps so both TensorCores get work.
        min_grid = 2 if (small_vmem and B >= 2) else 1
        bt = 1
        for cand in range(1, B + 1):
            if B % cand or cand * HW > row_cap:
                continue
            if B // cand < min_grid:
                continue
            bt = cand
    else:
        bt = block_batch

    def full_spec(arr):
        r = arr.ndim
        return pl.BlockSpec(arr.shape, lambda b, _r=r: (0,) * _r)

    in_specs = [pl.BlockSpec((bt, HW, C), lambda b: (b, 0, 0))] + \
               [full_spec(w) for w in weights]

    kernel = functools.partial(cab_kernel, H, W)

    out = pl.pallas_call(
        kernel,
        out_shape=jax.ShapeDtypeStruct((B, HW, C), jnp.float32),
        grid_spec=pltpu.PrefetchScalarGridSpec(
            num_scalar_prefetch=0,
            grid=(B // bt,),
            in_specs=in_specs,
            out_specs=pl.BlockSpec((bt, HW, C), lambda b: (b, 0, 0)),
        ),
        compiler_params=pltpu.CompilerParams(
            dimension_semantics=("parallel",),
            vmem_limit_bytes=vmem_limit_bytes,
        ),
    )(x, *weights)
    return out.reshape(B, H, W, C).transpose(0, 3, 1, 2)


def make_params(H, W):
    key = jax.random.PRNGKey(0)
    ks = jax.random.split(key, 12)
    s = 0.05

    def nrm(k, shape):
        return s * jax.random.normal(k, shape, jnp.float32)

    # 3x3 conv weights stored as (9, Cin, Cout), k = kh*3 + kw
    wb1 = nrm(ks[0], (9, 64, 64))
    wb2 = nrm(ks[1], (9, 64, 64))

    # key_embed: Conv2d(64,64,3,groups=8) -> block-diagonal dense weight
    ci = np.arange(64)
    mask8 = (ci[:, None] // 8 == ci[None, :] // 8).astype(np.float32)
    wkey = nrm(ks[2], (9, 64, 64)) * jnp.asarray(mask8)[None]

    # embed[0]: Conv2d(128,32,1,groups=2,bias=False); interleave folded via even/odd rows
    m_e1 = (np.arange(128)[:, None] // 64 == np.arange(32)[None, :] // 16).astype(np.float32)
    we1 = nrm(ks[3], (128, 32)) * jnp.asarray(m_e1)
    we1x = we1[0::2, :]
    we1k = we1[1::2, :]

    # embed[2]: Conv2d(32,72,1,groups=2,bias=True)
    m_e2 = (np.arange(32)[:, None] // 16 == np.arange(72)[None, :] // 36).astype(np.float32)
    we2 = nrm(ks[4], (32, 72)) * jnp.asarray(m_e2)
    be2 = nrm(ks[5], (1, 72))

    # GroupNorm(8, 72) affine params
    gng = 1.0 + nrm(ks[6], (1, 72))
    gnb = nrm(ks[7], (1, 72))

    # conv1x1: Conv2d(64,64,1,groups=2,bias=False)
    m_c1 = (np.arange(64)[:, None] // 32 == np.arange(64)[None, :] // 32).astype(np.float32)
    wc1 = nrm(ks[8], (64, 64)) * jnp.asarray(m_c1)

    # conv_du: 64 -> 64//16=4 -> 64, bias=False
    wdu1 = nrm(ks[9], (64, 4))
    wdu2 = nrm(ks[10], (4, 64))

    # GroupNorm group-membership (72 channels -> 8 groups of 9)
    gm = np.zeros((72, 8), np.float32)
    gm[np.arange(72), np.arange(72) // 9] = 1.0

    # LocalConvolution weight selection: output channel c uses attention channel
    # 36*(c//32) + 9*((c%32)%4) + k   (dw_group=2, weight_channels=4)
    sel = np.zeros((9, 72, 64), np.float32)
    for k in range(9):
        for c in range(64):
            j = 36 * (c // 32) + 9 * ((c % 32) % 4) + k
            sel[k, j, c] = 1.0

    return dict(wb1=wb1, wb2=wb2, wkey=wkey,
                we1x=we1x, we1k=we1k, we2=we2, be2=be2,
                gng=gng, gnb=gnb, gm=jnp.asarray(gm), gmt=jnp.asarray(gm.T),
                wc1=wc1, sel=jnp.asarray(sel), wdu1=wdu1, wdu2=wdu2)


def ref_forward(x_nchw, p):
    """Pure-JAX reference mirroring the PyTorch CAB forward semantics."""
    B, C, H, W = x_nchw.shape
    x = jnp.transpose(x_nchw, (0, 2, 3, 1)).astype(jnp.float32)   # NHWC

    def conv3(v, w9, relu=False):
        w = w9.reshape(3, 3, w9.shape[1], w9.shape[2])
        o = jax.lax.conv_general_dilated(v, w, (1, 1), [(1, 1), (1, 1)],
                                         dimension_numbers=('NHWC', 'HWIO', 'NHWC'))
        return jnp.maximum(o, 0.0) if relu else o

    r = conv3(x, p['wb1'])
    r = jnp.maximum(r, 0.0)
    r = conv3(r, p['wb2'])
    kf = conv3(r, p['wkey'], relu=True)

    e1 = jnp.maximum(jnp.einsum('bhwc,cd->bhwd', r, p['we1x'])
                     + jnp.einsum('bhwc,cd->bhwd', kf, p['we1k']), 0.0)
    w72 = jnp.einsum('bhwc,cd->bhwd', e1, p['we2']) + p['be2'].reshape(1, 1, 1, 72)

    w72g = w72.reshape(B, H, W, 8, 9)
    mean = w72g.mean(axis=(1, 2, 4), keepdims=True)
    var = ((w72g - mean) ** 2).mean(axis=(1, 2, 4), keepdims=True)
    w72n = ((w72g - mean) / jnp.sqrt(var + 1e-5)).reshape(B, H, W, 72)
    w72n = w72n * p['gng'].reshape(1, 1, 1, 72) + p['gnb'].reshape(1, 1, 1, 72)

    v = jnp.einsum('bhwc,cd->bhwd', r, p['wc1'])
    v_pad = jnp.pad(v, ((0, 0), (1, 1), (1, 1), (0, 0)))
    lc = jnp.zeros_like(v)
    for kh in range(3):
        for kw in range(3):
            k = kh * 3 + kw
            wk = jnp.einsum('bhwj,jc->bhwc', w72n, p['sel'][k])
            lc = lc + wk * v_pad[:, kh:kh + H, kw:kw + W, :]

    y = lc.mean(axis=(1, 2), keepdims=True)
    y = jnp.maximum(jnp.einsum('bhwc,cd->bhwd', y, p['wdu1']), 0.0)
    y = jax.nn.sigmoid(jnp.einsum('bhwc,cd->bhwd', y, p['wdu2']))
    out = lc * y + x
    return jnp.transpose(out, (0, 3, 1, 2))


if __name__ == "__main__":
    # CALayer hard-codes dim=64, so n_feat must be 64; small spatial size 8x8.
    B, C, H, W = 2, 64, 8, 8
    params = make_params(H, W)
    x = jax.random.normal(jax.random.PRNGKey(0), (B, C, H, W), jnp.float32)

    out = jax.block_until_ready(cab_forward(x, params))
    ref = jax.block_until_ready(ref_forward(x, params))

    assert out.shape == (B, C, H, W)
    np.testing.assert_allclose(np.asarray(out), np.asarray(ref), atol=5e-2, rtol=5e-2)
    print("KERNEL_OK")
</pallas_src>

<mosaic_0001>
module attributes {stable_mosaic.version = 11 : i64} {
  func.func @cab_kernel(%arg0: i32, %arg1: memref<2x64x64xf32, #tpu.memory_space<vmem>>, %arg2: memref<576x64xbf16, #tpu.memory_space<vmem>>, %arg3: memref<576x64xbf16, #tpu.memory_space<vmem>>, %arg4: memref<576x128xbf16, #tpu.memory_space<vmem>>, %arg5: memref<128x32xbf16, #tpu.memory_space<vmem>>, %arg6: memref<32x72xbf16, #tpu.memory_space<vmem>>, %arg7: memref<1x72xf32, #tpu.memory_space<vmem>>, %arg8: memref<1x72xf32, #tpu.memory_space<vmem>>, %arg9: memref<1x72xf32, #tpu.memory_space<vmem>>, %arg10: memref<72x8xf32, #tpu.memory_space<vmem>>, %arg11: memref<8x72xf32, #tpu.memory_space<vmem>>, %arg12: memref<72x576xbf16, #tpu.memory_space<vmem>>, %arg13: memref<64x4xf32, #tpu.memory_space<vmem>>, %arg14: memref<4x64xf32, #tpu.memory_space<vmem>>, %arg15: memref<2x64x64xf32, #tpu.memory_space<vmem>>) attributes {dimension_semantics = [#tpu.dimension_semantics<parallel>], iteration_bounds = array<i64: 1>, scalar_prefetch = 0 : i64, scratch_operands = 0 : i64, tpu.core_type = #tpu.core_type<tc>, window_params = [{transform_indices = @transform_0, window_bounds = array<i64: 2, 64, 64>}, {pipeline_mode = #tpu.pipeline_mode<synchronous>, transform_indices = @transform_1, window_bounds = array<i64: 576, 64>}, {pipeline_mode = #tpu.pipeline_mode<synchronous>, transform_indices = @transform_2, window_bounds = array<i64: 576, 64>}, {pipeline_mode = #tpu.pipeline_mode<synchronous>, transform_indices = @transform_3, window_bounds = array<i64: 576, 128>}, {pipeline_mode = #tpu.pipeline_mode<synchronous>, transform_indices = @transform_4, window_bounds = array<i64: 128, 32>}, {pipeline_mode = #tpu.pipeline_mode<synchronous>, transform_indices = @transform_5, window_bounds = array<i64: 32, 72>}, {pipeline_mode = #tpu.pipeline_mode<synchronous>, transform_indices = @transform_6, window_bounds = array<i64: 1, 72>}, {pipeline_mode = #tpu.pipeline_mode<synchronous>, transform_indices = @transform_7, window_bounds = array<i64: 1, 72>}, {pipeline_mode = #tpu.pipeline_mode<synchronous>, transform_indices = @transform_8, window_bounds = array<i64: 1, 72>}, {pipeline_mode = #tpu.pipeline_mode<synchronous>, transform_indices = @transform_9, window_bounds = array<i64: 72, 8>}, {pipeline_mode = #tpu.pipeline_mode<synchronous>, transform_indices = @transform_10, window_bounds = array<i64: 8, 72>}, {pipeline_mode = #tpu.pipeline_mode<synchronous>, transform_indices = @transform_11, window_bounds = array<i64: 72, 576>}, {pipeline_mode = #tpu.pipeline_mode<synchronous>, transform_indices = @transform_12, window_bounds = array<i64: 64, 4>}, {pipeline_mode = #tpu.pipeline_mode<synchronous>, transform_indices = @transform_13, window_bounds = array<i64: 4, 64>}, {transform_indices = @transform_14, window_bounds = array<i64: 2, 64, 64>}]} {
    %c0 = arith.constant 0 : index
    %c0_0 = arith.constant 0 : index
    %c0_1 = arith.constant 0 : index
    %0 = vector.load %arg1[%c0, %c0_0, %c0_1] : memref<2x64x64xf32, #tpu.memory_space<vmem>>, vector<2x64x64xf32>
    %1 = tpu.iota {dimensions = array<i32: 0>} : vector<64x1xi32>
    %c8_i32 = arith.constant 8 : i32
    %c0_i32 = arith.constant 0 : i32
    %2 = arith.cmpi eq, %c8_i32, %c0_i32 : i32
    %c1_i32 = arith.constant 1 : i32
    %3 = arith.select %2, %c1_i32, %c8_i32 : i32
    %4 = vector.broadcast %3 : i32 to vector<64x1xi32>
    %5 = arith.remsi %1, %4 : vector<64x1xi32>
    %c0_i32_2 = arith.constant 0 : i32
    %6 = vector.broadcast %c0_i32_2 : i32 to vector<64x1xi32>
    %7 = arith.cmpi ne, %5, %6 : vector<64x1xi32>
    %c0_i32_3 = arith.constant 0 : i32
    %8 = vector.broadcast %c0_i32_3 : i32 to vector<64x1xi32>
    %9 = arith.cmpi slt, %5, %8 : vector<64x1xi32>
    %c0_i32_4 = arith.constant 0 : i32
    %10 = arith.cmpi slt, %3, %c0_i32_4 : i32
    %11 = vector.broadcast %10 : i1 to vector<64x1xi1>
    %12 = vector.broadcast %11 : vector<64x1xi1> to vector<64x1xi1>
    %13 = arith.xori %9, %12 : vector<64x1xi1>
    %14 = arith.andi %13, %7 : vector<64x1xi1>
    %15 = vector.broadcast %3 : i32 to vector<64x1xi32>
    %16 = arith.addi %5, %15 : vector<64x1xi32>
    %17 = arith.select %14, %16, %5 : vector<64x1xi1>, vector<64x1xi32>
    %c0_i32_5 = arith.constant 0 : i32
    %18 = vector.broadcast %c0_i32_5 : i32 to vector<64x1xi32>
    %19 = arith.cmpi ne, %17, %18 : vector<64x1xi32>
    %20 = vector.shape_cast %19 : vector<64x1xi1> to vector<64x1xi1>
    %21 = vector.broadcast %20 : vector<64x1xi1> to vector<64x64xi1>
    %c7_i32 = arith.constant 7 : i32
    %22 = vector.broadcast %c7_i32 : i32 to vector<64x1xi32>
    %23 = arith.cmpi ne, %17, %22 : vector<64x1xi32>
    %24 = vector.shape_cast %23 : vector<64x1xi1> to vector<64x1xi1>
    %25 = vector.broadcast %24 : vector<64x1xi1> to vector<64x64xi1>
    %26 = arith.truncf %0 : vector<2x64x64xf32> to vector<2x64x64xbf16>
    %cst = arith.constant 0.000000e+00 : bf16
    %27 = vector.broadcast %cst : bf16 to vector<2x8x64xbf16>
    %28 = vector.extract_strided_slice %26 {offsets = [0, 0, 0], sizes = [2, 56, 64], strides = [1, 1, 1]} : vector<2x64x64xbf16> to vector<2x56x64xbf16>
    %29 = tpu.concatenate %27, %28 in 1 : vector<2x8x64xbf16>, vector<2x56x64xbf16> -> vector<2x64x64xbf16>
    %cst_6 = arith.constant 0.000000e+00 : bf16
    %30 = vector.broadcast %cst_6 : bf16 to vector<2x1x64xbf16>
    %31 = vector.extract_strided_slice %29 {offsets = [0, 0, 0], sizes = [2, 63, 64], strides = [1, 1, 1]} : vector<2x64x64xbf16> to vector<2x63x64xbf16>
    %32 = tpu.concatenate %30, %31 in 1 : vector<2x1x64xbf16>, vector<2x63x64xbf16> -> vector<2x64x64xbf16>
    %cst_7 = arith.constant 0.000000e+00 : bf16
    %33 = vector.broadcast %cst_7 : bf16 to vector<2x64x64xbf16>
    %34 = vector.shape_cast %21 : vector<64x64xi1> to vector<1x64x64xi1>
    %35 = vector.broadcast %34 : vector<1x64x64xi1> to vector<2x64x64xi1>
    %36 = arith.select %35, %32, %33 : vector<2x64x64xi1>, vector<2x64x64xbf16>
    %cst_8 = arith.constant 0.000000e+00 : bf16
    %37 = vector.broadcast %cst_8 : bf16 to vector<2x1x64xbf16>
    %38 = vector.extract_strided_slice %29 {offsets = [0, 1, 0], sizes = [2, 63, 64], strides = [1, 1, 1]} : vector<2x64x64xbf16> to vector<2x63x64xbf16>
    %39 = tpu.concatenate %38, %37 in 1 : vector<2x63x64xbf16>, vector<2x1x64xbf16> -> vector<2x64x64xbf16>
    %cst_9 = arith.constant 0.000000e+00 : bf16
    %40 = vector.broadcast %cst_9 : bf16 to vector<2x64x64xbf16>
    %41 = vector.shape_cast %25 : vector<64x64xi1> to vector<1x64x64xi1>
    %42 = vector.broadcast %41 : vector<1x64x64xi1> to vector<2x64x64xi1>
    %43 = arith.select %42, %39, %40 : vector<2x64x64xi1>, vector<2x64x64xbf16>
    %cst_10 = arith.constant 0.000000e+00 : bf16
    %44 = vector.broadcast %cst_10 : bf16 to vector<2x1x64xbf16>
    %45 = vector.extract_strided_slice %26 {offsets = [0, 0, 0], sizes = [2, 63, 64], strides = [1, 1, 1]} : vector<2x64x64xbf16> to vector<2x63x64xbf16>
    %46 = tpu.concatenate %44, %45 in 1 : vector<2x1x64xbf16>, vector<2x63x64xbf16> -> vector<2x64x64xbf16>
    %cst_11 = arith.constant 0.000000e+00 : bf16
    %47 = vector.broadcast %cst_11 : bf16 to vector<2x64x64xbf16>
    %48 = vector.shape_cast %21 : vector<64x64xi1> to vector<1x64x64xi1>
    %49 = vector.broadcast %48 : vector<1x64x64xi1> to vector<2x64x64xi1>
    %50 = arith.select %49, %46, %47 : vector<2x64x64xi1>, vector<2x64x64xbf16>
    %cst_12 = arith.constant 0.000000e+00 : bf16
    %51 = vector.broadcast %cst_12 : bf16 to vector<2x1x64xbf16>
    %52 = vector.extract_strided_slice %26 {offsets = [0, 1, 0], sizes = [2, 63, 64], strides = [1, 1, 1]} : vector<2x64x64xbf16> to vector<2x63x64xbf16>
    %53 = tpu.concatenate %52, %51 in 1 : vector<2x63x64xbf16>, vector<2x1x64xbf16> -> vector<2x64x64xbf16>
    %cst_13 = arith.constant 0.000000e+00 : bf16
    %54 = vector.broadcast %cst_13 : bf16 to vector<2x64x64xbf16>
    %55 = vector.shape_cast %25 : vector<64x64xi1> to vector<1x64x64xi1>
    %56 = vector.broadcast %55 : vector<1x64x64xi1> to vector<2x64x64xi1>
    %57 = arith.select %56, %53, %54 : vector<2x64x64xi1>, vector<2x64x64xbf16>
    %cst_14 = arith.constant 0.000000e+00 : bf16
    %58 = vector.broadcast %cst_14 : bf16 to vector<2x8x64xbf16>
    %59 = vector.extract_strided_slice %26 {offsets = [0, 8, 0], sizes = [2, 56, 64], strides = [1, 1, 1]} : vector<2x64x64xbf16> to vector<2x56x64xbf16>
    %60 = tpu.concatenate %59, %58 in 1 : vector<2x56x64xbf16>, vector<2x8x64xbf16> -> vector<2x64x64xbf16>
    %cst_15 = arith.constant 0.000000e+00 : bf16
    %61 = vector.broadcast %cst_15 : bf16 to vector<2x1x64xbf16>
    %62 = vector.extract_strided_slice %60 {offsets = [0, 0, 0], sizes = [2, 63, 64], strides = [1, 1, 1]} : vector<2x64x64xbf16> to vector<2x63x64xbf16>
    %63 = tpu.concatenate %61, %62 in 1 : vector<2x1x64xbf16>, vector<2x63x64xbf16> -> vector<2x64x64xbf16>
    %cst_16 = arith.constant 0.000000e+00 : bf16
    %64 = vector.broadcast %cst_16 : bf16 to vector<2x64x64xbf16>
    %65 = vector.shape_cast %21 : vector<64x64xi1> to vector<1x64x64xi1>
    %66 = vector.broadcast %65 : vector<1x64x64xi1> to vector<2x64x64xi1>
    %67 = arith.select %66, %63, %64 : vector<2x64x64xi1>, vector<2x64x64xbf16>
    %cst_17 = arith.constant 0.000000e+00 : bf16
    %68 = vector.broadcast %cst_17 : bf16 to vector<2x1x64xbf16>
    %69 = vector.extract_strided_slice %60 {offsets = [0, 1, 0], sizes = [2, 63, 64], strides = [1, 1, 1]} : vector<2x64x64xbf16> to vector<2x63x64xbf16>
    %70 = tpu.concatenate %69, %68 in 1 : vector<2x63x64xbf16>, vector<2x1x64xbf16> -> vector<2x64x64xbf16>
    %cst_18 = arith.constant 0.000000e+00 : bf16
    %71 = vector.broadcast %cst_18 : bf16 to vector<2x64x64xbf16>
    %72 = vector.shape_cast %25 : vector<64x64xi1> to vector<1x64x64xi1>
    %73 = vector.broadcast %72 : vector<1x64x64xi1> to vector<2x64x64xi1>
    %74 = arith.select %73, %70, %71 : vector<2x64x64xi1>, vector<2x64x64xbf16>
    %75 = tpu.concatenate %36, %29, %43, %50, %26, %57, %67, %60, %74 in 2 : vector<2x64x64xbf16>, vector<2x64x64xbf16>, vector<2x64x64xbf16>, vector<2x64x64xbf16>, vector<2x64x64xbf16>, vector<2x64x64xbf16>, vector<2x64x64xbf16>, vector<2x64x64xbf16>, vector<2x64x64xbf16> -> vector<2x64x576xbf16>
    %76 = vector.shape_cast %75 : vector<2x64x576xbf16> to vector<128x576xbf16>
    %c0_19 = arith.constant 0 : index
    %c0_20 = arith.constant 0 : index
    %77 = vector.load %arg2[%c0_19, %c0_20] : memref<576x64xbf16, #tpu.memory_space<vmem>>, vector<576x64xbf16>
    %cst_21 = arith.constant dense<0.000000e+00> : vector<128x64xf32>
    %78 = tpu.matmul %76, %77, %cst_21 {dimension_numbers = #tpu.dot_dimension_numbers<[1], [0], [0], [1], [0, 0, 1, 1], [], []>} : vector<128x576xbf16>, vector<576x64xbf16>, vector<128x64xf32> -> vector<128x64xf32>
    %cst_22 = arith.constant 0.000000e+00 : f32
    %79 = vector.broadcast %cst_22 : f32 to vector<128x64xf32>
    %80 = arith.maximumf %78, %79 : vector<128x64xf32>
    %81 = vector.shape_cast %80 : vector<128x64xf32> to vector<2x64x64xf32>
    %82 = arith.truncf %81 : vector<2x64x64xf32> to vector<2x64x64xbf16>
    %cst_23 = arith.constant 0.000000e+00 : bf16
    %83 = vector.broadcast %cst_23 : bf16 to vector<2x8x64xbf16>
    %84 = vector.extract_strided_slice %82 {offsets = [0, 0, 0], sizes = [2, 56, 64], strides = [1, 1, 1]} : vector<2x64x64xbf16> to vector<2x56x64xbf16>
    %85 = tpu.concatenate %83, %84 in 1 : vector<2x8x64xbf16>, vector<2x56x64xbf16> -> vector<2x64x64xbf16>
    %cst_24 = arith.constant 0.000000e+00 : bf16
    %86 = vector.broadcast %cst_24 : bf16 to vector<2x1x64xbf16>
    %87 = vector.extract_strided_slice %85 {offsets = [0, 0, 0], sizes = [2, 63, 64], strides = [1, 1, 1]} : vector<2x64x64xbf16> to vector<2x63x64xbf16>
    %88 = tpu.concatenate %86, %87 in 1 : vector<2x1x64xbf16>, vector<2x63x64xbf16> -> vector<2x64x64xbf16>
    %cst_25 = arith.constant 0.000000e+00 : bf16
    %89 = vector.broadcast %cst_25 : bf16 to vector<2x64x64xbf16>
    %90 = vector.shape_cast %21 : vector<64x64xi1> to vector<1x64x64xi1>
    %91 = vector.broadcast %90 : vector<1x64x64xi1> to vector<2x64x64xi1>
    %92 = arith.select %91, %88, %89 : vector<2x64x64xi1>, vector<2x64x64xbf16>
    %cst_26 = arith.constant 0.000000e+00 : bf16
    %93 = vector.broadcast %cst_26 : bf16 to vector<2x1x64xbf16>
    %94 = vector.extract_strided_slice %85 {offsets = [0, 1, 0], sizes = [2, 63, 64], strides = [1, 1, 1]} : vector<2x64x64xbf16> to vector<2x63x64xbf16>
    %95 = tpu.concatenate %94, %93 in 1 : vector<2x63x64xbf16>, vector<2x1x64xbf16> -> vector<2x64x64xbf16>
    %cst_27 = arith.constant 0.000000e+00 : bf16
    %96 = vector.broadcast %cst_27 : bf16 to vector<2x64x64xbf16>
    %97 = vector.shape_cast %25 : vector<64x64xi1> to vector<1x64x64xi1>
    %98 = vector.broadcast %97 : vector<1x64x64xi1> to vector<2x64x64xi1>
    %99 = arith.select %98, %95, %96 : vector<2x64x64xi1>, vector<2x64x64xbf16>
    %cst_28 = arith.constant 0.000000e+00 : bf16
    %100 = vector.broadcast %cst_28 : bf16 to vector<2x1x64xbf16>
    %101 = vector.extract_strided_slice %82 {offsets = [0, 0, 0], sizes = [2, 63, 64], strides = [1, 1, 1]} : vector<2x64x64xbf16> to vector<2x63x64xbf16>
    %102 = tpu.concatenate %100, %101 in 1 : vector<2x1x64xbf16>, vector<2x63x64xbf16> -> vector<2x64x64xbf16>
    %cst_29 = arith.constant 0.000000e+00 : bf16
    %103 = vector.broadcast %cst_29 : bf16 to vector<2x64x64xbf16>
    %104 = vector.shape_cast %21 : vector<64x64xi1> to vector<1x64x64xi1>
    %105 = vector.broadcast %104 : vector<1x64x64xi1> to vector<2x64x64xi1>
    %106 = arith.select %105, %102, %103 : vector<2x64x64xi1>, vector<2x64x64xbf16>
    %cst_30 = arith.constant 0.000000e+00 : bf16
    %107 = vector.broadcast %cst_30 : bf16 to vector<2x1x64xbf16>
    %108 = vector.extract_strided_slice %82 {offsets = [0, 1, 0], sizes = [2, 63, 64], strides = [1, 1, 1]} : vector<2x64x64xbf16> to vector<2x63x64xbf16>
    %109 = tpu.concatenate %108, %107 in 1 : vector<2x63x64xbf16>, vector<2x1x64xbf16> -> vector<2x64x64xbf16>
    %cst_31 = arith.constant 0.000000e+00 : bf16
    %110 = vector.broadcast %cst_31 : bf16 to vector<2x64x64xbf16>
    %111 = vector.shape_cast %25 : vector<64x64xi1> to vector<1x64x64xi1>
    %112 = vector.broadcast %111 : vector<1x64x64xi1> to vector<2x64x64xi1>
    %113 = arith.select %112, %109, %110 : vector<2x64x64xi1>, vector<2x64x64xbf16>
    %cst_32 = arith.constant 0.000000e+00 : bf16
    %114 = vector.broadcast %cst_32 : bf16 to vector<2x8x64xbf16>
    %115 = vector.extract_strided_slice %82 {offsets = [0, 8, 0], sizes = [2, 56, 64], strides = [1, 1, 1]} : vector<2x64x64xbf16> to vector<2x56x64xbf16>
    %116 = tpu.concatenate %115, %114 in 1 : vector<2x56x64xbf16>, vector<2x8x64xbf16> -> vector<2x64x64xbf16>
    %cst_33 = arith.constant 0.000000e+00 : bf16
    %117 = vector.broadcast %cst_33 : bf16 to vector<2x1x64xbf16>
    %118 = vector.extract_strided_slice %116 {offsets = [0, 0, 0], sizes = [2, 63, 64], strides = [1, 1, 1]} : vector<2x64x64xbf16> to vector<2x63x64xbf16>
    %119 = tpu.concatenate %117, %118 in 1 : vector<2x1x64xbf16>, vector<2x63x64xbf16> -> vector<2x64x64xbf16>
    %cst_34 = arith.constant 0.000000e+00 : bf16
    %120 = vector.broadcast %cst_34 : bf16 to vector<2x64x64xbf16>
    %121 = vector.shape_cast %21 : vector<64x64xi1> to vector<1x64x64xi1>
    %122 = vector.broadcast %121 : vector<1x64x64xi1> to vector<2x64x64xi1>
    %123 = arith.select %122, %119, %120 : vector<2x64x64xi1>, vector<2x64x64xbf16>
    %cst_35 = arith.constant 0.000000e+00 : bf16
    %124 = vector.broadcast %cst_35 : bf16 to vector<2x1x64xbf16>
    %125 = vector.extract_strided_slice %116 {offsets = [0, 1, 0], sizes = [2, 63, 64], strides = [1, 1, 1]} : vector<2x64x64xbf16> to vector<2x63x64xbf16>
    %126 = tpu.concatenate %125, %124 in 1 : vector<2x63x64xbf16>, vector<2x1x64xbf16> -> vector<2x64x64xbf16>
    %cst_36 = arith.constant 0.000000e+00 : bf16
    %127 = vector.broadcast %cst_36 : bf16 to vector<2x64x64xbf16>
    %128 = vector.shape_cast %25 : vector<64x64xi1> to vector<1x64x64xi1>
    %129 = vector.broadcast %128 : vector<1x64x64xi1> to vector<2x64x64xi1>
    %130 = arith.select %129, %126, %127 : vector<2x64x64xi1>, vector<2x64x64xbf16>
    %131 = tpu.concatenate %92, %85, %99, %106, %82, %113, %123, %116, %130 in 2 : vector<2x64x64xbf16>, vector<2x64x64xbf16>, vector<2x64x64xbf16>, vector<2x64x64xbf16>, vector<2x64x64xbf16>, vector<2x64x64xbf16>, vector<2x64x64xbf16>, vector<2x64x64xbf16>, vector<2x64x64xbf16> -> vector<2x64x576xbf16>
    %132 = vector.shape_cast %131 : vector<2x64x576xbf16> to vector<128x576xbf16>
    %c0_37 = arith.constant 0 : index
    %c0_38 = arith.constant 0 : index
    %133 = vector.load %arg3[%c0_37, %c0_38] : memref<576x64xbf16, #tpu.memory_space<vmem>>, vector<576x64xbf16>
    %cst_39 = arith.constant dense<0.000000e+00> : vector<128x64xf32>
    %134 = tpu.matmul %132, %133, %cst_39 {dimension_numbers = #tpu.dot_dimension_numbers<[1], [0], [0], [1], [0, 0, 1, 1], [], []>} : vector<128x576xbf16>, vector<576x64xbf16>, vector<128x64xf32> -> vector<128x64xf32>
    %135 = vector.shape_cast %134 : vector<128x64xf32> to vector<2x64x64xf32>
    %136 = arith.truncf %134 : vector<128x64xf32> to vector<128x64xbf16>
    %137 = arith.truncf %135 : vector<2x64x64xf32> to vector<2x64x64xbf16>
    %cst_40 = arith.constant 0.000000e+00 : bf16
    %138 = vector.broadcast %cst_40 : bf16 to vector<2x8x64xbf16>
    %139 = vector.extract_strided_slice %137 {offsets = [0, 0, 0], sizes = [2, 56, 64], strides = [1, 1, 1]} : vector<2x64x64xbf16> to vector<2x56x64xbf16>
    %140 = tpu.concatenate %138, %139 in 1 : vector<2x8x64xbf16>, vector<2x56x64xbf16> -> vector<2x64x64xbf16>
    %cst_41 = arith.constant 0.000000e+00 : bf16
    %141 = vector.broadcast %cst_41 : bf16 to vector<2x1x64xbf16>
    %142 = vector.extract_strided_slice %140 {offsets = [0, 0, 0], sizes = [2, 63, 64], strides = [1, 1, 1]} : vector<2x64x64xbf16> to vector<2x63x64xbf16>
    %143 = tpu.concatenate %141, %142 in 1 : vector<2x1x64xbf16>, vector<2x63x64xbf16> -> vector<2x64x64xbf16>
    %cst_42 = arith.constant 0.000000e+00 : bf16
    %144 = vector.broadcast %cst_42 : bf16 to vector<2x64x64xbf16>
    %145 = vector.shape_cast %21 : vector<64x64xi1> to vector<1x64x64xi1>
    %146 = vector.broadcast %145 : vector<1x64x64xi1> to vector<2x64x64xi1>
    %147 = arith.select %146, %143, %144 : vector<2x64x64xi1>, vector<2x64x64xbf16>
    %cst_43 = arith.constant 0.000000e+00 : bf16
    %148 = vector.broadcast %cst_43 : bf16 to vector<2x1x64xbf16>
    %149 = vector.extract_strided_slice %140 {offsets = [0, 1, 0], sizes = [2, 63, 64], strides = [1, 1, 1]} : vector<2x64x64xbf16> to vector<2x63x64xbf16>
    %150 = tpu.concatenate %149, %148 in 1 : vector<2x63x64xbf16>, vector<2x1x64xbf16> -> vector<2x64x64xbf16>
    %cst_44 = arith.constant 0.000000e+00 : bf16
    %151 = vector.broadcast %cst_44 : bf16 to vector<2x64x64xbf16>
    %152 = vector.shape_cast %25 : vector<64x64xi1> to vector<1x64x64xi1>
    %153 = vector.broadcast %152 : vector<1x64x64xi1> to vector<2x64x64xi1>
    %154 = arith.select %153, %150, %151 : vector<2x64x64xi1>, vector<2x64x64xbf16>
    %cst_45 = arith.constant 0.000000e+00 : bf16
    %155 = vector.broadcast %cst_45 : bf16 to vector<2x1x64xbf16>
    %156 = vector.extract_strided_slice %137 {offsets = [0, 0, 0], sizes = [2, 63, 64], strides = [1, 1, 1]} : vector<2x64x64xbf16> to vector<2x63x64xbf16>
    %157 = tpu.concatenate %155, %156 in 1 : vector<2x1x64xbf16>, vector<2x63x64xbf16> -> vector<2x64x64xbf16>
    %cst_46 = arith.constant 0.000000e+00 : bf16
    %158 = vector.broadcast %cst_46 : bf16 to vector<2x64x64xbf16>
    %159 = vector.shape_cast %21 : vector<64x64xi1> to vector<1x64x64xi1>
    %160 = vector.broadcast %159 : vector<1x64x64xi1> to vector<2x64x64xi1>
    %161 = arith.select %160, %157, %158 : vector<2x64x64xi1>, vector<2x64x64xbf16>
    %cst_47 = arith.constant 0.000000e+00 : bf16
    %162 = vector.broadcast %cst_47 : bf16 to vector<2x1x64xbf16>
    %163 = vector.extract_strided_slice %137 {offsets = [0, 1, 0], sizes = [2, 63, 64], strides = [1, 1, 1]} : vector<2x64x64xbf16> to vector<2x63x64xbf16>
    %164 = tpu.concatenate %163, %162 in 1 : vector<2x63x64xbf16>, vector<2x1x64xbf16> -> vector<2x64x64xbf16>
    %cst_48 = arith.constant 0.000000e+00 : bf16
    %165 = vector.broadcast %cst_48 : bf16 to vector<2x64x64xbf16>
    %166 = vector.shape_cast %25 : vector<64x64xi1> to vector<1x64x64xi1>
    %167 = vector.broadcast %166 : vector<1x64x64xi1> to vector<2x64x64xi1>
    %168 = arith.select %167, %164, %165 : vector<2x64x64xi1>, vector<2x64x64xbf16>
    %cst_49 = arith.constant 0.000000e+00 : bf16
    %169 = vector.broadcast %cst_49 : bf16 to vector<2x8x64xbf16>
    %170 = vector.extract_strided_slice %137 {offsets = [0, 8, 0], sizes = [2, 56, 64], strides = [1, 1, 1]} : vector<2x64x64xbf16> to vector<2x56x64xbf16>
    %171 = tpu.concatenate %170, %169 in 1 : vector<2x56x64xbf16>, vector<2x8x64xbf16> -> vector<2x64x64xbf16>
    %cst_50 = arith.constant 0.000000e+00 : bf16
    %172 = vector.broadcast %cst_50 : bf16 to vector<2x1x64xbf16>
    %173 = vector.extract_strided_slice %171 {offsets = [0, 0, 0], sizes = [2, 63, 64], strides = [1, 1, 1]} : vector<2x64x64xbf16> to vector<2x63x64xbf16>
    %174 = tpu.concatenate %172, %173 in 1 : vector<2x1x64xbf16>, vector<2x63x64xbf16> -> vector<2x64x64xbf16>
    %cst_51 = arith.constant 0.000000e+00 : bf16
    %175 = vector.broadcast %cst_51 : bf16 to vector<2x64x64xbf16>
    %176 = vector.shape_cast %21 : vector<64x64xi1> to vector<1x64x64xi1>
    %177 = vector.broadcast %176 : vector<1x64x64xi1> to vector<2x64x64xi1>
    %178 = arith.select %177, %174, %175 : vector<2x64x64xi1>, vector<2x64x64xbf16>
    %cst_52 = arith.constant 0.000000e+00 : bf16
    %179 = vector.broadcast %cst_52 : bf16 to vector<2x1x64xbf16>
    %180 = vector.extract_strided_slice %171 {offsets = [0, 1, 0], sizes = [2, 63, 64], strides = [1, 1, 1]} : vector<2x64x64xbf16> to vector<2x63x64xbf16>
    %181 = tpu.concatenate %180, %179 in 1 : vector<2x63x64xbf16>, vector<2x1x64xbf16> -> vector<2x64x64xbf16>
    %cst_53 = arith.constant 0.000000e+00 : bf16
    %182 = vector.broadcast %cst_53 : bf16 to vector<2x64x64xbf16>
    %183 = vector.shape_cast %25 : vector<64x64xi1> to vector<1x64x64xi1>
    %184 = vector.broadcast %183 : vector<1x64x64xi1> to vector<2x64x64xi1>
    %185 = arith.select %184, %181, %182 : vector<2x64x64xi1>, vector<2x64x64xbf16>
    %186 = tpu.concatenate %147, %140, %154, %161, %137, %168, %178, %171, %185 in 2 : vector<2x64x64xbf16>, vector<2x64x64xbf16>, vector<2x64x64xbf16>, vector<2x64x64xbf16>, vector<2x64x64xbf16>, vector<2x64x64xbf16>, vector<2x64x64xbf16>, vector<2x64x64xbf16>, vector<2x64x64xbf16> -> vector<2x64x576xbf16>
    %187 = vector.shape_cast %186 : vector<2x64x576xbf16> to vector<128x576xbf16>
    %c0_54 = arith.constant 0 : index
    %c0_55 = arith.constant 0 : index
    %188 = vector.load %arg4[%c0_54, %c0_55] : memref<576x128xbf16, #tpu.memory_space<vmem>>, vector<576x128xbf16>
    %cst_56 = arith.constant dense<0.000000e+00> : vector<128x128xf32>
    %189 = tpu.matmul %187, %188, %cst_56 {dimension_numbers = #tpu.dot_dimension_numbers<[1], [0], [0], [1], [0, 0, 1, 1], [], []>} : vector<128x576xbf16>, vector<576x128xbf16>, vector<128x128xf32> -> vector<128x128xf32>
    %190 = vector.extract_strided_slice %189 {offsets = [0, 0], sizes = [128, 64], strides = [1, 1]} : vector<128x128xf32> to vector<128x64xf32>
    %cst_57 = arith.constant 0.000000e+00 : f32
    %191 = vector.broadcast %cst_57 : f32 to vector<128x64xf32>
    %192 = arith.maximumf %190, %191 : vector<128x64xf32>
    %193 = vector.extract_strided_slice %189 {offsets = [0, 64], sizes = [128, 64], strides = [1, 1]} : vector<128x128xf32> to vector<128x64xf32>
    %194 = vector.shape_cast %193 : vector<128x64xf32> to vector<2x64x64xf32>
    %195 = arith.truncf %192 : vector<128x64xf32> to vector<128x64xbf16>
    %196 = tpu.concatenate %136, %195 in 1 : vector<128x64xbf16>, vector<128x64xbf16> -> vector<128x128xbf16>
    %c0_58 = arith.constant 0 : index
    %c0_59 = arith.constant 0 : index
    %197 = vector.load %arg5[%c0_58, %c0_59] : memref<128x32xbf16, #tpu.memory_space<vmem>>, vector<128x32xbf16>
    %cst_60 = arith.constant dense<0.000000e+00> : vector<128x32xf32>
    %198 = tpu.matmul %196, %197, %cst_60 {dimension_numbers = #tpu.dot_dimension_numbers<[1], [0], [0], [1], [0, 0, 1, 1], [], []>} : vector<128x128xbf16>, vector<128x32xbf16>, vector<128x32xf32> -> vector<128x32xf32>
    %cst_61 = arith.constant 0.000000e+00 : f32
    %199 = vector.broadcast %cst_61 : f32 to vector<128x32xf32>
    %200 = arith.maximumf %198, %199 : vector<128x32xf32>
    %201 = arith.truncf %200 : vector<128x32xf32> to vector<128x32xbf16>
    %c0_62 = arith.constant 0 : index
    %c0_63 = arith.constant 0 : index
    %202 = vector.load %arg6[%c0_62, %c0_63] : memref<32x72xbf16, #tpu.memory_space<vmem>>, vector<32x72xbf16>
    %cst_64 = arith.constant dense<0.000000e+00> : vector<128x72xf32>
    %203 = tpu.matmul %201, %202, %cst_64 {dimension_numbers = #tpu.dot_dimension_numbers<[1], [0], [0], [1], [0, 0, 1, 1], [], []>} : vector<128x32xbf16>, vector<32x72xbf16>, vector<128x72xf32> -> vector<128x72xf32>
    %c0_65 = arith.constant 0 : index
    %c0_66 = arith.constant 0 : index
    %204 = vector.load %arg7[%c0_65, %c0_66] : memref<1x72xf32, #tpu.memory_space<vmem>>, vector<1x72xf32>
    %205 = vector.broadcast %204 : vector<1x72xf32> to vector<128x72xf32>
    %206 = arith.addf %203, %205 : vector<128x72xf32>
    %207 = vector.shape_cast %206 : vector<128x72xf32> to vector<2x64x72xf32>
    %cst_67 = arith.constant dense<0.000000e+00> : vector<2x72xf32>
    %208 = vector.multi_reduction <add>, %207, %cst_67 [1] : vector<2x64x72xf32> to vector<2x72xf32>
    %c0_68 = arith.constant 0 : index
    %c0_69 = arith.constant 0 : index
    %209 = vector.load %arg10[%c0_68, %c0_69] : memref<72x8xf32, #tpu.memory_space<vmem>>, vector<72x8xf32>
    %cst_70 = arith.constant dense<0.000000e+00> : vector<2x8xf32>
    %210 = tpu.matmul %208, %209, %cst_70 {dimension_numbers = #tpu.dot_dimension_numbers<[1], [0], [0], [1], [0, 0, 1, 1], [], []>} : vector<2x72xf32>, vector<72x8xf32>, vector<2x8xf32> -> vector<2x8xf32>
    %cst_71 = arith.constant 0.00173611112 : f32
    %211 = vector.broadcast %cst_71 : f32 to vector<2x8xf32>
    %212 = arith.mulf %210, %211 : vector<2x8xf32>
    %c0_72 = arith.constant 0 : index
    %c0_73 = arith.constant 0 : index
    %213 = vector.load %arg11[%c0_72, %c0_73] : memref<8x72xf32, #tpu.memory_space<vmem>>, vector<8x72xf32>
    %cst_74 = arith.constant dense<0.000000e+00> : vector<2x72xf32>
    %214 = tpu.matmul %212, %213, %cst_74 {dimension_numbers = #tpu.dot_dimension_numbers<[1], [0], [0], [1], [0, 0, 1, 1], [], []>} : vector<2x8xf32>, vector<8x72xf32>, vector<2x72xf32> -> vector<2x72xf32>
    %215 = vector.shape_cast %214 : vector<2x72xf32> to vector<2x1x72xf32>
    %216 = vector.broadcast %215 : vector<2x1x72xf32> to vector<2x64x72xf32>
    %217 = arith.subf %207, %216 : vector<2x64x72xf32>
    %218 = arith.mulf %217, %217 : vector<2x64x72xf32>
    %cst_75 = arith.constant dense<0.000000e+00> : vector<2x72xf32>
    %219 = vector.multi_reduction <add>, %218, %cst_75 [1] : vector<2x64x72xf32> to vector<2x72xf32>
    %c0_76 = arith.constant 0 : index
    %c0_77 = arith.constant 0 : index
    %220 = vector.load %arg10[%c0_76, %c0_77] : memref<72x8xf32, #tpu.memory_space<vmem>>, vector<72x8xf32>
    %cst_78 = arith.constant dense<0.000000e+00> : vector<2x8xf32>
    %221 = tpu.matmul %219, %220, %cst_78 {dimension_numbers = #tpu.dot_dimension_numbers<[1], [0], [0], [1], [0, 0, 1, 1], [], []>} : vector<2x72xf32>, vector<72x8xf32>, vector<2x8xf32> -> vector<2x8xf32>
    %cst_79 = arith.constant 0.00173611112 : f32
    %222 = vector.broadcast %cst_79 : f32 to vector<2x8xf32>
    %223 = arith.mulf %221, %222 : vector<2x8xf32>
    %cst_80 = arith.constant 9.99999974E-6 : f32
    %224 = vector.broadcast %cst_80 : f32 to vector<2x8xf32>
    %225 = arith.addf %223, %224 : vector<2x8xf32>
    %226 = math.rsqrt %225 : vector<2x8xf32>
    %c0_81 = arith.constant 0 : index
    %c0_82 = arith.constant 0 : index
    %227 = vector.load %arg11[%c0_81, %c0_82] : memref<8x72xf32, #tpu.memory_space<vmem>>, vector<8x72xf32>
    %cst_83 = arith.constant dense<0.000000e+00> : vector<2x72xf32>
    %228 = tpu.matmul %226, %227, %cst_83 {dimension_numbers = #tpu.dot_dimension_numbers<[1], [0], [0], [1], [0, 0, 1, 1], [], []>} : vector<2x8xf32>, vector<8x72xf32>, vector<2x72xf32> -> vector<2x72xf32>
    %229 = vector.shape_cast %228 : vector<2x72xf32> to vector<2x1x72xf32>
    %230 = vector.broadcast %229 : vector<2x1x72xf32> to vector<2x64x72xf32>
    %231 = arith.mulf %217, %230 : vector<2x64x72xf32>
    %c0_84 = arith.constant 0 : index
    %c0_85 = arith.constant 0 : index
    %232 = vector.load %arg8[%c0_84, %c0_85] : memref<1x72xf32, #tpu.memory_space<vmem>>, vector<1x72xf32>
    %233 = vector.shape_cast %232 : vector<1x72xf32> to vector<1x1x72xf32>
    %234 = vector.broadcast %233 : vector<1x1x72xf32> to vector<2x64x72xf32>
    %235 = arith.mulf %231, %234 : vector<2x64x72xf32>
    %c0_86 = arith.constant 0 : index
    %c0_87 = arith.constant 0 : index
    %236 = vector.load %arg9[%c0_86, %c0_87] : memref<1x72xf32, #tpu.memory_space<vmem>>, vector<1x72xf32>
    %237 = vector.shape_cast %236 : vector<1x72xf32> to vector<1x1x72xf32>
    %238 = vector.broadcast %237 : vector<1x1x72xf32> to vector<2x64x72xf32>
    %239 = arith.addf %235, %238 : vector<2x64x72xf32>
    %240 = vector.shape_cast %239 : vector<2x64x72xf32> to vector<128x72xf32>
    %241 = arith.truncf %240 : vector<128x72xf32> to vector<128x72xbf16>
    %c0_88 = arith.constant 0 : index
    %c0_89 = arith.constant 0 : index
    %242 = vector.load %arg12[%c0_88, %c0_89] : memref<72x576xbf16, #tpu.memory_space<vmem>>, vector<72x576xbf16>
    %cst_90 = arith.constant dense<0.000000e+00> : vector<128x576xf32>
    %243 = tpu.matmul %241, %242, %cst_90 {dimension_numbers = #tpu.dot_dimension_numbers<[1], [0], [0], [1], [0, 0, 1, 1], [], []>} : vector<128x72xbf16>, vector<72x576xbf16>, vector<128x576xf32> -> vector<128x576xf32>
    %244 = arith.truncf %243 : vector<128x576xf32> to vector<128x576xbf16>
    %245 = vector.shape_cast %244 : vector<128x576xbf16> to vector<2x64x576xbf16>
    %cst_91 = arith.constant 0.000000e+00 : f32
    %246 = vector.broadcast %cst_91 : f32 to vector<2x64x64xf32>
    %cst_92 = arith.constant 0.000000e+00 : f32
    %247 = vector.broadcast %cst_92 : f32 to vector<2x8x64xf32>
    %248 = vector.extract_strided_slice %194 {offsets = [0, 0, 0], sizes = [2, 56, 64], strides = [1, 1, 1]} : vector<2x64x64xf32> to vector<2x56x64xf32>
    %249 = tpu.concatenate %247, %248 in 1 : vector<2x8x64xf32>, vector<2x56x64xf32> -> vector<2x64x64xf32>
    %cst_93 = arith.constant 0.000000e+00 : f32
    %250 = vector.broadcast %cst_93 : f32 to vector<2x1x64xf32>
    %251 = vector.extract_strided_slice %249 {offsets = [0, 0, 0], sizes = [2, 63, 64], strides = [1, 1, 1]} : vector<2x64x64xf32> to vector<2x63x64xf32>
    %252 = tpu.concatenate %250, %251 in 1 : vector<2x1x64xf32>, vector<2x63x64xf32> -> vector<2x64x64xf32>
    %cst_94 = arith.constant 0.000000e+00 : f32
    %253 = vector.broadcast %cst_94 : f32 to vector<2x64x64xf32>
    %254 = vector.shape_cast %21 : vector<64x64xi1> to vector<1x64x64xi1>
    %255 = vector.broadcast %254 : vector<1x64x64xi1> to vector<2x64x64xi1>
    %256 = arith.select %255, %252, %253 : vector<2x64x64xi1>, vector<2x64x64xf32>
    %257 = vector.extract_strided_slice %245 {offsets = [0, 0, 0], sizes = [2, 64, 64], strides = [1, 1, 1]} : vector<2x64x576xbf16> to vector<2x64x64xbf16>
    %258 = arith.extf %257 : vector<2x64x64xbf16> to vector<2x64x64xf32>
    %259 = arith.mulf %258, %256 : vector<2x64x64xf32>
    %260 = arith.addf %246, %259 : vector<2x64x64xf32>
    %261 = vector.extract_strided_slice %245 {offsets = [0, 0, 64], sizes = [2, 64, 64], strides = [1, 1, 1]} : vector<2x64x576xbf16> to vector<2x64x64xbf16>
    %262 = arith.extf %261 : vector<2x64x64xbf16> to vector<2x64x64xf32>
    %263 = arith.mulf %262, %249 : vector<2x64x64xf32>
    %264 = arith.addf %260, %263 : vector<2x64x64xf32>
    %cst_95 = arith.constant 0.000000e+00 : f32
    %265 = vector.broadcast %cst_95 : f32 to vector<2x1x64xf32>
    %266 = vector.extract_strided_slice %249 {offsets = [0, 1, 0], sizes = [2, 63, 64], strides = [1, 1, 1]} : vector<2x64x64xf32> to vector<2x63x64xf32>
    %267 = tpu.concatenate %266, %265 in 1 : vector<2x63x64xf32>, vector<2x1x64xf32> -> vector<2x64x64xf32>
    %cst_96 = arith.constant 0.000000e+00 : f32
    %268 = vector.broadcast %cst_96 : f32 to vector<2x64x64xf32>
    %269 = vector.shape_cast %25 : vector<64x64xi1> to vector<1x64x64xi1>
    %270 = vector.broadcast %269 : vector<1x64x64xi1> to vector<2x64x64xi1>
    %271 = arith.select %270, %267, %268 : vector<2x64x64xi1>, vector<2x64x64xf32>
    %272 = vector.extract_strided_slice %245 {offsets = [0, 0, 128], sizes = [2, 64, 64], strides = [1, 1, 1]} : vector<2x64x576xbf16> to vector<2x64x64xbf16>
    %273 = arith.extf %272 : vector<2x64x64xbf16> to vector<2x64x64xf32>
    %274 = arith.mulf %273, %271 : vector<2x64x64xf32>
    %275 = arith.addf %264, %274 : vector<2x64x64xf32>
    %cst_97 = arith.constant 0.000000e+00 : f32
    %276 = vector.broadcast %cst_97 : f32 to vector<2x1x64xf32>
    %277 = vector.extract_strided_slice %194 {offsets = [0, 0, 0], sizes = [2, 63, 64], strides = [1, 1, 1]} : vector<2x64x64xf32> to vector<2x63x64xf32>
    %278 = tpu.concatenate %276, %277 in 1 : vector<2x1x64xf32>, vector<2x63x64xf32> -> vector<2x64x64xf32>
    %cst_98 = arith.constant 0.000000e+00 : f32
    %279 = vector.broadcast %cst_98 : f32 to vector<2x64x64xf32>
    %280 = vector.shape_cast %21 : vector<64x64xi1> to vector<1x64x64xi1>
    %281 = vector.broadcast %280 : vector<1x64x64xi1> to vector<2x64x64xi1>
    %282 = arith.select %281, %278, %279 : vector<2x64x64xi1>, vector<2x64x64xf32>
    %283 = vector.extract_strided_slice %245 {offsets = [0, 0, 192], sizes = [2, 64, 64], strides = [1, 1, 1]} : vector<2x64x576xbf16> to vector<2x64x64xbf16>
    %284 = arith.extf %283 : vector<2x64x64xbf16> to vector<2x64x64xf32>
    %285 = arith.mulf %284, %282 : vector<2x64x64xf32>
    %286 = arith.addf %275, %285 : vector<2x64x64xf32>
    %287 = vector.extract_strided_slice %245 {offsets = [0, 0, 256], sizes = [2, 64, 64], strides = [1, 1, 1]} : vector<2x64x576xbf16> to vector<2x64x64xbf16>
    %288 = arith.extf %287 : vector<2x64x64xbf16> to vector<2x64x64xf32>
    %289 = arith.mulf %288, %194 : vector<2x64x64xf32>
    %290 = arith.addf %286, %289 : vector<2x64x64xf32>
    %cst_99 = arith.constant 0.000000e+00 : f32
    %291 = vector.broadcast %cst_99 : f32 to vector<2x1x64xf32>
    %292 = vector.extract_strided_slice %194 {offsets = [0, 1, 0], sizes = [2, 63, 64], strides = [1, 1, 1]} : vector<2x64x64xf32> to vector<2x63x64xf32>
    %293 = tpu.concatenate %292, %291 in 1 : vector<2x63x64xf32>, vector<2x1x64xf32> -> vector<2x64x64xf32>
    %cst_100 = arith.constant 0.000000e+00 : f32
    %294 = vector.broadcast %cst_100 : f32 to vector<2x64x64xf32>
    %295 = vector.shape_cast %25 : vector<64x64xi1> to vector<1x64x64xi1>
    %296 = vector.broadcast %295 : vector<1x64x64xi1> to vector<2x64x64xi1>
    %297 = arith.select %296, %293, %294 : vector<2x64x64xi1>, vector<2x64x64xf32>
    %298 = vector.extract_strided_slice %245 {offsets = [0, 0, 320], sizes = [2, 64, 64], strides = [1, 1, 1]} : vector<2x64x576xbf16> to vector<2x64x64xbf16>
    %299 = arith.extf %298 : vector<2x64x64xbf16> to vector<2x64x64xf32>
    %300 = arith.mulf %299, %297 : vector<2x64x64xf32>
    %301 = arith.addf %290, %300 : vector<2x64x64xf32>
    %cst_101 = arith.constant 0.000000e+00 : f32
    %302 = vector.broadcast %cst_101 : f32 to vector<2x8x64xf32>
    %303 = vector.extract_strided_slice %194 {offsets = [0, 8, 0], sizes = [2, 56, 64], strides = [1, 1, 1]} : vector<2x64x64xf32> to vector<2x56x64xf32>
    %304 = tpu.concatenate %303, %302 in 1 : vector<2x56x64xf32>, vector<2x8x64xf32> -> vector<2x64x64xf32>
    %cst_102 = arith.constant 0.000000e+00 : f32
    %305 = vector.broadcast %cst_102 : f32 to vector<2x1x64xf32>
    %306 = vector.extract_strided_slice %304 {offsets = [0, 0, 0], sizes = [2, 63, 64], strides = [1, 1, 1]} : vector<2x64x64xf32> to vector<2x63x64xf32>
    %307 = tpu.concatenate %305, %306 in 1 : vector<2x1x64xf32>, vector<2x63x64xf32> -> vector<2x64x64xf32>
    %cst_103 = arith.constant 0.000000e+00 : f32
    %308 = vector.broadcast %cst_103 : f32 to vector<2x64x64xf32>
    %309 = vector.shape_cast %21 : vector<64x64xi1> to vector<1x64x64xi1>
    %310 = vector.broadcast %309 : vector<1x64x64xi1> to vector<2x64x64xi1>
    %311 = arith.select %310, %307, %308 : vector<2x64x64xi1>, vector<2x64x64xf32>
    %312 = vector.extract_strided_slice %245 {offsets = [0, 0, 384], sizes = [2, 64, 64], strides = [1, 1, 1]} : vector<2x64x576xbf16> to vector<2x64x64xbf16>
    %313 = arith.extf %312 : vector<2x64x64xbf16> to vector<2x64x64xf32>
    %314 = arith.mulf %313, %311 : vector<2x64x64xf32>
    %315 = arith.addf %301, %314 : vector<2x64x64xf32>
    %316 = vector.extract_strided_slice %245 {offsets = [0, 0, 448], sizes = [2, 64, 64], strides = [1, 1, 1]} : vector<2x64x576xbf16> to vector<2x64x64xbf16>
    %317 = arith.extf %316 : vector<2x64x64xbf16> to vector<2x64x64xf32>
    %318 = arith.mulf %317, %304 : vector<2x64x64xf32>
    %319 = arith.addf %315, %318 : vector<2x64x64xf32>
    %cst_104 = arith.constant 0.000000e+00 : f32
    %320 = vector.broadcast %cst_104 : f32 to vector<2x1x64xf32>
    %321 = vector.extract_strided_slice %304 {offsets = [0, 1, 0], sizes = [2, 63, 64], strides = [1, 1, 1]} : vector<2x64x64xf32> to vector<2x63x64xf32>
    %322 = tpu.concatenate %321, %320 in 1 : vector<2x63x64xf32>, vector<2x1x64xf32> -> vector<2x64x64xf32>
    %cst_105 = arith.constant 0.000000e+00 : f32
    %323 = vector.broadcast %cst_105 : f32 to vector<2x64x64xf32>
    %324 = vector.shape_cast %25 : vector<64x64xi1> to vector<1x64x64xi1>
    %325 = vector.broadcast %324 : vector<1x64x64xi1> to vector<2x64x64xi1>
    %326 = arith.select %325, %322, %323 : vector<2x64x64xi1>, vector<2x64x64xf32>
    %327 = vector.extract_strided_slice %245 {offsets = [0, 0, 512], sizes = [2, 64, 64], strides = [1, 1, 1]} : vector<2x64x576xbf16> to vector<2x64x64xbf16>
    %328 = arith.extf %327 : vector<2x64x64xbf16> to vector<2x64x64xf32>
    %329 = arith.mulf %328, %326 : vector<2x64x64xf32>
    %330 = arith.addf %319, %329 : vector<2x64x64xf32>
    %cst_106 = arith.constant dense<0.000000e+00> : vector<2x64xf32>
    %331 = vector.multi_reduction <add>, %330, %cst_106 [1] : vector<2x64x64xf32> to vector<2x64xf32>
    %cst_107 = arith.constant 6.400000e+01 : f32
    %332 = vector.broadcast %cst_107 : f32 to vector<2x64xf32>
    %333 = arith.divf %331, %332 : vector<2x64xf32>
    %c0_108 = arith.constant 0 : index
    %c0_109 = arith.constant 0 : index
    %334 = vector.load %arg13[%c0_108, %c0_109] : memref<64x4xf32, #tpu.memory_space<vmem>>, vector<64x4xf32>
    %cst_110 = arith.constant dense<0.000000e+00> : vector<2x4xf32>
    %335 = tpu.matmul %333, %334, %cst_110 {dimension_numbers = #tpu.dot_dimension_numbers<[1], [0], [0], [1], [0, 0, 1, 1], [], []>} : vector<2x64xf32>, vector<64x4xf32>, vector<2x4xf32> -> vector<2x4xf32>
    %cst_111 = arith.constant 0.000000e+00 : f32
    %336 = vector.broadcast %cst_111 : f32 to vector<2x4xf32>
    %337 = arith.maximumf %335, %336 : vector<2x4xf32>
    %c0_112 = arith.constant 0 : index
    %c0_113 = arith.constant 0 : index
    %338 = vector.load %arg14[%c0_112, %c0_113] : memref<4x64xf32, #tpu.memory_space<vmem>>, vector<4x64xf32>
    %cst_114 = arith.constant dense<0.000000e+00> : vector<2x64xf32>
    %339 = tpu.matmul %337, %338, %cst_114 {dimension_numbers = #tpu.dot_dimension_numbers<[1], [0], [0], [1], [0, 0, 1, 1], [], []>} : vector<2x4xf32>, vector<4x64xf32>, vector<2x64xf32> -> vector<2x64xf32>
    %cst_115 = arith.constant 0.000000e+00 : f32
    %340 = vector.broadcast %cst_115 : f32 to vector<2x64xf32>
    %341 = arith.subf %340, %339 : vector<2x64xf32>
    %342 = math.exp %341 : vector<2x64xf32>
    %cst_116 = arith.constant 1.000000e+00 : f32
    %343 = vector.broadcast %cst_116 : f32 to vector<2x64xf32>
    %344 = arith.addf %343, %342 : vector<2x64xf32>
    %345 = tpu.reciprocal %344 {approx = true} : vector<2x64xf32> -> vector<2x64xf32>
    %346 = vector.shape_cast %345 : vector<2x64xf32> to vector<2x1x64xf32>
    %347 = vector.broadcast %346 : vector<2x1x64xf32> to vector<2x64x64xf32>
    %348 = arith.mulf %330, %347 : vector<2x64x64xf32>
    %349 = arith.addf %348, %0 : vector<2x64x64xf32>
    %c0_117 = arith.constant 0 : index
    %c0_118 = arith.constant 0 : index
    %c0_119 = arith.constant 0 : index
    %350 = vector.load %arg15[%c0_117, %c0_118, %c0_119] : memref<2x64x64xf32, #tpu.memory_space<vmem>>, vector<2x64x64xf32>
    tpu.vector_store %arg15[%c0_117, %c0_118, %c0_119], %349 {strides = array<i32>} : memref<2x64x64xf32, #tpu.memory_space<vmem>>, vector<2x64x64xf32>,
    return
  }
  func.func @transform_0(%arg0: i32) -> (i32, i32, i32) {
    %c0_i32 = arith.constant 0 : i32
    %c0_i32_0 = arith.constant 0 : i32
    %c0_i32_1 = arith.constant 0 : i32
    return %arg0, %c0_i32, %c0_i32_0 : i32, i32, i32
  }
  func.func @transform_1(%arg0: i32) -> (i32, i32) {
    %c0_i32 = arith.constant 0 : i32
    %c0_i32_0 = arith.constant 0 : i32
    %c0_i32_1 = arith.constant 0 : i32
    return %c0_i32, %c0_i32_0 : i32, i32
  }
  func.func @transform_2(%arg0: i32) -> (i32, i32) {
    %c0_i32 = arith.constant 0 : i32
    %c0_i32_0 = arith.constant 0 : i32
    %c0_i32_1 = arith.constant 0 : i32
    return %c0_i32, %c0_i32_0 : i32, i32
  }
  func.func @transform_3(%arg0: i32) -> (i32, i32) {
    %c0_i32 = arith.constant 0 : i32
    %c0_i32_0 = arith.constant 0 : i32
    %c0_i32_1 = arith.constant 0 : i32
    return %c0_i32, %c0_i32_0 : i32, i32
  }
  func.func @transform_4(%arg0: i32) -> (i32, i32) {
    %c0_i32 = arith.constant 0 : i32
    %c0_i32_0 = arith.constant 0 : i32
    %c0_i32_1 = arith.constant 0 : i32
    return %c0_i32, %c0_i32_0 : i32, i32
  }
  func.func @transform_5(%arg0: i32) -> (i32, i32) {
    %c0_i32 = arith.constant 0 : i32
    %c0_i32_0 = arith.constant 0 : i32
    %c0_i32_1 = arith.constant 0 : i32
    return %c0_i32, %c0_i32_0 : i32, i32
  }
  func.func @transform_6(%arg0: i32) -> (i32, i32) {
    %c0_i32 = arith.constant 0 : i32
    %c0_i32_0 = arith.constant 0 : i32
    %c0_i32_1 = arith.constant 0 : i32
    return %c0_i32, %c0_i32_0 : i32, i32
  }
  func.func @transform_7(%arg0: i32) -> (i32, i32) {
    %c0_i32 = arith.constant 0 : i32
    %c0_i32_0 = arith.constant 0 : i32
    %c0_i32_1 = arith.constant 0 : i32
    return %c0_i32, %c0_i32_0 : i32, i32
  }
  func.func @transform_8(%arg0: i32) -> (i32, i32) {
    %c0_i32 = arith.constant 0 : i32
    %c0_i32_0 = arith.constant 0 : i32
    %c0_i32_1 = arith.constant 0 : i32
    return %c0_i32, %c0_i32_0 : i32, i32
  }
  func.func @transform_9(%arg0: i32) -> (i32, i32) {
    %c0_i32 = arith.constant 0 : i32
    %c0_i32_0 = arith.constant 0 : i32
    %c0_i32_1 = arith.constant 0 : i32
    return %c0_i32, %c0_i32_0 : i32, i32
  }
  func.func @transform_10(%arg0: i32) -> (i32, i32) {
    %c0_i32 = arith.constant 0 : i32
    %c0_i32_0 = arith.constant 0 : i32
    %c0_i32_1 = arith.constant 0 : i32
    return %c0_i32, %c0_i32_0 : i32, i32
  }
  func.func @transform_11(%arg0: i32) -> (i32, i32) {
    %c0_i32 = arith.constant 0 : i32
    %c0_i32_0 = arith.constant 0 : i32
    %c0_i32_1 = arith.constant 0 : i32
    return %c0_i32, %c0_i32_0 : i32, i32
  }
  func.func @transform_12(%arg0: i32) -> (i32, i32) {
    %c0_i32 = arith.constant 0 : i32
    %c0_i32_0 = arith.constant 0 : i32
    %c0_i32_1 = arith.constant 0 : i32
    return %c0_i32, %c0_i32_0 : i32, i32
  }
  func.func @transform_13(%arg0: i32) -> (i32, i32) {
    %c0_i32 = arith.constant 0 : i32
    %c0_i32_0 = arith.constant 0 : i32
    %c0_i32_1 = arith.constant 0 : i32
    return %c0_i32, %c0_i32_0 : i32, i32
  }
  func.func @transform_14(%arg0: i32) -> (i32, i32, i32) {
    %c0_i32 = arith.constant 0 : i32
    %c0_i32_0 = arith.constant 0 : i32
    %c0_i32_1 = arith.constant 0 : i32
    return %arg0, %c0_i32, %c0_i32_0 : i32, i32, i32
  }
}

</mosaic_0001>

<llo_original>
// kernel: tpu_custom_call.1
$region0: #{tpu_custom_call.1}
  #allocation0 [shape = 'u32[]', space=smem, size = 0x4, offset = 0x4, fixed_abs, tag = 'smem constant byte address 0x4 - core index']
  #allocation1 [shape = 'u32[144,128]{1,0:T(1,128)}', space=vmem, size = 0x12000, scoped, tag = 'internal scratch']
  %s0 = inlined_call_operand.hbm [shape: f32[2,64,64], index: 0, kind: input, shape index: {}]
  %s1 = inlined_call_operand.hbm [shape: bf16[576,64], index: 1, kind: input, shape index: {}]
  %s2 = inlined_call_operand.hbm [shape: bf16[576,64], index: 2, kind: input, shape index: {}]
  %s3 = inlined_call_operand.hbm [shape: bf16[576,128], index: 3, kind: input, shape index: {}]
  %s4 = inlined_call_operand.hbm [shape: bf16[128,32], index: 4, kind: input, shape index: {}]
  %s5 = inlined_call_operand.hbm [shape: bf16[32,72], index: 5, kind: input, shape index: {}]
  %s6 = inlined_call_operand.hbm [shape: f32[1,72], index: 6, kind: input, shape index: {}]
  %s7 = inlined_call_operand.hbm [shape: f32[1,72], index: 7, kind: input, shape index: {}]
  %s8 = inlined_call_operand.hbm [shape: f32[1,72], index: 8, kind: input, shape index: {}]
  %s9 = inlined_call_operand.hbm [shape: f32[72,8], index: 9, kind: input, shape index: {}]
  %s10 = inlined_call_operand.hbm [shape: f32[8,72], index: 10, kind: input, shape index: {}]
  %s11 = inlined_call_operand.hbm [shape: bf16[72,576], index: 11, kind: input, shape index: {}]
  %s12 = inlined_call_operand.hbm [shape: f32[64,4], index: 12, kind: input, shape index: {}]
  %s13 = inlined_call_operand.hbm [shape: f32[4,64], index: 13, kind: input, shape index: {}]
  %s14 = inlined_call_operand.hbm [shape: f32[2,64,64], index: 14, kind: output, shape index: {}]
  %s15 = sld [smem:[#allocation0]]
  $region122: #{tpu_custom_call.1} parent=0
    _
  %s17 = ssub.s32 1, %s15
  %s18 = scalar_select 0, %s17, %s15
  $region1: #{tpu_custom_call.1} parent=0
    #allocation2 [shape = 'u8[65536]{0}', space=vmem, size = 0x10000, scoped, tag = 'input window, operand 0, single buffered']
    #allocation3 [shape = 's32[1]{0}', space=sflag, size = 0x4, scoped, tag = 'scoped memory for tpu_custom_call.1']
    #allocation4 [shape = 's32[1]{0}', space=sflag, size = 0x4, scoped, tag = 'scoped memory for tpu_custom_call.1']
    #allocation5 [shape = 'u8[147456]{0}', space=vmem, size = 0x24000, scoped, tag = 'input window, operand 1, single buffered']
    #allocation6 [shape = 's32[1]{0}', space=sflag, size = 0x4, scoped, tag = 'scoped memory for tpu_custom_call.1']
    #allocation7 [shape = 'u8[147456]{0}', space=vmem, size = 0x24000, scoped, tag = 'input window, operand 2, single buffered']
    #allocation8 [shape = 'u8[147456]{0}', space=vmem, size = 0x24000, scoped, tag = 'input window, operand 3, single buffered']
    #allocation9 [shape = 's32[1]{0}', space=sflag, size = 0x4, scoped, tag = 'scoped memory for tpu_custom_call.1']
    #allocation10 [shape = 'u8[32768]{0}', space=vmem, size = 0x8000, scoped, tag = 'input window, operand 4, single buffered']
    #allocation11 [shape = 'u8[8192]{0}', space=vmem, size = 0x2000, scoped, tag = 'input window, operand 5, single buffered']
    #allocation12 [shape = 's32[1]{0}', space=sflag, size = 0x4, scoped, tag = 'scoped memory for tpu_custom_call.1']
    #allocation13 [shape = 'u8[512]{0}', space=vmem, size = 0x400, scoped, tag = 'input window, operand 6, single buffered']
    #allocation14 [shape = 'u8[512]{0}', space=vmem, size = 0x400, scoped, tag = 'input window, operand 7, single buffered']
    #allocation15 [shape = 's32[1]{0}', space=sflag, size = 0x4, scoped, tag = 'scoped memory for tpu_custom_call.1']
    #allocation16 [shape = 'u8[512]{0}', space=vmem, size = 0x400, scoped, tag = 'input window, operand 8, single buffered']
    #allocation17 [shape = 'u8[36864]{0}', space=vmem, size = 0x9000, scoped, tag = 'input window, operand 9, single buffered']
    #allocation18 [shape = 's32[1]{0}', space=sflag, size = 0x4, scoped, tag = 'scoped memory for tpu_custom_call.1']
    #allocation19 [shape = 'u8[4096]{0}', space=vmem, size = 0x1000, scoped, tag = 'input window, operand 10, single buffered']
    #allocation20 [shape = 'u8[92160]{0}', space=vmem, size = 0x16800, scoped, tag = 'input window, operand 11, single buffered']
    #allocation21 [shape = 's32[1]{0}', space=sflag, size = 0x4, scoped, tag = 'scoped memory for tpu_custom_call.1']
    #allocation22 [shape = 'u8[32768]{0}', space=vmem, size = 0x8000, scoped, tag = 'input window, operand 12, single buffered']
    #allocation23 [shape = 'u8[2048]{0}', space=vmem, size = 0x800, scoped, tag = 'input window, operand 13, single buffered']
    #allocation24 [shape = 's32[1]{0}', space=sflag, size = 0x4, scoped, tag = 'scoped memory for tpu_custom_call.1']
    #allocation25 [shape = 'u8[65536]{0}', space=vmem, size = 0x10000, scoped, tag = 'output window, operand 0, single buffered']
    %19 = vsyncpa [#allocation3], 0
    %20 = vsyncpa [#allocation6], 0
    %21 = vsyncpa [#allocation9], 0
    %22 = vsyncpa [#allocation12], 0
    %23 = vsyncpa [#allocation15], 0
    %24 = vsyncpa [#allocation18], 0
    %25 = vsyncpa [#allocation21], 0
    %26 = vsyncpa [#allocation24], 0
    %27 = vsyncpa [#allocation4], 0
    // Predicated region
    $region2: #{tpu_custom_call.1} parent=1 // pred_check
      _
    $region3: #{tpu_custom_call.1} parent=1 // pred_check_branch
      %29 = sbr.rel (0) target = $region5
    $region4: #{tpu_custom_call.1} parent=1 // pred_region
      %s31 = ssub.s32 2048, 2048
      %32 = vsyncadd [#allocation3], %s31
      %s33 = sshll.u32 [#allocation2], 4
      %s34 = int_to_ptr.vmem [resolvable:$true] %s33
      %39 = dma.hbm_to_vmem [thread:$0]  %s0, 2048, %s34, [#allocation3], 128, 128, 8
    $region5: #{tpu_custom_call.1} parent=1 // pred_fallthru
      _
    // Predicated region
    $region6: #{tpu_custom_call.1} parent=1 // pred_check
      _
    $region7: #{tpu_custom_call.1} parent=1 // pred_check_branch
      %41 = sbr.rel (0) target = $region9
    $region8: #{tpu_custom_call.1} parent=1 // pred_region
      %s43 = ssub.s32 4608, 4608
      %44 = vsyncadd [#allocation6], %s43
      %s45 = sshll.u32 [#allocation5], 4
      %s46 = int_to_ptr.vmem [resolvable:$true] %s45
      %51 = dma.hbm_to_vmem [thread:$0]  %s1, 4608, %s46, [#allocation6], 64, 64, 4
    $region9: #{tpu_custom_call.1} parent=1 // pred_fallthru
      _
    // Predicated region
    $region10: #{tpu_custom_call.1} parent=1 // pred_check
      _
    $region11: #{tpu_custom_call.1} parent=1 // pred_check_branch
      %53 = sbr.rel (0) target = $region13
    $region12: #{tpu_custom_call.1} parent=1 // pred_region
      %s55 = ssub.s32 4608, 4608
      %56 = vsyncadd [#allocation6], %s55
      %s57 = sshll.u32 [#allocation7], 4
      %s58 = int_to_ptr.vmem [resolvable:$true] %s57
      %63 = dma.hbm_to_vmem [thread:$0]  %s2, 4608, %s58, [#allocation6], 64, 64, 4
    $region13: #{tpu_custom_call.1} parent=1 // pred_fallthru
      _
    // Predicated region
    $region14: #{tpu_custom_call.1} parent=1 // pred_check
      _
    $region15: #{tpu_custom_call.1} parent=1 // pred_check_branch
      %65 = sbr.rel (0) target = $region17
    $region16: #{tpu_custom_call.1} parent=1 // pred_region
      %s67 = ssub.s32 4608, 4608
      %68 = vsyncadd [#allocation9], %s67
      %s69 = sshll.u32 [#allocation8], 4
      %s70 = int_to_ptr.vmem [resolvable:$true] %s69
      %75 = dma.hbm_to_vmem [thread:$0]  %s3, 4608, %s70, [#allocation9], 64, 64, 4
    $region17: #{tpu_custom_call.1} parent=1 // pred_fallthru
      _
    // Predicated region
    $region18: #{tpu_custom_call.1} parent=1 // pred_check
      _
    $region19: #{tpu_custom_call.1} parent=1 // pred_check_branch
      %77 = sbr.rel (0) target = $region21
    $region20: #{tpu_custom_call.1} parent=1 // pred_region
      %s79 = ssub.s32 1024, 1024
      %80 = vsyncadd [#allocation9], %s79
      %s81 = sshll.u32 [#allocation10], 4
      %s82 = int_to_ptr.vmem [resolvable:$true] %s81
      %87 = dma.hbm_to_vmem [thread:$0]  %s4, 1024, %s82, [#allocation9], 64, 64, 4
    $region21: #{tpu_custom_call.1} parent=1 // pred_fallthru
      _
    // Predicated region
    $region22: #{tpu_custom_call.1} parent=1 // pred_check
      _
    $region23: #{tpu_custom_call.1} parent=1 // pred_check_branch
      %89 = sbr.rel (0) target = $region25
    $region24: #{tpu_custom_call.1} parent=1 // pred_region
      %s91 = ssub.s32 256, 256
      %92 = vsyncadd [#allocation12], %s91
      %s93 = sshll.u32 [#allocation11], 4
      %s94 = int_to_ptr.vmem [resolvable:$true] %s93
      %99 = dma.hbm_to_vmem [thread:$0]  %s5, 256, %s94, [#allocation12], 64, 64, 4
    $region25: #{tpu_custom_call.1} parent=1 // pred_fallthru
      _
    // Predicated region
    $region26: #{tpu_custom_call.1} parent=1 // pred_check
      _
    $region27: #{tpu_custom_call.1} parent=1 // pred_check_branch
      %101 = sbr.rel (0) target = $region29
    $region28: #{tpu_custom_call.1} parent=1 // pred_region
      %s103 = ssub.s32 16, 16
      %104 = vsyncadd [#allocation12], %s103
      %s106 = sshll.u32 [#allocation13], 4
      %s107 = int_to_ptr.vmem [resolvable:$true] %s106
      %109 = dma.hbm_to_vmem [thread:$0]  %s6, 16, %s107, [#allocation12]
    $region29: #{tpu_custom_call.1} parent=1 // pred_fallthru
      _
    // Predicated region
    $region30: #{tpu_custom_call.1} parent=1 // pred_check
      _
    $region31: #{tpu_custom_call.1} parent=1 // pred_check_branch
      %111 = sbr.rel (0) target = $region33
    $region32: #{tpu_custom_call.1} parent=1 // pred_region
      %s113 = ssub.s32 16, 16
      %114 = vsyncadd [#allocation15], %s113
      %s116 = sshll.u32 [#allocation14], 4
      %s117 = int_to_ptr.vmem [resolvable:$true] %s116
      %119 = dma.hbm_to_vmem [thread:$0]  %s7, 16, %s117, [#allocation15]
    $region33: #{tpu_custom_call.1} parent=1 // pred_fallthru
      _
    // Predicated region
    $region34: #{tpu_custom_call.1} parent=1 // pred_check
      _
    $region35: #{tpu_custom_call.1} parent=1 // pred_check_branch
      %121 = sbr.rel (0) target = $region37
    $region36: #{tpu_custom_call.1} parent=1 // pred_region
      %s123 = ssub.s32 16, 16
      %124 = vsyncadd [#allocation15], %s123
      %s126 = sshll.u32 [#allocation16], 4
      %s127 = int_to_ptr.vmem [resolvable:$true] %s126
      %129 = dma.hbm_to_vmem [thread:$0]  %s8, 16, %s127, [#allocation15]
    $region37: #{tpu_custom_call.1} parent=1 // pred_fallthru
      _
    // Predicated region
    $region38: #{tpu_custom_call.1} parent=1 // pred_check
      _
    $region39: #{tpu_custom_call.1} parent=1 // pred_check_branch
      %131 = sbr.rel (0) target = $region41
    $region40: #{tpu_custom_call.1} parent=1 // pred_region
      %s133 = ssub.s32 1152, 1152
      %134 = vsyncadd [#allocation18], %s133
      %s135 = sshll.u32 [#allocation17], 4
      %s136 = int_to_ptr.vmem [resolvable:$true] %s135
      %141 = dma.hbm_to_vmem [thread:$0]  %s9, 1152, %s136, [#allocation18], 128, 128, 8
    $region41: #{tpu_custom_call.1} parent=1 // pred_fallthru
      _
    // Predicated region
    $region42: #{tpu_custom_call.1} parent=1 // pred_check
      _
    $region43: #{tpu_custom_call.1} parent=1 // pred_check_branch
      %143 = sbr.rel (0) target = $region45
    $region44: #{tpu_custom_call.1} parent=1 // pred_region
      %s145 = ssub.s32 128, 128
      %146 = vsyncadd [#allocation18], %s145
      %s148 = sshll.u32 [#allocation19], 4
      %s149 = int_to_ptr.vmem [resolvable:$true] %s148
      %151 = dma.hbm_to_vmem [thread:$0]  %s10, 128, %s149, [#allocation18]
    $region45: #{tpu_custom_call.1} parent=1 // pred_fallthru
      _
    // Predicated region
    $region46: #{tpu_custom_call.1} parent=1 // pred_check
      _
    $region47: #{tpu_custom_call.1} parent=1 // pred_check_branch
      %153 = sbr.rel (0) target = $region49
    $region48: #{tpu_custom_call.1} parent=1 // pred_region
      %s155 = ssub.s32 2880, 2880
      %156 = vsyncadd [#allocation21], %s155
      %s157 = sshll.u32 [#allocation20], 4
      %s158 = int_to_ptr.vmem [resolvable:$true] %s157
      %163 = dma.hbm_to_vmem [thread:$0]  %s11, 2880, %s158, [#allocation21], 320, 320, 20
    $region49: #{tpu_custom_call.1} parent=1 // pred_fallthru
      _
    // Predicated region
    $region50: #{tpu_custom_call.1} parent=1 // pred_check
      _
    $region51: #{tpu_custom_call.1} parent=1 // pred_check_branch
      %165 = sbr.rel (0) target = $region53
    $region52: #{tpu_custom_call.1} parent=1 // pred_region
      %s167 = ssub.s32 1024, 1024
      %168 = vsyncadd [#allocation21], %s167
      %s169 = sshll.u32 [#allocation22], 4
      %s170 = int_to_ptr.vmem [resolvable:$true] %s169
      %175 = dma.hbm_to_vmem [thread:$0]  %s12, 1024, %s170, [#allocation21], 128, 128, 8
    $region53: #{tpu_custom_call.1} parent=1 // pred_fallthru
      _
    // Predicated region
    $region54: #{tpu_custom_call.1} parent=1 // pred_check
      _
    $region55: #{tpu_custom_call.1} parent=1 // pred_check_branch
      %177 = sbr.rel (0) target = $region57
    $region56: #{tpu_custom_call.1} parent=1 // pred_region
      %s179 = ssub.s32 64, 64
      %180 = vsyncadd [#allocation24], %s179
      %s182 = sshll.u32 [#allocation23], 4
      %s183 = int_to_ptr.vmem [resolvable:$true] %s182
      %185 = dma.hbm_to_vmem [thread:$0]  %s13, 64, %s183, [#allocation24]
    $region57: #{tpu_custom_call.1} parent=1 // pred_fallthru
      _
    // Predicated region
    $region58: #{tpu_custom_call.1} parent=1 // pred_check
      _
    $region59: #{tpu_custom_call.1} parent=1 // pred_check_branch
      %187 = sbr.rel (0) target = $region61
    $region60: #{tpu_custom_call.1} parent=1 // pred_region
      %188 = dma.done [#allocation3], 2048
    $region61: #{tpu_custom_call.1} parent=1 // pred_fallthru
      _
    // Predicated region
    $region62: #{tpu_custom_call.1} parent=1 // pred_check
      _
    $region63: #{tpu_custom_call.1} parent=1 // pred_check_branch
      %190 = sbr.rel (0) target = $region65
    $region64: #{tpu_custom_call.1} parent=1 // pred_region
      %191 = dma.done [#allocation6], 4608
    $region65: #{tpu_custom_call.1} parent=1 // pred_fallthru
      _
    // Predicated region
    $region66: #{tpu_custom_call.1} parent=1 // pred_check
      _
    $region67: #{tpu_custom_call.1} parent=1 // pred_check_branch
      %193 = sbr.rel (0) target = $region69
    $region68: #{tpu_custom_call.1} parent=1 // pred_region
      %194 = dma.done [#allocation6], 4608
    $region69: #{tpu_custom_call.1} parent=1 // pred_fallthru
      _
    // Predicated region
    $region70: #{tpu_custom_call.1} parent=1 // pred_check
      _
    $region71: #{tpu_custom_call.1} parent=1 // pred_check_branch
      %196 = sbr.rel (0) target = $region73
    $region72: #{tpu_custom_call.1} parent=1 // pred_region
      %197 = dma.done [#allocation9], 4608
    $region73: #{tpu_custom_call.1} parent=1 // pred_fallthru
      _
    // Predicated region
    $region74: #{tpu_custom_call.1} parent=1 // pred_check
      _
    $region75: #{tpu_custom_call.1} parent=1 // pred_check_branch
      %199 = sbr.rel (0) target = $region77
    $region76: #{tpu_custom_call.1} parent=1 // pred_region
      %200 = dma.done [#allocation9], 1024
    $region77: #{tpu_custom_call.1} parent=1 // pred_fallthru
      _
    // Predicated region
    $region78: #{tpu_custom_call.1} parent=1 // pred_check
      _
    $region79: #{tpu_custom_call.1} parent=1 // pred_check_branch
      %202 = sbr.rel (0) target = $region81
    $region80: #{tpu_custom_call.1} parent=1 // pred_region
      %203 = dma.done [#allocation12], 256
    $region81: #{tpu_custom_call.1} parent=1 // pred_fallthru
      _
    // Predicated region
    $region82: #{tpu_custom_call.1} parent=1 // pred_check
      _
    $region83: #{tpu_custom_call.1} parent=1 // pred_check_branch
      %205 = sbr.rel (0) target = $region85
    $region84: #{tpu_custom_call.1} parent=1 // pred_region
      %206 = dma.done [#allocation12], 16
    $region85: #{tpu_custom_call.1} parent=1 // pred_fallthru
      _
    // Predicated region
    $region86: #{tpu_custom_call.1} parent=1 // pred_check
      _
    $region87: #{tpu_custom_call.1} parent=1 // pred_check_branch
      %208 = sbr.rel (0) target = $region89
    $region88: #{tpu_custom_call.1} parent=1 // pred_region
      %209 = dma.done [#allocation15], 16
    $region89: #{tpu_custom_call.1} parent=1 // pred_fallthru
      _
    // Predicated region
    $region90: #{tpu_custom_call.1} parent=1 // pred_check
      _
    $region91: #{tpu_custom_call.1} parent=1 // pred_check_branch
      %211 = sbr.rel (0) target = $region93
    $region92: #{tpu_custom_call.1} parent=1 // pred_region
      %212 = dma.done [#allocation15], 16
    $region93: #{tpu_custom_call.1} parent=1 // pred_fallthru
      _
    // Predicated region
    $region94: #{tpu_custom_call.1} parent=1 // pred_check
      _
    $region95: #{tpu_custom_call.1} parent=1 // pred_check_branch
      %214 = sbr.rel (0) target = $region97
    $region96: #{tpu_custom_call.1} parent=1 // pred_region
      %215 = dma.done [#allocation18], 1152
    $region97: #{tpu_custom_call.1} parent=1 // pred_fallthru
      _
    // Predicated region
    $region98: #{tpu_custom_call.1} parent=1 // pred_check
      _
    $region99: #{tpu_custom_call.1} parent=1 // pred_check_branch
      %217 = sbr.rel (0) target = $region101
    $region100: #{tpu_custom_call.1} parent=1 // pred_region
      %218 = dma.done [#allocation18], 128
    $region101: #{tpu_custom_call.1} parent=1 // pred_fallthru
      _
    // Predicated region
    $region102: #{tpu_custom_call.1} parent=1 // pred_check
      _
    $region103: #{tpu_custom_call.1} parent=1 // pred_check_branch
      %220 = sbr.rel (0) target = $region105
    $region104: #{tpu_custom_call.1} parent=1 // pred_region
      %221 = dma.done [#allocation21], 2880
    $region105: #{tpu_custom_call.1} parent=1 // pred_fallthru
      _
    // Predicated region
    $region106: #{tpu_custom_call.1} parent=1 // pred_check
      _
    $region107: #{tpu_custom_call.1} parent=1 // pred_check_branch
      %223 = sbr.rel (0) target = $region109
    $region108: #{tpu_custom_call.1} parent=1 // pred_region
      %224 = dma.done [#allocation21], 1024
    $region109: #{tpu_custom_call.1} parent=1 // pred_fallthru
      _
    // Predicated region
    $region110: #{tpu_custom_call.1} parent=1 // pred_check
      _
    $region111: #{tpu_custom_call.1} parent=1 // pred_check_branch
      %226 = sbr.rel (0) target = $region113
    $region112: #{tpu_custom_call.1} parent=1 // pred_region
      %227 = dma.done [#allocation24], 64
    $region113: #{tpu_custom_call.1} parent=1 // pred_fallthru
      _
    %v231 = vld [vmem:[#allocation2] sm:$0xff]
    %v232 = vld [vmem:[#allocation2 + $0x8] sm:$0xff]
    %v233 = vld [vmem:[#allocation2 + $0x10] sm:$0xff]
    %v234 = vld [vmem:[#allocation2 + $0x18] sm:$0xff]
    %v235 = vld [vmem:[#allocation2 + $0x20] sm:$0xff]
    %v236 = vld [vmem:[#allocation2 + $0x28] sm:$0xff]
    %v237 = vld [vmem:[#allocation2 + $0x30] sm:$0xff]
    %v238 = vld [vmem:[#allocation2 + $0x38] sm:$0xff]
    %v239 = vld [vmem:[#allocation2 + $0x40] sm:$0xff]
    %v240 = vld [vmem:[#allocation2 + $0x48] sm:$0xff]
    %v241 = vld [vmem:[#allocation2 + $0x50] sm:$0xff]
    %v242 = vld [vmem:[#allocation2 + $0x58] sm:$0xff]
    %v243 = vld [vmem:[#allocation2 + $0x60] sm:$0xff]
    %v244 = vld [vmem:[#allocation2 + $0x68] sm:$0xff]
    %v245 = vld [vmem:[#allocation2 + $0x70] sm:$0xff]
    %v246 = vld [vmem:[#allocation2 + $0x78] sm:$0xff]
    %v247 = vlaneseq
    %v248 = vshrl.u32 %v247, 7
    %v249 = vadd.s32 %v248, 8
    %v250 = vadd.s32 %v248, 16
    %v251 = vadd.s32 %v248, 24
    %v252 = vadd.s32 %v248, 32
    %v253 = vadd.s32 %v248, 40
    %v254 = vadd.s32 %v248, 48
    %v255 = vadd.s32 %v248, 56
    %vm256 = vcmp.lt.s32.totalorder %v248, 0
    %v257 = vsub.s32 0, %v248
    %v258 = vsel %vm256, %v257, %v248
    %v259 = vshrl.u32 %v258, 3
    %v260 = vand.u32 %v258, 7
    %v261 = vsub.s32 0, %v260
    %v262 = vsel %vm256, %v261, %v260
    %vm263 = vcmp.lt.s32.totalorder %v249, 0
    %v264 = vsub.s32 0, %v249
    %v265 = vsel %vm263, %v264, %v249
    %v266 = vshrl.u32 %v265, 3
    %v267 = vand.u32 %v265, 7
    %v268 = vsub.s32 0, %v267
    %v269 = vsel %vm263, %v268, %v267
    %vm270 = vcmp.lt.s32.totalorder %v250, 0
    %v271 = vsub.s32 0, %v250
    %v272 = vsel %vm270, %v271, %v250
    %v273 = vshrl.u32 %v272, 3
    %v274 = vand.u32 %v272, 7
    %v275 = vsub.s32 0, %v274
    %v276 = vsel %vm270, %v275, %v274
    %vm277 = vcmp.lt.s32.totalorder %v251, 0
    %v278 = vsub.s32 0, %v251
    %v279 = vsel %vm277, %v278, %v251
    %v280 = vshrl.u32 %v279, 3
    %v281 = vand.u32 %v279, 7
    %v282 = vsub.s32 0, %v281
    %v283 = vsel %vm277, %v282, %v281
    %vm284 = vcmp.lt.s32.totalorder %v252, 0
    %v285 = vsub.s32 0, %v252
    %v286 = vsel %vm284, %v285, %v252
    %v287 = vshrl.u32 %v286, 3
    %v288 = vand.u32 %v286, 7
    %v289 = vsub.s32 0, %v288
    %v290 = vsel %vm284, %v289, %v288
    %vm291 = vcmp.lt.s32.totalorder %v253, 0
    %v292 = vsub.s32 0, %v253
    %v293 = vsel %vm291, %v292, %v253
    %v294 = vshrl.u32 %v293, 3
    %v295 = vand.u32 %v293, 7
    %v296 = vsub.s32 0, %v295
    %v297 = vsel %vm291, %v296, %v295
    %vm298 = vcmp.lt.s32.totalorder %v254, 0
    %v299 = vsub.s32 0, %v254
    %v300 = vsel %vm298, %v299, %v254
    %v301 = vshrl.u32 %v300, 3
    %v302 = vand.u32 %v300, 7
    %v303 = vsub.s32 0, %v302
    %v304 = vsel %vm298, %v303, %v302
    %vm305 = vcmp.lt.s32.totalorder %v255, 0
    %v306 = vsub.s32 0, %v255
    %v307 = vsel %vm305, %v306, %v255
    %v308 = vshrl.u32 %v307, 3
    %v309 = vand.u32 %v307, 7
    %v310 = vsub.s32 0, %v309
    %v311 = vsel %vm305, %v310, %v309
    %vm312 = vcmp.ne.s32.totalorder %v262, 0
    %vm313 = vcmp.ne.s32.totalorder %v269, 0
    %vm314 = vcmp.ne.s32.totalorder %v276, 0
    %vm315 = vcmp.ne.s32.totalorder %v283, 0
    %vm316 = vcmp.ne.s32.totalorder %v290, 0
    %vm317 = vcmp.ne.s32.totalorder %v297, 0
    %vm318 = vcmp.ne.s32.totalorder %v304, 0
    %vm319 = vcmp.ne.s32.totalorder %v311, 0
    %vm320 = vcmp.lt.s32.totalorder %v262, 0
    %vm321 = vcmp.lt.s32.totalorder %v269, 0
    %vm322 = vcmp.lt.s32.totalorder %v276, 0
    %vm323 = vcmp.lt.s32.totalorder %v283, 0
    %vm324 = vcmp.lt.s32.totalorder %v290, 0
    %vm325 = vcmp.lt.s32.totalorder %v297, 0
    %vm326 = vcmp.lt.s32.totalorder %v304, 0
    %vm327 = vcmp.lt.s32.totalorder %v311, 0
    %vm328 = vmand %vm320, %vm312
    %vm329 = vmand %vm321, %vm313
    %vm330 = vmand %vm322, %vm314
    %vm331 = vmand %vm323, %vm315
    %vm332 = vmand %vm324, %vm316
    %vm333 = vmand %vm325, %vm317
    %vm334 = vmand %vm326, %vm318
    %vm335 = vmand %vm327, %vm319
    %v336 = vadd.s32 %v262, 8
    %v337 = vadd.s32 %v269, 8
    %v338 = vadd.s32 %v276, 8
    %v339 = vadd.s32 %v283, 8
    %v340 = vadd.s32 %v290, 8
    %v341 = vadd.s32 %v297, 8
    %v342 = vadd.s32 %v304, 8
    %v343 = vadd.s32 %v311, 8
    %v344 = vsel %vm328, %v336, %v262
    %v345 = vsel %vm329, %v337, %v269
    %v346 = vsel %vm330, %v338, %v276
    %v347 = vsel %vm331, %v339, %v283
    %v348 = vsel %vm332, %v340, %v290
    %v349 = vsel %vm333, %v341, %v297
    %v350 = vsel %vm334, %v342, %v304
    %v351 = vsel %vm335, %v343, %v311
    %vm352 = vcmp.ne.s32.totalorder %v344, 0
    %vm353 = vcmp.ne.s32.totalorder %v345, 0
    %vm354 = vcmp.ne.s32.totalorder %v346, 0
    %vm355 = vcmp.ne.s32.totalorder %v347, 0
    %vm356 = vcmp.ne.s32.totalorder %v348, 0
    %vm357 = vcmp.ne.s32.totalorder %v349, 0
    %vm358 = vcmp.ne.s32.totalorder %v350, 0
    %vm359 = vcmp.ne.s32.totalorder %v351, 0
    %vm360 = vcmp.ne.s32.totalorder %v344, 7
    %vm361 = vcmp.ne.s32.totalorder %v345, 7
    %vm362 = vcmp.ne.s32.totalorder %v346, 7
    %vm363 = vcmp.ne.s32.totalorder %v347, 7
    %vm364 = vcmp.ne.s32.totalorder %v348, 7
    %vm365 = vcmp.ne.s32.totalorder %v349, 7
    %vm366 = vcmp.ne.s32.totalorder %v350, 7
    %vm367 = vcmp.ne.s32.totalorder %v351, 7
    %v368 = vpack.c.bf16 %v232, %v231
    %v369 = vpack.c.bf16 %v234, %v233
    %v370 = vpack.c.bf16 %v236, %v235
    %v371 = vpack.c.bf16 %v238, %v237
    %v372 = vpack.c.bf16 %v240, %v239
    %v373 = vpack.c.bf16 %v242, %v241
    %v374 = vpack.c.bf16 %v244, %v243
    %v375 = vpack.c.bf16 %v246, %v245
    %vm384 = vcmask 1043456
    %v385 = vrot.slane %v368, 4
    %v386 = vrot.slane %v369, 4
    %v387 = vsel %vm384, %v385, %v386
    %v388 = vrot.slane %v370, 4
    %v389 = vsel %vm384, %v386, %v388
    %v390 = vrot.slane %v371, 4
    %v391 = vsel %vm384, %v388, %v390
    %v392 = vrot.slane %v372, 4
    %v393 = vrot.slane %v373, 4
    %v394 = vsel %vm384, %v392, %v393
    %v395 = vrot.slane %v374, 4
    %v396 = vsel %vm384, %v393, %v395
    %v397 = vrot.slane %v375, 4
    %v398 = vsel %vm384, %v395, %v397
    %vm399 = vcmask 1043456
    %v402 = vsel %vm399, 0, %v385
    %v404 = vsel %vm399, 0, %v392
    %vm405 = vsmask.f32 256
    %v406 = vshrl.u32 %v402, 16
    %v408 = vrot.slane %v406, 7
    %v409 = vshll.u32 %v402, 16
    %v411 = vor.u32 %v408, %v409
    %v413 = vshrl.u32 %v387, 16
    %v415 = vrot.slane %v413, 7
    %v416 = vshll.u32 %v387, 16
    %v418 = vor.u32 %v415, %v416
    %v419 = vsel %vm405, %v408, %v418
    %v421 = vshrl.u32 %v389, 16
    %v423 = vrot.slane %v421, 7
    %v424 = vshll.u32 %v389, 16
    %v426 = vor.u32 %v423, %v424
    %v427 = vsel %vm405, %v415, %v426
    %v429 = vshrl.u32 %v391, 16
    %v431 = vrot.slane %v429, 7
    %v432 = vshll.u32 %v391, 16
    %v434 = vor.u32 %v431, %v432
    %v435 = vsel %vm405, %v423, %v434
    %v436 = vshrl.u32 %v404, 16
    %v438 = vrot.slane %v436, 7
    %v439 = vshll.u32 %v404, 16
    %v441 = vor.u32 %v438, %v439
    %v443 = vshrl.u32 %v394, 16
    %v445 = vrot.slane %v443, 7
    %v446 = vshll.u32 %v394, 16
    %v448 = vor.u32 %v445, %v446
    %v449 = vsel %vm405, %v438, %v448
    %v451 = vshrl.u32 %v396, 16
    %v453 = vrot.slane %v451, 7
    %v454 = vshll.u32 %v396, 16
    %v456 = vor.u32 %v453, %v454
    %v457 = vsel %vm405, %v445, %v456
    %v459 = vshrl.u32 %v398, 16
    %v461 = vrot.slane %v459, 7
    %v462 = vshll.u32 %v398, 16
    %v464 = vor.u32 %v461, %v462
    %v465 = vsel %vm405, %v453, %v464
    %vm474 = vcmask 1040384
    %vm475 = vmand %vm474, %vm405
    %v476 = vsel %vm475, 0, %v411
    %v477 = vsel %vm475, 0, %v441
    %v478 = vsel %vm352, 1, 0
    %v479 = vsel %vm353, 1, 0
    %v480 = vsel %vm354, 1, 0
    %v481 = vsel %vm355, 1, 0
    %v482 = vsel %vm356, 1, 0
    %v483 = vsel %vm357, 1, 0
    %v484 = vsel %vm358, 1, 0
    %v485 = vsel %vm359, 1, 0
    %vm486 = vcmp.eq.s32.totalorder %v478, 1
    %vm487 = vcmp.eq.s32.totalorder %v479, 1
    %vm488 = vcmp.eq.s32.totalorder %v480, 1
    %vm489 = vcmp.eq.s32.totalorder %v481, 1
    %vm490 = vcmp.eq.s32.totalorder %v482, 1
    %vm491 = vcmp.eq.s32.totalorder %v483, 1
    %vm492 = vcmp.eq.s32.totalorder %v484, 1
    %vm493 = vcmp.eq.s32.totalorder %v485, 1
    %vm494 = vmpackc.low %vm486, %vm486
    %vm495 = vmpackc.low %vm487, %vm487
    %vm496 = vmpackc.low %vm488, %vm488
    %vm497 = vmpackc.low %vm489, %vm489
    %vm498 = vmpackc.low %vm490, %vm490
    %vm499 = vmpackc.low %vm491, %vm491
    %vm500 = vmpackc.low %vm492, %vm492
    %vm501 = vmpackc.low %vm493, %vm493
    %v502 = vsel %vm494, 65537, 0
    %v503 = vsel %vm495, 65537, 0
    %v504 = vsel %vm496, 65537, 0
    %v505 = vsel %vm497, 65537, 0
    %v506 = vsel %vm498, 65537, 0
    %v507 = vsel %vm499, 65537, 0
    %v508 = vsel %vm500, 65537, 0
    %v509 = vsel %vm501, 65537, 0
    %v510 = vunpack.c.l.b16 %v502
    %v511 = vunpack.c.l.b16 %v503
    %v512 = vunpack.c.l.b16 %v504
    %v513 = vunpack.c.l.b16 %v505
    %v514 = vunpack.c.l.b16 %v506
    %v515 = vunpack.c.l.b16 %v507
    %v516 = vunpack.c.l.b16 %v508
    %v517 = vunpack.c.l.b16 %v509
    %v518 = vpack.c.b16 %v511, %v510
    %v519 = vpack.c.b16 %v513, %v512
    %v520 = vpack.c.b16 %v515, %v514
    %v521 = vpack.c.b16 %v517, %v516
    %vm522 = vcmp.ne.s16.totalorder %v518, 0
    %vm523 = vcmp.ne.s16.totalorder %v519, 0
    %vm524 = vcmp.ne.s16.totalorder %v520, 0
    %vm525 = vcmp.ne.s16.totalorder %v521, 0
    %v526 = vsel %vm522, %v476, 0
    %v527 = vsel %vm523, %v419, 0
    %v528 = vsel %vm524, %v427, 0
    %v529 = vsel %vm525, %v435, 0
    %v530 = vsel %vm522, %v477, 0
    %v531 = vsel %vm523, %v449, 0
    %v532 = vsel %vm524, %v457, 0
    %v533 = vsel %vm525, %v465, 0
    %vm534 = vsmask.f32 7424
    %v535 = vrot.slane %v409, 1
    %v536 = vor.u32 %v406, %v535
    %v537 = vrot.slane %v416, 1
    %v538 = vsel %vm534, %v536, %v537
    %v539 = vor.u32 %v413, %v537
    %v540 = vrot.slane %v424, 1
    %v541 = vsel %vm534, %v539, %v540
    %v542 = vor.u32 %v421, %v540
    %v543 = vrot.slane %v432, 1
    %v544 = vsel %vm534, %v542, %v543
    %v545 = vor.u32 %v429, %v543
    %v546 = vrot.slane %v439, 1
    %v547 = vor.u32 %v436, %v546
    %v548 = vrot.slane %v446, 1
    %v549 = vsel %vm534, %v547, %v548
    %v550 = vor.u32 %v443, %v548
    %v551 = vrot.slane %v454, 1
    %v552 = vsel %vm534, %v550, %v551
    %v553 = vor.u32 %v451, %v551
    %v554 = vrot.slane %v462, 1
    %v555 = vsel %vm534, %v553, %v554
    %v556 = vor.u32 %v459, %v554
    %vm565 = vcmask 1047552
    %vm566 = vmand %vm565, %vm534
    %v567 = vsel %vm566, %v545, 0
    %v568 = vsel %vm566, %v556, 0
    %v569 = vsel %vm360, 1, 0
    %v570 = vsel %vm361, 1, 0
    %v571 = vsel %vm362, 1, 0
    %v572 = vsel %vm363, 1, 0
    %v573 = vsel %vm364, 1, 0
    %v574 = vsel %vm365, 1, 0
    %v575 = vsel %vm366, 1, 0
    %v576 = vsel %vm367, 1, 0
    %vm577 = vcmp.eq.s32.totalorder %v569, 1
    %vm578 = vcmp.eq.s32.totalorder %v570, 1
    %vm579 = vcmp.eq.s32.totalorder %v571, 1
    %vm580 = vcmp.eq.s32.totalorder %v572, 1
    %vm581 = vcmp.eq.s32.totalorder %v573, 1
    %vm582 = vcmp.eq.s32.totalorder %v574, 1
    %vm583 = vcmp.eq.s32.totalorder %v575, 1
    %vm584 = vcmp.eq.s32.totalorder %v576, 1
    %vm585 = vmpackc.low %vm577, %vm577
    %vm586 = vmpackc.low %vm578, %vm578
    %vm587 = vmpackc.low %vm579, %vm579
    %vm588 = vmpackc.low %vm580, %vm580
    %vm589 = vmpackc.low %vm581, %vm581
    %vm590 = vmpackc.low %vm582, %vm582
    %vm591 = vmpackc.low %vm583, %vm583
    %vm592 = vmpackc.low %vm584, %vm584
    %v593 = vsel %vm585, 65537, 0
    %v594 = vsel %vm586, 65537, 0
    %v595 = vsel %vm587, 65537, 0
    %v596 = vsel %vm588, 65537, 0
    %v597 = vsel %vm589, 65537, 0
    %v598 = vsel %vm590, 65537, 0
    %v599 = vsel %vm591, 65537, 0
    %v600 = vsel %vm592, 65537, 0
    %v601 = vunpack.c.l.b16 %v593
    %v602 = vunpack.c.l.b16 %v594
    %v603 = vunpack.c.l.b16 %v595
    %v604 = vunpack.c.l.b16 %v596
    %v605 = vunpack.c.l.b16 %v597
    %v606 = vunpack.c.l.b16 %v598
    %v607 = vunpack.c.l.b16 %v599
    %v608 = vunpack.c.l.b16 %v600
    %v609 = vpack.c.b16 %v602, %v601
    %v610 = vpack.c.b16 %v604, %v603
    %v611 = vpack.c.b16 %v606, %v605
    %v612 = vpack.c.b16 %v608, %v607
    %vm613 = vcmp.ne.s16.totalorder %v609, 0
    %vm614 = vcmp.ne.s16.totalorder %v610, 0
    %vm615 = vcmp.ne.s16.totalorder %v611, 0
    %vm616 = vcmp.ne.s16.totalorder %v612, 0
    %v617 = vsel %vm613, %v538, 0
    %v618 = vsel %vm614, %v541, 0
    %v619 = vsel %vm615, %v544, 0
    %v620 = vsel %vm616, %v567, 0
    %v621 = vsel %vm613, %v549, 0
    %v622 = vsel %vm614, %v552, 0
    %v623 = vsel %vm615, %v555, 0
    %v624 = vsel %vm616, %v568, 0
    %v626 = vshrl.u32 %v368, 16
    %v628 = vrot.slane %v626, 7
    %v629 = vshll.u32 %v368, 16
    %v631 = vor.u32 %v628, %v629
    %v633 = vshrl.u32 %v369, 16
    %v635 = vrot.slane %v633, 7
    %v636 = vshll.u32 %v369, 16
    %v638 = vor.u32 %v635, %v636
    %v639 = vsel %vm405, %v628, %v638
    %v641 = vshrl.u32 %v370, 16
    %v643 = vrot.slane %v641, 7
    %v644 = vshll.u32 %v370, 16
    %v646 = vor.u32 %v643, %v644
    %v647 = vsel %vm405, %v635, %v646
    %v649 = vshrl.u32 %v371, 16
    %v651 = vrot.slane %v649, 7
    %v652 = vshll.u32 %v371, 16
    %v654 = vor.u32 %v651, %v652
    %v655 = vsel %vm405, %v643, %v654
    %v657 = vshrl.u32 %v372, 16
    %v659 = vrot.slane %v657, 7
    %v660 = vshll.u32 %v372, 16
    %v662 = vor.u32 %v659, %v660
    %v664 = vshrl.u32 %v373, 16
    %v666 = vrot.slane %v664, 7
    %v667 = vshll.u32 %v373, 16
    %v669 = vor.u32 %v666, %v667
    %v670 = vsel %vm405, %v659, %v669
    %v672 = vshrl.u32 %v374, 16
    %v674 = vrot.slane %v672, 7
    %v675 = vshll.u32 %v374, 16
    %v677 = vor.u32 %v674, %v675
    %v678 = vsel %vm405, %v666, %v677
    %v680 = vshrl.u32 %v375, 16
    %v682 = vrot.slane %v680, 7
    %v683 = vshll.u32 %v375, 16
    %v685 = vor.u32 %v682, %v683
    %v686 = vsel %vm405, %v674, %v685
    %v695 = vsel %vm475, 0, %v631
    %v696 = vsel %vm475, 0, %v662
    %v697 = vsel %vm522, %v695, 0
    %v698 = vsel %vm523, %v639, 0
    %v699 = vsel %vm524, %v647, 0
    %v700 = vsel %vm525, %v655, 0
    %v701 = vsel %vm522, %v696, 0
    %v702 = vsel %vm523, %v670, 0
    %v703 = vsel %vm524, %v678, 0
    %v704 = vsel %vm525, %v686, 0
    %v705 = vrot.slane %v629, 1
    %v706 = vor.u32 %v626, %v705
    %v707 = vrot.slane %v636, 1
    %v708 = vsel %vm534, %v706, %v707
    %v709 = vor.u32 %v633, %v707
    %v710 = vrot.slane %v644, 1
    %v711 = vsel %vm534, %v709, %v710
    %v712 = vor.u32 %v641, %v710
    %v713 = vrot.slane %v652, 1
    %v714 = vsel %vm534, %v712, %v713
    %v715 = vor.u32 %v649, %v713
    %v716 = vrot.slane %v660, 1
    %v717 = vor.u32 %v657, %v716
    %v718 = vrot.slane %v667, 1
    %v719 = vsel %vm534, %v717, %v718
    %v720 = vor.u32 %v664, %v718
    %v721 = vrot.slane %v675, 1
    %v722 = vsel %vm534, %v720, %v721
    %v723 = vor.u32 %v672, %v721
    %v724 = vrot.slane %v683, 1
    %v725 = vsel %vm534, %v723, %v724
    %v726 = vor.u32 %v680, %v724
    %v735 = vsel %vm566, %v715, 0
    %v736 = vsel %vm566, %v726, 0
    %v737 = vsel %vm613, %v708, 0
    %v738 = vsel %vm614, %v711, 0
    %v739 = vsel %vm615, %v714, 0
    %v740 = vsel %vm616, %v735, 0
    %v741 = vsel %vm613, %v719, 0
    %v742 = vsel %vm614, %v722, 0
    %v743 = vsel %vm615, %v725, 0
    %v744 = vsel %vm616, %v736, 0
    %v746 = vsel %vm399, %v390, 0
    %v748 = vsel %vm399, %v397, 0
    %v749 = vshrl.u32 %v746, 16
    %v751 = vrot.slane %v749, 7
    %v752 = vshll.u32 %v746, 16
    %v754 = vor.u32 %v751, %v752
    %v755 = vsel %vm405, %v431, %v754
    %v756 = vshrl.u32 %v748, 16
    %v758 = vrot.slane %v756, 7
    %v759 = vshll.u32 %v748, 16
    %v761 = vor.u32 %v758, %v759
    %v762 = vsel %vm405, %v461, %v761
    %v767 = vsel %vm475, 0, %v418
    %v768 = vsel %vm475, 0, %v448
    %v769 = vsel %vm522, %v767, 0
    %v770 = vsel %vm523, %v427, 0
    %v771 = vsel %vm524, %v435, 0
    %v772 = vsel %vm525, %v755, 0
    %v773 = vsel %vm522, %v768, 0
    %v774 = vsel %vm523, %v457, 0
    %v775 = vsel %vm524, %v465, 0
    %v776 = vsel %vm525, %v762, 0
    %v777 = vrot.slane %v752, 1
    %v778 = vsel %vm534, %v545, %v777
    %v779 = vor.u32 %v749, %v777
    %v780 = vrot.slane %v759, 1
    %v781 = vsel %vm534, %v556, %v780
    %v782 = vor.u32 %v756, %v780
    %v787 = vsel %vm566, %v779, 0
    %v788 = vsel %vm566, %v782, 0
    %v789 = vsel %vm613, %v541, 0
    %v790 = vsel %vm614, %v544, 0
    %v791 = vsel %vm615, %v778, 0
    %v792 = vsel %vm616, %v787, 0
    %v793 = vsel %vm613, %v552, 0
    %v794 = vsel %vm614, %v555, 0
    %v795 = vsel %vm615, %v781, 0
    %v796 = vsel %vm616, %v788, 0
    %799 = vrot.lane.b32.xlu0 %v402, 64
    %v800 = vpop.permute.xlu0 %799
    %801 = vrot.lane.b32.xlu0 %v387, 64
    %v802 = vpop.permute.xlu0 %801
    %803 = vrot.lane.b32.xlu0 %v389, 64
    %v804 = vpop.permute.xlu0 %803
    %805 = vrot.lane.b32.xlu0 %v391, 64
    %v806 = vpop.permute.xlu0 %805
    %807 = vrot.lane.b32.xlu0 %v404, 64
    %v808 = vpop.permute.xlu0 %807
    %809 = vrot.lane.b32.xlu0 %v394, 64
    %v810 = vpop.permute.xlu0 %809
    %811 = vrot.lane.b32.xlu0 %v396, 64
    %v812 = vpop.permute.xlu0 %811
    %813 = vrot.lane.b32.xlu0 %v398, 64
    %v814 = vpop.permute.xlu0 %813
    %823 = vrot.lane.b32.xlu0 %v697, 64
    %v824 = vpop.permute.xlu0 %823
    %825 = vrot.lane.b32.xlu0 %v698, 64
    %v826 = vpop.permute.xlu0 %825
    %827 = vrot.lane.b32.xlu0 %v699, 64
    %v828 = vpop.permute.xlu0 %827
    %829 = vrot.lane.b32.xlu0 %v700, 64
    %v830 = vpop.permute.xlu0 %829
    %831 = vrot.lane.b32.xlu0 %v701, 64
    %v832 = vpop.permute.xlu0 %831
    %833 = vrot.lane.b32.xlu0 %v702, 64
    %v834 = vpop.permute.xlu0 %833
    %835 = vrot.lane.b32.xlu0 %v703, 64
    %v836 = vpop.permute.xlu0 %835
    %837 = vrot.lane.b32.xlu0 %v704, 64
    %v838 = vpop.permute.xlu0 %837
    %847 = vrot.lane.b32.xlu0 %v737, 64
    %v848 = vpop.permute.xlu0 %847
    %849 = vrot.lane.b32.xlu0 %v738, 64
    %v850 = vpop.permute.xlu0 %849
    %851 = vrot.lane.b32.xlu0 %v739, 64
    %v852 = vpop.permute.xlu0 %851
    %853 = vrot.lane.b32.xlu0 %v740, 64
    %v854 = vpop.permute.xlu0 %853
    %855 = vrot.lane.b32.xlu0 %v741, 64
    %v856 = vpop.permute.xlu0 %855
    %857 = vrot.lane.b32.xlu0 %v742, 64
    %v858 = vpop.permute.xlu0 %857
    %859 = vrot.lane.b32.xlu0 %v743, 64
    %v860 = vpop.permute.xlu0 %859
    %861 = vrot.lane.b32.xlu0 %v744, 64
    %v862 = vpop.permute.xlu0 %861
    %865 = vrot.lane.b32.xlu0 %v746, 64
    %v866 = vpop.permute.xlu0 %865
    %867 = vrot.lane.b32.xlu0 %v748, 64
    %v868 = vpop.permute.xlu0 %867
    %vm869 = vcmask 523264
    %v872 = vsel %vm869, %v526, %v800
    %v876 = vsel %vm869, %v527, %v802
    %v880 = vsel %vm869, %v528, %v804
    %v884 = vsel %vm869, %v529, %v806
    %v888 = vsel %vm869, %v530, %v808
    %v892 = vsel %vm869, %v531, %v810
    %v896 = vsel %vm869, %v532, %v812
    %v900 = vsel %vm869, %v533, %v814
    %v904 = vsel %vm869, %v617, %v824
    %v908 = vsel %vm869, %v618, %v826
    %v912 = vsel %vm869, %v619, %v828
    %v916 = vsel %vm869, %v620, %v830
    %v920 = vsel %vm869, %v621, %v832
    %v924 = vsel %vm869, %v622, %v834
    %v928 = vsel %vm869, %v623, %v836
    %v932 = vsel %vm869, %v624, %v838
    %v935 = vsel %vm869, %v368, %v848
    %v938 = vsel %vm869, %v369, %v850
    %v941 = vsel %vm869, %v370, %v852
    %v944 = vsel %vm869, %v371, %v854
    %v947 = vsel %vm869, %v372, %v856
    %v950 = vsel %vm869, %v373, %v858
    %v953 = vsel %vm869, %v374, %v860
    %v956 = vsel %vm869, %v375, %v862
    %v959 = vsel %vm869, %v769, %v802
    %v962 = vsel %vm869, %v770, %v804
    %v965 = vsel %vm869, %v771, %v806
    %v969 = vsel %vm869, %v772, %v866
    %v972 = vsel %vm869, %v773, %v810
    %v975 = vsel %vm869, %v774, %v812
    %v978 = vsel %vm869, %v775, %v814
    %v982 = vsel %vm869, %v776, %v868
    %v984 = vld [vmem:[#allocation5] sm:$0xf]
    %v985 = vld [vmem:[#allocation5 + $0x4] sm:$0xf]
    %v986 = vld [vmem:[#allocation5 + $0x8] sm:$0xf]
    %v987 = vld [vmem:[#allocation5 + $0xc] sm:$0xf]
    %v988 = vld [vmem:[#allocation5 + $0x10] sm:$0xf]
    %v989 = vld [vmem:[#allocation5 + $0x14] sm:$0xf]
    %v990 = vld [vmem:[#allocation5 + $0x18] sm:$0xf]
    %v991 = vld [vmem:[#allocation5 + $0x1c] sm:$0xf]
    %v992 = vld [vmem:[#allocation5 + $0x20] sm:$0xf]
    %v993 = vld [vmem:[#allocation5 + $0x24] sm:$0xf]
    %v994 = vld [vmem:[#allocation5 + $0x28] sm:$0xf]
    %v995 = vld [vmem:[#allocation5 + $0x2c] sm:$0xf]
    %v996 = vld [vmem:[#allocation5 + $0x30] sm:$0xf]
    %v997 = vld [vmem:[#allocation5 + $0x34] sm:$0xf]
    %v998 = vld [vmem:[#allocation5 + $0x38] sm:$0xf]
    %v999 = vld [vmem:[#allocation5 + $0x3c] sm:$0xf]
    %v1000 = vld [vmem:[#allocation5 + $0x40] sm:$0xf]
    %v1001 = vld [vmem:[#allocation5 + $0x44] sm:$0xf]
    %v1002 = vld [vmem:[#allocation5 + $0x48] sm:$0xf]
    %v1003 = vld [vmem:[#allocation5 + $0x4c] sm:$0xf]
    %v1004 = vld [vmem:[#allocation5 + $0x50] sm:$0xf]
    %v1005 = vld [vmem:[#allocation5 + $0x54] sm:$0xf]
    %v1006 = vld [vmem:[#allocation5 + $0x58] sm:$0xf]
    %v1007 = vld [vmem:[#allocation5 + $0x5c] sm:$0xf]
    %v1008 = vld [vmem:[#allocation5 + $0x60] sm:$0xf]
    %v1009 = vld [vmem:[#allocation5 + $0x64] sm:$0xf]
    %v1010 = vld [vmem:[#allocation5 + $0x68] sm:$0xf]
    %v1011 = vld [vmem:[#allocation5 + $0x6c] sm:$0xf]
    %v1012 = vld [vmem:[#allocation5 + $0x70] sm:$0xf]
    %v1013 = vld [vmem:[#allocation5 + $0x74] sm:$0xf]
    %v1014 = vld [vmem:[#allocation5 + $0x78] sm:$0xf]
    %v1015 = vld [vmem:[#allocation5 + $0x7c] sm:$0xf]
    %v1016 = vld [vmem:[#allocation5 + $0x80] sm:$0xf]
    %v1017 = vld [vmem:[#allocation5 + $0x84] sm:$0xf]
    %v1018 = vld [vmem:[#allocation5 + $0x88] sm:$0xf]
    %v1019 = vld [vmem:[#allocation5 + $0x8c] sm:$0xf]
    %v1020 = vld [vmem:[#allocation5 + $0x90] sm:$0xf]
    %v1021 = vld [vmem:[#allocation5 + $0x94] sm:$0xf]
    %v1022 = vld [vmem:[#allocation5 + $0x98] sm:$0xf]
    %v1023 = vld [vmem:[#allocation5 + $0x9c] sm:$0xf]
    %v1024 = vld [vmem:[#allocation5 + $0xa0] sm:$0xf]
    %v1025 = vld [vmem:[#allocation5 + $0xa4] sm:$0xf]
    %v1026 = vld [vmem:[#allocation5 + $0xa8] sm:$0xf]
    %v1027 = vld [vmem:[#allocation5 + $0xac] sm:$0xf]
    %v1028 = vld [vmem:[#allocation5 + $0xb0] sm:$0xf]
    %v1029 = vld [vmem:[#allocation5 + $0xb4] sm:$0xf]
    %v1030 = vld [vmem:[#allocation5 + $0xb8] sm:$0xf]
    %v1031 = vld [vmem:[#allocation5 + $0xbc] sm:$0xf]
    %v1032 = vld [vmem:[#allocation5 + $0xc0] sm:$0xf]
    %v1033 = vld [vmem:[#allocation5 + $0xc4] sm:$0xf]
    %v1034 = vld [vmem:[#allocation5 + $0xc8] sm:$0xf]
    %v1035 = vld [vmem:[#allocation5 + $0xcc] sm:$0xf]
    %v1036 = vld [vmem:[#allocation5 + $0xd0] sm:$0xf]
    %v1037 = vld [vmem:[#allocation5 + $0xd4] sm:$0xf]
    %v1038 = vld [vmem:[#allocation5 + $0xd8] sm:$0xf]
    %v1039 = vld [vmem:[#allocation5 + $0xdc] sm:$0xf]
    %v1040 = vld [vmem:[#allocation5 + $0xe0] sm:$0xf]
    %v1041 = vld [vmem:[#allocation5 + $0xe4] sm:$0xf]
    %v1042 = vld [vmem:[#allocation5 + $0xe8] sm:$0xf]
    %v1043 = vld [vmem:[#allocation5 + $0xec] sm:$0xf]
    %v1044 = vld [vmem:[#allocation5 + $0xf0] sm:$0xf]
    %v1045 = vld [vmem:[#allocation5 + $0xf4] sm:$0xf]
    %v1046 = vld [vmem:[#allocation5 + $0xf8] sm:$0xf]
    %v1047 = vld [vmem:[#allocation5 + $0xfc] sm:$0xf]
    %v1048 = vld [vmem:[#allocation5 + $0x100] sm:$0xf]
    %v1049 = vld [vmem:[#allocation5 + $0x104] sm:$0xf]
    %v1050 = vld [vmem:[#allocation5 + $0x108] sm:$0xf]
    %v1051 = vld [vmem:[#allocation5 + $0x10c] sm:$0xf]
    %v1052 = vld [vmem:[#allocation5 + $0x110] sm:$0xf]
    %v1053 = vld [vmem:[#allocation5 + $0x114] sm:$0xf]
    %v1054 = vld [vmem:[#allocation5 + $0x118] sm:$0xf]
    %v1055 = vld [vmem:[#allocation5 + $0x11c] sm:$0xf]
    %v1128 = vunpack.c.l.b16 %v984
    %v1129 = vunpack.c.l.b16 %v985
    %v1130 = vunpack.c.l.b16 %v986
    %v1131 = vunpack.c.l.b16 %v987
    %v1132 = vunpack.c.l.b16 %v988
    %v1133 = vunpack.c.l.b16 %v989
    %v1134 = vunpack.c.l.b16 %v990
    %v1135 = vunpack.c.l.b16 %v991
    %v1136 = vunpack.c.l.b16 %v992
    %v1137 = vunpack.c.l.b16 %v993
    %v1138 = vunpack.c.l.b16 %v994
    %v1139 = vunpack.c.l.b16 %v995
    %v1140 = vunpack.c.l.b16 %v996
    %v1141 = vunpack.c.l.b16 %v997
    %v1142 = vunpack.c.l.b16 %v998
    %v1143 = vunpack.c.l.b16 %v999
    %v1144 = vunpack.c.l.b16 %v1000
    %v1145 = vunpack.c.l.b16 %v1001
    %v1146 = vunpack.c.l.b16 %v1002
    %v1147 = vunpack.c.l.b16 %v1003
    %v1148 = vunpack.c.l.b16 %v1004
    %v1149 = vunpack.c.l.b16 %v1005
    %v1150 = vunpack.c.l.b16 %v1006
    %v1151 = vunpack.c.l.b16 %v1007
    %v1152 = vunpack.c.l.b16 %v1008
    %v1153 = vunpack.c.l.b16 %v1009
    %v1154 = vunpack.c.l.b16 %v1010
    %v1155 = vunpack.c.l.b16 %v1011
    %v1156 = vunpack.c.l.b16 %v1012
    %v1157 = vunpack.c.l.b16 %v1013
    %v1158 = vunpack.c.l.b16 %v1014
    %v1159 = vunpack.c.l.b16 %v1015
    %v1160 = vunpack.c.l.b16 %v1016
    %v1161 = vunpack.c.l.b16 %v1017
    %v1162 = vunpack.c.l.b16 %v1018
    %v1163 = vunpack.c.l.b16 %v1019
    %v1164 = vunpack.c.l.b16 %v1020
    %v1165 = vunpack.c.l.b16 %v1021
    %v1166 = vunpack.c.l.b16 %v1022
    %v1167 = vunpack.c.l.b16 %v1023
    %v1168 = vunpack.c.l.b16 %v1024
    %v1169 = vunpack.c.l.b16 %v1025
    %v1170 = vunpack.c.l.b16 %v1026
    %v1171 = vunpack.c.l.b16 %v1027
    %v1172 = vunpack.c.l.b16 %v1028
    %v1173 = vunpack.c.l.b16 %v1029
    %v1174 = vunpack.c.l.b16 %v1030
    %v1175 = vunpack.c.l.b16 %v1031
    %v1176 = vunpack.c.l.b16 %v1032
    %v1177 = vunpack.c.l.b16 %v1033
    %v1178 = vunpack.c.l.b16 %v1034
    %v1179 = vunpack.c.l.b16 %v1035
    %v1180 = vunpack.c.l.b16 %v1036
    %v1181 = vunpack.c.l.b16 %v1037
    %v1182 = vunpack.c.l.b16 %v1038
    %v1183 = vunpack.c.l.b16 %v1039
    %v1184 = vunpack.c.l.b16 %v1040
    %v1185 = vunpack.c.l.b16 %v1041
    %v1186 = vunpack.c.l.b16 %v1042
    %v1187 = vunpack.c.l.b16 %v1043
    %v1188 = vunpack.c.l.b16 %v1044
    %v1189 = vunpack.c.l.b16 %v1045
    %v1190 = vunpack.c.l.b16 %v1046
    %v1191 = vunpack.c.l.b16 %v1047
    %v1192 = vunpack.c.l.b16 %v1048
    %v1193 = vunpack.c.l.b16 %v1049
    %v1194 = vunpack.c.l.b16 %v1050
    %v1195 = vunpack.c.l.b16 %v1051
    %v1196 = vunpack.c.l.b16 %v1052
    %v1197 = vunpack.c.l.b16 %v1053
    %v1198 = vunpack.c.l.b16 %v1054
    %v1199 = vunpack.c.l.b16 %v1055
    %v1200 = vpack.c.b16 %v1129, %v1128
    %v1201 = vpack.c.b16 %v1131, %v1130
    %v1202 = vpack.c.b16 %v1133, %v1132
    %v1203 = vpack.c.b16 %v1135, %v1134
    %v1204 = vpack.c.b16 %v1137, %v1136
    %v1205 = vpack.c.b16 %v1139, %v1138
    %v1206 = vpack.c.b16 %v1141, %v1140
    %v1207 = vpack.c.b16 %v1143, %v1142
    %v1208 = vpack.c.b16 %v1145, %v1144
    %v1209 = vpack.c.b16 %v1147, %v1146
    %v1210 = vpack.c.b16 %v1149, %v1148
    %v1211 = vpack.c.b16 %v1151, %v1150
    %v1212 = vpack.c.b16 %v1153, %v1152
    %v1213 = vpack.c.b16 %v1155, %v1154
    %v1214 = vpack.c.b16 %v1157, %v1156
    %v1215 = vpack.c.b16 %v1159, %v1158
    %v1216 = vpack.c.b16 %v1161, %v1160
    %v1217 = vpack.c.b16 %v1163, %v1162
    %v1218 = vpack.c.b16 %v1165, %v1164
    %v1219 = vpack.c.b16 %v1167, %v1166
    %v1220 = vpack.c.b16 %v1169, %v1168
    %v1221 = vpack.c.b16 %v1171, %v1170
    %v1222 = vpack.c.b16 %v1173, %v1172
    %v1223 = vpack.c.b16 %v1175, %v1174
    %v1224 = vpack.c.b16 %v1177, %v1176
    %v1225 = vpack.c.b16 %v1179, %v1178
    %v1226 = vpack.c.b16 %v1181, %v1180
    %v1227 = vpack.c.b16 %v1183, %v1182
    %v1228 = vpack.c.b16 %v1185, %v1184
    %v1229 = vpack.c.b16 %v1187, %v1186
    %v1230 = vpack.c.b16 %v1189, %v1188
    %v1231 = vpack.c.b16 %v1191, %v1190
    %v1232 = vpack.c.b16 %v1193, %v1192
    %v1233 = vpack.c.b16 %v1195, %v1194
    %v1234 = vpack.c.b16 %v1197, %v1196
    %v1235 = vpack.c.b16 %v1199, %v1198
    %v1273 = vsel %vm869, %v789, 0
    %v1276 = vsel %vm869, %v790, 0
    %v1279 = vsel %vm869, %v791, 0
    %v1282 = vsel %vm869, %v792, 0
    %v1285 = vsel %vm869, %v793, 0
    %v1288 = vsel %vm869, %v794, 0
    %v1291 = vsel %vm869, %v795, 0
    %v1294 = vsel %vm869, %v796, 0
    %1296 = vmatprep.subr.bf16.mxu0 0
    %1297 = vmatpush1.bf16.msra.mxu0 %v1200
    %1298 = vmatprep.subr.bf16.mxu0 0
    %1299 = vmatpush1.bf16.msra.mxu0 %v1201
    %1300 = vmatprep.subr.bf16.mxu0 0
    %1301 = vmatpush1.bf16.msra.mxu0 %v1202
    %1302 = vmatprep.subr.bf16.mxu0 0
    %1303 = vmatpush1.bf16.msra.mxu0 %v1203
    %1304 = vmatprep.subr.bf16.mxu0 0
    %1305 = vmatpush1.bf16.msra.mxu0 %v1204
    %1306 = vmatprep.subr.bf16.mxu0 0
    %1307 = vmatpush1.bf16.msra.mxu0 %v1205
    %1308 = vmatprep.subr.bf16.mxu0 0
    %1309 = vmatpush1.bf16.msra.mxu0 %v1206
    %1310 = vmatprep.subr.bf16.mxu0 0
    %1311 = vmatpush1.bf16.msra.mxu0 %v1207
    %1312 = vmatprep.subr.bf16.mxu0 0
    %1313 = vmatpush1.bf16.msra.mxu0 %v1208
    %1314 = vmatprep.subr.bf16.mxu0 0
    %1315 = vmatpush1.bf16.msra.mxu0 %v1209
    %1316 = vmatprep.subr.bf16.mxu0 0
    %1317 = vmatpush1.bf16.msra.mxu0 %v1210
    %1318 = vmatprep.subr.bf16.mxu0 0
    %1319 = vmatpush1.bf16.msra.mxu0 %v1211
    %1320 = vmatprep.subr.bf16.mxu0 0
    %1321 = vmatpush1.bf16.msra.mxu0 %v1212
    %1322 = vmatprep.subr.bf16.mxu0 0
    %1323 = vmatpush1.bf16.msra.mxu0 %v1213
    %1324 = vmatprep.subr.bf16.mxu0 0
    %1325 = vmatpush1.bf16.msra.mxu0 %v1214
    %1326 = vmatprep.subr.bf16.mxu0 0
    %1327 = vmatpush1.bf16.msra.mxu0 %v1215
    %1328 = vmatprep.mubr.bf16.mxu0 %v904
    %1329 = vmatmul.mubr.bf16.gmra.mrb[0].mxu0 %v872
    %v1330 = vpop.f32.mrb[0].mxu0
    %v1331 = vadd.f32 0.0, %v1330
    %v1332 = vpop.f32.mrb[0].mxu0
    %v1333 = vpop.f32.mrb[0].mxu0
    %v1334 = vadd.f32 0.0, %v1333
    %v1335 = vpop.f32.mrb[0].mxu0
    %1336 = vmatprep.mubr.bf16.mxu0 %v908
    %1337 = vmatmul.mubr.bf16.gmra.mrb[0].mxu0 %v876
    %v1338 = vpop.f32.mrb[0].mxu0
    %v1339 = vadd.f32 0.0, %v1338
    %v1340 = vpop.f32.mrb[0].mxu0
    %v1341 = vpop.f32.mrb[0].mxu0
    %v1342 = vadd.f32 0.0, %v1341
    %v1343 = vpop.f32.mrb[0].mxu0
    %1344 = vmatprep.mubr.bf16.mxu0 %v912
    %1345 = vmatmul.mubr.bf16.gmra.mrb[0].mxu0 %v880
    %v1346 = vpop.f32.mrb[0].mxu0
    %v1347 = vadd.f32 0.0, %v1346
    %v1348 = vpop.f32.mrb[0].mxu0
    %v1349 = vpop.f32.mrb[0].mxu0
    %v1350 = vadd.f32 0.0, %v1349
    %v1351 = vpop.f32.mrb[0].mxu0
    %1352 = vmatprep.mubr.bf16.mxu0 %v916
    %1353 = vmatmul.mubr.bf16.gmra.mrb[0].mxu0 %v884
    %v1354 = vpop.f32.mrb[0].mxu0
    %v1355 = vadd.f32 0.0, %v1354
    %v1356 = vpop.f32.mrb[0].mxu0
    %v1357 = vpop.f32.mrb[0].mxu0
    %v1358 = vadd.f32 0.0, %v1357
    %v1359 = vpop.f32.mrb[0].mxu0
    %1360 = vmatprep.mubr.bf16.mxu0 %v920
    %1361 = vmatmul.mubr.bf16.gmra.mrb[0].mxu0 %v888
    %v1362 = vpop.f32.mrb[0].mxu0
    %v1363 = vadd.f32 0.0, %v1362
    %v1364 = vpop.f32.mrb[0].mxu0
    %v1365 = vpop.f32.mrb[0].mxu0
    %v1366 = vadd.f32 0.0, %v1365
    %v1367 = vpop.f32.mrb[0].mxu0
    %1368 = vmatprep.mubr.bf16.mxu0 %v924
    %1369 = vmatmul.mubr.bf16.gmra.mrb[0].mxu0 %v892
    %v1370 = vpop.f32.mrb[0].mxu0
    %v1371 = vadd.f32 0.0, %v1370
    %v1372 = vpop.f32.mrb[0].mxu0
    %v1373 = vpop.f32.mrb[0].mxu0
    %v1374 = vadd.f32 0.0, %v1373
    %v1375 = vpop.f32.mrb[0].mxu0
    %1376 = vmatprep.mubr.bf16.mxu0 %v928
    %1377 = vmatmul.mubr.bf16.gmra.mrb[0].mxu0 %v896
    %v1378 = vpop.f32.mrb[0].mxu0
    %v1379 = vadd.f32 0.0, %v1378
    %v1380 = vpop.f32.mrb[0].mxu0
    %v1381 = vpop.f32.mrb[0].mxu0
    %v1382 = vadd.f32 0.0, %v1381
    %v1383 = vpop.f32.mrb[0].mxu0
    %1384 = vmatprep.mubr.bf16.mxu0 %v932
    %1385 = vmatmul.mubr.bf16.gmra.mrb[0].mxu0 %v900
    %v1386 = vpop.f32.mrb[0].mxu0
    %v1387 = vadd.f32 0.0, %v1386
    %v1388 = vpop.f32.mrb[0].mxu0
    %v1389 = vpop.f32.mrb[0].mxu0
    %v1390 = vadd.f32 0.0, %v1389
    %v1391 = vpop.f32.mrb[0].mxu0
    %1392 = vdwg.mxu0
    %1393 = vmatprep.subr.bf16.mxu0 0
    %1394 = vmatpush1.bf16.msra.mxu0 %v1216
    %1395 = vmatprep.subr.bf16.mxu0 0
    %1396 = vmatpush1.bf16.msra.mxu0 %v1217
    %1397 = vmatprep.subr.bf16.mxu0 0
    %1398 = vmatpush1.bf16.msra.mxu0 %v1218
    %1399 = vmatprep.subr.bf16.mxu0 0
    %1400 = vmatpush1.bf16.msra.mxu0 %v1219
    %1401 = vmatprep.subr.bf16.mxu0 0
    %1402 = vmatpush1.bf16.msra.mxu0 %v1220
    %1403 = vmatprep.subr.bf16.mxu0 0
    %1404 = vmatpush1.bf16.msra.mxu0 %v1221
    %1405 = vmatprep.subr.bf16.mxu0 0
    %1406 = vmatpush1.bf16.msra.mxu0 %v1222
    %1407 = vmatprep.subr.bf16.mxu0 0
    %1408 = vmatpush1.bf16.msra.mxu0 %v1223
    %1409 = vmatprep.subr.bf16.mxu0 0
    %1410 = vmatpush1.bf16.msra.mxu0 %v1224
    %1411 = vmatprep.subr.bf16.mxu0 0
    %1412 = vmatpush1.bf16.msra.mxu0 %v1225
    %1413 = vmatprep.subr.bf16.mxu0 0
    %1414 = vmatpush1.bf16.msra.mxu0 %v1226
    %1415 = vmatprep.subr.bf16.mxu0 0
    %1416 = vmatpush1.bf16.msra.mxu0 %v1227
    %1417 = vmatprep.subr.bf16.mxu0 0
    %1418 = vmatpush1.bf16.msra.mxu0 %v1228
    %1419 = vmatprep.subr.bf16.mxu0 0
    %1420 = vmatpush1.bf16.msra.mxu0 %v1229
    %1421 = vmatprep.subr.bf16.mxu0 0
    %1422 = vmatpush1.bf16.msra.mxu0 %v1230
    %1423 = vmatprep.subr.bf16.mxu0 0
    %1424 = vmatpush1.bf16.msra.mxu0 %v1231
    %1425 = vmatprep.mubr.bf16.mxu0 %v959
    %1426 = vmatmul.mubr.bf16.gmra.mrb[0].mxu0 %v935
    %v1427 = vpop.f32.mrb[0].mxu0
    %v1428 = vadd.f32 %v1331, %v1427
    %v1429 = vpop.f32.mrb[0].mxu0
    %v1430 = vpop.f32.mrb[0].mxu0
    %v1431 = vadd.f32 %v1334, %v1430
    %v1432 = vpop.f32.mrb[0].mxu0
    %1433 = vmatprep.mubr.bf16.mxu0 %v962
    %1434 = vmatmul.mubr.bf16.gmra.mrb[0].mxu0 %v938
    %v1435 = vpop.f32.mrb[0].mxu0
    %v1436 = vadd.f32 %v1339, %v1435
    %v1437 = vpop.f32.mrb[0].mxu0
    %v1438 = vpop.f32.mrb[0].mxu0
    %v1439 = vadd.f32 %v1342, %v1438
    %v1440 = vpop.f32.mrb[0].mxu0
    %1441 = vmatprep.mubr.bf16.mxu0 %v965
    %1442 = vmatmul.mubr.bf16.gmra.mrb[0].mxu0 %v941
    %v1443 = vpop.f32.mrb[0].mxu0
    %v1444 = vadd.f32 %v1347, %v1443
    %v1445 = vpop.f32.mrb[0].mxu0
    %v1446 = vpop.f32.mrb[0].mxu0
    %v1447 = vadd.f32 %v1350, %v1446
    %v1448 = vpop.f32.mrb[0].mxu0
    %1449 = vmatprep.mubr.bf16.mxu0 %v969
    %1450 = vmatmul.mubr.bf16.gmra.mrb[0].mxu0 %v944
    %v1451 = vpop.f32.mrb[0].mxu0
    %v1452 = vadd.f32 %v1355, %v1451
    %v1453 = vpop.f32.mrb[0].mxu0
    %v1454 = vpop.f32.mrb[0].mxu0
    %v1455 = vadd.f32 %v1358, %v1454
    %v1456 = vpop.f32.mrb[0].mxu0
    %1457 = vmatprep.mubr.bf16.mxu0 %v972
    %1458 = vmatmul.mubr.bf16.gmra.mrb[0].mxu0 %v947
    %v1459 = vpop.f32.mrb[0].mxu0
    %v1460 = vadd.f32 %v1363, %v1459
    %v1461 = vpop.f32.mrb[0].mxu0
    %v1462 = vpop.f32.mrb[0].mxu0
    %v1463 = vadd.f32 %v1366, %v1462
    %v1464 = vpop.f32.mrb[0].mxu0
    %1465 = vmatprep.mubr.bf16.mxu0 %v975
    %1466 = vmatmul.mubr.bf16.gmra.mrb[0].mxu0 %v950
    %v1467 = vpop.f32.mrb[0].mxu0
    %v1468 = vadd.f32 %v1371, %v1467
    %v1469 = vpop.f32.mrb[0].mxu0
    %v1470 = vpop.f32.mrb[0].mxu0
    %v1471 = vadd.f32 %v1374, %v1470
    %v1472 = vpop.f32.mrb[0].mxu0
    %1473 = vmatprep.mubr.bf16.mxu0 %v978
    %1474 = vmatmul.mubr.bf16.gmra.mrb[0].mxu0 %v953
    %v1475 = vpop.f32.mrb[0].mxu0
    %v1476 = vadd.f32 %v1379, %v1475
    %v1477 = vpop.f32.mrb[0].mxu0
    %v1478 = vpop.f32.mrb[0].mxu0
    %v1479 = vadd.f32 %v1382, %v1478
    %v1480 = vpop.f32.mrb[0].mxu0
    %1481 = vmatprep.mubr.bf16.mxu0 %v982
    %1482 = vmatmul.mubr.bf16.gmra.mrb[0].mxu0 %v956
    %v1483 = vpop.f32.mrb[0].mxu0
    %v1484 = vadd.f32 %v1387, %v1483
    %v1485 = vpop.f32.mrb[0].mxu0
    %v1486 = vpop.f32.mrb[0].mxu0
    %v1487 = vadd.f32 %v1390, %v1486
    %v1488 = vpop.f32.mrb[0].mxu0
    %1489 = vdwg.mxu0
    %1490 = vmatprep.subr.bf16.mxu0 0
    %1491 = vmatpush1.bf16.msra.mxu0 %v1232
    %1492 = vmatprep.subr.bf16.mxu0 0
    %1493 = vmatpush1.bf16.msra.mxu0 %v1233
    %1494 = vmatprep.subr.bf16.mxu0 0
    %1495 = vmatpush1.bf16.msra.mxu0 %v1234
    %1496 = vmatprep.subr.bf16.mxu0 0
    %1497 = vmatpush1.bf16.msra.mxu0 %v1235
    %1498 = vmatprep.subr.bf16.mxu0 0
    %1499 = vmatpush1.bf16.msra.mxu0 0
    %1500 = vmatprep.subr.bf16.mxu0 0
    %1501 = vmatpush1.bf16.msra.mxu0 0
    %1502 = vmatprep.subr.bf16.mxu0 0
    %1503 = vmatpush1.bf16.msra.mxu0 0
    %1504 = vmatprep.subr.bf16.mxu0 0
    %1505 = vmatpush1.bf16.msra.mxu0 0
    %1506 = vmatprep.subr.bf16.mxu0 0
    %1507 = vmatpush1.bf16.msra.mxu0 0
    %1508 = vmatprep.subr.bf16.mxu0 0
    %1509 = vmatpush1.bf16.msra.mxu0 0
    %1510 = vmatprep.subr.bf16.mxu0 0
    %1511 = vmatpush1.bf16.msra.mxu0 0
    %1512 = vmatprep.subr.bf16.mxu0 0
    %1513 = vmatpush1.bf16.msra.mxu0 0
    %1514 = vmatprep.subr.bf16.mxu0 0
    %1515 = vmatpush1.bf16.msra.mxu0 0
    %1516 = vmatprep.subr.bf16.mxu0 0
    %1517 = vmatpush1.bf16.msra.mxu0 0
    %1518 = vmatprep.subr.bf16.mxu0 0
    %1519 = vmatpush1.bf16.msra.mxu0 0
    %1520 = vmatprep.subr.bf16.mxu0 0
    %1521 = vmatpush1.bf16.msra.mxu0 0
    %1522 = vmatprep.mubr.bf16.mxu0 0
    %1523 = vmatmul.mubr.bf16.gmra.mrb[0].mxu0 %v1273
    %v1524 = vpop.f32.mrb[0].mxu0
    %v1525 = vadd.f32 %v1428, %v1524
    %v1526 = vpop.f32.mrb[0].mxu0
    %v1527 = vpop.f32.mrb[0].mxu0
    %v1528 = vadd.f32 %v1431, %v1527
    %v1529 = vpop.f32.mrb[0].mxu0
    %1530 = vmatprep.mubr.bf16.mxu0 0
    %1531 = vmatmul.mubr.bf16.gmra.mrb[0].mxu0 %v1276
    %v1532 = vpop.f32.mrb[0].mxu0
    %v1533 = vadd.f32 %v1436, %v1532
    %v1534 = vpop.f32.mrb[0].mxu0
    %v1535 = vpop.f32.mrb[0].mxu0
    %v1536 = vadd.f32 %v1439, %v1535
    %v1537 = vpop.f32.mrb[0].mxu0
    %1538 = vmatprep.mubr.bf16.mxu0 0
    %1539 = vmatmul.mubr.bf16.gmra.mrb[0].mxu0 %v1279
    %v1540 = vpop.f32.mrb[0].mxu0
    %v1541 = vadd.f32 %v1444, %v1540
    %v1542 = vpop.f32.mrb[0].mxu0
    %v1543 = vpop.f32.mrb[0].mxu0
    %v1544 = vadd.f32 %v1447, %v1543
    %v1545 = vpop.f32.mrb[0].mxu0
    %1546 = vmatprep.mubr.bf16.mxu0 0
    %1547 = vmatmul.mubr.bf16.gmra.mrb[0].mxu0 %v1282
    %v1548 = vpop.f32.mrb[0].mxu0
    %v1549 = vadd.f32 %v1452, %v1548
    %v1550 = vpop.f32.mrb[0].mxu0
    %v1551 = vpop.f32.mrb[0].mxu0
    %v1552 = vadd.f32 %v1455, %v1551
    %v1553 = vpop.f32.mrb[0].mxu0
    %1554 = vmatprep.mubr.bf16.mxu0 0
    %1555 = vmatmul.mubr.bf16.gmra.mrb[0].mxu0 %v1285
    %v1556 = vpop.f32.mrb[0].mxu0
    %v1557 = vadd.f32 %v1460, %v1556
    %v1558 = vpop.f32.mrb[0].mxu0
    %v1559 = vpop.f32.mrb[0].mxu0
    %v1560 = vadd.f32 %v1463, %v1559
    %v1561 = vpop.f32.mrb[0].mxu0
    %1562 = vmatprep.mubr.bf16.mxu0 0
    %1563 = vmatmul.mubr.bf16.gmra.mrb[0].mxu0 %v1288
    %v1564 = vpop.f32.mrb[0].mxu0
    %v1565 = vadd.f32 %v1468, %v1564
    %v1566 = vpop.f32.mrb[0].mxu0
    %v1567 = vpop.f32.mrb[0].mxu0
    %v1568 = vadd.f32 %v1471, %v1567
    %v1569 = vpop.f32.mrb[0].mxu0
    %1570 = vmatprep.mubr.bf16.mxu0 0
    %1571 = vmatmul.mubr.bf16.gmra.mrb[0].mxu0 %v1291
    %v1572 = vpop.f32.mrb[0].mxu0
    %v1573 = vadd.f32 %v1476, %v1572
    %v1574 = vpop.f32.mrb[0].mxu0
    %v1575 = vpop.f32.mrb[0].mxu0
    %v1576 = vadd.f32 %v1479, %v1575
    %v1577 = vpop.f32.mrb[0].mxu0
    %1578 = vmatprep.mubr.bf16.mxu0 0
    %1579 = vmatmul.mubr.bf16.gmra.mrb[0].mxu0 %v1294
    %v1580 = vpop.f32.mrb[0].mxu0
    %v1581 = vadd.f32 %v1484, %v1580
    %v1582 = vpop.f32.mrb[0].mxu0
    %v1583 = vpop.f32.mrb[0].mxu0
    %v1584 = vadd.f32 %v1487, %v1583
    %v1585 = vpop.f32.mrb[0].mxu0
    %1586 = vdwg.mxu0
    %v1587 = vmax.f32 %v1525, 0.0
    %v1588 = vmax.f32 %v1528, 0.0
    %v1589 = vmax.f32 %v1533, 0.0
    %v1590 = vmax.f32 %v1536, 0.0
    %v1591 = vmax.f32 %v1541, 0.0
    %v1592 = vmax.f32 %v1544, 0.0
    %v1593 = vmax.f32 %v1549, 0.0
    %v1594 = vmax.f32 %v1552, 0.0
    %v1595 = vmax.f32 %v1557, 0.0
    %v1596 = vmax.f32 %v1560, 0.0
    %v1597 = vmax.f32 %v1565, 0.0
    %v1598 = vmax.f32 %v1568, 0.0
    %v1599 = vmax.f32 %v1573, 0.0
    %v1600 = vmax.f32 %v1576, 0.0
    %v1601 = vmax.f32 %v1581, 0.0
    %v1602 = vmax.f32 %v1584, 0.0
    %v1603 = vpack.c.bf16 %v1588, %v1587
    %v1604 = vpack.c.bf16 %v1590, %v1589
    %v1605 = vpack.c.bf16 %v1592, %v1591
    %v1606 = vpack.c.bf16 %v1594, %v1593
    %v1607 = vpack.c.bf16 %v1596, %v1595
    %v1608 = vpack.c.bf16 %v1598, %v1597
    %v1609 = vpack.c.bf16 %v1600, %v1599
    %v1610 = vpack.c.bf16 %v1602, %v1601
    %v1619 = vrot.slane %v1603, 4
    %v1620 = vrot.slane %v1604, 4
    %v1621 = vsel %vm384, %v1619, %v1620
    %v1622 = vrot.slane %v1605, 4
    %v1623 = vsel %vm384, %v1620, %v1622
    %v1624 = vrot.slane %v1606, 4
    %v1625 = vsel %vm384, %v1622, %v1624
    %v1626 = vrot.slane %v1607, 4
    %v1627 = vrot.slane %v1608, 4
    %v1628 = vsel %vm384, %v1626, %v1627
    %v1629 = vrot.slane %v1609, 4
    %v1630 = vsel %vm384, %v1627, %v1629
    %v1631 = vrot.slane %v1610, 4
    %v1632 = vsel %vm384, %v1629, %v1631
    %v1634 = vsel %vm399, 0, %v1619
    %v1636 = vsel %vm399, 0, %v1626
    %v1637 = vshrl.u32 %v1634, 16
    %v1639 = vrot.slane %v1637, 7
    %v1640 = vshll.u32 %v1634, 16
    %v1642 = vor.u32 %v1639, %v1640
    %v1644 = vshrl.u32 %v1621, 16
    %v1646 = vrot.slane %v1644, 7
    %v1647 = vshll.u32 %v1621, 16
    %v1649 = vor.u32 %v1646, %v1647
    %v1650 = vsel %vm405, %v1639, %v1649
    %v1652 = vshrl.u32 %v1623, 16
    %v1654 = vrot.slane %v1652, 7
    %v1655 = vshll.u32 %v1623, 16
    %v1657 = vor.u32 %v1654, %v1655
    %v1658 = vsel %vm405, %v1646, %v1657
    %v1660 = vshrl.u32 %v1625, 16
    %v1662 = vrot.slane %v1660, 7
    %v1663 = vshll.u32 %v1625, 16
    %v1665 = vor.u32 %v1662, %v1663
    %v1666 = vsel %vm405, %v1654, %v1665
    %v1667 = vshrl.u32 %v1636, 16
    %v1669 = vrot.slane %v1667, 7
    %v1670 = vshll.u32 %v1636, 16
    %v1672 = vor.u32 %v1669, %v1670
    %v1674 = vshrl.u32 %v1628, 16
    %v1676 = vrot.slane %v1674, 7
    %v1677 = vshll.u32 %v1628, 16
    %v1679 = vor.u32 %v1676, %v1677
    %v1680 = vsel %vm405, %v1669, %v1679
    %v1682 = vshrl.u32 %v1630, 16
    %v1684 = vrot.slane %v1682, 7
    %v1685 = vshll.u32 %v1630, 16
    %v1687 = vor.u32 %v1684, %v1685
    %v1688 = vsel %vm405, %v1676, %v1687
    %v1690 = vshrl.u32 %v1632, 16
    %v1692 = vrot.slane %v1690, 7
    %v1693 = vshll.u32 %v1632, 16
    %v1695 = vor.u32 %v1692, %v1693
    %v1696 = vsel %vm405, %v1684, %v1695
    %v1705 = vsel %vm475, 0, %v1642
    %v1706 = vsel %vm475, 0, %v1672
    %v1707 = vsel %vm522, %v1705, 0
    %v1708 = vsel %vm523, %v1650, 0
    %v1709 = vsel %vm524, %v1658, 0
    %v1710 = vsel %vm525, %v1666, 0
    %v1711 = vsel %vm522, %v1706, 0
    %v1712 = vsel %vm523, %v1680, 0
    %v1713 = vsel %vm524, %v1688, 0
    %v1714 = vsel %vm525, %v1696, 0
    %v1715 = vrot.slane %v1640, 1
    %v1716 = vor.u32 %v1637, %v1715
    %v1717 = vrot.slane %v1647, 1
    %v1718 = vsel %vm534, %v1716, %v1717
    %v1719 = vor.u32 %v1644, %v1717
    %v1720 = vrot.slane %v1655, 1
    %v1721 = vsel %vm534, %v1719, %v1720
    %v1722 = vor.u32 %v1652, %v1720
    %v1723 = vrot.slane %v1663, 1
    %v1724 = vsel %vm534, %v1722, %v1723
    %v1725 = vor.u32 %v1660, %v1723
    %v1726 = vrot.slane %v1670, 1
    %v1727 = vor.u32 %v1667, %v1726
    %v1728 = vrot.slane %v1677, 1
    %v1729 = vsel %vm534, %v1727, %v1728
    %v1730 = vor.u32 %v1674, %v1728
    %v1731 = vrot.slane %v1685, 1
    %v1732 = vsel %vm534, %v1730, %v1731
    %v1733 = vor.u32 %v1682, %v1731
    %v1734 = vrot.slane %v1693, 1
    %v1735 = vsel %vm534, %v1733, %v1734
    %v1736 = vor.u32 %v1690, %v1734
    %v1745 = vsel %vm566, %v1725, 0
    %v1746 = vsel %vm566, %v1736, 0
    %v1747 = vsel %vm613, %v1718, 0
    %v1748 = vsel %vm614, %v1721, 0
    %v1749 = vsel %vm615, %v1724, 0
    %v1750 = vsel %vm616, %v1745, 0
    %v1751 = vsel %vm613, %v1729, 0
    %v1752 = vsel %vm614, %v1732, 0
    %v1753 = vsel %vm615, %v1735, 0
    %v1754 = vsel %vm616, %v1746, 0
    %v1756 = vshrl.u32 %v1603, 16
    %v1758 = vrot.slane %v1756, 7
    %v1759 = vshll.u32 %v1603, 16
    %v1761 = vor.u32 %v1758, %v1759
    %v1763 = vshrl.u32 %v1604, 16
    %v1765 = vrot.slane %v1763, 7
    %v1766 = vshll.u32 %v1604, 16
    %v1768 = vor.u32 %v1765, %v1766
    %v1769 = vsel %vm405, %v1758, %v1768
    %v1771 = vshrl.u32 %v1605, 16
    %v1773 = vrot.slane %v1771, 7
    %v1774 = vshll.u32 %v1605, 16
    %v1776 = vor.u32 %v1773, %v1774
    %v1777 = vsel %vm405, %v1765, %v1776
    %v1779 = vshrl.u32 %v1606, 16
    %v1781 = vrot.slane %v1779, 7
    %v1782 = vshll.u32 %v1606, 16
    %v1784 = vor.u32 %v1781, %v1782
    %v1785 = vsel %vm405, %v1773, %v1784
    %v1787 = vshrl.u32 %v1607, 16
    %v1789 = vrot.slane %v1787, 7
    %v1790 = vshll.u32 %v1607, 16
    %v1792 = vor.u32 %v1789, %v1790
    %v1794 = vshrl.u32 %v1608, 16
    %v1796 = vrot.slane %v1794, 7
    %v1797 = vshll.u32 %v1608, 16
    %v1799 = vor.u32 %v1796, %v1797
    %v1800 = vsel %vm405, %v1789, %v1799
    %v1802 = vshrl.u32 %v1609, 16
    %v1804 = vrot.slane %v1802, 7
    %v1805 = vshll.u32 %v1609, 16
    %v1807 = vor.u32 %v1804, %v1805
    %v1808 = vsel %vm405, %v1796, %v1807
    %v1810 = vshrl.u32 %v1610, 16
    %v1812 = vrot.slane %v1810, 7
    %v1813 = vshll.u32 %v1610, 16
    %v1815 = vor.u32 %v1812, %v1813
    %v1816 = vsel %vm405, %v1804, %v1815
    %v1825 = vsel %vm475, 0, %v1761
    %v1826 = vsel %vm475, 0, %v1792
    %v1827 = vsel %vm522, %v1825, 0
    %v1828 = vsel %vm523, %v1769, 0
    %v1829 = vsel %vm524, %v1777, 0
    %v1830 = vsel %vm525, %v1785, 0
    %v1831 = vsel %vm522, %v1826, 0
    %v1832 = vsel %vm523, %v1800, 0
    %v1833 = vsel %vm524, %v1808, 0
    %v1834 = vsel %vm525, %v1816, 0
    %v1835 = vrot.slane %v1759, 1
    %v1836 = vor.u32 %v1756, %v1835
    %v1837 = vrot.slane %v1766, 1
    %v1838 = vsel %vm534, %v1836, %v1837
    %v1839 = vor.u32 %v1763, %v1837
    %v1840 = vrot.slane %v1774, 1
    %v1841 = vsel %vm534, %v1839, %v1840
    %v1842 = vor.u32 %v1771, %v1840
    %v1843 = vrot.slane %v1782, 1
    %v1844 = vsel %vm534, %v1842, %v1843
    %v1845 = vor.u32 %v1779, %v1843
    %v1846 = vrot.slane %v1790, 1
    %v1847 = vor.u32 %v1787, %v1846
    %v1848 = vrot.slane %v1797, 1
    %v1849 = vsel %vm534, %v1847, %v1848
    %v1850 = vor.u32 %v1794, %v1848
    %v1851 = vrot.slane %v1805, 1
    %v1852 = vsel %vm534, %v1850, %v1851
    %v1853 = vor.u32 %v1802, %v1851
    %v1854 = vrot.slane %v1813, 1
    %v1855 = vsel %vm534, %v1853, %v1854
    %v1856 = vor.u32 %v1810, %v1854
    %v1865 = vsel %vm566, %v1845, 0
    %v1866 = vsel %vm566, %v1856, 0
    %v1867 = vsel %vm613, %v1838, 0
    %v1868 = vsel %vm614, %v1841, 0
    %v1869 = vsel %vm615, %v1844, 0
    %v1870 = vsel %vm616, %v1865, 0
    %v1871 = vsel %vm613, %v1849, 0
    %v1872 = vsel %vm614, %v1852, 0
    %v1873 = vsel %vm615, %v1855, 0
    %v1874 = vsel %vm616, %v1866, 0
    %v1876 = vsel %vm399, %v1624, 0
    %v1878 = vsel %vm399, %v1631, 0
    %v1879 = vshrl.u32 %v1876, 16
    %v1881 = vrot.slane %v1879, 7
    %v1882 = vshll.u32 %v1876, 16
    %v1884 = vor.u32 %v1881, %v1882
    %v1885 = vsel %vm405, %v1662, %v1884
    %v1886 = vshrl.u32 %v1878, 16
    %v1888 = vrot.slane %v1886, 7
    %v1889 = vshll.u32 %v1878, 16
    %v1891 = vor.u32 %v1888, %v1889
    %v1892 = vsel %vm405, %v1692, %v1891
    %v1897 = vsel %vm475, 0, %v1649
    %v1898 = vsel %vm475, 0, %v1679
    %v1899 = vsel %vm522, %v1897, 0
    %v1900 = vsel %vm523, %v1658, 0
    %v1901 = vsel %vm524, %v1666, 0
    %v1902 = vsel %vm525, %v1885, 0
    %v1903 = vsel %vm522, %v1898, 0
    %v1904 = vsel %vm523, %v1688, 0
    %v1905 = vsel %vm524, %v1696, 0
    %v1906 = vsel %vm525, %v1892, 0
    %v1907 = vrot.slane %v1882, 1
    %v1908 = vsel %vm534, %v1725, %v1907
    %v1909 = vor.u32 %v1879, %v1907
    %v1910 = vrot.slane %v1889, 1
    %v1911 = vsel %vm534, %v1736, %v1910
    %v1912 = vor.u32 %v1886, %v1910
    %v1917 = vsel %vm566, %v1909, 0
    %v1918 = vsel %vm566, %v1912, 0
    %v1919 = vsel %vm613, %v1721, 0
    %v1920 = vsel %vm614, %v1724, 0
    %v1921 = vsel %vm615, %v1908, 0
    %v1922 = vsel %vm616, %v1917, 0
    %v1923 = vsel %vm613, %v1732, 0
    %v1924 = vsel %vm614, %v1735, 0
    %v1925 = vsel %vm615, %v1911, 0
    %v1926 = vsel %vm616, %v1918, 0
    %1929 = vrot.lane.b32.xlu0 %v1634, 64
    %v1930 = vpop.permute.xlu0 %1929
    %1931 = vrot.lane.b32.xlu0 %v1621, 64
    %v1932 = vpop.permute.xlu0 %1931
    %1933 = vrot.lane.b32.xlu0 %v1623, 64
    %v1934 = vpop.permute.xlu0 %1933
    %1935 = vrot.lane.b32.xlu0 %v1625, 64
    %v1936 = vpop.permute.xlu0 %1935
    %1937 = vrot.lane.b32.xlu0 %v1636, 64
    %v1938 = vpop.permute.xlu0 %1937
    %1939 = vrot.lane.b32.xlu0 %v1628, 64
    %v1940 = vpop.permute.xlu0 %1939
    %1941 = vrot.lane.b32.xlu0 %v1630, 64
    %v1942 = vpop.permute.xlu0 %1941
    %1943 = vrot.lane.b32.xlu0 %v1632, 64
    %v1944 = vpop.permute.xlu0 %1943
    %1953 = vrot.lane.b32.xlu0 %v1827, 64
    %v1954 = vpop.permute.xlu0 %1953
    %1955 = vrot.lane.b32.xlu0 %v1828, 64
    %v1956 = vpop.permute.xlu0 %1955
    %1957 = vrot.lane.b32.xlu0 %v1829, 64
    %v1958 = vpop.permute.xlu0 %1957
    %1959 = vrot.lane.b32.xlu0 %v1830, 64
    %v1960 = vpop.permute.xlu0 %1959
    %1961 = vrot.lane.b32.xlu0 %v1831, 64
    %v1962 = vpop.permute.xlu0 %1961
    %1963 = vrot.lane.b32.xlu0 %v1832, 64
    %v1964 = vpop.permute.xlu0 %1963
    %1965 = vrot.lane.b32.xlu0 %v1833, 64
    %v1966 = vpop.permute.xlu0 %1965
    %1967 = vrot.lane.b32.xlu0 %v1834, 64
    %v1968 = vpop.permute.xlu0 %1967
    %1977 = vrot.lane.b32.xlu0 %v1867, 64
    %v1978 = vpop.permute.xlu0 %1977
    %1979 = vrot.lane.b32.xlu0 %v1868, 64
    %v1980 = vpop.permute.xlu0 %1979
    %1981 = vrot.lane.b32.xlu0 %v1869, 64
    %v1982 = vpop.permute.xlu0 %1981
    %1983 = vrot.lane.b32.xlu0 %v1870, 64
    %v1984 = vpop.permute.xlu0 %1983
    %1985 = vrot.lane.b32.xlu0 %v1871, 64
    %v1986 = vpop.permute.xlu0 %1985
    %1987 = vrot.lane.b32.xlu0 %v1872, 64
    %v1988 = vpop.permute.xlu0 %1987
    %1989 = vrot.lane.b32.xlu0 %v1873, 64
    %v1990 = vpop.permute.xlu0 %1989
    %1991 = vrot.lane.b32.xlu0 %v1874, 64
    %v1992 = vpop.permute.xlu0 %1991
    %1995 = vrot.lane.b32.xlu0 %v1876, 64
    %v1996 = vpop.permute.xlu0 %1995
    %1997 = vrot.lane.b32.xlu0 %v1878, 64
    %v1998 = vpop.permute.xlu0 %1997
    %v2001 = vsel %vm869, %v1707, %v1930
    %v2005 = vsel %vm869, %v1708, %v1932
    %v2009 = vsel %vm869, %v1709, %v1934
    %v2013 = vsel %vm869, %v1710, %v1936
    %v2017 = vsel %vm869, %v1711, %v1938
    %v2021 = vsel %vm869, %v1712, %v1940
    %v2025 = vsel %vm869, %v1713, %v1942
    %v2029 = vsel %vm869, %v1714, %v1944
    %v2033 = vsel %vm869, %v1747, %v1954
    %v2037 = vsel %vm869, %v1748, %v1956
    %v2041 = vsel %vm869, %v1749, %v1958
    %v2045 = vsel %vm869, %v1750, %v1960
    %v2049 = vsel %vm869, %v1751, %v1962
    %v2053 = vsel %vm869, %v1752, %v1964
    %v2057 = vsel %vm869, %v1753, %v1966
    %v2061 = vsel %vm869, %v1754, %v1968
    %v2064 = vsel %vm869, %v1603, %v1978
    %v2067 = vsel %vm869, %v1604, %v1980
    %v2070 = vsel %vm869, %v1605, %v1982
    %v2073 = vsel %vm869, %v1606, %v1984
    %v2076 = vsel %vm869, %v1607, %v1986
    %v2079 = vsel %vm869, %v1608, %v1988
    %v2082 = vsel %vm869, %v1609, %v1990
    %v2085 = vsel %vm869, %v1610, %v1992
    %v2088 = vsel %vm869, %v1899, %v1932
    %v2091 = vsel %vm869, %v1900, %v1934
    %v2094 = vsel %vm869, %v1901, %v1936
    %v2098 = vsel %vm869, %v1902, %v1996
    %v2101 = vsel %vm869, %v1903, %v1940
    %v2104 = vsel %vm869, %v1904, %v1942
    %v2107 = vsel %vm869, %v1905, %v1944
    %v2111 = vsel %vm869, %v1906, %v1998
    %v2113 = vld [vmem:[#allocation7] sm:$0xf]
    %v2114 = vld [vmem:[#allocation7 + $0x4] sm:$0xf]
    %v2115 = vld [vmem:[#allocation7 + $0x8] sm:$0xf]
    %v2116 = vld [vmem:[#allocation7 + $0xc] sm:$0xf]
    %v2117 = vld [vmem:[#allocation7 + $0x10] sm:$0xf]
    %v2118 = vld [vmem:[#allocation7 + $0x14] sm:$0xf]
    %v2119 = vld [vmem:[#allocation7 + $0x18] sm:$0xf]
    %v2120 = vld [vmem:[#allocation7 + $0x1c] sm:$0xf]
    %v2121 = vld [vmem:[#allocation7 + $0x20] sm:$0xf]
    %v2122 = vld [vmem:[#allocation7 + $0x24] sm:$0xf]
    %v2123 = vld [vmem:[#allocation7 + $0x28] sm:$0xf]
    %v2124 = vld [vmem:[#allocation7 + $0x2c] sm:$0xf]
    %v2125 = vld [vmem:[#allocation7 + $0x30] sm:$0xf]
    %v2126 = vld [vmem:[#allocation7 + $0x34] sm:$0xf]
    %v2127 = vld [vmem:[#allocation7 + $0x38] sm:$0xf]
    %v2128 = vld [vmem:[#allocation7 + $0x3c] sm:$0xf]
    %v2129 = vld [vmem:[#allocation7 + $0x40] sm:$0xf]
    %v2130 = vld [vmem:[#allocation7 + $0x44] sm:$0xf]
    %v2131 = vld [vmem:[#allocation7 + $0x48] sm:$0xf]
    %v2132 = vld [vmem:[#allocation7 + $0x4c] sm:$0xf]
    %v2133 = vld [vmem:[#allocation7 + $0x50] sm:$0xf]
    %v2134 = vld [vmem:[#allocation7 + $0x54] sm:$0xf]
    %v2135 = vld [vmem:[#allocation7 + $0x58] sm:$0xf]
    %v2136 = vld [vmem:[#allocation7 + $0x5c] sm:$0xf]
    %v2137 = vld [vmem:[#allocation7 + $0x60] sm:$0xf]
    %v2138 = vld [vmem:[#allocation7 + $0x64] sm:$0xf]
    %v2139 = vld [vmem:[#allocation7 + $0x68] sm:$0xf]
    %v2140 = vld [vmem:[#allocation7 + $0x6c] sm:$0xf]
    %v2141 = vld [vmem:[#allocation7 + $0x70] sm:$0xf]
    %v2142 = vld [vmem:[#allocation7 + $0x74] sm:$0xf]
    %v2143 = vld [vmem:[#allocation7 + $0x78] sm:$0xf]
    %v2144 = vld [vmem:[#allocation7 + $0x7c] sm:$0xf]
    %v2145 = vld [vmem:[#allocation7 + $0x80] sm:$0xf]
    %v2146 = vld [vmem:[#allocation7 + $0x84] sm:$0xf]
    %v2147 = vld [vmem:[#allocation7 + $0x88] sm:$0xf]
    %v2148 = vld [vmem:[#allocation7 + $0x8c] sm:$0xf]
    %v2149 = vld [vmem:[#allocation7 + $0x90] sm:$0xf]
    %v2150 = vld [vmem:[#allocation7 + $0x94] sm:$0xf]
    %v2151 = vld [vmem:[#allocation7 + $0x98] sm:$0xf]
    %v2152 = vld [vmem:[#allocation7 + $0x9c] sm:$0xf]
    %v2153 = vld [vmem:[#allocation7 + $0xa0] sm:$0xf]
    %v2154 = vld [vmem:[#allocation7 + $0xa4] sm:$0xf]
    %v2155 = vld [vmem:[#allocation7 + $0xa8] sm:$0xf]
    %v2156 = vld [vmem:[#allocation7 + $0xac] sm:$0xf]
    %v2157 = vld [vmem:[#allocation7 + $0xb0] sm:$0xf]
    %v2158 = vld [vmem:[#allocation7 + $0xb4] sm:$0xf]
    %v2159 = vld [vmem:[#allocation7 + $0xb8] sm:$0xf]
    %v2160 = vld [vmem:[#allocation7 + $0xbc] sm:$0xf]
    %v2161 = vld [vmem:[#allocation7 + $0xc0] sm:$0xf]
    %v2162 = vld [vmem:[#allocation7 + $0xc4] sm:$0xf]
    %v2163 = vld [vmem:[#allocation7 + $0xc8] sm:$0xf]
    %v2164 = vld [vmem:[#allocation7 + $0xcc] sm:$0xf]
    %v2165 = vld [vmem:[#allocation7 + $0xd0] sm:$0xf]
    %v2166 = vld [vmem:[#allocation7 + $0xd4] sm:$0xf]
    %v2167 = vld [vmem:[#allocation7 + $0xd8] sm:$0xf]
    %v2168 = vld [vmem:[#allocation7 + $0xdc] sm:$0xf]
    %v2169 = vld [vmem:[#allocation7 + $0xe0] sm:$0xf]
    %v2170 = vld [vmem:[#allocation7 + $0xe4] sm:$0xf]
    %v2171 = vld [vmem:[#allocation7 + $0xe8] sm:$0xf]
    %v2172 = vld [vmem:[#allocation7 + $0xec] sm:$0xf]
    %v2173 = vld [vmem:[#allocation7 + $0xf0] sm:$0xf]
    %v2174 = vld [vmem:[#allocation7 + $0xf4] sm:$0xf]
    %v2175 = vld [vmem:[#allocation7 + $0xf8] sm:$0xf]
    %v2176 = vld [vmem:[#allocation7 + $0xfc] sm:$0xf]
    %v2177 = vld [vmem:[#allocation7 + $0x100] sm:$0xf]
    %v2178 = vld [vmem:[#allocation7 + $0x104] sm:$0xf]
    %v2179 = vld [vmem:[#allocation7 + $0x108] sm:$0xf]
    %v2180 = vld [vmem:[#allocation7 + $0x10c] sm:$0xf]
    %v2181 = vld [vmem:[#allocation7 + $0x110] sm:$0xf]
    %v2182 = vld [vmem:[#allocation7 + $0x114] sm:$0xf]
    %v2183 = vld [vmem:[#allocation7 + $0x118] sm:$0xf]
    %v2184 = vld [vmem:[#allocation7 + $0x11c] sm:$0xf]
    %v2257 = vunpack.c.l.b16 %v2113
    %v2258 = vunpack.c.l.b16 %v2114
    %v2259 = vunpack.c.l.b16 %v2115
    %v2260 = vunpack.c.l.b16 %v2116
    %v2261 = vunpack.c.l.b16 %v2117
    %v2262 = vunpack.c.l.b16 %v2118
    %v2263 = vunpack.c.l.b16 %v2119
    %v2264 = vunpack.c.l.b16 %v2120
    %v2265 = vunpack.c.l.b16 %v2121
    %v2266 = vunpack.c.l.b16 %v2122
    %v2267 = vunpack.c.l.b16 %v2123
    %v2268 = vunpack.c.l.b16 %v2124
    %v2269 = vunpack.c.l.b16 %v2125
    %v2270 = vunpack.c.l.b16 %v2126
    %v2271 = vunpack.c.l.b16 %v2127
    %v2272 = vunpack.c.l.b16 %v2128
    %v2273 = vunpack.c.l.b16 %v2129
    %v2274 = vunpack.c.l.b16 %v2130
    %v2275 = vunpack.c.l.b16 %v2131
    %v2276 = vunpack.c.l.b16 %v2132
    %v2277 = vunpack.c.l.b16 %v2133
    %v2278 = vunpack.c.l.b16 %v2134
    %v2279 = vunpack.c.l.b16 %v2135
    %v2280 = vunpack.c.l.b16 %v2136
    %v2281 = vunpack.c.l.b16 %v2137
    %v2282 = vunpack.c.l.b16 %v2138
    %v2283 = vunpack.c.l.b16 %v2139
    %v2284 = vunpack.c.l.b16 %v2140
    %v2285 = vunpack.c.l.b16 %v2141
    %v2286 = vunpack.c.l.b16 %v2142
    %v2287 = vunpack.c.l.b16 %v2143
    %v2288 = vunpack.c.l.b16 %v2144
    %v2289 = vunpack.c.l.b16 %v2145
    %v2290 = vunpack.c.l.b16 %v2146
    %v2291 = vunpack.c.l.b16 %v2147
    %v2292 = vunpack.c.l.b16 %v2148
    %v2293 = vunpack.c.l.b16 %v2149
    %v2294 = vunpack.c.l.b16 %v2150
    %v2295 = vunpack.c.l.b16 %v2151
    %v2296 = vunpack.c.l.b16 %v2152
    %v2297 = vunpack.c.l.b16 %v2153
    %v2298 = vunpack.c.l.b16 %v2154
    %v2299 = vunpack.c.l.b16 %v2155
    %v2300 = vunpack.c.l.b16 %v2156
    %v2301 = vunpack.c.l.b16 %v2157
    %v2302 = vunpack.c.l.b16 %v2158
    %v2303 = vunpack.c.l.b16 %v2159
    %v2304 = vunpack.c.l.b16 %v2160
    %v2305 = vunpack.c.l.b16 %v2161
    %v2306 = vunpack.c.l.b16 %v2162
    %v2307 = vunpack.c.l.b16 %v2163
    %v2308 = vunpack.c.l.b16 %v2164
    %v2309 = vunpack.c.l.b16 %v2165
    %v2310 = vunpack.c.l.b16 %v2166
    %v2311 = vunpack.c.l.b16 %v2167
    %v2312 = vunpack.c.l.b16 %v2168
    %v2313 = vunpack.c.l.b16 %v2169
    %v2314 = vunpack.c.l.b16 %v2170
    %v2315 = vunpack.c.l.b16 %v2171
    %v2316 = vunpack.c.l.b16 %v2172
    %v2317 = vunpack.c.l.b16 %v2173
    %v2318 = vunpack.c.l.b16 %v2174
    %v2319 = vunpack.c.l.b16 %v2175
    %v2320 = vunpack.c.l.b16 %v2176
    %v2321 = vunpack.c.l.b16 %v2177
    %v2322 = vunpack.c.l.b16 %v2178
    %v2323 = vunpack.c.l.b16 %v2179
    %v2324 = vunpack.c.l.b16 %v2180
    %v2325 = vunpack.c.l.b16 %v2181
    %v2326 = vunpack.c.l.b16 %v2182
    %v2327 = vunpack.c.l.b16 %v2183
    %v2328 = vunpack.c.l.b16 %v2184
    %v2329 = vpack.c.b16 %v2258, %v2257
    %v2330 = vpack.c.b16 %v2260, %v2259
    %v2331 = vpack.c.b16 %v2262, %v2261
    %v2332 = vpack.c.b16 %v2264, %v2263
    %v2333 = vpack.c.b16 %v2266, %v2265
    %v2334 = vpack.c.b16 %v2268, %v2267
    %v2335 = vpack.c.b16 %v2270, %v2269
    %v2336 = vpack.c.b16 %v2272, %v2271
    %v2337 = vpack.c.b16 %v2274, %v2273
    %v2338 = vpack.c.b16 %v2276, %v2275
    %v2339 = vpack.c.b16 %v2278, %v2277
    %v2340 = vpack.c.b16 %v2280, %v2279
    %v2341 = vpack.c.b16 %v2282, %v2281
    %v2342 = vpack.c.b16 %v2284, %v2283
    %v2343 = vpack.c.b16 %v2286, %v2285
    %v2344 = vpack.c.b16 %v2288, %v2287
    %v2345 = vpack.c.b16 %v2290, %v2289
    %v2346 = vpack.c.b16 %v2292, %v2291
    %v2347 = vpack.c.b16 %v2294, %v2293
    %v2348 = vpack.c.b16 %v2296, %v2295
    %v2349 = vpack.c.b16 %v2298, %v2297
    %v2350 = vpack.c.b16 %v2300, %v2299
    %v2351 = vpack.c.b16 %v2302, %v2301
    %v2352 = vpack.c.b16 %v2304, %v2303
    %v2353 = vpack.c.b16 %v2306, %v2305
    %v2354 = vpack.c.b16 %v2308, %v2307
    %v2355 = vpack.c.b16 %v2310, %v2309
    %v2356 = vpack.c.b16 %v2312, %v2311
    %v2357 = vpack.c.b16 %v2314, %v2313
    %v2358 = vpack.c.b16 %v2316, %v2315
    %v2359 = vpack.c.b16 %v2318, %v2317
    %v2360 = vpack.c.b16 %v2320, %v2319
    %v2361 = vpack.c.b16 %v2322, %v2321
    %v2362 = vpack.c.b16 %v2324, %v2323
    %v2363 = vpack.c.b16 %v2326, %v2325
    %v2364 = vpack.c.b16 %v2328, %v2327
    %v2402 = vsel %vm869, %v1919, 0
    %v2405 = vsel %vm869, %v1920, 0
    %v2408 = vsel %vm869, %v1921, 0
    %v2411 = vsel %vm869, %v1922, 0
    %v2414 = vsel %vm869, %v1923, 0
    %v2417 = vsel %vm869, %v1924, 0
    %v2420 = vsel %vm869, %v1925, 0
    %v2423 = vsel %vm869, %v1926, 0
    %2425 = vmatprep.subr.bf16.mxu0 0
    %2426 = vmatpush1.bf16.msra.mxu0 %v2329
    %2427 = vmatprep.subr.bf16.mxu0 0
    %2428 = vmatpush1.bf16.msra.mxu0 %v2330
    %2429 = vmatprep.subr.bf16.mxu0 0
    %2430 = vmatpush1.bf16.msra.mxu0 %v2331
    %2431 = vmatprep.subr.bf16.mxu0 0
    %2432 = vmatpush1.bf16.msra.mxu0 %v2332
    %2433 = vmatprep.subr.bf16.mxu0 0
    %2434 = vmatpush1.bf16.msra.mxu0 %v2333
    %2435 = vmatprep.subr.bf16.mxu0 0
    %2436 = vmatpush1.bf16.msra.mxu0 %v2334
    %2437 = vmatprep.subr.bf16.mxu0 0
    %2438 = vmatpush1.bf16.msra.mxu0 %v2335
    %2439 = vmatprep.subr.bf16.mxu0 0
    %2440 = vmatpush1.bf16.msra.mxu0 %v2336
    %2441 = vmatprep.subr.bf16.mxu0 0
    %2442 = vmatpush1.bf16.msra.mxu0 %v2337
    %2443 = vmatprep.subr.bf16.mxu0 0
    %2444 = vmatpush1.bf16.msra.mxu0 %v2338
    %2445 = vmatprep.subr.bf16.mxu0 0
    %2446 = vmatpush1.bf16.msra.mxu0 %v2339
    %2447 = vmatprep.subr.bf16.mxu0 0
    %2448 = vmatpush1.bf16.msra.mxu0 %v2340
    %2449 = vmatprep.subr.bf16.mxu0 0
    %2450 = vmatpush1.bf16.msra.mxu0 %v2341
    %2451 = vmatprep.subr.bf16.mxu0 0
    %2452 = vmatpush1.bf16.msra.mxu0 %v2342
    %2453 = vmatprep.subr.bf16.mxu0 0
    %2454 = vmatpush1.bf16.msra.mxu0 %v2343
    %2455 = vmatprep.subr.bf16.mxu0 0
    %2456 = vmatpush1.bf16.msra.mxu0 %v2344
    %2457 = vmatprep.mubr.bf16.mxu0 %v2033
    %2458 = vmatmul.mubr.bf16.gmra.mrb[0].mxu0 %v2001
    %v2459 = vpop.f32.mrb[0].mxu0
    %v2460 = vadd.f32 0.0, %v2459
    %v2461 = vpop.f32.mrb[0].mxu0
    %v2462 = vpop.f32.mrb[0].mxu0
    %v2463 = vadd.f32 0.0, %v2462
    %v2464 = vpop.f32.mrb[0].mxu0
    %2465 = vmatprep.mubr.bf16.mxu0 %v2037
    %2466 = vmatmul.mubr.bf16.gmra.mrb[0].mxu0 %v2005
    %v2467 = vpop.f32.mrb[0].mxu0
    %v2468 = vadd.f32 0.0, %v2467
    %v2469 = vpop.f32.mrb[0].mxu0
    %v2470 = vpop.f32.mrb[0].mxu0
    %v2471 = vadd.f32 0.0, %v2470
    %v2472 = vpop.f32.mrb[0].mxu0
    %2473 = vmatprep.mubr.bf16.mxu0 %v2041
    %2474 = vmatmul.mubr.bf16.gmra.mrb[0].mxu0 %v2009
    %v2475 = vpop.f32.mrb[0].mxu0
    %v2476 = vadd.f32 0.0, %v2475
    %v2477 = vpop.f32.mrb[0].mxu0
    %v2478 = vpop.f32.mrb[0].mxu0
    %v2479 = vadd.f32 0.0, %v2478
    %v2480 = vpop.f32.mrb[0].mxu0
    %2481 = vmatprep.mubr.bf16.mxu0 %v2045
    %2482 = vmatmul.mubr.bf16.gmra.mrb[0].mxu0 %v2013
    %v2483 = vpop.f32.mrb[0].mxu0
    %v2484 = vadd.f32 0.0, %v2483
    %v2485 = vpop.f32.mrb[0].mxu0
    %v2486 = vpop.f32.mrb[0].mxu0
    %v2487 = vadd.f32 0.0, %v2486
    %v2488 = vpop.f32.mrb[0].mxu0
    %2489 = vmatprep.mubr.bf16.mxu0 %v2049
    %2490 = vmatmul.mubr.bf16.gmra.mrb[0].mxu0 %v2017
    %v2491 = vpop.f32.mrb[0].mxu0
    %v2492 = vadd.f32 0.0, %v2491
    %v2493 = vpop.f32.mrb[0].mxu0
    %v2494 = vpop.f32.mrb[0].mxu0
    %v2495 = vadd.f32 0.0, %v2494
    %v2496 = vpop.f32.mrb[0].mxu0
    %2497 = vmatprep.mubr.bf16.mxu0 %v2053
    %2498 = vmatmul.mubr.bf16.gmra.mrb[0].mxu0 %v2021
    %v2499 = vpop.f32.mrb[0].mxu0
    %v2500 = vadd.f32 0.0, %v2499
    %v2501 = vpop.f32.mrb[0].mxu0
    %v2502 = vpop.f32.mrb[0].mxu0
    %v2503 = vadd.f32 0.0, %v2502
    %v2504 = vpop.f32.mrb[0].mxu0
    %2505 = vmatprep.mubr.bf16.mxu0 %v2057
    %2506 = vmatmul.mubr.bf16.gmra.mrb[0].mxu0 %v2025
    %v2507 = vpop.f32.mrb[0].mxu0
    %v2508 = vadd.f32 0.0, %v2507
    %v2509 = vpop.f32.mrb[0].mxu0
    %v2510 = vpop.f32.mrb[0].mxu0
    %v2511 = vadd.f32 0.0, %v2510
    %v2512 = vpop.f32.mrb[0].mxu0
    %2513 = vmatprep.mubr.bf16.mxu0 %v2061
    %2514 = vmatmul.mubr.bf16.gmra.mrb[0].mxu0 %v2029
    %v2515 = vpop.f32.mrb[0].mxu0
    %v2516 = vadd.f32 0.0, %v2515
    %v2517 = vpop.f32.mrb[0].mxu0
    %v2518 = vpop.f32.mrb[0].mxu0
    %v2519 = vadd.f32 0.0, %v2518
    %v2520 = vpop.f32.mrb[0].mxu0
    %2521 = vdwg.mxu0
    %2522 = vmatprep.subr.bf16.mxu0 0
    %2523 = vmatpush1.bf16.msra.mxu0 %v2345
    %2524 = vmatprep.subr.bf16.mxu0 0
    %2525 = vmatpush1.bf16.msra.mxu0 %v2346
    %2526 = vmatprep.subr.bf16.mxu0 0
    %2527 = vmatpush1.bf16.msra.mxu0 %v2347
    %2528 = vmatprep.subr.bf16.mxu0 0
    %2529 = vmatpush1.bf16.msra.mxu0 %v2348
    %2530 = vmatprep.subr.bf16.mxu0 0
    %2531 = vmatpush1.bf16.msra.mxu0 %v2349
    %2532 = vmatprep.subr.bf16.mxu0 0
    %2533 = vmatpush1.bf16.msra.mxu0 %v2350
    %2534 = vmatprep.subr.bf16.mxu0 0
    %2535 = vmatpush1.bf16.msra.mxu0 %v2351
    %2536 = vmatprep.subr.bf16.mxu0 0
    %2537 = vmatpush1.bf16.msra.mxu0 %v2352
    %2538 = vmatprep.subr.bf16.mxu0 0
    %2539 = vmatpush1.bf16.msra.mxu0 %v2353
    %2540 = vmatprep.subr.bf16.mxu0 0
    %2541 = vmatpush1.bf16.msra.mxu0 %v2354
    %2542 = vmatprep.subr.bf16.mxu0 0
    %2543 = vmatpush1.bf16.msra.mxu0 %v2355
    %2544 = vmatprep.subr.bf16.mxu0 0
    %2545 = vmatpush1.bf16.msra.mxu0 %v2356
    %2546 = vmatprep.subr.bf16.mxu0 0
    %2547 = vmatpush1.bf16.msra.mxu0 %v2357
    %2548 = vmatprep.subr.bf16.mxu0 0
    %2549 = vmatpush1.bf16.msra.mxu0 %v2358
    %2550 = vmatprep.subr.bf16.mxu0 0
    %2551 = vmatpush1.bf16.msra.mxu0 %v2359
    %2552 = vmatprep.subr.bf16.mxu0 0
    %2553 = vmatpush1.bf16.msra.mxu0 %v2360
    %2554 = vmatprep.mubr.bf16.mxu0 %v2088
    %2555 = vmatmul.mubr.bf16.gmra.mrb[0].mxu0 %v2064
    %v2556 = vpop.f32.mrb[0].mxu0
    %v2557 = vadd.f32 %v2460, %v2556
    %v2558 = vpop.f32.mrb[0].mxu0
    %v2559 = vpop.f32.mrb[0].mxu0
    %v2560 = vadd.f32 %v2463, %v2559
    %v2561 = vpop.f32.mrb[0].mxu0
    %2562 = vmatprep.mubr.bf16.mxu0 %v2091
    %2563 = vmatmul.mubr.bf16.gmra.mrb[0].mxu0 %v2067
    %v2564 = vpop.f32.mrb[0].mxu0
    %v2565 = vadd.f32 %v2468, %v2564
    %v2566 = vpop.f32.mrb[0].mxu0
    %v2567 = vpop.f32.mrb[0].mxu0
    %v2568 = vadd.f32 %v2471, %v2567
    %v2569 = vpop.f32.mrb[0].mxu0
    %2570 = vmatprep.mubr.bf16.mxu0 %v2094
    %2571 = vmatmul.mubr.bf16.gmra.mrb[0].mxu0 %v2070
    %v2572 = vpop.f32.mrb[0].mxu0
    %v2573 = vadd.f32 %v2476, %v2572
    %v2574 = vpop.f32.mrb[0].mxu0
    %v2575 = vpop.f32.mrb[0].mxu0
    %v2576 = vadd.f32 %v2479, %v2575
    %v2577 = vpop.f32.mrb[0].mxu0
    %2578 = vmatprep.mubr.bf16.mxu0 %v2098
    %2579 = vmatmul.mubr.bf16.gmra.mrb[0].mxu0 %v2073
    %v2580 = vpop.f32.mrb[0].mxu0
    %v2581 = vadd.f32 %v2484, %v2580
    %v2582 = vpop.f32.mrb[0].mxu0
    %v2583 = vpop.f32.mrb[0].mxu0
    %v2584 = vadd.f32 %v2487, %v2583
    %v2585 = vpop.f32.mrb[0].mxu0
    %2586 = vmatprep.mubr.bf16.mxu0 %v2101
    %2587 = vmatmul.mubr.bf16.gmra.mrb[0].mxu0 %v2076
    %v2588 = vpop.f32.mrb[0].mxu0
    %v2589 = vadd.f32 %v2492, %v2588
    %v2590 = vpop.f32.mrb[0].mxu0
    %v2591 = vpop.f32.mrb[0].mxu0
    %v2592 = vadd.f32 %v2495, %v2591
    %v2593 = vpop.f32.mrb[0].mxu0
    %2594 = vmatprep.mubr.bf16.mxu0 %v2104
    %2595 = vmatmul.mubr.bf16.gmra.mrb[0].mxu0 %v2079
    %v2596 = vpop.f32.mrb[0].mxu0
    %v2597 = vadd.f32 %v2500, %v2596
    %v2598 = vpop.f32.mrb[0].mxu0
    %v2599 = vpop.f32.mrb[0].mxu0
    %v2600 = vadd.f32 %v2503, %v2599
    %v2601 = vpop.f32.mrb[0].mxu0
    %2602 = vmatprep.mubr.bf16.mxu0 %v2107
    %2603 = vmatmul.mubr.bf16.gmra.mrb[0].mxu0 %v2082
    %v2604 = vpop.f32.mrb[0].mxu0
    %v2605 = vadd.f32 %v2508, %v2604
    %v2606 = vpop.f32.mrb[0].mxu0
    %v2607 = vpop.f32.mrb[0].mxu0
    %v2608 = vadd.f32 %v2511, %v2607
    %v2609 = vpop.f32.mrb[0].mxu0
    %2610 = vmatprep.mubr.bf16.mxu0 %v2111
    %2611 = vmatmul.mubr.bf16.gmra.mrb[0].mxu0 %v2085
    %v2612 = vpop.f32.mrb[0].mxu0
    %v2613 = vadd.f32 %v2516, %v2612
    %v2614 = vpop.f32.mrb[0].mxu0
    %v2615 = vpop.f32.mrb[0].mxu0
    %v2616 = vadd.f32 %v2519, %v2615
    %v2617 = vpop.f32.mrb[0].mxu0
    %2618 = vdwg.mxu0
    %2619 = vmatprep.subr.bf16.mxu0 0
    %2620 = vmatpush1.bf16.msra.mxu0 %v2361
    %2621 = vmatprep.subr.bf16.mxu0 0
    %2622 = vmatpush1.bf16.msra.mxu0 %v2362
    %2623 = vmatprep.subr.bf16.mxu0 0
    %2624 = vmatpush1.bf16.msra.mxu0 %v2363
    %2625 = vmatprep.subr.bf16.mxu0 0
    %2626 = vmatpush1.bf16.msra.mxu0 %v2364
    %2627 = vmatprep.subr.bf16.mxu0 0
    %2628 = vmatpush1.bf16.msra.mxu0 0
    %2629 = vmatprep.subr.bf16.mxu0 0
    %2630 = vmatpush1.bf16.msra.mxu0 0
    %2631 = vmatprep.subr.bf16.mxu0 0
    %2632 = vmatpush1.bf16.msra.mxu0 0
    %2633 = vmatprep.subr.bf16.mxu0 0
    %2634 = vmatpush1.bf16.msra.mxu0 0
    %2635 = vmatprep.subr.bf16.mxu0 0
    %2636 = vmatpush1.bf16.msra.mxu0 0
    %2637 = vmatprep.subr.bf16.mxu0 0
    %2638 = vmatpush1.bf16.msra.mxu0 0
    %2639 = vmatprep.subr.bf16.mxu0 0
    %2640 = vmatpush1.bf16.msra.mxu0 0
    %2641 = vmatprep.subr.bf16.mxu0 0
    %2642 = vmatpush1.bf16.msra.mxu0 0
    %2643 = vmatprep.subr.bf16.mxu0 0
    %2644 = vmatpush1.bf16.msra.mxu0 0
    %2645 = vmatprep.subr.bf16.mxu0 0
    %2646 = vmatpush1.bf16.msra.mxu0 0
    %2647 = vmatprep.subr.bf16.mxu0 0
    %2648 = vmatpush1.bf16.msra.mxu0 0
    %2649 = vmatprep.subr.bf16.mxu0 0
    %2650 = vmatpush1.bf16.msra.mxu0 0
    %2651 = vmatprep.mubr.bf16.mxu0 0
    %2652 = vmatmul.mubr.bf16.gmra.mrb[0].mxu0 %v2402
    %v2653 = vpop.f32.mrb[0].mxu0
    %v2654 = vadd.f32 %v2557, %v2653
    %v2655 = vpop.f32.mrb[0].mxu0
    %v2656 = vpop.f32.mrb[0].mxu0
    %v2657 = vadd.f32 %v2560, %v2656
    %v2658 = vpop.f32.mrb[0].mxu0
    %2659 = vmatprep.mubr.bf16.mxu0 0
    %2660 = vmatmul.mubr.bf16.gmra.mrb[0].mxu0 %v2405
    %v2661 = vpop.f32.mrb[0].mxu0
    %v2662 = vadd.f32 %v2565, %v2661
    %v2663 = vpop.f32.mrb[0].mxu0
    %v2664 = vpop.f32.mrb[0].mxu0
    %v2665 = vadd.f32 %v2568, %v2664
    %v2666 = vpop.f32.mrb[0].mxu0
    %2667 = vmatprep.mubr.bf16.mxu0 0
    %2668 = vmatmul.mubr.bf16.gmra.mrb[0].mxu0 %v2408
    %v2669 = vpop.f32.mrb[0].mxu0
    %v2670 = vadd.f32 %v2573, %v2669
    %v2671 = vpop.f32.mrb[0].mxu0
    %v2672 = vpop.f32.mrb[0].mxu0
    %v2673 = vadd.f32 %v2576, %v2672
    %v2674 = vpop.f32.mrb[0].mxu0
    %2675 = vmatprep.mubr.bf16.mxu0 0
    %2676 = vmatmul.mubr.bf16.gmra.mrb[0].mxu0 %v2411
    %v2677 = vpop.f32.mrb[0].mxu0
    %v2678 = vadd.f32 %v2581, %v2677
    %v2679 = vpop.f32.mrb[0].mxu0
    %v2680 = vpop.f32.mrb[0].mxu0
    %v2681 = vadd.f32 %v2584, %v2680
    %v2682 = vpop.f32.mrb[0].mxu0
    %2683 = vmatprep.mubr.bf16.mxu0 0
    %2684 = vmatmul.mubr.bf16.gmra.mrb[0].mxu0 %v2414
    %v2685 = vpop.f32.mrb[0].mxu0
    %v2686 = vadd.f32 %v2589, %v2685
    %v2687 = vpop.f32.mrb[0].mxu0
    %v2688 = vpop.f32.mrb[0].mxu0
    %v2689 = vadd.f32 %v2592, %v2688
    %v2690 = vpop.f32.mrb[0].mxu0
    %2691 = vmatprep.mubr.bf16.mxu0 0
    %2692 = vmatmul.mubr.bf16.gmra.mrb[0].mxu0 %v2417
    %v2693 = vpop.f32.mrb[0].mxu0
    %v2694 = vadd.f32 %v2597, %v2693
    %v2695 = vpop.f32.mrb[0].mxu0
    %v2696 = vpop.f32.mrb[0].mxu0
    %v2697 = vadd.f32 %v2600, %v2696
    %v2698 = vpop.f32.mrb[0].mxu0
    %2699 = vmatprep.mubr.bf16.mxu0 0
    %2700 = vmatmul.mubr.bf16.gmra.mrb[0].mxu0 %v2420
    %v2701 = vpop.f32.mrb[0].mxu0
    %v2702 = vadd.f32 %v2605, %v2701
    %v2703 = vpop.f32.mrb[0].mxu0
    %v2704 = vpop.f32.mrb[0].mxu0
    %v2705 = vadd.f32 %v2608, %v2704
    %v2706 = vpop.f32.mrb[0].mxu0
    %2707 = vmatprep.mubr.bf16.mxu0 0
    %2708 = vmatmul.mubr.bf16.gmra.mrb[0].mxu0 %v2423
    %v2709 = vpop.f32.mrb[0].mxu0
    %v2710 = vadd.f32 %v2613, %v2709
    %v2711 = vpop.f32.mrb[0].mxu0
    %v2712 = vpop.f32.mrb[0].mxu0
    %v2713 = vadd.f32 %v2616, %v2712
    %v2714 = vpop.f32.mrb[0].mxu0
    %2715 = vdwg.mxu0
    %v2716 = vpack.c.bf16 %v2657, %v2654
    %v2717 = vpack.c.bf16 %v2665, %v2662
    %v2718 = vpack.c.bf16 %v2673, %v2670
    %v2719 = vpack.c.bf16 %v2681, %v2678
    %v2720 = vpack.c.bf16 %v2689, %v2686
    %v2721 = vpack.c.bf16 %v2697, %v2694
    %v2722 = vpack.c.bf16 %v2705, %v2702
    %v2723 = vpack.c.bf16 %v2713, %v2710
    %v2732 = vrot.slane %v2716, 4
    %v2733 = vrot.slane %v2717, 4
    %v2734 = vsel %vm384, %v2732, %v2733
    %v2735 = vrot.slane %v2718, 4
    %v2736 = vsel %vm384, %v2733, %v2735
    %v2737 = vrot.slane %v2719, 4
    %v2738 = vsel %vm384, %v2735, %v2737
    %v2739 = vrot.slane %v2720, 4
    %v2740 = vrot.slane %v2721, 4
    %v2741 = vsel %vm384, %v2739, %v2740
    %v2742 = vrot.slane %v2722, 4
    %v2743 = vsel %vm384, %v2740, %v2742
    %v2744 = vrot.slane %v2723, 4
    %v2745 = vsel %vm384, %v2742, %v2744
    %v2747 = vsel %vm399, 0, %v2732
    %v2749 = vsel %vm399, 0, %v2739
    %v2750 = vshrl.u32 %v2747, 16
    %v2752 = vrot.slane %v2750, 7
    %v2753 = vshll.u32 %v2747, 16
    %v2755 = vor.u32 %v2752, %v2753
    %v2757 = vshrl.u32 %v2734, 16
    %v2759 = vrot.slane %v2757, 7
    %v2760 = vshll.u32 %v2734, 16
    %v2762 = vor.u32 %v2759, %v2760
    %v2763 = vsel %vm405, %v2752, %v2762
    %v2765 = vshrl.u32 %v2736, 16
    %v2767 = vrot.slane %v2765, 7
    %v2768 = vshll.u32 %v2736, 16
    %v2770 = vor.u32 %v2767, %v2768
    %v2771 = vsel %vm405, %v2759, %v2770
    %v2773 = vshrl.u32 %v2738, 16
    %v2775 = vrot.slane %v2773, 7
    %v2776 = vshll.u32 %v2738, 16
    %v2778 = vor.u32 %v2775, %v2776
    %v2779 = vsel %vm405, %v2767, %v2778
    %v2780 = vshrl.u32 %v2749, 16
    %v2782 = vrot.slane %v2780, 7
    %v2783 = vshll.u32 %v2749, 16
    %v2785 = vor.u32 %v2782, %v2783
    %v2787 = vshrl.u32 %v2741, 16
    %v2789 = vrot.slane %v2787, 7
    %v2790 = vshll.u32 %v2741, 16
    %v2792 = vor.u32 %v2789, %v2790
    %v2793 = vsel %vm405, %v2782, %v2792
    %v2795 = vshrl.u32 %v2743, 16
    %v2797 = vrot.slane %v2795, 7
    %v2798 = vshll.u32 %v2743, 16
    %v2800 = vor.u32 %v2797, %v2798
    %v2801 = vsel %vm405, %v2789, %v2800
    %v2803 = vshrl.u32 %v2745, 16
    %v2805 = vrot.slane %v2803, 7
    %v2806 = vshll.u32 %v2745, 16
    %v2808 = vor.u32 %v2805, %v2806
    %v2809 = vsel %vm405, %v2797, %v2808
    %v2818 = vsel %vm475, 0, %v2755
    %v2819 = vsel %vm475, 0, %v2785
    %v2820 = vsel %vm522, %v2818, 0
    %v2821 = vsel %vm523, %v2763, 0
    %v2822 = vsel %vm524, %v2771, 0
    %v2823 = vsel %vm525, %v2779, 0
    %v2824 = vsel %vm522, %v2819, 0
    %v2825 = vsel %vm523, %v2793, 0
    %v2826 = vsel %vm524, %v2801, 0
    %v2827 = vsel %vm525, %v2809, 0
    %v2828 = vrot.slane %v2753, 1
    %v2829 = vor.u32 %v2750, %v2828
    %v2830 = vrot.slane %v2760, 1
    %v2831 = vsel %vm534, %v2829, %v2830
    %v2832 = vor.u32 %v2757, %v2830
    %v2833 = vrot.slane %v2768, 1
    %v2834 = vsel %vm534, %v2832, %v2833
    %v2835 = vor.u32 %v2765, %v2833
    %v2836 = vrot.slane %v2776, 1
    %v2837 = vsel %vm534, %v2835, %v2836
    %v2838 = vor.u32 %v2773, %v2836
    %v2839 = vrot.slane %v2783, 1
    %v2840 = vor.u32 %v2780, %v2839
    %v2841 = vrot.slane %v2790, 1
    %v2842 = vsel %vm534, %v2840, %v2841
    %v2843 = vor.u32 %v2787, %v2841
    %v2844 = vrot.slane %v2798, 1
    %v2845 = vsel %vm534, %v2843, %v2844
    %v2846 = vor.u32 %v2795, %v2844
    %v2847 = vrot.slane %v2806, 1
    %v2848 = vsel %vm534, %v2846, %v2847
    %v2849 = vor.u32 %v2803, %v2847
    %v2858 = vsel %vm566, %v2838, 0
    %v2859 = vsel %vm566, %v2849, 0
    %v2860 = vsel %vm613, %v2831, 0
    %v2861 = vsel %vm614, %v2834, 0
    %v2862 = vsel %vm615, %v2837, 0
    %v2863 = vsel %vm616, %v2858, 0
    %v2864 = vsel %vm613, %v2842, 0
    %v2865 = vsel %vm614, %v2845, 0
    %v2866 = vsel %vm615, %v2848, 0
    %v2867 = vsel %vm616, %v2859, 0
    %v2869 = vshrl.u32 %v2716, 16
    %v2871 = vrot.slane %v2869, 7
    %v2872 = vshll.u32 %v2716, 16
    %v2874 = vor.u32 %v2871, %v2872
    %v2876 = vshrl.u32 %v2717, 16
    %v2878 = vrot.slane %v2876, 7
    %v2879 = vshll.u32 %v2717, 16
    %v2881 = vor.u32 %v2878, %v2879
    %v2882 = vsel %vm405, %v2871, %v2881
    %v2884 = vshrl.u32 %v2718, 16
    %v2886 = vrot.slane %v2884, 7
    %v2887 = vshll.u32 %v2718, 16
    %v2889 = vor.u32 %v2886, %v2887
    %v2890 = vsel %vm405, %v2878, %v2889
    %v2892 = vshrl.u32 %v2719, 16
    %v2894 = vrot.slane %v2892, 7
    %v2895 = vshll.u32 %v2719, 16
    %v2897 = vor.u32 %v2894, %v2895
    %v2898 = vsel %vm405, %v2886, %v2897
    %v2900 = vshrl.u32 %v2720, 16
    %v2902 = vrot.slane %v2900, 7
    %v2903 = vshll.u32 %v2720, 16
    %v2905 = vor.u32 %v2902, %v2903
    %v2907 = vshrl.u32 %v2721, 16
    %v2909 = vrot.slane %v2907, 7
    %v2910 = vshll.u32 %v2721, 16
    %v2912 = vor.u32 %v2909, %v2910
    %v2913 = vsel %vm405, %v2902, %v2912
    %v2915 = vshrl.u32 %v2722, 16
    %v2917 = vrot.slane %v2915, 7
    %v2918 = vshll.u32 %v2722, 16
    %v2920 = vor.u32 %v2917, %v2918
    %v2921 = vsel %vm405, %v2909, %v2920
    %v2923 = vshrl.u32 %v2723, 16
    %v2925 = vrot.slane %v2923, 7
    %v2926 = vshll.u32 %v2723, 16
    %v2928 = vor.u32 %v2925, %v2926
    %v2929 = vsel %vm405, %v2917, %v2928
    %v2938 = vsel %vm475, 0, %v2874
    %v2939 = vsel %vm475, 0, %v2905
    %v2940 = vsel %vm522, %v2938, 0
    %v2941 = vsel %vm523, %v2882, 0
    %v2942 = vsel %vm524, %v2890, 0
    %v2943 = vsel %vm525, %v2898, 0
    %v2944 = vsel %vm522, %v2939, 0
    %v2945 = vsel %vm523, %v2913, 0
    %v2946 = vsel %vm524, %v2921, 0
    %v2947 = vsel %vm525, %v2929, 0
    %v2948 = vrot.slane %v2872, 1
    %v2949 = vor.u32 %v2869, %v2948
    %v2950 = vrot.slane %v2879, 1
    %v2951 = vsel %vm534, %v2949, %v2950
    %v2952 = vor.u32 %v2876, %v2950
    %v2953 = vrot.slane %v2887, 1
    %v2954 = vsel %vm534, %v2952, %v2953
    %v2955 = vor.u32 %v2884, %v2953
    %v2956 = vrot.slane %v2895, 1
    %v2957 = vsel %vm534, %v2955, %v2956
    %v2958 = vor.u32 %v2892, %v2956
    %v2959 = vrot.slane %v2903, 1
    %v2960 = vor.u32 %v2900, %v2959
    %v2961 = vrot.slane %v2910, 1
    %v2962 = vsel %vm534, %v2960, %v2961
    %v2963 = vor.u32 %v2907, %v2961
    %v2964 = vrot.slane %v2918, 1
    %v2965 = vsel %vm534, %v2963, %v2964
    %v2966 = vor.u32 %v2915, %v2964
    %v2967 = vrot.slane %v2926, 1
    %v2968 = vsel %vm534, %v2966, %v2967
    %v2969 = vor.u32 %v2923, %v2967
    %v2978 = vsel %vm566, %v2958, 0
    %v2979 = vsel %vm566, %v2969, 0
    %v2980 = vsel %vm613, %v2951, 0
    %v2981 = vsel %vm614, %v2954, 0
    %v2982 = vsel %vm615, %v2957, 0
    %v2983 = vsel %vm616, %v2978, 0
    %v2984 = vsel %vm613, %v2962, 0
    %v2985 = vsel %vm614, %v2965, 0
    %v2986 = vsel %vm615, %v2968, 0
    %v2987 = vsel %vm616, %v2979, 0
    %v2989 = vsel %vm399, %v2737, 0
    %v2991 = vsel %vm399, %v2744, 0
    %v2992 = vshrl.u32 %v2989, 16
    %v2994 = vrot.slane %v2992, 7
    %v2995 = vshll.u32 %v2989, 16
    %v2997 = vor.u32 %v2994, %v2995
    %v2998 = vsel %vm405, %v2775, %v2997
    %v2999 = vshrl.u32 %v2991, 16
    %v3001 = vrot.slane %v2999, 7
    %v3002 = vshll.u32 %v2991, 16
    %v3004 = vor.u32 %v3001, %v3002
    %v3005 = vsel %vm405, %v2805, %v3004
    %v3010 = vsel %vm475, 0, %v2762
    %v3011 = vsel %vm475, 0, %v2792
    %v3012 = vsel %vm522, %v3010, 0
    %v3013 = vsel %vm523, %v2771, 0
    %v3014 = vsel %vm524, %v2779, 0
    %v3015 = vsel %vm525, %v2998, 0
    %v3016 = vsel %vm522, %v3011, 0
    %v3017 = vsel %vm523, %v2801, 0
    %v3018 = vsel %vm524, %v2809, 0
    %v3019 = vsel %vm525, %v3005, 0
    %v3020 = vrot.slane %v2995, 1
    %v3021 = vsel %vm534, %v2838, %v3020
    %v3022 = vor.u32 %v2992, %v3020
    %v3023 = vrot.slane %v3002, 1
    %v3024 = vsel %vm534, %v2849, %v3023
    %v3025 = vor.u32 %v2999, %v3023
    %v3030 = vsel %vm566, %v3022, 0
    %v3031 = vsel %vm566, %v3025, 0
    %v3032 = vsel %vm613, %v2834, 0
    %v3033 = vsel %vm614, %v2837, 0
    %v3034 = vsel %vm615, %v3021, 0
    %v3035 = vsel %vm616, %v3030, 0
    %v3036 = vsel %vm613, %v2845, 0
    %v3037 = vsel %vm614, %v2848, 0
    %v3038 = vsel %vm615, %v3024, 0
    %v3039 = vsel %vm616, %v3031, 0
    %3042 = vrot.lane.b32.xlu0 %v2747, 64
    %v3043 = vpop.permute.xlu0 %3042
    %3044 = vrot.lane.b32.xlu0 %v2734, 64
    %v3045 = vpop.permute.xlu0 %3044
    %3046 = vrot.lane.b32.xlu0 %v2736, 64
    %v3047 = vpop.permute.xlu0 %3046
    %3048 = vrot.lane.b32.xlu0 %v2738, 64
    %v3049 = vpop.permute.xlu0 %3048
    %3050 = vrot.lane.b32.xlu0 %v2749, 64
    %v3051 = vpop.permute.xlu0 %3050
    %3052 = vrot.lane.b32.xlu0 %v2741, 64
    %v3053 = vpop.permute.xlu0 %3052
    %3054 = vrot.lane.b32.xlu0 %v2743, 64
    %v3055 = vpop.permute.xlu0 %3054
    %3056 = vrot.lane.b32.xlu0 %v2745, 64
    %v3057 = vpop.permute.xlu0 %3056
    %3066 = vrot.lane.b32.xlu0 %v2940, 64
    %v3067 = vpop.permute.xlu0 %3066
    %3068 = vrot.lane.b32.xlu0 %v2941, 64
    %v3069 = vpop.permute.xlu0 %3068
    %3070 = vrot.lane.b32.xlu0 %v2942, 64
    %v3071 = vpop.permute.xlu0 %3070
    %3072 = vrot.lane.b32.xlu0 %v2943, 64
    %v3073 = vpop.permute.xlu0 %3072
    %3074 = vrot.lane.b32.xlu0 %v2944, 64
    %v3075 = vpop.permute.xlu0 %3074
    %3076 = vrot.lane.b32.xlu0 %v2945, 64
    %v3077 = vpop.permute.xlu0 %3076
    %3078 = vrot.lane.b32.xlu0 %v2946, 64
    %v3079 = vpop.permute.xlu0 %3078
    %3080 = vrot.lane.b32.xlu0 %v2947, 64
    %v3081 = vpop.permute.xlu0 %3080
    %3090 = vrot.lane.b32.xlu0 %v2980, 64
    %v3091 = vpop.permute.xlu0 %3090
    %3092 = vrot.lane.b32.xlu0 %v2981, 64
    %v3093 = vpop.permute.xlu0 %3092
    %3094 = vrot.lane.b32.xlu0 %v2982, 64
    %v3095 = vpop.permute.xlu0 %3094
    %3096 = vrot.lane.b32.xlu0 %v2983, 64
    %v3097 = vpop.permute.xlu0 %3096
    %3098 = vrot.lane.b32.xlu0 %v2984, 64
    %v3099 = vpop.permute.xlu0 %3098
    %3100 = vrot.lane.b32.xlu0 %v2985, 64
    %v3101 = vpop.permute.xlu0 %3100
    %3102 = vrot.lane.b32.xlu0 %v2986, 64
    %v3103 = vpop.permute.xlu0 %3102
    %3104 = vrot.lane.b32.xlu0 %v2987, 64
    %v3105 = vpop.permute.xlu0 %3104
    %3108 = vrot.lane.b32.xlu0 %v2989, 64
    %v3109 = vpop.permute.xlu0 %3108
    %3110 = vrot.lane.b32.xlu0 %v2991, 64
    %v3111 = vpop.permute.xlu0 %3110
    %v3114 = vsel %vm869, %v2820, %v3043
    %v3118 = vsel %vm869, %v2821, %v3045
    %v3122 = vsel %vm869, %v2822, %v3047
    %v3126 = vsel %vm869, %v2823, %v3049
    %v3130 = vsel %vm869, %v2824, %v3051
    %v3134 = vsel %vm869, %v2825, %v3053
    %v3138 = vsel %vm869, %v2826, %v3055
    %v3142 = vsel %vm869, %v2827, %v3057
    %v3146 = vsel %vm869, %v2860, %v3067
    %v3150 = vsel %vm869, %v2861, %v3069
    %v3154 = vsel %vm869, %v2862, %v3071
    %v3158 = vsel %vm869, %v2863, %v3073
    %v3162 = vsel %vm869, %v2864, %v3075
    %v3166 = vsel %vm869, %v2865, %v3077
    %v3170 = vsel %vm869, %v2866, %v3079
    %v3174 = vsel %vm869, %v2867, %v3081
    %v3177 = vsel %vm869, %v2716, %v3091
    %v3180 = vsel %vm869, %v2717, %v3093
    %v3183 = vsel %vm869, %v2718, %v3095
    %v3186 = vsel %vm869, %v2719, %v3097
    %v3189 = vsel %vm869, %v2720, %v3099
    %v3192 = vsel %vm869, %v2721, %v3101
    %v3195 = vsel %vm869, %v2722, %v3103
    %v3198 = vsel %vm869, %v2723, %v3105
    %v3201 = vsel %vm869, %v3012, %v3045
    %v3204 = vsel %vm869, %v3013, %v3047
    %v3207 = vsel %vm869, %v3014, %v3049
    %v3211 = vsel %vm869, %v3015, %v3109
    %v3214 = vsel %vm869, %v3016, %v3053
    %v3217 = vsel %vm869, %v3017, %v3055
    %v3220 = vsel %vm869, %v3018, %v3057
    %v3224 = vsel %vm869, %v3019, %v3111
    %v3226 = vld [vmem:[#allocation8] sm:$0xf]
    %v3227 = vld [vmem:[#allocation8 + $0x4] sm:$0xf]
    %v3228 = vld [vmem:[#allocation8 + $0x8] sm:$0xf]
    %v3229 = vld [vmem:[#allocation8 + $0xc] sm:$0xf]
    %v3230 = vld [vmem:[#allocation8 + $0x10] sm:$0xf]
    %v3231 = vld [vmem:[#allocation8 + $0x14] sm:$0xf]
    %v3232 = vld [vmem:[#allocation8 + $0x18] sm:$0xf]
    %v3233 = vld [vmem:[#allocation8 + $0x1c] sm:$0xf]
    %v3234 = vld [vmem:[#allocation8 + $0x20] sm:$0xf]
    %v3235 = vld [vmem:[#allocation8 + $0x24] sm:$0xf]
    %v3236 = vld [vmem:[#allocation8 + $0x28] sm:$0xf]
    %v3237 = vld [vmem:[#allocation8 + $0x2c] sm:$0xf]
    %v3238 = vld [vmem:[#allocation8 + $0x30] sm:$0xf]
    %v3239 = vld [vmem:[#allocation8 + $0x34] sm:$0xf]
    %v3240 = vld [vmem:[#allocation8 + $0x38] sm:$0xf]
    %v3241 = vld [vmem:[#allocation8 + $0x3c] sm:$0xf]
    %v3242 = vld [vmem:[#allocation8 + $0x40] sm:$0xf]
    %v3243 = vld [vmem:[#allocation8 + $0x44] sm:$0xf]
    %v3244 = vld [vmem:[#allocation8 + $0x48] sm:$0xf]
    %v3245 = vld [vmem:[#allocation8 + $0x4c] sm:$0xf]
    %v3246 = vld [vmem:[#allocation8 + $0x50] sm:$0xf]
    %v3247 = vld [vmem:[#allocation8 + $0x54] sm:$0xf]
    %v3248 = vld [vmem:[#allocation8 + $0x58] sm:$0xf]
    %v3249 = vld [vmem:[#allocation8 + $0x5c] sm:$0xf]
    %v3250 = vld [vmem:[#allocation8 + $0x60] sm:$0xf]
    %v3251 = vld [vmem:[#allocation8 + $0x64] sm:$0xf]
    %v3252 = vld [vmem:[#allocation8 + $0x68] sm:$0xf]
    %v3253 = vld [vmem:[#allocation8 + $0x6c] sm:$0xf]
    %v3254 = vld [vmem:[#allocation8 + $0x70] sm:$0xf]
    %v3255 = vld [vmem:[#allocation8 + $0x74] sm:$0xf]
    %v3256 = vld [vmem:[#allocation8 + $0x78] sm:$0xf]
    %v3257 = vld [vmem:[#allocation8 + $0x7c] sm:$0xf]
    %v3258 = vld [vmem:[#allocation8 + $0x80] sm:$0xf]
    %v3259 = vld [vmem:[#allocation8 + $0x84] sm:$0xf]
    %v3260 = vld [vmem:[#allocation8 + $0x88] sm:$0xf]
    %v3261 = vld [vmem:[#allocation8 + $0x8c] sm:$0xf]
    %v3262 = vld [vmem:[#allocation8 + $0x90] sm:$0xf]
    %v3263 = vld [vmem:[#allocation8 + $0x94] sm:$0xf]
    %v3264 = vld [vmem:[#allocation8 + $0x98] sm:$0xf]
    %v3265 = vld [vmem:[#allocation8 + $0x9c] sm:$0xf]
    %v3266 = vld [vmem:[#allocation8 + $0xa0] sm:$0xf]
    %v3267 = vld [vmem:[#allocation8 + $0xa4] sm:$0xf]
    %v3268 = vld [vmem:[#allocation8 + $0xa8] sm:$0xf]
    %v3269 = vld [vmem:[#allocation8 + $0xac] sm:$0xf]
    %v3270 = vld [vmem:[#allocation8 + $0xb0] sm:$0xf]
    %v3271 = vld [vmem:[#allocation8 + $0xb4] sm:$0xf]
    %v3272 = vld [vmem:[#allocation8 + $0xb8] sm:$0xf]
    %v3273 = vld [vmem:[#allocation8 + $0xbc] sm:$0xf]
    %v3274 = vld [vmem:[#allocation8 + $0xc0] sm:$0xf]
    %v3275 = vld [vmem:[#allocation8 + $0xc4] sm:$0xf]
    %v3276 = vld [vmem:[#allocation8 + $0xc8] sm:$0xf]
    %v3277 = vld [vmem:[#allocation8 + $0xcc] sm:$0xf]
    %v3278 = vld [vmem:[#allocation8 + $0xd0] sm:$0xf]
    %v3279 = vld [vmem:[#allocation8 + $0xd4] sm:$0xf]
    %v3280 = vld [vmem:[#allocation8 + $0xd8] sm:$0xf]
    %v3281 = vld [vmem:[#allocation8 + $0xdc] sm:$0xf]
    %v3282 = vld [vmem:[#allocation8 + $0xe0] sm:$0xf]
    %v3283 = vld [vmem:[#allocation8 + $0xe4] sm:$0xf]
    %v3284 = vld [vmem:[#allocation8 + $0xe8] sm:$0xf]
    %v3285 = vld [vmem:[#allocation8 + $0xec] sm:$0xf]
    %v3286 = vld [vmem:[#allocation8 + $0xf0] sm:$0xf]
    %v3287 = vld [vmem:[#allocation8 + $0xf4] sm:$0xf]
    %v3288 = vld [vmem:[#allocation8 + $0xf8] sm:$0xf]
    %v3289 = vld [vmem:[#allocation8 + $0xfc] sm:$0xf]
    %v3290 = vld [vmem:[#allocation8 + $0x100] sm:$0xf]
    %v3291 = vld [vmem:[#allocation8 + $0x104] sm:$0xf]
    %v3292 = vld [vmem:[#allocation8 + $0x108] sm:$0xf]
    %v3293 = vld [vmem:[#allocation8 + $0x10c] sm:$0xf]
    %v3294 = vld [vmem:[#allocation8 + $0x110] sm:$0xf]
    %v3295 = vld [vmem:[#allocation8 + $0x114] sm:$0xf]
    %v3296 = vld [vmem:[#allocation8 + $0x118] sm:$0xf]
    %v3297 = vld [vmem:[#allocation8 + $0x11c] sm:$0xf]
    %v3370 = vunpack.c.l.b16 %v3226
    %v3371 = vunpack.c.l.b16 %v3227
    %v3372 = vunpack.c.l.b16 %v3228
    %v3373 = vunpack.c.l.b16 %v3229
    %v3374 = vunpack.c.l.b16 %v3230
    %v3375 = vunpack.c.l.b16 %v3231
    %v3376 = vunpack.c.l.b16 %v3232
    %v3377 = vunpack.c.l.b16 %v3233
    %v3378 = vunpack.c.l.b16 %v3234
    %v3379 = vunpack.c.l.b16 %v3235
    %v3380 = vunpack.c.l.b16 %v3236
    %v3381 = vunpack.c.l.b16 %v3237
    %v3382 = vunpack.c.l.b16 %v3238
    %v3383 = vunpack.c.l.b16 %v3239
    %v3384 = vunpack.c.l.b16 %v3240
    %v3385 = vunpack.c.l.b16 %v3241
    %v3386 = vunpack.c.l.b16 %v3242
    %v3387 = vunpack.c.l.b16 %v3243
    %v3388 = vunpack.c.l.b16 %v3244
    %v3389 = vunpack.c.l.b16 %v3245
    %v3390 = vunpack.c.l.b16 %v3246
    %v3391 = vunpack.c.l.b16 %v3247
    %v3392 = vunpack.c.l.b16 %v3248
    %v3393 = vunpack.c.l.b16 %v3249
    %v3394 = vunpack.c.l.b16 %v3250
    %v3395 = vunpack.c.l.b16 %v3251
    %v3396 = vunpack.c.l.b16 %v3252
    %v3397 = vunpack.c.l.b16 %v3253
    %v3398 = vunpack.c.l.b16 %v3254
    %v3399 = vunpack.c.l.b16 %v3255
    %v3400 = vunpack.c.l.b16 %v3256
    %v3401 = vunpack.c.l.b16 %v3257
    %v3402 = vunpack.c.l.b16 %v3258
    %v3403 = vunpack.c.l.b16 %v3259
    %v3404 = vunpack.c.l.b16 %v3260
    %v3405 = vunpack.c.l.b16 %v3261
    %v3406 = vunpack.c.l.b16 %v3262
    %v3407 = vunpack.c.l.b16 %v3263
    %v3408 = vunpack.c.l.b16 %v3264
    %v3409 = vunpack.c.l.b16 %v3265
    %v3410 = vunpack.c.l.b16 %v3266
    %v3411 = vunpack.c.l.b16 %v3267
    %v3412 = vunpack.c.l.b16 %v3268
    %v3413 = vunpack.c.l.b16 %v3269
    %v3414 = vunpack.c.l.b16 %v3270
    %v3415 = vunpack.c.l.b16 %v3271
    %v3416 = vunpack.c.l.b16 %v3272
    %v3417 = vunpack.c.l.b16 %v3273
    %v3418 = vunpack.c.l.b16 %v3274
    %v3419 = vunpack.c.l.b16 %v3275
    %v3420 = vunpack.c.l.b16 %v3276
    %v3421 = vunpack.c.l.b16 %v3277
    %v3422 = vunpack.c.l.b16 %v3278
    %v3423 = vunpack.c.l.b16 %v3279
    %v3424 = vunpack.c.l.b16 %v3280
    %v3425 = vunpack.c.l.b16 %v3281
    %v3426 = vunpack.c.l.b16 %v3282
    %v3427 = vunpack.c.l.b16 %v3283
    %v3428 = vunpack.c.l.b16 %v3284
    %v3429 = vunpack.c.l.b16 %v3285
    %v3430 = vunpack.c.l.b16 %v3286
    %v3431 = vunpack.c.l.b16 %v3287
    %v3432 = vunpack.c.l.b16 %v3288
    %v3433 = vunpack.c.l.b16 %v3289
    %v3434 = vunpack.c.l.b16 %v3290
    %v3435 = vunpack.c.l.b16 %v3291
    %v3436 = vunpack.c.l.b16 %v3292
    %v3437 = vunpack.c.l.b16 %v3293
    %v3438 = vunpack.c.l.b16 %v3294
    %v3439 = vunpack.c.l.b16 %v3295
    %v3440 = vunpack.c.l.b16 %v3296
    %v3441 = vunpack.c.l.b16 %v3297
    %v3442 = vpack.c.b16 %v3371, %v3370
    %v3443 = vpack.c.b16 %v3373, %v3372
    %v3444 = vpack.c.b16 %v3375, %v3374
    %v3445 = vpack.c.b16 %v3377, %v3376
    %v3446 = vpack.c.b16 %v3379, %v3378
    %v3447 = vpack.c.b16 %v3381, %v3380
    %v3448 = vpack.c.b16 %v3383, %v3382
    %v3449 = vpack.c.b16 %v3385, %v3384
    %v3450 = vpack.c.b16 %v3387, %v3386
    %v3451 = vpack.c.b16 %v3389, %v3388
    %v3452 = vpack.c.b16 %v3391, %v3390
    %v3453 = vpack.c.b16 %v3393, %v3392
    %v3454 = vpack.c.b16 %v3395, %v3394
    %v3455 = vpack.c.b16 %v3397, %v3396
    %v3456 = vpack.c.b16 %v3399, %v3398
    %v3457 = vpack.c.b16 %v3401, %v3400
    %v3458 = vpack.c.b16 %v3403, %v3402
    %v3459 = vpack.c.b16 %v3405, %v3404
    %v3460 = vpack.c.b16 %v3407, %v3406
    %v3461 = vpack.c.b16 %v3409, %v3408
    %v3462 = vpack.c.b16 %v3411, %v3410
    %v3463 = vpack.c.b16 %v3413, %v3412
    %v3464 = vpack.c.b16 %v3415, %v3414
    %v3465 = vpack.c.b16 %v3417, %v3416
    %v3466 = vpack.c.b16 %v3419, %v3418
    %v3467 = vpack.c.b16 %v3421, %v3420
    %v3468 = vpack.c.b16 %v3423, %v3422
    %v3469 = vpack.c.b16 %v3425, %v3424
    %v3470 = vpack.c.b16 %v3427, %v3426
    %v3471 = vpack.c.b16 %v3429, %v3428
    %v3472 = vpack.c.b16 %v3431, %v3430
    %v3473 = vpack.c.b16 %v3433, %v3432
    %v3474 = vpack.c.b16 %v3435, %v3434
    %v3475 = vpack.c.b16 %v3437, %v3436
    %v3476 = vpack.c.b16 %v3439, %v3438
    %v3477 = vpack.c.b16 %v3441, %v3440
    %v3515 = vsel %vm869, %v3032, 0
    %v3518 = vsel %vm869, %v3033, 0
    %v3521 = vsel %vm869, %v3034, 0
    %v3524 = vsel %vm869, %v3035, 0
    %v3527 = vsel %vm869, %v3036, 0
    %v3530 = vsel %vm869, %v3037, 0
    %v3533 = vsel %vm869, %v3038, 0
    %v3536 = vsel %vm869, %v3039, 0
    %3538 = vmatprep.subr.bf16.mxu0 0
    %3539 = vmatpush1.bf16.msra.mxu0 %v3442
    %3540 = vmatprep.subr.bf16.mxu0 0
    %3541 = vmatpush1.bf16.msra.mxu0 %v3443
    %3542 = vmatprep.subr.bf16.mxu0 0
    %3543 = vmatpush1.bf16.msra.mxu0 %v3444
    %3544 = vmatprep.subr.bf16.mxu0 0
    %3545 = vmatpush1.bf16.msra.mxu0 %v3445
    %3546 = vmatprep.subr.bf16.mxu0 0
    %3547 = vmatpush1.bf16.msra.mxu0 %v3446
    %3548 = vmatprep.subr.bf16.mxu0 0
    %3549 = vmatpush1.bf16.msra.mxu0 %v3447
    %3550 = vmatprep.subr.bf16.mxu0 0
    %3551 = vmatpush1.bf16.msra.mxu0 %v3448
    %3552 = vmatprep.subr.bf16.mxu0 0
    %3553 = vmatpush1.bf16.msra.mxu0 %v3449
    %3554 = vmatprep.subr.bf16.mxu0 0
    %3555 = vmatpush1.bf16.msra.mxu0 %v3450
    %3556 = vmatprep.subr.bf16.mxu0 0
    %3557 = vmatpush1.bf16.msra.mxu0 %v3451
    %3558 = vmatprep.subr.bf16.mxu0 0
    %3559 = vmatpush1.bf16.msra.mxu0 %v3452
    %3560 = vmatprep.subr.bf16.mxu0 0
    %3561 = vmatpush1.bf16.msra.mxu0 %v3453
    %3562 = vmatprep.subr.bf16.mxu0 0
    %3563 = vmatpush1.bf16.msra.mxu0 %v3454
    %3564 = vmatprep.subr.bf16.mxu0 0
    %3565 = vmatpush1.bf16.msra.mxu0 %v3455
    %3566 = vmatprep.subr.bf16.mxu0 0
    %3567 = vmatpush1.bf16.msra.mxu0 %v3456
    %3568 = vmatprep.subr.bf16.mxu0 0
    %3569 = vmatpush1.bf16.msra.mxu0 %v3457
    %3570 = vmatprep.mubr.bf16.mxu0 %v3146
    %3571 = vmatmul.mubr.bf16.gmra.mrb[0].mxu0 %v3114
    %v3572 = vpop.f32.mrb[0].mxu0
    %v3573 = vadd.f32 0.0, %v3572
    %v3574 = vpop.f32.mrb[0].mxu0
    %v3575 = vpop.f32.mrb[0].mxu0
    %v3576 = vadd.f32 0.0, %v3575
    %v3577 = vpop.f32.mrb[0].mxu0
    %3578 = vmatprep.mubr.bf16.mxu0 %v3150
    %3579 = vmatmul.mubr.bf16.gmra.mrb[0].mxu0 %v3118
    %v3580 = vpop.f32.mrb[0].mxu0
    %v3581 = vadd.f32 0.0, %v3580
    %v3582 = vpop.f32.mrb[0].mxu0
    %v3583 = vpop.f32.mrb[0].mxu0
    %v3584 = vadd.f32 0.0, %v3583
    %v3585 = vpop.f32.mrb[0].mxu0
    %3586 = vmatprep.mubr.bf16.mxu0 %v3154
    %3587 = vmatmul.mubr.bf16.gmra.mrb[0].mxu0 %v3122
    %v3588 = vpop.f32.mrb[0].mxu0
    %v3589 = vadd.f32 0.0, %v3588
    %v3590 = vpop.f32.mrb[0].mxu0
    %v3591 = vpop.f32.mrb[0].mxu0
    %v3592 = vadd.f32 0.0, %v3591
    %v3593 = vpop.f32.mrb[0].mxu0
    %3594 = vmatprep.mubr.bf16.mxu0 %v3158
    %3595 = vmatmul.mubr.bf16.gmra.mrb[0].mxu0 %v3126
    %v3596 = vpop.f32.mrb[0].mxu0
    %v3597 = vadd.f32 0.0, %v3596
    %v3598 = vpop.f32.mrb[0].mxu0
    %v3599 = vpop.f32.mrb[0].mxu0
    %v3600 = vadd.f32 0.0, %v3599
    %v3601 = vpop.f32.mrb[0].mxu0
    %3602 = vmatprep.mubr.bf16.mxu0 %v3162
    %3603 = vmatmul.mubr.bf16.gmra.mrb[0].mxu0 %v3130
    %v3604 = vpop.f32.mrb[0].mxu0
    %v3605 = vadd.f32 0.0, %v3604
    %v3606 = vpop.f32.mrb[0].mxu0
    %v3607 = vpop.f32.mrb[0].mxu0
    %v3608 = vadd.f32 0.0, %v3607
    %v3609 = vpop.f32.mrb[0].mxu0
    %3610 = vmatprep.mubr.bf16.mxu0 %v3166
    %3611 = vmatmul.mubr.bf16.gmra.mrb[0].mxu0 %v3134
    %v3612 = vpop.f32.mrb[0].mxu0
    %v3613 = vadd.f32 0.0, %v3612
    %v3614 = vpop.f32.mrb[0].mxu0
    %v3615 = vpop.f32.mrb[0].mxu0
    %v3616 = vadd.f32 0.0, %v3615
    %v3617 = vpop.f32.mrb[0].mxu0
    %3618 = vmatprep.mubr.bf16.mxu0 %v3170
    %3619 = vmatmul.mubr.bf16.gmra.mrb[0].mxu0 %v3138
    %v3620 = vpop.f32.mrb[0].mxu0
    %v3621 = vadd.f32 0.0, %v3620
    %v3622 = vpop.f32.mrb[0].mxu0
    %v3623 = vpop.f32.mrb[0].mxu0
    %v3624 = vadd.f32 0.0, %v3623
    %v3625 = vpop.f32.mrb[0].mxu0
    %3626 = vmatprep.mubr.bf16.mxu0 %v3174
    %3627 = vmatmul.mubr.bf16.gmra.mrb[0].mxu0 %v3142
    %v3628 = vpop.f32.mrb[0].mxu0
    %v3629 = vadd.f32 0.0, %v3628
    %v3630 = vpop.f32.mrb[0].mxu0
    %v3631 = vpop.f32.mrb[0].mxu0
    %v3632 = vadd.f32 0.0, %v3631
    %v3633 = vpop.f32.mrb[0].mxu0
    %3634 = vdwg.mxu0
    %3635 = vmatprep.subr.bf16.mxu0 0
    %3636 = vmatpush1.bf16.msra.mxu0 %v3458
    %3637 = vmatprep.subr.bf16.mxu0 0
    %3638 = vmatpush1.bf16.msra.mxu0 %v3459
    %3639 = vmatprep.subr.bf16.mxu0 0
    %3640 = vmatpush1.bf16.msra.mxu0 %v3460
    %3641 = vmatprep.subr.bf16.mxu0 0
    %3642 = vmatpush1.bf16.msra.mxu0 %v3461
    %3643 = vmatprep.subr.bf16.mxu0 0
    %3644 = vmatpush1.bf16.msra.mxu0 %v3462
    %3645 = vmatprep.subr.bf16.mxu0 0
    %3646 = vmatpush1.bf16.msra.mxu0 %v3463
    %3647 = vmatprep.subr.bf16.mxu0 0
    %3648 = vmatpush1.bf16.msra.mxu0 %v3464
    %3649 = vmatprep.subr.bf16.mxu0 0
    %3650 = vmatpush1.bf16.msra.mxu0 %v3465
    %3651 = vmatprep.subr.bf16.mxu0 0
    %3652 = vmatpush1.bf16.msra.mxu0 %v3466
    %3653 = vmatprep.subr.bf16.mxu0 0
    %3654 = vmatpush1.bf16.msra.mxu0 %v3467
    %3655 = vmatprep.subr.bf16.mxu0 0
    %3656 = vmatpush1.bf16.msra.mxu0 %v3468
    %3657 = vmatprep.subr.bf16.mxu0 0
    %3658 = vmatpush1.bf16.msra.mxu0 %v3469
    %3659 = vmatprep.subr.bf16.mxu0 0
    %3660 = vmatpush1.bf16.msra.mxu0 %v3470
    %3661 = vmatprep.subr.bf16.mxu0 0
    %3662 = vmatpush1.bf16.msra.mxu0 %v3471
    %3663 = vmatprep.subr.bf16.mxu0 0
    %3664 = vmatpush1.bf16.msra.mxu0 %v3472
    %3665 = vmatprep.subr.bf16.mxu0 0
    %3666 = vmatpush1.bf16.msra.mxu0 %v3473
    %3667 = vmatprep.mubr.bf16.mxu0 %v3201
    %3668 = vmatmul.mubr.bf16.gmra.mrb[0].mxu0 %v3177
    %v3669 = vpop.f32.mrb[0].mxu0
    %v3670 = vadd.f32 %v3573, %v3669
    %v3671 = vpop.f32.mrb[0].mxu0
    %v3672 = vpop.f32.mrb[0].mxu0
    %v3673 = vadd.f32 %v3576, %v3672
    %v3674 = vpop.f32.mrb[0].mxu0
    %3675 = vmatprep.mubr.bf16.mxu0 %v3204
    %3676 = vmatmul.mubr.bf16.gmra.mrb[0].mxu0 %v3180
    %v3677 = vpop.f32.mrb[0].mxu0
    %v3678 = vadd.f32 %v3581, %v3677
    %v3679 = vpop.f32.mrb[0].mxu0
    %v3680 = vpop.f32.mrb[0].mxu0
    %v3681 = vadd.f32 %v3584, %v3680
    %v3682 = vpop.f32.mrb[0].mxu0
    %3683 = vmatprep.mubr.bf16.mxu0 %v3207
    %3684 = vmatmul.mubr.bf16.gmra.mrb[0].mxu0 %v3183
    %v3685 = vpop.f32.mrb[0].mxu0
    %v3686 = vadd.f32 %v3589, %v3685
    %v3687 = vpop.f32.mrb[0].mxu0
    %v3688 = vpop.f32.mrb[0].mxu0
    %v3689 = vadd.f32 %v3592, %v3688
    %v3690 = vpop.f32.mrb[0].mxu0
    %3691 = vmatprep.mubr.bf16.mxu0 %v3211
    %3692 = vmatmul.mubr.bf16.gmra.mrb[0].mxu0 %v3186
    %v3693 = vpop.f32.mrb[0].mxu0
    %v3694 = vadd.f32 %v3597, %v3693
    %v3695 = vpop.f32.mrb[0].mxu0
    %v3696 = vpop.f32.mrb[0].mxu0
    %v3697 = vadd.f32 %v3600, %v3696
    %v3698 = vpop.f32.mrb[0].mxu0
    %3699 = vmatprep.mubr.bf16.mxu0 %v3214
    %3700 = vmatmul.mubr.bf16.gmra.mrb[0].mxu0 %v3189
    %v3701 = vpop.f32.mrb[0].mxu0
    %v3702 = vadd.f32 %v3605, %v3701
    %v3703 = vpop.f32.mrb[0].mxu0
    %v3704 = vpop.f32.mrb[0].mxu0
    %v3705 = vadd.f32 %v3608, %v3704
    %v3706 = vpop.f32.mrb[0].mxu0
    %3707 = vmatprep.mubr.bf16.mxu0 %v3217
    %3708 = vmatmul.mubr.bf16.gmra.mrb[0].mxu0 %v3192
    %v3709 = vpop.f32.mrb[0].mxu0
    %v3710 = vadd.f32 %v3613, %v3709
    %v3711 = vpop.f32.mrb[0].mxu0
    %v3712 = vpop.f32.mrb[0].mxu0
    %v3713 = vadd.f32 %v3616, %v3712
    %v3714 = vpop.f32.mrb[0].mxu0
    %3715 = vmatprep.mubr.bf16.mxu0 %v3220
    %3716 = vmatmul.mubr.bf16.gmra.mrb[0].mxu0 %v3195
    %v3717 = vpop.f32.mrb[0].mxu0
    %v3718 = vadd.f32 %v3621, %v3717
    %v3719 = vpop.f32.mrb[0].mxu0
    %v3720 = vpop.f32.mrb[0].mxu0
    %v3721 = vadd.f32 %v3624, %v3720
    %v3722 = vpop.f32.mrb[0].mxu0
    %3723 = vmatprep.mubr.bf16.mxu0 %v3224
    %3724 = vmatmul.mubr.bf16.gmra.mrb[0].mxu0 %v3198
    %v3725 = vpop.f32.mrb[0].mxu0
    %v3726 = vadd.f32 %v3629, %v3725
    %v3727 = vpop.f32.mrb[0].mxu0
    %v3728 = vpop.f32.mrb[0].mxu0
    %v3729 = vadd.f32 %v3632, %v3728
    %v3730 = vpop.f32.mrb[0].mxu0
    %3731 = vdwg.mxu0
    %3732 = vmatprep.subr.bf16.mxu0 0
    %3733 = vmatpush1.bf16.msra.mxu0 %v3474
    %3734 = vmatprep.subr.bf16.mxu0 0
    %3735 = vmatpush1.bf16.msra.mxu0 %v3475
    %3736 = vmatprep.subr.bf16.mxu0 0
    %3737 = vmatpush1.bf16.msra.mxu0 %v3476
    %3738 = vmatprep.subr.bf16.mxu0 0
    %3739 = vmatpush1.bf16.msra.mxu0 %v3477
    %3740 = vmatprep.subr.bf16.mxu0 0
    %3741 = vmatpush1.bf16.msra.mxu0 0
    %3742 = vmatprep.subr.bf16.mxu0 0
    %3743 = vmatpush1.bf16.msra.mxu0 0
    %3744 = vmatprep.subr.bf16.mxu0 0
    %3745 = vmatpush1.bf16.msra.mxu0 0
    %3746 = vmatprep.subr.bf16.mxu0 0
    %3747 = vmatpush1.bf16.msra.mxu0 0
    %3748 = vmatprep.subr.bf16.mxu0 0
    %3749 = vmatpush1.bf16.msra.mxu0 0
    %3750 = vmatprep.subr.bf16.mxu0 0
    %3751 = vmatpush1.bf16.msra.mxu0 0
    %3752 = vmatprep.subr.bf16.mxu0 0
    %3753 = vmatpush1.bf16.msra.mxu0 0
    %3754 = vmatprep.subr.bf16.mxu0 0
    %3755 = vmatpush1.bf16.msra.mxu0 0
    %3756 = vmatprep.subr.bf16.mxu0 0
    %3757 = vmatpush1.bf16.msra.mxu0 0
    %3758 = vmatprep.subr.bf16.mxu0 0
    %3759 = vmatpush1.bf16.msra.mxu0 0
    %3760 = vmatprep.subr.bf16.mxu0 0
    %3761 = vmatpush1.bf16.msra.mxu0 0
    %3762 = vmatprep.subr.bf16.mxu0 0
    %3763 = vmatpush1.bf16.msra.mxu0 0
    %3764 = vmatprep.mubr.bf16.mxu0 0
    %3765 = vmatmul.mubr.bf16.gmra.mrb[0].mxu0 %v3515
    %v3766 = vpop.f32.mrb[0].mxu0
    %v3767 = vadd.f32 %v3670, %v3766
    %v3768 = vpop.f32.mrb[0].mxu0
    %v3769 = vpop.f32.mrb[0].mxu0
    %v3770 = vadd.f32 %v3673, %v3769
    %v3771 = vpop.f32.mrb[0].mxu0
    %3772 = vmatprep.mubr.bf16.mxu0 0
    %3773 = vmatmul.mubr.bf16.gmra.mrb[0].mxu0 %v3518
    %v3774 = vpop.f32.mrb[0].mxu0
    %v3775 = vadd.f32 %v3678, %v3774
    %v3776 = vpop.f32.mrb[0].mxu0
    %v3777 = vpop.f32.mrb[0].mxu0
    %v3778 = vadd.f32 %v3681, %v3777
    %v3779 = vpop.f32.mrb[0].mxu0
    %3780 = vmatprep.mubr.bf16.mxu0 0
    %3781 = vmatmul.mubr.bf16.gmra.mrb[0].mxu0 %v3521
    %v3782 = vpop.f32.mrb[0].mxu0
    %v3783 = vadd.f32 %v3686, %v3782
    %v3784 = vpop.f32.mrb[0].mxu0
    %v3785 = vpop.f32.mrb[0].mxu0
    %v3786 = vadd.f32 %v3689, %v3785
    %v3787 = vpop.f32.mrb[0].mxu0
    %3788 = vmatprep.mubr.bf16.mxu0 0
    %3789 = vmatmul.mubr.bf16.gmra.mrb[0].mxu0 %v3524
    %v3790 = vpop.f32.mrb[0].mxu0
    %v3791 = vadd.f32 %v3694, %v3790
    %v3792 = vpop.f32.mrb[0].mxu0
    %v3793 = vpop.f32.mrb[0].mxu0
    %v3794 = vadd.f32 %v3697, %v3793
    %v3795 = vpop.f32.mrb[0].mxu0
    %3796 = vmatprep.mubr.bf16.mxu0 0
    %3797 = vmatmul.mubr.bf16.gmra.mrb[0].mxu0 %v3527
    %v3798 = vpop.f32.mrb[0].mxu0
    %v3799 = vadd.f32 %v3702, %v3798
    %v3800 = vpop.f32.mrb[0].mxu0
    %v3801 = vpop.f32.mrb[0].mxu0
    %v3802 = vadd.f32 %v3705, %v3801
    %v3803 = vpop.f32.mrb[0].mxu0
    %3804 = vmatprep.mubr.bf16.mxu0 0
    %3805 = vmatmul.mubr.bf16.gmra.mrb[0].mxu0 %v3530
    %v3806 = vpop.f32.mrb[0].mxu0
    %v3807 = vadd.f32 %v3710, %v3806
    %v3808 = vpop.f32.mrb[0].mxu0
    %v3809 = vpop.f32.mrb[0].mxu0
    %v3810 = vadd.f32 %v3713, %v3809
    %v3811 = vpop.f32.mrb[0].mxu0
    %3812 = vmatprep.mubr.bf16.mxu0 0
    %3813 = vmatmul.mubr.bf16.gmra.mrb[0].mxu0 %v3533
    %v3814 = vpop.f32.mrb[0].mxu0
    %v3815 = vadd.f32 %v3718, %v3814
    %v3816 = vpop.f32.mrb[0].mxu0
    %v3817 = vpop.f32.mrb[0].mxu0
    %v3818 = vadd.f32 %v3721, %v3817
    %v3819 = vpop.f32.mrb[0].mxu0
    %3820 = vmatprep.mubr.bf16.mxu0 0
    %3821 = vmatmul.mubr.bf16.gmra.mrb[0].mxu0 %v3536
    %v3822 = vpop.f32.mrb[0].mxu0
    %v3823 = vadd.f32 %v3726, %v3822
    %v3824 = vpop.f32.mrb[0].mxu0
    %v3825 = vpop.f32.mrb[0].mxu0
    %v3826 = vadd.f32 %v3729, %v3825
    %v3827 = vpop.f32.mrb[0].mxu0
    %3828 = vdwg.mxu0
    %v3829 = vmax.f32 %v3767, 0.0
    %v3830 = vmax.f32 %v3770, 0.0
    %v3831 = vmax.f32 %v3775, 0.0
    %v3832 = vmax.f32 %v3778, 0.0
    %v3833 = vmax.f32 %v3783, 0.0
    %v3834 = vmax.f32 %v3786, 0.0
    %v3835 = vmax.f32 %v3791, 0.0
    %v3836 = vmax.f32 %v3794, 0.0
    %v3837 = vmax.f32 %v3799, 0.0
    %v3838 = vmax.f32 %v3802, 0.0
    %v3839 = vmax.f32 %v3807, 0.0
    %v3840 = vmax.f32 %v3810, 0.0
    %v3841 = vmax.f32 %v3815, 0.0
    %v3842 = vmax.f32 %v3818, 0.0
    %v3843 = vmax.f32 %v3823, 0.0
    %v3844 = vmax.f32 %v3826, 0.0
    %v3845 = vpack.c.bf16 %v3830, %v3829
    %v3846 = vpack.c.bf16 %v3832, %v3831
    %v3847 = vpack.c.bf16 %v3834, %v3833
    %v3848 = vpack.c.bf16 %v3836, %v3835
    %v3849 = vpack.c.bf16 %v3838, %v3837
    %v3850 = vpack.c.bf16 %v3840, %v3839
    %v3851 = vpack.c.bf16 %v3842, %v3841
    %v3852 = vpack.c.bf16 %v3844, %v3843
    %3861 = vrot.lane.b32.xlu0 %v3845, 64
    %v3862 = vpop.permute.xlu0 %3861
    %3863 = vrot.lane.b32.xlu0 %v3846, 64
    %v3864 = vpop.permute.xlu0 %3863
    %3865 = vrot.lane.b32.xlu0 %v3847, 64
    %v3866 = vpop.permute.xlu0 %3865
    %3867 = vrot.lane.b32.xlu0 %v3848, 64
    %v3868 = vpop.permute.xlu0 %3867
    %3869 = vrot.lane.b32.xlu0 %v3849, 64
    %v3870 = vpop.permute.xlu0 %3869
    %3871 = vrot.lane.b32.xlu0 %v3850, 64
    %v3872 = vpop.permute.xlu0 %3871
    %3873 = vrot.lane.b32.xlu0 %v3851, 64
    %v3874 = vpop.permute.xlu0 %3873
    %3875 = vrot.lane.b32.xlu0 %v3852, 64
    %v3876 = vpop.permute.xlu0 %3875
    %v3878 = vsel %vm869, %v2716, %v3862
    %v3881 = vsel %vm869, %v2717, %v3864
    %v3884 = vsel %vm869, %v2718, %v3866
    %v3887 = vsel %vm869, %v2719, %v3868
    %v3890 = vsel %vm869, %v2720, %v3870
    %v3893 = vsel %vm869, %v2721, %v3872
    %v3896 = vsel %vm869, %v2722, %v3874
    %v3899 = vsel %vm869, %v2723, %v3876
    %v3901 = vld [vmem:[#allocation10] sm:$0xf]
    %v3902 = vld [vmem:[#allocation10 + $0x4] sm:$0xf]
    %v3903 = vld [vmem:[#allocation10 + $0x8] sm:$0xf]
    %v3904 = vld [vmem:[#allocation10 + $0xc] sm:$0xf]
    %v3905 = vld [vmem:[#allocation10 + $0x10] sm:$0xf]
    %v3906 = vld [vmem:[#allocation10 + $0x14] sm:$0xf]
    %v3907 = vld [vmem:[#allocation10 + $0x18] sm:$0xf]
    %v3908 = vld [vmem:[#allocation10 + $0x1c] sm:$0xf]
    %v3909 = vld [vmem:[#allocation10 + $0x20] sm:$0xf]
    %v3910 = vld [vmem:[#allocation10 + $0x24] sm:$0xf]
    %v3911 = vld [vmem:[#allocation10 + $0x28] sm:$0xf]
    %v3912 = vld [vmem:[#allocation10 + $0x2c] sm:$0xf]
    %v3913 = vld [vmem:[#allocation10 + $0x30] sm:$0xf]
    %v3914 = vld [vmem:[#allocation10 + $0x34] sm:$0xf]
    %v3915 = vld [vmem:[#allocation10 + $0x38] sm:$0xf]
    %v3916 = vld [vmem:[#allocation10 + $0x3c] sm:$0xf]
    %v3933 = vunpack.c.l.b16 %v3901
    %v3934 = vunpack.c.l.b16 %v3902
    %v3935 = vunpack.c.l.b16 %v3903
    %v3936 = vunpack.c.l.b16 %v3904
    %v3937 = vunpack.c.l.b16 %v3905
    %v3938 = vunpack.c.l.b16 %v3906
    %v3939 = vunpack.c.l.b16 %v3907
    %v3940 = vunpack.c.l.b16 %v3908
    %v3941 = vunpack.c.l.b16 %v3909
    %v3942 = vunpack.c.l.b16 %v3910
    %v3943 = vunpack.c.l.b16 %v3911
    %v3944 = vunpack.c.l.b16 %v3912
    %v3945 = vunpack.c.l.b16 %v3913
    %v3946 = vunpack.c.l.b16 %v3914
    %v3947 = vunpack.c.l.b16 %v3915
    %v3948 = vunpack.c.l.b16 %v3916
    %v3949 = vpack.c.b16 %v3934, %v3933
    %v3950 = vpack.c.b16 %v3936, %v3935
    %v3951 = vpack.c.b16 %v3938, %v3937
    %v3952 = vpack.c.b16 %v3940, %v3939
    %v3953 = vpack.c.b16 %v3942, %v3941
    %v3954 = vpack.c.b16 %v3944, %v3943
    %v3955 = vpack.c.b16 %v3946, %v3945
    %v3956 = vpack.c.b16 %v3948, %v3947
    %3965 = vmatprep.subr.bf16.mxu0 0
    %3966 = vmatpush1.bf16.msra.mxu0 %v3949
    %3967 = vmatprep.subr.bf16.mxu0 0
    %3968 = vmatpush1.bf16.msra.mxu0 %v3950
    %3969 = vmatprep.subr.bf16.mxu0 0
    %3970 = vmatpush1.bf16.msra.mxu0 %v3951
    %3971 = vmatprep.subr.bf16.mxu0 0
    %3972 = vmatpush1.bf16.msra.mxu0 %v3952
    %3973 = vmatprep.subr.bf16.mxu0 0
    %3974 = vmatpush1.bf16.msra.mxu0 %v3953
    %3975 = vmatprep.subr.bf16.mxu0 0
    %3976 = vmatpush1.bf16.msra.mxu0 %v3954
    %3977 = vmatprep.subr.bf16.mxu0 0
    %3978 = vmatpush1.bf16.msra.mxu0 %v3955
    %3979 = vmatprep.subr.bf16.mxu0 0
    %3980 = vmatpush1.bf16.msra.mxu0 %v3956
    %3981 = vmatprep.subr.bf16.mxu0 0
    %3982 = vmatpush1.bf16.msra.mxu0 0
    %3983 = vmatprep.subr.bf16.mxu0 0
    %3984 = vmatpush1.bf16.msra.mxu0 0
    %3985 = vmatprep.subr.bf16.mxu0 0
    %3986 = vmatpush1.bf16.msra.mxu0 0
    %3987 = vmatprep.subr.bf16.mxu0 0
    %3988 = vmatpush1.bf16.msra.mxu0 0
    %3989 = vmatprep.subr.bf16.mxu0 0
    %3990 = vmatpush1.bf16.msra.mxu0 0
    %3991 = vmatprep.subr.bf16.mxu0 0
    %3992 = vmatpush1.bf16.msra.mxu0 0
    %3993 = vmatprep.subr.bf16.mxu0 0
    %3994 = vmatpush1.bf16.msra.mxu0 0
    %3995 = vmatprep.subr.bf16.mxu0 0
    %3996 = vmatpush1.bf16.msra.mxu0 0
    %3997 = vmatprep.mubr.bf16.mxu0 0
    %3998 = vmatmul.mubr.bf16.gmra.mrb[0].mxu0 %v3878
    %v3999 = vpop.f32.mrb[0].mxu0
    %v4000 = vadd.f32 0.0, %v3999
    %v4001 = vpop.f32.mrb[0].mxu0
    %v4002 = vpop.f32.mrb[0].mxu0
    %v4003 = vadd.f32 0.0, %v4002
    %v4004 = vpop.f32.mrb[0].mxu0
    %4005 = vmatprep.mubr.bf16.mxu0 0
    %4006 = vmatmul.mubr.bf16.gmra.mrb[0].mxu0 %v3881
    %v4007 = vpop.f32.mrb[0].mxu0
    %v4008 = vadd.f32 0.0, %v4007
    %v4009 = vpop.f32.mrb[0].mxu0
    %v4010 = vpop.f32.mrb[0].mxu0
    %v4011 = vadd.f32 0.0, %v4010
    %v4012 = vpop.f32.mrb[0].mxu0
    %4013 = vmatprep.mubr.bf16.mxu0 0
    %4014 = vmatmul.mubr.bf16.gmra.mrb[0].mxu0 %v3884
    %v4015 = vpop.f32.mrb[0].mxu0
    %v4016 = vadd.f32 0.0, %v4015
    %v4017 = vpop.f32.mrb[0].mxu0
    %v4018 = vpop.f32.mrb[0].mxu0
    %v4019 = vadd.f32 0.0, %v4018
    %v4020 = vpop.f32.mrb[0].mxu0
    %4021 = vmatprep.mubr.bf16.mxu0 0
    %4022 = vmatmul.mubr.bf16.gmra.mrb[0].mxu0 %v3887
    %v4023 = vpop.f32.mrb[0].mxu0
    %v4024 = vadd.f32 0.0, %v4023
    %v4025 = vpop.f32.mrb[0].mxu0
    %v4026 = vpop.f32.mrb[0].mxu0
    %v4027 = vadd.f32 0.0, %v4026
    %v4028 = vpop.f32.mrb[0].mxu0
    %4029 = vmatprep.mubr.bf16.mxu0 0
    %4030 = vmatmul.mubr.bf16.gmra.mrb[0].mxu0 %v3890
    %v4031 = vpop.f32.mrb[0].mxu0
    %v4032 = vadd.f32 0.0, %v4031
    %v4033 = vpop.f32.mrb[0].mxu0
    %v4034 = vpop.f32.mrb[0].mxu0
    %v4035 = vadd.f32 0.0, %v4034
    %v4036 = vpop.f32.mrb[0].mxu0
    %4037 = vmatprep.mubr.bf16.mxu0 0
    %4038 = vmatmul.mubr.bf16.gmra.mrb[0].mxu0 %v3893
    %v4039 = vpop.f32.mrb[0].mxu0
    %v4040 = vadd.f32 0.0, %v4039
    %v4041 = vpop.f32.mrb[0].mxu0
    %v4042 = vpop.f32.mrb[0].mxu0
    %v4043 = vadd.f32 0.0, %v4042
    %v4044 = vpop.f32.mrb[0].mxu0
    %4045 = vmatprep.mubr.bf16.mxu0 0
    %4046 = vmatmul.mubr.bf16.gmra.mrb[0].mxu0 %v3896
    %v4047 = vpop.f32.mrb[0].mxu0
    %v4048 = vadd.f32 0.0, %v4047
    %v4049 = vpop.f32.mrb[0].mxu0
    %v4050 = vpop.f32.mrb[0].mxu0
    %v4051 = vadd.f32 0.0, %v4050
    %v4052 = vpop.f32.mrb[0].mxu0
    %4053 = vmatprep.mubr.bf16.mxu0 0
    %4054 = vmatmul.mubr.bf16.gmra.mrb[0].mxu0 %v3899
    %v4055 = vpop.f32.mrb[0].mxu0
    %v4056 = vadd.f32 0.0, %v4055
    %v4057 = vpop.f32.mrb[0].mxu0
    %v4058 = vpop.f32.mrb[0].mxu0
    %v4059 = vadd.f32 0.0, %v4058
    %v4060 = vpop.f32.mrb[0].mxu0
    %4061 = vdwg.mxu0
    %v4062 = vmax.f32 %v4000, 0.0
    %v4063 = vmax.f32 %v4003, 0.0
    %v4064 = vmax.f32 %v4008, 0.0
    %v4065 = vmax.f32 %v4011, 0.0
    %v4066 = vmax.f32 %v4016, 0.0
    %v4067 = vmax.f32 %v4019, 0.0
    %v4068 = vmax.f32 %v4024, 0.0
    %v4069 = vmax.f32 %v4027, 0.0
    %v4070 = vmax.f32 %v4032, 0.0
    %v4071 = vmax.f32 %v4035, 0.0
    %v4072 = vmax.f32 %v4040, 0.0
    %v4073 = vmax.f32 %v4043, 0.0
    %v4074 = vmax.f32 %v4048, 0.0
    %v4075 = vmax.f32 %v4051, 0.0
    %v4076 = vmax.f32 %v4056, 0.0
    %v4077 = vmax.f32 %v4059, 0.0
    %v4078 = vpack.c.bf16 %v4063, %v4062
    %v4079 = vpack.c.bf16 %v4065, %v4064
    %v4080 = vpack.c.bf16 %v4067, %v4066
    %v4081 = vpack.c.bf16 %v4069, %v4068
    %v4082 = vpack.c.bf16 %v4071, %v4070
    %v4083 = vpack.c.bf16 %v4073, %v4072
    %v4084 = vpack.c.bf16 %v4075, %v4074
    %v4085 = vpack.c.bf16 %v4077, %v4076
    %v4086 = vld [vmem:[#allocation11] sm:$0xf]
    %v4087 = vld [vmem:[#allocation11 + $0x4] sm:$0xf]
    %v4088 = vld [vmem:[#allocation11 + $0x8] sm:$0xf]
    %v4089 = vld [vmem:[#allocation11 + $0xc] sm:$0xf]
    %v4090 = vld [vmem:[#allocation13] sm:$0x1]
    %v4092 = vlaneseq
    %v4093 = vshrl.u32 %v4092, 7
    %v4094 = vsub.s32 0, %v4093
    %v4095 = vrot.slane %v4090, %v4094
    %v4101 = vunpack.c.l.b16 %v4086
    %v4102 = vunpack.c.l.b16 %v4087
    %v4103 = vunpack.c.l.b16 %v4088
    %v4104 = vunpack.c.l.b16 %v4089
    %v4105 = vpack.c.b16 %v4102, %v4101
    %v4106 = vpack.c.b16 %v4104, %v4103
    %vm4109 = vcmask 261120
    %v4111 = vsel %vm4109, %v4078, 0
    %v4114 = vsel %vm4109, %v4079, 0
    %v4117 = vsel %vm4109, %v4080, 0
    %v4120 = vsel %vm4109, %v4081, 0
    %v4123 = vsel %vm4109, %v4082, 0
    %v4126 = vsel %vm4109, %v4083, 0
    %v4129 = vsel %vm4109, %v4084, 0
    %v4132 = vsel %vm4109, %v4085, 0
    %4134 = vmatprep.subr.bf16.mxu0 0
    %4135 = vmatpush1.bf16.msra.mxu0 %v4105
    %4136 = vmatprep.subr.bf16.mxu0 0
    %4137 = vmatpush1.bf16.msra.mxu0 %v4106
    %4138 = vmatprep.subr.bf16.mxu0 0
    %4139 = vmatpush1.bf16.msra.mxu0 0
    %4140 = vmatprep.subr.bf16.mxu0 0
    %4141 = vmatpush1.bf16.msra.mxu0 0
    %4142 = vmatprep.subr.bf16.mxu0 0
    %4143 = vmatpush1.bf16.msra.mxu0 0
    %4144 = vmatprep.subr.bf16.mxu0 0
    %4145 = vmatpush1.bf16.msra.mxu0 0
    %4146 = vmatprep.subr.bf16.mxu0 0
    %4147 = vmatpush1.bf16.msra.mxu0 0
    %4148 = vmatprep.subr.bf16.mxu0 0
    %4149 = vmatpush1.bf16.msra.mxu0 0
    %4150 = vmatprep.subr.bf16.mxu0 0
    %4151 = vmatpush1.bf16.msra.mxu0 0
    %4152 = vmatprep.subr.bf16.mxu0 0
    %4153 = vmatpush1.bf16.msra.mxu0 0
    %4154 = vmatprep.subr.bf16.mxu0 0
    %4155 = vmatpush1.bf16.msra.mxu0 0
    %4156 = vmatprep.subr.bf16.mxu0 0
    %4157 = vmatpush1.bf16.msra.mxu0 0
    %4158 = vmatprep.subr.bf16.mxu0 0
    %4159 = vmatpush1.bf16.msra.mxu0 0
    %4160 = vmatprep.subr.bf16.mxu0 0
    %4161 = vmatpush1.bf16.msra.mxu0 0
    %4162 = vmatprep.subr.bf16.mxu0 0
    %4163 = vmatpush1.bf16.msra.mxu0 0
    %4164 = vmatprep.subr.bf16.mxu0 0
    %4165 = vmatpush1.bf16.msra.mxu0 0
    %4166 = vmatprep.mubr.bf16.mxu0 0
    %4167 = vmatmul.mubr.bf16.gmra.mrb[0].mxu0 %v4111
    %v4168 = vpop.f32.mrb[0].mxu0
    %v4169 = vadd.f32 %v4095, %v4168
    %v4170 = vpop.f32.mrb[0].mxu0
    %v4171 = vpop.f32.mrb[0].mxu0
    %v4172 = vadd.f32 %v4095, %v4171
    %v4173 = vpop.f32.mrb[0].mxu0
    %4174 = vmatprep.mubr.bf16.mxu0 0
    %4175 = vmatmul.mubr.bf16.gmra.mrb[0].mxu0 %v4114
    %v4176 = vpop.f32.mrb[0].mxu0
    %v4177 = vadd.f32 %v4095, %v4176
    %v4178 = vpop.f32.mrb[0].mxu0
    %v4179 = vpop.f32.mrb[0].mxu0
    %v4180 = vadd.f32 %v4095, %v4179
    %v4181 = vpop.f32.mrb[0].mxu0
    %4182 = vmatprep.mubr.bf16.mxu0 0
    %4183 = vmatmul.mubr.bf16.gmra.mrb[0].mxu0 %v4117
    %v4184 = vpop.f32.mrb[0].mxu0
    %v4185 = vadd.f32 %v4095, %v4184
    %v4186 = vpop.f32.mrb[0].mxu0
    %v4187 = vpop.f32.mrb[0].mxu0
    %v4188 = vadd.f32 %v4095, %v4187
    %v4189 = vpop.f32.mrb[0].mxu0
    %4190 = vmatprep.mubr.bf16.mxu0 0
    %4191 = vmatmul.mubr.bf16.gmra.mrb[0].mxu0 %v4120
    %v4192 = vpop.f32.mrb[0].mxu0
    %v4193 = vadd.f32 %v4095, %v4192
    %v4194 = vpop.f32.mrb[0].mxu0
    %v4195 = vpop.f32.mrb[0].mxu0
    %v4196 = vadd.f32 %v4095, %v4195
    %v4197 = vpop.f32.mrb[0].mxu0
    %4198 = vmatprep.mubr.bf16.mxu0 0
    %4199 = vmatmul.mubr.bf16.gmra.mrb[0].mxu0 %v4123
    %v4200 = vpop.f32.mrb[0].mxu0
    %v4201 = vadd.f32 %v4095, %v4200
    %v4202 = vpop.f32.mrb[0].mxu0
    %v4203 = vpop.f32.mrb[0].mxu0
    %v4204 = vadd.f32 %v4095, %v4203
    %v4205 = vpop.f32.mrb[0].mxu0
    %4206 = vmatprep.mubr.bf16.mxu0 0
    %4207 = vmatmul.mubr.bf16.gmra.mrb[0].mxu0 %v4126
    %v4208 = vpop.f32.mrb[0].mxu0
    %v4209 = vadd.f32 %v4095, %v4208
    %v4210 = vpop.f32.mrb[0].mxu0
    %v4211 = vpop.f32.mrb[0].mxu0
    %v4212 = vadd.f32 %v4095, %v4211
    %v4213 = vpop.f32.mrb[0].mxu0
    %4214 = vmatprep.mubr.bf16.mxu0 0
    %4215 = vmatmul.mubr.bf16.gmra.mrb[0].mxu0 %v4129
    %v4216 = vpop.f32.mrb[0].mxu0
    %v4217 = vadd.f32 %v4095, %v4216
    %v4218 = vpop.f32.mrb[0].mxu0
    %v4219 = vpop.f32.mrb[0].mxu0
    %v4220 = vadd.f32 %v4095, %v4219
    %v4221 = vpop.f32.mrb[0].mxu0
    %4222 = vmatprep.mubr.bf16.mxu0 0
    %4223 = vmatmul.mubr.bf16.gmra.mrb[0].mxu0 %v4132
    %v4224 = vpop.f32.mrb[0].mxu0
    %v4225 = vadd.f32 %v4095, %v4224
    %v4226 = vpop.f32.mrb[0].mxu0
    %v4227 = vpop.f32.mrb[0].mxu0
    %v4228 = vadd.f32 %v4095, %v4227
    %v4229 = vpop.f32.mrb[0].mxu0
    %4230 = vdwg.mxu0
    %vm4231 = vcmask 588800
    %v4232 = vsel %vm4231, %v4169, 0.0
    %v4233 = vsel %vm4231, %v4172, 0.0
    %v4234 = vadd.f32 %v4232, %v4233
    %v4235 = vsel %vm4231, %v4177, 0.0
    %v4236 = vadd.f32 %v4234, %v4235
    %v4237 = vsel %vm4231, %v4180, 0.0
    %v4238 = vadd.f32 %v4236, %v4237
    %v4239 = vsel %vm4231, %v4185, 0.0
    %v4240 = vadd.f32 %v4238, %v4239
    %v4241 = vsel %vm4231, %v4188, 0.0
    %v4242 = vadd.f32 %v4240, %v4241
    %v4243 = vsel %vm4231, %v4193, 0.0
    %v4244 = vadd.f32 %v4242, %v4243
    %v4245 = vsel %vm4231, %v4196, 0.0
    %v4246 = vadd.f32 %v4244, %v4245
    %v4247 = vrot.slane %v4246, 4
    %v4248 = vadd.f32 %v4246, %v4247
    %v4249 = vrot.slane %v4248, 2
    %v4250 = vadd.f32 %v4248, %v4249
    %v4251 = vrot.slane %v4250, 1
    %v4252 = vadd.f32 %v4250, %v4251
    %v4253 = vsel %vm4231, %v4201, 0.0
    %v4254 = vsel %vm4231, %v4204, 0.0
    %v4255 = vadd.f32 %v4253, %v4254
    %v4256 = vsel %vm4231, %v4209, 0.0
    %v4257 = vadd.f32 %v4255, %v4256
    %v4258 = vsel %vm4231, %v4212, 0.0
    %v4259 = vadd.f32 %v4257, %v4258
    %v4260 = vsel %vm4231, %v4217, 0.0
    %v4261 = vadd.f32 %v4259, %v4260
    %v4262 = vsel %vm4231, %v4220, 0.0
    %v4263 = vadd.f32 %v4261, %v4262
    %v4264 = vsel %vm4231, %v4225, 0.0
    %v4265 = vadd.f32 %v4263, %v4264
    %v4266 = vsel %vm4231, %v4228, 0.0
    %v4267 = vadd.f32 %v4265, %v4266
    %v4268 = vrot.slane %v4267, 4
    %v4269 = vadd.f32 %v4267, %v4268
    %v4270 = vrot.slane %v4269, 2
    %v4271 = vadd.f32 %v4269, %v4270
    %v4272 = vrot.slane %v4271, 1
    %v4273 = vadd.f32 %v4271, %v4272
    %v4274 = vld [vmem:[#allocation17] sm:$0xff]
    %v4275 = vld [vmem:[#allocation17 + $0x8] sm:$0xff]
    %v4276 = vld [vmem:[#allocation17 + $0x10] sm:$0xff]
    %v4277 = vld [vmem:[#allocation17 + $0x18] sm:$0xff]
    %v4278 = vld [vmem:[#allocation17 + $0x20] sm:$0xff]
    %v4279 = vld [vmem:[#allocation17 + $0x28] sm:$0xff]
    %v4280 = vld [vmem:[#allocation17 + $0x30] sm:$0xff]
    %v4281 = vld [vmem:[#allocation17 + $0x38] sm:$0xff]
    %v4282 = vld [vmem:[#allocation17 + $0x40] sm:$0xff]
    %vm4285 = vcmask 1041409
    %v4286 = vsel %vm4285, %v4273, %v4252
    %v4287 = vsel %vm4231, %v4286, 0
    %4289 = vmatprep.subr.mxu0 0.0
    %4290 = vmatpush1.msra.mxu0 %v4274
    %4291 = vmatprep.subr.mxu0 0.0
    %4292 = vmatpush1.msra.mxu0 %v4275
    %4293 = vmatprep.subr.mxu0 0.0
    %4294 = vmatpush1.msra.mxu0 %v4276
    %4295 = vmatprep.subr.mxu0 0.0
    %4296 = vmatpush1.msra.mxu0 %v4277
    %4297 = vmatprep.subr.mxu0 0.0
    %4298 = vmatpush1.msra.mxu0 %v4278
    %4299 = vmatprep.subr.mxu0 0.0
    %4300 = vmatpush1.msra.mxu0 %v4279
    %4301 = vmatprep.subr.mxu0 0.0
    %4302 = vmatpush1.msra.mxu0 %v4280
    %4303 = vmatprep.subr.mxu0 0.0
    %4304 = vmatpush1.msra.mxu0 %v4281
    %4305 = vmatprep.subr.mxu0 0.0
    %4306 = vmatpush1.msra.mxu0 %v4282
    %4307 = vmatprep.subr.mxu0 0.0
    %4308 = vmatpush1.msra.mxu0 0.0
    %4309 = vmatprep.subr.mxu0 0.0
    %4310 = vmatpush1.msra.mxu0 0.0
    %4311 = vmatprep.subr.mxu0 0.0
    %4312 = vmatpush1.msra.mxu0 0.0
    %4313 = vmatprep.subr.mxu0 0.0
    %4314 = vmatpush1.msra.mxu0 0.0
    %4315 = vmatprep.subr.mxu0 0.0
    %4316 = vmatpush1.msra.mxu0 0.0
    %4317 = vmatprep.subr.mxu0 0.0
    %4318 = vmatpush1.msra.mxu0 0.0
    %4319 = vmatprep.subr.mxu0 0.0
    %4320 = vmatpush1.msra.mxu0 0.0
    %4321 = vmatprep.subr.mxu0 0.0
    %4322 = vmatpush1.msra.mxu0 0.0
    %4323 = vmatprep.subr.mxu0 0.0
    %4324 = vmatpush1.msra.mxu0 0.0
    %4325 = vmatprep.subr.mxu0 0.0
    %4326 = vmatpush1.msra.mxu0 0.0
    %4327 = vmatprep.subr.mxu0 0.0
    %4328 = vmatpush1.msra.mxu0 0.0
    %4329 = vmatprep.subr.mxu0 0.0
    %4330 = vmatpush1.msra.mxu0 0.0
    %4331 = vmatprep.subr.mxu0 0.0
    %4332 = vmatpush1.msra.mxu0 0.0
    %4333 = vmatprep.subr.mxu0 0.0
    %4334 = vmatpush1.msra.mxu0 0.0
    %4335 = vmatprep.subr.mxu0 0.0
    %4336 = vmatpush1.msra.mxu0 0.0
    %4337 = vmatprep.subr.mxu0 0.0
    %4338 = vmatpush1.msra.mxu0 0.0
    %4339 = vmatprep.subr.mxu0 0.0
    %4340 = vmatpush1.msra.mxu0 0.0
    %4341 = vmatprep.subr.mxu0 0.0
    %4342 = vmatpush1.msra.mxu0 0.0
    %4343 = vmatprep.subr.mxu0 0.0
    %4344 = vmatpush1.msra.mxu0 0.0
    %4345 = vmatprep.subr.mxu0 0.0
    %4346 = vmatpush1.msra.mxu0 0.0
    %4347 = vmatprep.subr.mxu0 0.0
    %4348 = vmatpush1.msra.mxu0 0.0
    %4349 = vmatprep.subr.mxu0 0.0
    %4350 = vmatpush1.msra.mxu0 0.0
    %4351 = vmatprep.subr.mxu0 0.0
    %4352 = vmatpush1.msra.mxu0 0.0
    %4353 = vmatprep.mubr.f32.mxu0 0.0
    %4354 = vmatmul.mubr.f32.gmra.mrb[0].mxu0 %v4287
    %v4355 = vpop.f32.mrb[0].mxu0
    %v4356 = vadd.f32 0.0, %v4355
    %v4357 = vpop.f32.mrb[0].mxu0
    %4358 = vdwg.mxu0
    %v4359 = vmul.f32 %v4356, 0.0017361111
    %v4360 = vld [vmem:[#allocation19] sm:$0xff]
    %vm4361 = vcmask 64512
    %v4363 = vsel %vm4361, %v4359, 0
    %4365 = vmatprep.subr.mxu0 0.0
    %4366 = vmatpush1.msra.mxu0 %v4360
    %4367 = vmatprep.subr.mxu0 0.0
    %4368 = vmatpush1.msra.mxu0 0.0
    %4369 = vmatprep.subr.mxu0 0.0
    %4370 = vmatpush1.msra.mxu0 0.0
    %4371 = vmatprep.subr.mxu0 0.0
    %4372 = vmatpush1.msra.mxu0 0.0
    %4373 = vmatprep.subr.mxu0 0.0
    %4374 = vmatpush1.msra.mxu0 0.0
    %4375 = vmatprep.subr.mxu0 0.0
    %4376 = vmatpush1.msra.mxu0 0.0
    %4377 = vmatprep.subr.mxu0 0.0
    %4378 = vmatpush1.msra.mxu0 0.0
    %4379 = vmatprep.subr.mxu0 0.0
    %4380 = vmatpush1.msra.mxu0 0.0
    %4381 = vmatprep.subr.mxu0 0.0
    %4382 = vmatpush1.msra.mxu0 0.0
    %4383 = vmatprep.subr.mxu0 0.0
    %4384 = vmatpush1.msra.mxu0 0.0
    %4385 = vmatprep.subr.mxu0 0.0
    %4386 = vmatpush1.msra.mxu0 0.0
    %4387 = vmatprep.subr.mxu0 0.0
    %4388 = vmatpush1.msra.mxu0 0.0
    %4389 = vmatprep.subr.mxu0 0.0
    %4390 = vmatpush1.msra.mxu0 0.0
    %4391 = vmatprep.subr.mxu0 0.0
    %4392 = vmatpush1.msra.mxu0 0.0
    %4393 = vmatprep.subr.mxu0 0.0
    %4394 = vmatpush1.msra.mxu0 0.0
    %4395 = vmatprep.subr.mxu0 0.0
    %4396 = vmatpush1.msra.mxu0 0.0
    %4397 = vmatprep.subr.mxu0 0.0
    %4398 = vmatpush1.msra.mxu0 0.0
    %4399 = vmatprep.subr.mxu0 0.0
    %4400 = vmatpush1.msra.mxu0 0.0
    %4401 = vmatprep.subr.mxu0 0.0
    %4402 = vmatpush1.msra.mxu0 0.0
    %4403 = vmatprep.subr.mxu0 0.0
    %4404 = vmatpush1.msra.mxu0 0.0
    %4405 = vmatprep.subr.mxu0 0.0
    %4406 = vmatpush1.msra.mxu0 0.0
    %4407 = vmatprep.subr.mxu0 0.0
    %4408 = vmatpush1.msra.mxu0 0.0
    %4409 = vmatprep.subr.mxu0 0.0
    %4410 = vmatpush1.msra.mxu0 0.0
    %4411 = vmatprep.subr.mxu0 0.0
    %4412 = vmatpush1.msra.mxu0 0.0
    %4413 = vmatprep.subr.mxu0 0.0
    %4414 = vmatpush1.msra.mxu0 0.0
    %4415 = vmatprep.subr.mxu0 0.0
    %4416 = vmatpush1.msra.mxu0 0.0
    %4417 = vmatprep.subr.mxu0 0.0
    %4418 = vmatpush1.msra.mxu0 0.0
    %4419 = vmatprep.subr.mxu0 0.0
    %4420 = vmatpush1.msra.mxu0 0.0
    %4421 = vmatprep.subr.mxu0 0.0
    %4422 = vmatpush1.msra.mxu0 0.0
    %4423 = vmatprep.subr.mxu0 0.0
    %4424 = vmatpush1.msra.mxu0 0.0
    %4425 = vmatprep.subr.mxu0 0.0
    %4426 = vmatpush1.msra.mxu0 0.0
    %4427 = vmatprep.subr.mxu0 0.0
    %4428 = vmatpush1.msra.mxu0 0.0
    %4429 = vmatprep.mubr.f32.mxu0 0.0
    %4430 = vmatmul.mubr.f32.gmra.mrb[0].mxu0 %v4363
    %v4431 = vpop.f32.mrb[0].mxu0
    %v4432 = vadd.f32 0.0, %v4431
    %v4433 = vpop.f32.mrb[0].mxu0
    %4434 = vdwg.mxu0
    %v4437 = vunpack.c.l.s4 1966171168
    %v4438 = vunpack.c.0.s8 %v4437
    %v4439 = vlaneseq
    %v4440 = vshrl.u32 %v4439, 7
    %v4441 = vsub.s32 %v4438, %v4440
    %v4442 = vrot.slane %v4432, %v4441
    %v4443 = vcombine.high %v4442, %v4442
    %v4445 = vunpack.c.l.s4 1966171168
    %v4446 = vunpack.c.0.s8 %v4445
    %v4447 = vlaneseq
    %v4448 = vshrl.u32 %v4447, 7
    %v4449 = vsub.s32 %v4446, %v4448
    %v4450 = vrot.slane %v4442, %v4449
    %v4452 = vunpack.c.l.s4 1966171168
    %v4453 = vunpack.c.0.s8 %v4452
    %v4454 = vlaneseq
    %v4455 = vshrl.u32 %v4454, 7
    %v4456 = vsub.s32 %v4453, %v4455
    %v4457 = vrot.slane %v4443, %v4456
    %v4458 = vlaneseq
    %v4459 = vshrl.u32 %v4458, 7
    %v4460 = vsub.s32 0, %v4459
    %v4461 = vrot.slane %v4450, %v4460
    %v4462 = vlaneseq
    %v4463 = vshrl.u32 %v4462, 7
    %v4464 = vsub.s32 0, %v4463
    %v4465 = vrot.slane %v4457, %v4464
    %v4468 = vsub.f32 %v4169, %v4461
    %v4469 = vsub.f32 %v4172, %v4461
    %v4470 = vsub.f32 %v4177, %v4461
    %v4471 = vsub.f32 %v4180, %v4461
    %v4472 = vsub.f32 %v4185, %v4461
    %v4473 = vsub.f32 %v4188, %v4461
    %v4474 = vsub.f32 %v4193, %v4461
    %v4475 = vsub.f32 %v4196, %v4461
    %v4476 = vsub.f32 %v4201, %v4465
    %v4477 = vsub.f32 %v4204, %v4465
    %v4478 = vsub.f32 %v4209, %v4465
    %v4479 = vsub.f32 %v4212, %v4465
    %v4480 = vsub.f32 %v4217, %v4465
    %v4481 = vsub.f32 %v4220, %v4465
    %v4482 = vsub.f32 %v4225, %v4465
    %v4483 = vsub.f32 %v4228, %v4465
    %v4484 = vmul.f32 %v4468, %v4468
    %v4485 = vmul.f32 %v4469, %v4469
    %v4486 = vmul.f32 %v4470, %v4470
    %v4487 = vmul.f32 %v4471, %v4471
    %v4488 = vmul.f32 %v4472, %v4472
    %v4489 = vmul.f32 %v4473, %v4473
    %v4490 = vmul.f32 %v4474, %v4474
    %v4491 = vmul.f32 %v4475, %v4475
    %v4492 = vmul.f32 %v4476, %v4476
    %v4493 = vmul.f32 %v4477, %v4477
    %v4494 = vmul.f32 %v4478, %v4478
    %v4495 = vmul.f32 %v4479, %v4479
    %v4496 = vmul.f32 %v4480, %v4480
    %v4497 = vmul.f32 %v4481, %v4481
    %v4498 = vmul.f32 %v4482, %v4482
    %v4499 = vmul.f32 %v4483, %v4483
    %v4500 = vsel %vm4231, %v4484, 0.0
    %v4501 = vsel %vm4231, %v4485, 0.0
    %v4502 = vadd.f32 %v4500, %v4501
    %v4503 = vsel %vm4231, %v4486, 0.0
    %v4504 = vadd.f32 %v4502, %v4503
    %v4505 = vsel %vm4231, %v4487, 0.0
    %v4506 = vadd.f32 %v4504, %v4505
    %v4507 = vsel %vm4231, %v4488, 0.0
    %v4508 = vadd.f32 %v4506, %v4507
    %v4509 = vsel %vm4231, %v4489, 0.0
    %v4510 = vadd.f32 %v4508, %v4509
    %v4511 = vsel %vm4231, %v4490, 0.0
    %v4512 = vadd.f32 %v4510, %v4511
    %v4513 = vsel %vm4231, %v4491, 0.0
    %v4514 = vadd.f32 %v4512, %v4513
    %v4515 = vrot.slane %v4514, 4
    %v4516 = vadd.f32 %v4514, %v4515
    %v4517 = vrot.slane %v4516, 2
    %v4518 = vadd.f32 %v4516, %v4517
    %v4519 = vrot.slane %v4518, 1
    %v4520 = vadd.f32 %v4518, %v4519
    %v4521 = vsel %vm4231, %v4492, 0.0
    %v4522 = vsel %vm4231, %v4493, 0.0
    %v4523 = vadd.f32 %v4521, %v4522
    %v4524 = vsel %vm4231, %v4494, 0.0
    %v4525 = vadd.f32 %v4523, %v4524
    %v4526 = vsel %vm4231, %v4495, 0.0
    %v4527 = vadd.f32 %v4525, %v4526
    %v4528 = vsel %vm4231, %v4496, 0.0
    %v4529 = vadd.f32 %v4527, %v4528
    %v4530 = vsel %vm4231, %v4497, 0.0
    %v4531 = vadd.f32 %v4529, %v4530
    %v4532 = vsel %vm4231, %v4498, 0.0
    %v4533 = vadd.f32 %v4531, %v4532
    %v4534 = vsel %vm4231, %v4499, 0.0
    %v4535 = vadd.f32 %v4533, %v4534
    %v4536 = vrot.slane %v4535, 4
    %v4537 = vadd.f32 %v4535, %v4536
    %v4538 = vrot.slane %v4537, 2
    %v4539 = vadd.f32 %v4537, %v4538
    %v4540 = vrot.slane %v4539, 1
    %v4541 = vadd.f32 %v4539, %v4540
    %v4544 = vsel %vm4285, %v4541, %v4520
    %v4545 = vsel %vm4231, %v4544, 0
    %4547 = vmatprep.subr.mxu0 0.0
    %4548 = vmatpush1.msra.mxu0 %v4274
    %4549 = vmatprep.subr.mxu0 0.0
    %4550 = vmatpush1.msra.mxu0 %v4275
    %4551 = vmatprep.subr.mxu0 0.0
    %4552 = vmatpush1.msra.mxu0 %v4276
    %4553 = vmatprep.subr.mxu0 0.0
    %4554 = vmatpush1.msra.mxu0 %v4277
    %4555 = vmatprep.subr.mxu0 0.0
    %4556 = vmatpush1.msra.mxu0 %v4278
    %4557 = vmatprep.subr.mxu0 0.0
    %4558 = vmatpush1.msra.mxu0 %v4279
    %4559 = vmatprep.subr.mxu0 0.0
    %4560 = vmatpush1.msra.mxu0 %v4280
    %4561 = vmatprep.subr.mxu0 0.0
    %4562 = vmatpush1.msra.mxu0 %v4281
    %4563 = vmatprep.subr.mxu0 0.0
    %4564 = vmatpush1.msra.mxu0 %v4282
    %4565 = vmatprep.subr.mxu0 0.0
    %4566 = vmatpush1.msra.mxu0 0.0
    %4567 = vmatprep.subr.mxu0 0.0
    %4568 = vmatpush1.msra.mxu0 0.0
    %4569 = vmatprep.subr.mxu0 0.0
    %4570 = vmatpush1.msra.mxu0 0.0
    %4571 = vmatprep.subr.mxu0 0.0
    %4572 = vmatpush1.msra.mxu0 0.0
    %4573 = vmatprep.subr.mxu0 0.0
    %4574 = vmatpush1.msra.mxu0 0.0
    %4575 = vmatprep.subr.mxu0 0.0
    %4576 = vmatpush1.msra.mxu0 0.0
    %4577 = vmatprep.subr.mxu0 0.0
    %4578 = vmatpush1.msra.mxu0 0.0
    %4579 = vmatprep.subr.mxu0 0.0
    %4580 = vmatpush1.msra.mxu0 0.0
    %4581 = vmatprep.subr.mxu0 0.0
    %4582 = vmatpush1.msra.mxu0 0.0
    %4583 = vmatprep.subr.mxu0 0.0
    %4584 = vmatpush1.msra.mxu0 0.0
    %4585 = vmatprep.subr.mxu0 0.0
    %4586 = vmatpush1.msra.mxu0 0.0
    %4587 = vmatprep.subr.mxu0 0.0
    %4588 = vmatpush1.msra.mxu0 0.0
    %4589 = vmatprep.subr.mxu0 0.0
    %4590 = vmatpush1.msra.mxu0 0.0
    %4591 = vmatprep.subr.mxu0 0.0
    %4592 = vmatpush1.msra.mxu0 0.0
    %4593 = vmatprep.subr.mxu0 0.0
    %4594 = vmatpush1.msra.mxu0 0.0
    %4595 = vmatprep.subr.mxu0 0.0
    %4596 = vmatpush1.msra.mxu0 0.0
    %4597 = vmatprep.subr.mxu0 0.0
    %4598 = vmatpush1.msra.mxu0 0.0
    %4599 = vmatprep.subr.mxu0 0.0
    %4600 = vmatpush1.msra.mxu0 0.0
    %4601 = vmatprep.subr.mxu0 0.0
    %4602 = vmatpush1.msra.mxu0 0.0
    %4603 = vmatprep.subr.mxu0 0.0
    %4604 = vmatpush1.msra.mxu0 0.0
    %4605 = vmatprep.subr.mxu0 0.0
    %4606 = vmatpush1.msra.mxu0 0.0
    %4607 = vmatprep.subr.mxu0 0.0
    %4608 = vmatpush1.msra.mxu0 0.0
    %4609 = vmatprep.subr.mxu0 0.0
    %4610 = vmatpush1.msra.mxu0 0.0
    %4611 = vmatprep.mubr.f32.mxu0 0.0
    %4612 = vmatmul.mubr.f32.gmra.mrb[0].mxu0 %v4545
    %v4613 = vpop.f32.mrb[0].mxu0
    %v4614 = vadd.f32 0.0, %v4613
    %v4615 = vpop.f32.mrb[0].mxu0
    %4616 = vdwg.mxu0
    %v4617 = vmul.f32 %v4614, 0.0017361111
    %v4618 = vadd.f32 %v4617, 1e-05
    %v4619 = vrsqrt.pop %v4618
    %v4621 = vsel %vm4361, %v4619, 0
    %4623 = vmatprep.subr.mxu0 0.0
    %4624 = vmatpush1.msra.mxu0 %v4360
    %4625 = vmatprep.subr.mxu0 0.0
    %4626 = vmatpush1.msra.mxu0 0.0
    %4627 = vmatprep.subr.mxu0 0.0
    %4628 = vmatpush1.msra.mxu0 0.0
    %4629 = vmatprep.subr.mxu0 0.0
    %4630 = vmatpush1.msra.mxu0 0.0
    %4631 = vmatprep.subr.mxu0 0.0
    %4632 = vmatpush1.msra.mxu0 0.0
    %4633 = vmatprep.subr.mxu0 0.0
    %4634 = vmatpush1.msra.mxu0 0.0
    %4635 = vmatprep.subr.mxu0 0.0
    %4636 = vmatpush1.msra.mxu0 0.0
    %4637 = vmatprep.subr.mxu0 0.0
    %4638 = vmatpush1.msra.mxu0 0.0
    %4639 = vmatprep.subr.mxu0 0.0
    %4640 = vmatpush1.msra.mxu0 0.0
    %4641 = vmatprep.subr.mxu0 0.0
    %4642 = vmatpush1.msra.mxu0 0.0
    %4643 = vmatprep.subr.mxu0 0.0
    %4644 = vmatpush1.msra.mxu0 0.0
    %4645 = vmatprep.subr.mxu0 0.0
    %4646 = vmatpush1.msra.mxu0 0.0
    %4647 = vmatprep.subr.mxu0 0.0
    %4648 = vmatpush1.msra.mxu0 0.0
    %4649 = vmatprep.subr.mxu0 0.0
    %4650 = vmatpush1.msra.mxu0 0.0
    %4651 = vmatprep.subr.mxu0 0.0
    %4652 = vmatpush1.msra.mxu0 0.0
    %4653 = vmatprep.subr.mxu0 0.0
    %4654 = vmatpush1.msra.mxu0 0.0
    %4655 = vmatprep.subr.mxu0 0.0
    %4656 = vmatpush1.msra.mxu0 0.0
    %4657 = vmatprep.subr.mxu0 0.0
    %4658 = vmatpush1.msra.mxu0 0.0
    %4659 = vmatprep.subr.mxu0 0.0
    %4660 = vmatpush1.msra.mxu0 0.0
    %4661 = vmatprep.subr.mxu0 0.0
    %4662 = vmatpush1.msra.mxu0 0.0
    %4663 = vmatprep.subr.mxu0 0.0
    %4664 = vmatpush1.msra.mxu0 0.0
    %4665 = vmatprep.subr.mxu0 0.0
    %4666 = vmatpush1.msra.mxu0 0.0
    %4667 = vmatprep.subr.mxu0 0.0
    %4668 = vmatpush1.msra.mxu0 0.0
    %4669 = vmatprep.subr.mxu0 0.0
    %4670 = vmatpush1.msra.mxu0 0.0
    %4671 = vmatprep.subr.mxu0 0.0
    %4672 = vmatpush1.msra.mxu0 0.0
    %4673 = vmatprep.subr.mxu0 0.0
    %4674 = vmatpush1.msra.mxu0 0.0
    %4675 = vmatprep.subr.mxu0 0.0
    %4676 = vmatpush1.msra.mxu0 0.0
    %4677 = vmatprep.subr.mxu0 0.0
    %4678 = vmatpush1.msra.mxu0 0.0
    %4679 = vmatprep.subr.mxu0 0.0
    %4680 = vmatpush1.msra.mxu0 0.0
    %4681 = vmatprep.subr.mxu0 0.0
    %4682 = vmatpush1.msra.mxu0 0.0
    %4683 = vmatprep.subr.mxu0 0.0
    %4684 = vmatpush1.msra.mxu0 0.0
    %4685 = vmatprep.subr.mxu0 0.0
    %4686 = vmatpush1.msra.mxu0 0.0
    %4687 = vmatprep.mubr.f32.mxu0 0.0
    %4688 = vmatmul.mubr.f32.gmra.mrb[0].mxu0 %v4621
    %v4689 = vpop.f32.mrb[0].mxu0
    %v4690 = vadd.f32 0.0, %v4689
    %v4691 = vpop.f32.mrb[0].mxu0
    %4692 = vdwg.mxu0
    %v4695 = vunpack.c.l.s4 1966171168
    %v4696 = vunpack.c.0.s8 %v4695
    %v4697 = vlaneseq
    %v4698 = vshrl.u32 %v4697, 7
    %v4699 = vsub.s32 %v4696, %v4698
    %v4700 = vrot.slane %v4690, %v4699
    %v4701 = vcombine.high %v4700, %v4700
    %v4703 = vunpack.c.l.s4 1966171168
    %v4704 = vunpack.c.0.s8 %v4703
    %v4705 = vlaneseq
    %v4706 = vshrl.u32 %v4705, 7
    %v4707 = vsub.s32 %v4704, %v4706
    %v4708 = vrot.slane %v4700, %v4707
    %v4710 = vunpack.c.l.s4 1966171168
    %v4711 = vunpack.c.0.s8 %v4710
    %v4712 = vlaneseq
    %v4713 = vshrl.u32 %v4712, 7
    %v4714 = vsub.s32 %v4711, %v4713
    %v4715 = vrot.slane %v4701, %v4714
    %v4716 = vlaneseq
    %v4717 = vshrl.u32 %v4716, 7
    %v4718 = vsub.s32 0, %v4717
    %v4719 = vrot.slane %v4708, %v4718
    %v4720 = vlaneseq
    %v4721 = vshrl.u32 %v4720, 7
    %v4722 = vsub.s32 0, %v4721
    %v4723 = vrot.slane %v4715, %v4722
    %v4726 = vmul.f32 %v4468, %v4719
    %v4727 = vmul.f32 %v4469, %v4719
    %v4728 = vmul.f32 %v4470, %v4719
    %v4729 = vmul.f32 %v4471, %v4719
    %v4730 = vmul.f32 %v4472, %v4719
    %v4731 = vmul.f32 %v4473, %v4719
    %v4732 = vmul.f32 %v4474, %v4719
    %v4733 = vmul.f32 %v4475, %v4719
    %v4734 = vmul.f32 %v4476, %v4723
    %v4735 = vmul.f32 %v4477, %v4723
    %v4736 = vmul.f32 %v4478, %v4723
    %v4737 = vmul.f32 %v4479, %v4723
    %v4738 = vmul.f32 %v4480, %v4723
    %v4739 = vmul.f32 %v4481, %v4723
    %v4740 = vmul.f32 %v4482, %v4723
    %v4741 = vmul.f32 %v4483, %v4723
    %v4742 = vld [vmem:[#allocation14] sm:$0x1]
    %v4744 = vlaneseq
    %v4745 = vshrl.u32 %v4744, 7
    %v4746 = vsub.s32 0, %v4745
    %v4747 = vrot.slane %v4742, %v4746
    %v4749 = vmul.f32 %v4726, %v4747
    %v4750 = vmul.f32 %v4727, %v4747
    %v4751 = vmul.f32 %v4728, %v4747
    %v4752 = vmul.f32 %v4729, %v4747
    %v4753 = vmul.f32 %v4730, %v4747
    %v4754 = vmul.f32 %v4731, %v4747
    %v4755 = vmul.f32 %v4732, %v4747
    %v4756 = vmul.f32 %v4733, %v4747
    %v4757 = vmul.f32 %v4734, %v4747
    %v4758 = vmul.f32 %v4735, %v4747
    %v4759 = vmul.f32 %v4736, %v4747
    %v4760 = vmul.f32 %v4737, %v4747
    %v4761 = vmul.f32 %v4738, %v4747
    %v4762 = vmul.f32 %v4739, %v4747
    %v4763 = vmul.f32 %v4740, %v4747
    %v4764 = vmul.f32 %v4741, %v4747
    %v4765 = vld [vmem:[#allocation16] sm:$0x1]
    %v4767 = vlaneseq
    %v4768 = vshrl.u32 %v4767, 7
    %v4769 = vsub.s32 0, %v4768
    %v4770 = vrot.slane %v4765, %v4769
    %v4772 = vadd.f32 %v4749, %v4770
    %v4773 = vadd.f32 %v4750, %v4770
    %v4774 = vadd.f32 %v4751, %v4770
    %v4775 = vadd.f32 %v4752, %v4770
    %v4776 = vadd.f32 %v4753, %v4770
    %v4777 = vadd.f32 %v4754, %v4770
    %v4778 = vadd.f32 %v4755, %v4770
    %v4779 = vadd.f32 %v4756, %v4770
    %v4780 = vadd.f32 %v4757, %v4770
    %v4781 = vadd.f32 %v4758, %v4770
    %v4782 = vadd.f32 %v4759, %v4770
    %v4783 = vadd.f32 %v4760, %v4770
    %v4784 = vadd.f32 %v4761, %v4770
    %v4785 = vadd.f32 %v4762, %v4770
    %v4786 = vadd.f32 %v4763, %v4770
    %v4787 = vadd.f32 %v4764, %v4770
    %v4788 = vpack.c.bf16 %v4773, %v4772
    %v4789 = vpack.c.bf16 %v4775, %v4774
    %v4790 = vpack.c.bf16 %v4777, %v4776
    %v4791 = vpack.c.bf16 %v4779, %v4778
    %v4792 = vpack.c.bf16 %v4781, %v4780
    %v4793 = vpack.c.bf16 %v4783, %v4782
    %v4794 = vpack.c.bf16 %v4785, %v4784
    %v4795 = vpack.c.bf16 %v4787, %v4786
    %v4796 = vld [vmem:[#allocation20] sm:$0xff]
    %v4797 = vld [vmem:[#allocation20 + $0x8] sm:$0xff]
    %v4798 = vld [vmem:[#allocation20 + $0x10] sm:$0xf]
    %v4799 = vld [vmem:[#allocation20 + $0x14] sm:$0xff]
    %v4800 = vld [vmem:[#allocation20 + $0x1c] sm:$0xff]
    %v4801 = vld [vmem:[#allocation20 + $0x24] sm:$0xf]
    %v4802 = vld [vmem:[#allocation20 + $0x28] sm:$0xff]
    %v4803 = vld [vmem:[#allocation20 + $0x30] sm:$0xff]
    %v4804 = vld [vmem:[#allocation20 + $0x38] sm:$0xf]
    %v4805 = vld [vmem:[#allocation20 + $0x3c] sm:$0xff]
    %v4806 = vld [vmem:[#allocation20 + $0x44] sm:$0xff]
    %v4807 = vld [vmem:[#allocation20 + $0x4c] sm:$0xf]
    %v4808 = vld [vmem:[#allocation20 + $0x50] sm:$0xff]
    %v4809 = vld [vmem:[#allocation20 + $0x58] sm:$0xff]
    %v4810 = vld [vmem:[#allocation20 + $0x60] sm:$0xf]
    %v4811 = vld [vmem:[#allocation20 + $0x64] sm:$0xff]
    %v4812 = vld [vmem:[#allocation20 + $0x6c] sm:$0xff]
    %v4813 = vld [vmem:[#allocation20 + $0x74] sm:$0xf]
    %v4814 = vld [vmem:[#allocation20 + $0x78] sm:$0xff]
    %v4815 = vld [vmem:[#allocation20 + $0x80] sm:$0xff]
    %v4816 = vld [vmem:[#allocation20 + $0x88] sm:$0xf]
    %v4817 = vld [vmem:[#allocation20 + $0x8c] sm:$0xff]
    %v4818 = vld [vmem:[#allocation20 + $0x94] sm:$0xff]
    %v4819 = vld [vmem:[#allocation20 + $0x9c] sm:$0xf]
    %v4820 = vld [vmem:[#allocation20 + $0xa0] sm:$0xff]
    %v4821 = vld [vmem:[#allocation20 + $0xa8] sm:$0xff]
    %v4822 = vld [vmem:[#allocation20 + $0xb0] sm:$0xf]
    %v4850 = vunpack.c.l.b16 %v4796
    %v4851 = vunpack.c.h.b16 %v4796
    %v4852 = vunpack.c.l.b16 %v4797
    %v4853 = vunpack.c.h.b16 %v4797
    %v4854 = vunpack.c.l.b16 %v4798
    %v4855 = vunpack.c.l.b16 %v4799
    %v4856 = vunpack.c.h.b16 %v4799
    %v4857 = vunpack.c.l.b16 %v4800
    %v4858 = vunpack.c.h.b16 %v4800
    %v4859 = vunpack.c.l.b16 %v4801
    %v4860 = vunpack.c.l.b16 %v4802
    %v4861 = vunpack.c.h.b16 %v4802
    %v4862 = vunpack.c.l.b16 %v4803
    %v4863 = vunpack.c.h.b16 %v4803
    %v4864 = vunpack.c.l.b16 %v4804
    %v4865 = vunpack.c.l.b16 %v4805
    %v4866 = vunpack.c.h.b16 %v4805
    %v4867 = vunpack.c.l.b16 %v4806
    %v4868 = vunpack.c.h.b16 %v4806
    %v4869 = vunpack.c.l.b16 %v4807
    %v4870 = vunpack.c.l.b16 %v4808
    %v4871 = vunpack.c.h.b16 %v4808
    %v4872 = vunpack.c.l.b16 %v4809
    %v4873 = vunpack.c.h.b16 %v4809
    %v4874 = vunpack.c.l.b16 %v4810
    %v4875 = vunpack.c.l.b16 %v4811
    %v4876 = vunpack.c.h.b16 %v4811
    %v4877 = vunpack.c.l.b16 %v4812
    %v4878 = vunpack.c.h.b16 %v4812
    %v4879 = vunpack.c.l.b16 %v4813
    %v4880 = vunpack.c.l.b16 %v4814
    %v4881 = vunpack.c.h.b16 %v4814
    %v4882 = vunpack.c.l.b16 %v4815
    %v4883 = vunpack.c.h.b16 %v4815
    %v4884 = vunpack.c.l.b16 %v4816
    %v4885 = vunpack.c.l.b16 %v4817
    %v4886 = vunpack.c.h.b16 %v4817
    %v4887 = vunpack.c.l.b16 %v4818
    %v4888 = vunpack.c.h.b16 %v4818
    %v4889 = vunpack.c.l.b16 %v4819
    %v4890 = vunpack.c.l.b16 %v4820
    %v4891 = vunpack.c.h.b16 %v4820
    %v4892 = vunpack.c.l.b16 %v4821
    %v4893 = vunpack.c.h.b16 %v4821
    %v4894 = vunpack.c.l.b16 %v4822
    %v4895 = vpack.c.b16 %v4855, %v4850
    %v4896 = vpack.c.b16 %v4856, %v4851
    %v4897 = vpack.c.b16 %v4857, %v4852
    %v4898 = vpack.c.b16 %v4858, %v4853
    %v4899 = vpack.c.b16 %v4859, %v4854
    %v4900 = vpack.c.b16 %v4865, %v4860
    %v4901 = vpack.c.b16 %v4866, %v4861
    %v4902 = vpack.c.b16 %v4867, %v4862
    %v4903 = vpack.c.b16 %v4868, %v4863
    %v4904 = vpack.c.b16 %v4869, %v4864
    %v4905 = vpack.c.b16 %v4875, %v4870
    %v4906 = vpack.c.b16 %v4876, %v4871
    %v4907 = vpack.c.b16 %v4877, %v4872
    %v4908 = vpack.c.b16 %v4878, %v4873
    %v4909 = vpack.c.b16 %v4879, %v4874
    %v4910 = vpack.c.b16 %v4885, %v4880
    %v4911 = vpack.c.b16 %v4886, %v4881
    %v4912 = vpack.c.b16 %v4887, %v4882
    %v4913 = vpack.c.b16 %v4888, %v4883
    %v4914 = vpack.c.b16 %v4889, %v4884
    %v4915 = vpack.c.b16 %v4890, %v4890
    %v4916 = vpack.c.b16 %v4891, %v4891
    %v4917 = vpack.c.b16 %v4892, %v4892
    %v4918 = vpack.c.b16 %v4893, %v4893
    %v4919 = vpack.c.b16 %v4894, %v4894
    %v4941 = vsel %vm4231, %v4788, 0
    %v4944 = vsel %vm4231, %v4789, 0
    %v4947 = vsel %vm4231, %v4790, 0
    %v4950 = vsel %vm4231, %v4791, 0
    %v4953 = vsel %vm4231, %v4792, 0
    %v4956 = vsel %vm4231, %v4793, 0
    %v4959 = vsel %vm4231, %v4794, 0
    %v4962 = vsel %vm4231, %v4795, 0
    %v4965 = vsel %vm399, %v4915, 0
    %v4968 = vsel %vm399, %v4916, 0
    %v4971 = vsel %vm399, %v4917, 0
    %v4974 = vsel %vm399, %v4918, 0
    %v4977 = vsel %vm399, %v4919, 0
    %4979 = vmatprep.subr.bf16.mxu0 %v4896
    %4980 = vmatpush1.bf16.msra.mxu0 %v4895
    %4981 = vmatprep.subr.bf16.mxu0 %v4901
    %4982 = vmatpush1.bf16.msra.mxu0 %v4900
    %4983 = vmatprep.subr.bf16.mxu0 %v4906
    %4984 = vmatpush1.bf16.msra.mxu0 %v4905
    %4985 = vmatprep.subr.bf16.mxu0 %v4911
    %4986 = vmatpush1.bf16.msra.mxu0 %v4910
    %4987 = vmatprep.subr.bf16.mxu0 %v4968
    %4988 = vmatpush1.bf16.msra.mxu0 %v4965
    %4989 = vmatprep.subr.bf16.mxu0 0
    %4990 = vmatpush1.bf16.msra.mxu0 0
    %4991 = vmatprep.subr.bf16.mxu0 0
    %4992 = vmatpush1.bf16.msra.mxu0 0
    %4993 = vmatprep.subr.bf16.mxu0 0
    %4994 = vmatpush1.bf16.msra.mxu0 0
    %4995 = vmatprep.subr.bf16.mxu0 0
    %4996 = vmatpush1.bf16.msra.mxu0 0
    %4997 = vmatprep.subr.bf16.mxu0 0
    %4998 = vmatpush1.bf16.msra.mxu0 0
    %4999 = vmatprep.subr.bf16.mxu0 0
    %5000 = vmatpush1.bf16.msra.mxu0 0
    %5001 = vmatprep.subr.bf16.mxu0 0
    %5002 = vmatpush1.bf16.msra.mxu0 0
    %5003 = vmatprep.subr.bf16.mxu0 0
    %5004 = vmatpush1.bf16.msra.mxu0 0
    %5005 = vmatprep.subr.bf16.mxu0 0
    %5006 = vmatpush1.bf16.msra.mxu0 0
    %5007 = vmatprep.subr.bf16.mxu0 0
    %5008 = vmatpush1.bf16.msra.mxu0 0
    %5009 = vmatprep.subr.bf16.mxu0 0
    %5010 = vmatpush1.bf16.msra.mxu0 0
    %5011 = vmatprep.mubr.bf16.mxu0 0
    %5012 = vmatmul.mubr.bf16.gmra.mrb[0].mxu0 %v4941
    %v5013 = vpop.f32.mrb[0].mxu0
    %v5014 = vadd.f32 0.0, %v5013
    %v5015 = vpop.f32.mrb[0].mxu0
    %v5016 = vadd.f32 0.0, %v5015
    %v5017 = vpop.f32.mrb[0].mxu0
    %v5018 = vadd.f32 0.0, %v5017
    %v5019 = vpop.f32.mrb[0].mxu0
    %v5020 = vadd.f32 0.0, %v5019
    %5021 = vmatprep.mubr.bf16.mxu0 0
    %5022 = vmatmul.mubr.bf16.gmra.mrb[0].mxu0 %v4944
    %v5023 = vpop.f32.mrb[0].mxu0
    %v5024 = vadd.f32 0.0, %v5023
    %v5025 = vpop.f32.mrb[0].mxu0
    %v5026 = vadd.f32 0.0, %v5025
    %v5027 = vpop.f32.mrb[0].mxu0
    %v5028 = vadd.f32 0.0, %v5027
    %v5029 = vpop.f32.mrb[0].mxu0
    %v5030 = vadd.f32 0.0, %v5029
    %5031 = vmatprep.mubr.bf16.mxu0 0
    %5032 = vmatmul.mubr.bf16.gmra.mrb[0].mxu0 %v4947
    %v5033 = vpop.f32.mrb[0].mxu0
    %v5034 = vadd.f32 0.0, %v5033
    %v5035 = vpop.f32.mrb[0].mxu0
    %v5036 = vadd.f32 0.0, %v5035
    %v5037 = vpop.f32.mrb[0].mxu0
    %v5038 = vadd.f32 0.0, %v5037
    %v5039 = vpop.f32.mrb[0].mxu0
    %v5040 = vadd.f32 0.0, %v5039
    %5041 = vmatprep.mubr.bf16.mxu0 0
    %5042 = vmatmul.mubr.bf16.gmra.mrb[0].mxu0 %v4950
    %v5043 = vpop.f32.mrb[0].mxu0
    %v5044 = vadd.f32 0.0, %v5043
    %v5045 = vpop.f32.mrb[0].mxu0
    %v5046 = vadd.f32 0.0, %v5045
    %v5047 = vpop.f32.mrb[0].mxu0
    %v5048 = vadd.f32 0.0, %v5047
    %v5049 = vpop.f32.mrb[0].mxu0
    %v5050 = vadd.f32 0.0, %v5049
    %5051 = vmatprep.mubr.bf16.mxu0 0
    %5052 = vmatmul.mubr.bf16.gmra.mrb[0].mxu0 %v4953
    %v5053 = vpop.f32.mrb[0].mxu0
    %v5054 = vadd.f32 0.0, %v5053
    %v5055 = vpop.f32.mrb[0].mxu0
    %v5056 = vadd.f32 0.0, %v5055
    %v5057 = vpop.f32.mrb[0].mxu0
    %v5058 = vadd.f32 0.0, %v5057
    %v5059 = vpop.f32.mrb[0].mxu0
    %v5060 = vadd.f32 0.0, %v5059
    %5061 = vmatprep.mubr.bf16.mxu0 0
    %5062 = vmatmul.mubr.bf16.gmra.mrb[0].mxu0 %v4956
    %v5063 = vpop.f32.mrb[0].mxu0
    %v5064 = vadd.f32 0.0, %v5063
    %v5065 = vpop.f32.mrb[0].mxu0
    %v5066 = vadd.f32 0.0, %v5065
    %v5067 = vpop.f32.mrb[0].mxu0
    %v5068 = vadd.f32 0.0, %v5067
    %v5069 = vpop.f32.mrb[0].mxu0
    %v5070 = vadd.f32 0.0, %v5069
    %5071 = vmatprep.mubr.bf16.mxu0 0
    %5072 = vmatmul.mubr.bf16.gmra.mrb[0].mxu0 %v4959
    %v5073 = vpop.f32.mrb[0].mxu0
    %v5074 = vadd.f32 0.0, %v5073
    %v5075 = vpop.f32.mrb[0].mxu0
    %v5076 = vadd.f32 0.0, %v5075
    %v5077 = vpop.f32.mrb[0].mxu0
    %v5078 = vadd.f32 0.0, %v5077
    %v5079 = vpop.f32.mrb[0].mxu0
    %v5080 = vadd.f32 0.0, %v5079
    %5081 = vmatprep.mubr.bf16.mxu0 0
    %5082 = vmatmul.mubr.bf16.gmra.mrb[0].mxu0 %v4962
    %v5083 = vpop.f32.mrb[0].mxu0
    %v5084 = vadd.f32 0.0, %v5083
    %v5085 = vpop.f32.mrb[0].mxu0
    %v5086 = vadd.f32 0.0, %v5085
    %v5087 = vpop.f32.mrb[0].mxu0
    %v5088 = vadd.f32 0.0, %v5087
    %v5089 = vpop.f32.mrb[0].mxu0
    %v5090 = vadd.f32 0.0, %v5089
    %5091 = vdwg.mxu0
    %5092 = vmatprep.subr.bf16.mxu0 %v4898
    %5093 = vmatpush1.bf16.msra.mxu0 %v4897
    %5094 = vmatprep.subr.bf16.mxu0 %v4903
    %5095 = vmatpush1.bf16.msra.mxu0 %v4902
    %5096 = vmatprep.subr.bf16.mxu0 %v4908
    %5097 = vmatpush1.bf16.msra.mxu0 %v4907
    %5098 = vmatprep.subr.bf16.mxu0 %v4913
    %5099 = vmatpush1.bf16.msra.mxu0 %v4912
    %5100 = vmatprep.subr.bf16.mxu0 %v4974
    %5101 = vmatpush1.bf16.msra.mxu0 %v4971
    %5102 = vmatprep.subr.bf16.mxu0 0
    %5103 = vmatpush1.bf16.msra.mxu0 0
    %5104 = vmatprep.subr.bf16.mxu0 0
    %5105 = vmatpush1.bf16.msra.mxu0 0
    %5106 = vmatprep.subr.bf16.mxu0 0
    %5107 = vmatpush1.bf16.msra.mxu0 0
    %5108 = vmatprep.subr.bf16.mxu0 0
    %5109 = vmatpush1.bf16.msra.mxu0 0
    %5110 = vmatprep.subr.bf16.mxu0 0
    %5111 = vmatpush1.bf16.msra.mxu0 0
    %5112 = vmatprep.subr.bf16.mxu0 0
    %5113 = vmatpush1.bf16.msra.mxu0 0
    %5114 = vmatprep.subr.bf16.mxu0 0
    %5115 = vmatpush1.bf16.msra.mxu0 0
    %5116 = vmatprep.subr.bf16.mxu0 0
    %5117 = vmatpush1.bf16.msra.mxu0 0
    %5118 = vmatprep.subr.bf16.mxu0 0
    %5119 = vmatpush1.bf16.msra.mxu0 0
    %5120 = vmatprep.subr.bf16.mxu0 0
    %5121 = vmatpush1.bf16.msra.mxu0 0
    %5122 = vmatprep.subr.bf16.mxu0 0
    %5123 = vmatpush1.bf16.msra.mxu0 0
    %5124 = vmatprep.mubr.bf16.mxu0 0
    %5125 = vmatmul.mubr.bf16.gmra.mrb[0].mxu0 %v4941
    %v5126 = vpop.f32.mrb[0].mxu0
    %v5127 = vadd.f32 0.0, %v5126
    %v5128 = vpop.f32.mrb[0].mxu0
    %v5129 = vadd.f32 0.0, %v5128
    %v5130 = vpop.f32.mrb[0].mxu0
    %v5131 = vadd.f32 0.0, %v5130
    %v5132 = vpop.f32.mrb[0].mxu0
    %v5133 = vadd.f32 0.0, %v5132
    %5134 = vmatprep.mubr.bf16.mxu0 0
    %5135 = vmatmul.mubr.bf16.gmra.mrb[0].mxu0 %v4944
    %v5136 = vpop.f32.mrb[0].mxu0
    %v5137 = vadd.f32 0.0, %v5136
    %v5138 = vpop.f32.mrb[0].mxu0
    %v5139 = vadd.f32 0.0, %v5138
    %v5140 = vpop.f32.mrb[0].mxu0
    %v5141 = vadd.f32 0.0, %v5140
    %v5142 = vpop.f32.mrb[0].mxu0
    %v5143 = vadd.f32 0.0, %v5142
    %5144 = vmatprep.mubr.bf16.mxu0 0
    %5145 = vmatmul.mubr.bf16.gmra.mrb[0].mxu0 %v4947
    %v5146 = vpop.f32.mrb[0].mxu0
    %v5147 = vadd.f32 0.0, %v5146
    %v5148 = vpop.f32.mrb[0].mxu0
    %v5149 = vadd.f32 0.0, %v5148
    %v5150 = vpop.f32.mrb[0].mxu0
    %v5151 = vadd.f32 0.0, %v5150
    %v5152 = vpop.f32.mrb[0].mxu0
    %v5153 = vadd.f32 0.0, %v5152
    %5154 = vmatprep.mubr.bf16.mxu0 0
    %5155 = vmatmul.mubr.bf16.gmra.mrb[0].mxu0 %v4950
    %v5156 = vpop.f32.mrb[0].mxu0
    %v5157 = vadd.f32 0.0, %v5156
    %v5158 = vpop.f32.mrb[0].mxu0
    %v5159 = vadd.f32 0.0, %v5158
    %v5160 = vpop.f32.mrb[0].mxu0
    %v5161 = vadd.f32 0.0, %v5160
    %v5162 = vpop.f32.mrb[0].mxu0
    %v5163 = vadd.f32 0.0, %v5162
    %5164 = vmatprep.mubr.bf16.mxu0 0
    %5165 = vmatmul.mubr.bf16.gmra.mrb[0].mxu0 %v4953
    %v5166 = vpop.f32.mrb[0].mxu0
    %v5167 = vadd.f32 0.0, %v5166
    %v5168 = vpop.f32.mrb[0].mxu0
    %v5169 = vadd.f32 0.0, %v5168
    %v5170 = vpop.f32.mrb[0].mxu0
    %v5171 = vadd.f32 0.0, %v5170
    %v5172 = vpop.f32.mrb[0].mxu0
    %v5173 = vadd.f32 0.0, %v5172
    %5174 = vmatprep.mubr.bf16.mxu0 0
    %5175 = vmatmul.mubr.bf16.gmra.mrb[0].mxu0 %v4956
    %v5176 = vpop.f32.mrb[0].mxu0
    %v5177 = vadd.f32 0.0, %v5176
    %v5178 = vpop.f32.mrb[0].mxu0
    %v5179 = vadd.f32 0.0, %v5178
    %v5180 = vpop.f32.mrb[0].mxu0
    %v5181 = vadd.f32 0.0, %v5180
    %v5182 = vpop.f32.mrb[0].mxu0
    %v5183 = vadd.f32 0.0, %v5182
    %5184 = vmatprep.mubr.bf16.mxu0 0
    %5185 = vmatmul.mubr.bf16.gmra.mrb[0].mxu0 %v4959
    %v5186 = vpop.f32.mrb[0].mxu0
    %v5187 = vadd.f32 0.0, %v5186
    %v5188 = vpop.f32.mrb[0].mxu0
    %v5189 = vadd.f32 0.0, %v5188
    %v5190 = vpop.f32.mrb[0].mxu0
    %v5191 = vadd.f32 0.0, %v5190
    %v5192 = vpop.f32.mrb[0].mxu0
    %v5193 = vadd.f32 0.0, %v5192
    %5194 = vmatprep.mubr.bf16.mxu0 0
    %5195 = vmatmul.mubr.bf16.gmra.mrb[0].mxu0 %v4962
    %v5196 = vpop.f32.mrb[0].mxu0
    %v5197 = vadd.f32 0.0, %v5196
    %v5198 = vpop.f32.mrb[0].mxu0
    %v5199 = vadd.f32 0.0, %v5198
    %v5200 = vpop.f32.mrb[0].mxu0
    %v5201 = vadd.f32 0.0, %v5200
    %v5202 = vpop.f32.mrb[0].mxu0
    %v5203 = vadd.f32 0.0, %v5202
    %5204 = vdwg.mxu0
    %5205 = vmatprep.subr.bf16.mxu0 0
    %5206 = vmatpush1.bf16.msra.mxu0 %v4899
    %5207 = vmatprep.subr.bf16.mxu0 0
    %5208 = vmatpush1.bf16.msra.mxu0 %v4904
    %5209 = vmatprep.subr.bf16.mxu0 0
    %5210 = vmatpush1.bf16.msra.mxu0 %v4909
    %5211 = vmatprep.subr.bf16.mxu0 0
    %5212 = vmatpush1.bf16.msra.mxu0 %v4914
    %5213 = vmatprep.subr.bf16.mxu0 0
    %5214 = vmatpush1.bf16.msra.mxu0 %v4977
    %5215 = vmatprep.subr.bf16.mxu0 0
    %5216 = vmatpush1.bf16.msra.mxu0 0
    %5217 = vmatprep.subr.bf16.mxu0 0
    %5218 = vmatpush1.bf16.msra.mxu0 0
    %5219 = vmatprep.subr.bf16.mxu0 0
    %5220 = vmatpush1.bf16.msra.mxu0 0
    %5221 = vmatprep.subr.bf16.mxu0 0
    %5222 = vmatpush1.bf16.msra.mxu0 0
    %5223 = vmatprep.subr.bf16.mxu0 0
    %5224 = vmatpush1.bf16.msra.mxu0 0
    %5225 = vmatprep.subr.bf16.mxu0 0
    %5226 = vmatpush1.bf16.msra.mxu0 0
    %5227 = vmatprep.subr.bf16.mxu0 0
    %5228 = vmatpush1.bf16.msra.mxu0 0
    %5229 = vmatprep.subr.bf16.mxu0 0
    %5230 = vmatpush1.bf16.msra.mxu0 0
    %5231 = vmatprep.subr.bf16.mxu0 0
    %5232 = vmatpush1.bf16.msra.mxu0 0
    %5233 = vmatprep.subr.bf16.mxu0 0
    %5234 = vmatpush1.bf16.msra.mxu0 0
    %5235 = vmatprep.subr.bf16.mxu0 0
    %5236 = vmatpush1.bf16.msra.mxu0 0
    %5237 = vmatprep.mubr.bf16.mxu0 0
    %5238 = vmatmul.mubr.bf16.gmra.mrb[0].mxu0 %v4941
    %v5239 = vpop.f32.mrb[0].mxu0
    %v5240 = vadd.f32 0.0, %v5239
    %v5241 = vpop.f32.mrb[0].mxu0
    %v5242 = vpop.f32.mrb[0].mxu0
    %v5243 = vadd.f32 0.0, %v5242
    %v5244 = vpop.f32.mrb[0].mxu0
    %5245 = vmatprep.mubr.bf16.mxu0 0
    %5246 = vmatmul.mubr.bf16.gmra.mrb[0].mxu0 %v4944
    %v5247 = vpop.f32.mrb[0].mxu0
    %v5248 = vadd.f32 0.0, %v5247
    %v5249 = vpop.f32.mrb[0].mxu0
    %v5250 = vpop.f32.mrb[0].mxu0
    %v5251 = vadd.f32 0.0, %v5250
    %v5252 = vpop.f32.mrb[0].mxu0
    %5253 = vmatprep.mubr.bf16.mxu0 0
    %5254 = vmatmul.mubr.bf16.gmra.mrb[0].mxu0 %v4947
    %v5255 = vpop.f32.mrb[0].mxu0
    %v5256 = vadd.f32 0.0, %v5255
    %v5257 = vpop.f32.mrb[0].mxu0
    %v5258 = vpop.f32.mrb[0].mxu0
    %v5259 = vadd.f32 0.0, %v5258
    %v5260 = vpop.f32.mrb[0].mxu0
    %5261 = vmatprep.mubr.bf16.mxu0 0
    %5262 = vmatmul.mubr.bf16.gmra.mrb[0].mxu0 %v4950
    %v5263 = vpop.f32.mrb[0].mxu0
    %v5264 = vadd.f32 0.0, %v5263
    %v5265 = vpop.f32.mrb[0].mxu0
    %v5266 = vpop.f32.mrb[0].mxu0
    %v5267 = vadd.f32 0.0, %v5266
    %v5268 = vpop.f32.mrb[0].mxu0
    %5269 = vmatprep.mubr.bf16.mxu0 0
    %5270 = vmatmul.mubr.bf16.gmra.mrb[0].mxu0 %v4953
    %v5271 = vpop.f32.mrb[0].mxu0
    %v5272 = vadd.f32 0.0, %v5271
    %v5273 = vpop.f32.mrb[0].mxu0
    %v5274 = vpop.f32.mrb[0].mxu0
    %v5275 = vadd.f32 0.0, %v5274
    %v5276 = vpop.f32.mrb[0].mxu0
    %5277 = vmatprep.mubr.bf16.mxu0 0
    %5278 = vmatmul.mubr.bf16.gmra.mrb[0].mxu0 %v4956
    %v5279 = vpop.f32.mrb[0].mxu0
    %v5280 = vadd.f32 0.0, %v5279
    %v5281 = vpop.f32.mrb[0].mxu0
    %v5282 = vpop.f32.mrb[0].mxu0
    %v5283 = vadd.f32 0.0, %v5282
    %v5284 = vpop.f32.mrb[0].mxu0
    %5285 = vmatprep.mubr.bf16.mxu0 0
    %5286 = vmatmul.mubr.bf16.gmra.mrb[0].mxu0 %v4959
    %v5287 = vpop.f32.mrb[0].mxu0
    %v5288 = vadd.f32 0.0, %v5287
    %v5289 = vpop.f32.mrb[0].mxu0
    %v5290 = vpop.f32.mrb[0].mxu0
    %v5291 = vadd.f32 0.0, %v5290
    %v5292 = vpop.f32.mrb[0].mxu0
    %5293 = vmatprep.mubr.bf16.mxu0 0
    %5294 = vmatmul.mubr.bf16.gmra.mrb[0].mxu0 %v4962
    %v5295 = vpop.f32.mrb[0].mxu0
    %v5296 = vadd.f32 0.0, %v5295
    %v5297 = vpop.f32.mrb[0].mxu0
    %v5298 = vpop.f32.mrb[0].mxu0
    %v5299 = vadd.f32 0.0, %v5298
    %v5300 = vpop.f32.mrb[0].mxu0
    %5301 = vdwg.mxu0
    %v5302 = vpack.c.bf16 %v5018, %v5014
    %v5303 = vpack.c.bf16 %v5020, %v5016
    %v5304 = vpack.c.bf16 %v5131, %v5127
    %v5305 = vpack.c.bf16 %v5133, %v5129
    %v5306 = vpack.c.bf16 %v5243, %v5240
    %v5307 = vpack.c.bf16 %v5028, %v5024
    %v5308 = vpack.c.bf16 %v5030, %v5026
    %v5309 = vpack.c.bf16 %v5141, %v5137
    %v5310 = vpack.c.bf16 %v5143, %v5139
    %v5311 = vpack.c.bf16 %v5251, %v5248
    %v5312 = vpack.c.bf16 %v5038, %v5034
    %v5313 = vpack.c.bf16 %v5040, %v5036
    %v5314 = vpack.c.bf16 %v5151, %v5147
    %v5315 = vpack.c.bf16 %v5153, %v5149
    %v5316 = vpack.c.bf16 %v5259, %v5256
    %v5317 = vpack.c.bf16 %v5048, %v5044
    %v5318 = vpack.c.bf16 %v5050, %v5046
    %v5319 = vpack.c.bf16 %v5161, %v5157
    %v5320 = vpack.c.bf16 %v5163, %v5159
    %v5321 = vpack.c.bf16 %v5267, %v5264
    %v5322 = vpack.c.bf16 %v5058, %v5054
    %v5323 = vpack.c.bf16 %v5060, %v5056
    %v5324 = vpack.c.bf16 %v5171, %v5167
    %v5325 = vpack.c.bf16 %v5173, %v5169
    %v5326 = vpack.c.bf16 %v5275, %v5272
    %v5327 = vpack.c.bf16 %v5068, %v5064
    %v5328 = vpack.c.bf16 %v5070, %v5066
    %v5329 = vpack.c.bf16 %v5181, %v5177
    %v5330 = vpack.c.bf16 %v5183, %v5179
    %v5331 = vpack.c.bf16 %v5283, %v5280
    %v5332 = vpack.c.bf16 %v5078, %v5074
    %v5333 = vpack.c.bf16 %v5080, %v5076
    %v5334 = vpack.c.bf16 %v5191, %v5187
    %v5335 = vpack.c.bf16 %v5193, %v5189
    %v5336 = vpack.c.bf16 %v5291, %v5288
    %v5337 = vpack.c.bf16 %v5088, %v5084
    %v5338 = vpack.c.bf16 %v5090, %v5086
    %v5339 = vpack.c.bf16 %v5201, %v5197
    %v5340 = vpack.c.bf16 %v5203, %v5199
    %v5341 = vpack.c.bf16 %v5299, %v5296
    %5356 = vrot.lane.b32.xlu0 %v3767, 64
    %v5357 = vpop.permute.xlu0 %5356
    %5358 = vrot.lane.b32.xlu0 %v3770, 64
    %v5359 = vpop.permute.xlu0 %5358
    %5360 = vrot.lane.b32.xlu0 %v3775, 64
    %v5361 = vpop.permute.xlu0 %5360
    %5362 = vrot.lane.b32.xlu0 %v3778, 64
    %v5363 = vpop.permute.xlu0 %5362
    %5364 = vrot.lane.b32.xlu0 %v3783, 64
    %v5365 = vpop.permute.xlu0 %5364
    %5366 = vrot.lane.b32.xlu0 %v3786, 64
    %v5367 = vpop.permute.xlu0 %5366
    %5368 = vrot.lane.b32.xlu0 %v3791, 64
    %v5369 = vpop.permute.xlu0 %5368
    %5370 = vrot.lane.b32.xlu0 %v3799, 64
    %v5371 = vpop.permute.xlu0 %5370
    %5372 = vrot.lane.b32.xlu0 %v3802, 64
    %v5373 = vpop.permute.xlu0 %5372
    %5374 = vrot.lane.b32.xlu0 %v3807, 64
    %v5375 = vpop.permute.xlu0 %5374
    %5376 = vrot.lane.b32.xlu0 %v3810, 64
    %v5377 = vpop.permute.xlu0 %5376
    %5378 = vrot.lane.b32.xlu0 %v3815, 64
    %v5379 = vpop.permute.xlu0 %5378
    %5380 = vrot.lane.b32.xlu0 %v3818, 64
    %v5381 = vpop.permute.xlu0 %5380
    %5382 = vrot.lane.b32.xlu0 %v3823, 64
    %v5383 = vpop.permute.xlu0 %5382
    %vm5385 = vcmask 1040384
    %v5386 = vrot.slane 0.0, 7
    %v5387 = vrot.slane %v5357, 7
    %v5388 = vsel %vm5385, %v5386, %v5387
    %v5389 = vrot.slane %v5359, 7
    %v5390 = vsel %vm5385, %v5387, %v5389
    %v5391 = vrot.slane %v5361, 7
    %v5392 = vsel %vm5385, %v5389, %v5391
    %v5393 = vrot.slane %v5363, 7
    %v5394 = vsel %vm5385, %v5391, %v5393
    %v5395 = vrot.slane %v5365, 7
    %v5396 = vsel %vm5385, %v5393, %v5395
    %v5397 = vrot.slane %v5367, 7
    %v5398 = vsel %vm5385, %v5395, %v5397
    %v5399 = vrot.slane %v5369, 7
    %v5400 = vsel %vm5385, %v5397, %v5399
    %v5401 = vrot.slane %v5371, 7
    %v5402 = vsel %vm5385, %v5386, %v5401
    %v5403 = vrot.slane %v5373, 7
    %v5404 = vsel %vm5385, %v5401, %v5403
    %v5405 = vrot.slane %v5375, 7
    %v5406 = vsel %vm5385, %v5403, %v5405
    %v5407 = vrot.slane %v5377, 7
    %v5408 = vsel %vm5385, %v5405, %v5407
    %v5409 = vrot.slane %v5379, 7
    %v5410 = vsel %vm5385, %v5407, %v5409
    %v5411 = vrot.slane %v5381, 7
    %v5412 = vsel %vm5385, %v5409, %v5411
    %v5413 = vrot.slane %v5383, 7
    %v5414 = vsel %vm5385, %v5411, %v5413
    %v5430 = vsel %vm5385, 0.0, %v5386
    %v5431 = vsel %vm486, %v5430, 0.0
    %v5432 = vsel %vm487, %v5388, 0.0
    %v5433 = vsel %vm488, %v5390, 0.0
    %v5434 = vsel %vm489, %v5392, 0.0
    %v5435 = vsel %vm490, %v5394, 0.0
    %v5436 = vsel %vm491, %v5396, 0.0
    %v5437 = vsel %vm492, %v5398, 0.0
    %v5438 = vsel %vm493, %v5400, 0.0
    %v5439 = vsel %vm487, %v5402, 0.0
    %v5440 = vsel %vm488, %v5404, 0.0
    %v5441 = vsel %vm489, %v5406, 0.0
    %v5442 = vsel %vm490, %v5408, 0.0
    %v5443 = vsel %vm491, %v5410, 0.0
    %v5444 = vsel %vm492, %v5412, 0.0
    %v5445 = vsel %vm493, %v5414, 0.0
    %v5446 = vunpack.c.l.bf16 %v5302
    %v5447 = vunpack.c.h.bf16 %v5302
    %v5448 = vunpack.c.l.bf16 %v5307
    %v5449 = vunpack.c.h.bf16 %v5307
    %v5450 = vunpack.c.l.bf16 %v5312
    %v5451 = vunpack.c.h.bf16 %v5312
    %v5452 = vunpack.c.l.bf16 %v5317
    %v5453 = vunpack.c.h.bf16 %v5317
    %v5454 = vunpack.c.l.bf16 %v5322
    %v5455 = vunpack.c.h.bf16 %v5322
    %v5456 = vunpack.c.l.bf16 %v5327
    %v5457 = vunpack.c.h.bf16 %v5327
    %v5458 = vunpack.c.l.bf16 %v5332
    %v5459 = vunpack.c.h.bf16 %v5332
    %v5460 = vunpack.c.l.bf16 %v5337
    %v5461 = vunpack.c.h.bf16 %v5337
    %v5462 = vmul.f32 %v5446, %v5431
    %v5463 = vmul.f32 %v5447, %v5432
    %v5464 = vmul.f32 %v5448, %v5433
    %v5465 = vmul.f32 %v5449, %v5434
    %v5466 = vmul.f32 %v5450, %v5435
    %v5467 = vmul.f32 %v5451, %v5436
    %v5468 = vmul.f32 %v5452, %v5437
    %v5469 = vmul.f32 %v5453, %v5438
    %v5470 = vmul.f32 %v5454, %v5431
    %v5471 = vmul.f32 %v5455, %v5439
    %v5472 = vmul.f32 %v5456, %v5440
    %v5473 = vmul.f32 %v5457, %v5441
    %v5474 = vmul.f32 %v5458, %v5442
    %v5475 = vmul.f32 %v5459, %v5443
    %v5476 = vmul.f32 %v5460, %v5444
    %v5477 = vmul.f32 %v5461, %v5445
    %v5478 = vadd.f32 %v5462, 0.0
    %v5479 = vadd.f32 %v5463, 0.0
    %v5480 = vadd.f32 %v5464, 0.0
    %v5481 = vadd.f32 %v5465, 0.0
    %v5482 = vadd.f32 %v5466, 0.0
    %v5483 = vadd.f32 %v5467, 0.0
    %v5484 = vadd.f32 %v5468, 0.0
    %v5485 = vadd.f32 %v5469, 0.0
    %v5486 = vadd.f32 %v5470, 0.0
    %v5487 = vadd.f32 %v5471, 0.0
    %v5488 = vadd.f32 %v5472, 0.0
    %v5489 = vadd.f32 %v5473, 0.0
    %v5490 = vadd.f32 %v5474, 0.0
    %v5491 = vadd.f32 %v5475, 0.0
    %v5492 = vadd.f32 %v5476, 0.0
    %v5493 = vadd.f32 %v5477, 0.0
    %5494 = vrot.lane.b32.xlu0 0.0, 64
    %v5495 = vpop.permute.xlu0 %5494
    %5496 = vrot.lane.b32.xlu0 %v5357, 64
    %v5497 = vpop.permute.xlu0 %5496
    %5498 = vrot.lane.b32.xlu0 %v5359, 64
    %v5499 = vpop.permute.xlu0 %5498
    %5500 = vrot.lane.b32.xlu0 %v5361, 64
    %v5501 = vpop.permute.xlu0 %5500
    %5502 = vrot.lane.b32.xlu0 %v5363, 64
    %v5503 = vpop.permute.xlu0 %5502
    %5504 = vrot.lane.b32.xlu0 %v5365, 64
    %v5505 = vpop.permute.xlu0 %5504
    %5506 = vrot.lane.b32.xlu0 %v5367, 64
    %v5507 = vpop.permute.xlu0 %5506
    %5508 = vrot.lane.b32.xlu0 %v5369, 64
    %v5509 = vpop.permute.xlu0 %5508
    %5510 = vrot.lane.b32.xlu0 %v5371, 64
    %v5511 = vpop.permute.xlu0 %5510
    %5512 = vrot.lane.b32.xlu0 %v5373, 64
    %v5513 = vpop.permute.xlu0 %5512
    %5514 = vrot.lane.b32.xlu0 %v5375, 64
    %v5515 = vpop.permute.xlu0 %5514
    %5516 = vrot.lane.b32.xlu0 %v5377, 64
    %v5517 = vpop.permute.xlu0 %5516
    %5518 = vrot.lane.b32.xlu0 %v5379, 64
    %v5519 = vpop.permute.xlu0 %5518
    %5520 = vrot.lane.b32.xlu0 %v5381, 64
    %v5521 = vpop.permute.xlu0 %5520
    %5522 = vrot.lane.b32.xlu0 %v5383, 64
    %v5523 = vpop.permute.xlu0 %5522
    %v5539 = vmul.f32 %v5446, %v5495
    %v5540 = vmul.f32 %v5447, %v5497
    %v5541 = vmul.f32 %v5448, %v5499
    %v5542 = vmul.f32 %v5449, %v5501
    %v5543 = vmul.f32 %v5450, %v5503
    %v5544 = vmul.f32 %v5451, %v5505
    %v5545 = vmul.f32 %v5452, %v5507
    %v5546 = vmul.f32 %v5453, %v5509
    %v5547 = vmul.f32 %v5454, %v5495
    %v5548 = vmul.f32 %v5455, %v5511
    %v5549 = vmul.f32 %v5456, %v5513
    %v5550 = vmul.f32 %v5457, %v5515
    %v5551 = vmul.f32 %v5458, %v5517
    %v5552 = vmul.f32 %v5459, %v5519
    %v5553 = vmul.f32 %v5460, %v5521
    %v5554 = vmul.f32 %v5461, %v5523
    %5571 = vrot.lane.b32.xlu0 %v5539, 64
    %v5572 = vpop.permute.xlu0 %5571
    %5573 = vrot.lane.b32.xlu0 %v5540, 64
    %v5574 = vpop.permute.xlu0 %5573
    %5575 = vrot.lane.b32.xlu0 %v5541, 64
    %v5576 = vpop.permute.xlu0 %5575
    %5577 = vrot.lane.b32.xlu0 %v5542, 64
    %v5578 = vpop.permute.xlu0 %5577
    %5579 = vrot.lane.b32.xlu0 %v5543, 64
    %v5580 = vpop.permute.xlu0 %5579
    %5581 = vrot.lane.b32.xlu0 %v5544, 64
    %v5582 = vpop.permute.xlu0 %5581
    %5583 = vrot.lane.b32.xlu0 %v5545, 64
    %v5584 = vpop.permute.xlu0 %5583
    %5585 = vrot.lane.b32.xlu0 %v5546, 64
    %v5586 = vpop.permute.xlu0 %5585
    %5587 = vrot.lane.b32.xlu0 %v5547, 64
    %v5588 = vpop.permute.xlu0 %5587
    %5589 = vrot.lane.b32.xlu0 %v5548, 64
    %v5590 = vpop.permute.xlu0 %5589
    %5591 = vrot.lane.b32.xlu0 %v5549, 64
    %v5592 = vpop.permute.xlu0 %5591
    %5593 = vrot.lane.b32.xlu0 %v5550, 64
    %v5594 = vpop.permute.xlu0 %5593
    %5595 = vrot.lane.b32.xlu0 %v5551, 64
    %v5596 = vpop.permute.xlu0 %5595
    %5597 = vrot.lane.b32.xlu0 %v5552, 64
    %v5598 = vpop.permute.xlu0 %5597
    %5599 = vrot.lane.b32.xlu0 %v5553, 64
    %v5600 = vpop.permute.xlu0 %5599
    %5601 = vrot.lane.b32.xlu0 %v5554, 64
    %v5602 = vpop.permute.xlu0 %5601
    %v5619 = vadd.f32 %v5478, %v5572
    %v5620 = vadd.f32 %v5479, %v5574
    %v5621 = vadd.f32 %v5480, %v5576
    %v5622 = vadd.f32 %v5481, %v5578
    %v5623 = vadd.f32 %v5482, %v5580
    %v5624 = vadd.f32 %v5483, %v5582
    %v5625 = vadd.f32 %v5484, %v5584
    %v5626 = vadd.f32 %v5485, %v5586
    %v5627 = vadd.f32 %v5486, %v5588
    %v5628 = vadd.f32 %v5487, %v5590
    %v5629 = vadd.f32 %v5488, %v5592
    %v5630 = vadd.f32 %v5489, %v5594
    %v5631 = vadd.f32 %v5490, %v5596
    %v5632 = vadd.f32 %v5491, %v5598
    %v5633 = vadd.f32 %v5492, %v5600
    %v5634 = vadd.f32 %v5493, %v5602
    %vm5635 = vcmask 1046528
    %v5636 = vrot.slane 0.0, 1
    %v5637 = vrot.slane %v5357, 1
    %v5638 = vsel %vm5635, %v5636, %v5637
    %v5639 = vrot.slane %v5359, 1
    %v5640 = vsel %vm5635, %v5637, %v5639
    %v5641 = vrot.slane %v5361, 1
    %v5642 = vsel %vm5635, %v5639, %v5641
    %v5643 = vrot.slane %v5363, 1
    %v5644 = vsel %vm5635, %v5641, %v5643
    %v5645 = vrot.slane %v5365, 1
    %v5646 = vsel %vm5635, %v5643, %v5645
    %v5647 = vrot.slane %v5367, 1
    %v5648 = vsel %vm5635, %v5645, %v5647
    %v5649 = vrot.slane %v5369, 1
    %v5650 = vsel %vm5635, %v5647, %v5649
    %v5651 = vrot.slane %v5371, 1
    %v5652 = vsel %vm5635, %v5636, %v5651
    %v5653 = vrot.slane %v5373, 1
    %v5654 = vsel %vm5635, %v5651, %v5653
    %v5655 = vrot.slane %v5375, 1
    %v5656 = vsel %vm5635, %v5653, %v5655
    %v5657 = vrot.slane %v5377, 1
    %v5658 = vsel %vm5635, %v5655, %v5657
    %v5659 = vrot.slane %v5379, 1
    %v5660 = vsel %vm5635, %v5657, %v5659
    %v5661 = vrot.slane %v5381, 1
    %v5662 = vsel %vm5635, %v5659, %v5661
    %v5663 = vrot.slane %v5383, 1
    %v5664 = vsel %vm5635, %v5661, %v5663
    %v5681 = vsel %vm5635, %v5649, 0.0
    %v5682 = vsel %vm5635, %v5663, 0.0
    %v5683 = vsel %vm577, %v5638, 0.0
    %v5684 = vsel %vm578, %v5640, 0.0
    %v5685 = vsel %vm579, %v5642, 0.0
    %v5686 = vsel %vm580, %v5644, 0.0
    %v5687 = vsel %vm581, %v5646, 0.0
    %v5688 = vsel %vm582, %v5648, 0.0
    %v5689 = vsel %vm583, %v5650, 0.0
    %v5690 = vsel %vm584, %v5681, 0.0
    %v5691 = vsel %vm577, %v5652, 0.0
    %v5692 = vsel %vm578, %v5654, 0.0
    %v5693 = vsel %vm579, %v5656, 0.0
    %v5694 = vsel %vm580, %v5658, 0.0
    %v5695 = vsel %vm581, %v5660, 0.0
    %v5696 = vsel %vm582, %v5662, 0.0
    %v5697 = vsel %vm583, %v5664, 0.0
    %v5698 = vsel %vm584, %v5682, 0.0
    %v5699 = vunpack.c.l.bf16 %v5303
    %v5700 = vunpack.c.h.bf16 %v5303
    %v5701 = vunpack.c.l.bf16 %v5308
    %v5702 = vunpack.c.h.bf16 %v5308
    %v5703 = vunpack.c.l.bf16 %v5313
    %v5704 = vunpack.c.h.bf16 %v5313
    %v5705 = vunpack.c.l.bf16 %v5318
    %v5706 = vunpack.c.h.bf16 %v5318
    %v5707 = vunpack.c.l.bf16 %v5323
    %v5708 = vunpack.c.h.bf16 %v5323
    %v5709 = vunpack.c.l.bf16 %v5328
    %v5710 = vunpack.c.h.bf16 %v5328
    %v5711 = vunpack.c.l.bf16 %v5333
    %v5712 = vunpack.c.h.bf16 %v5333
    %v5713 = vunpack.c.l.bf16 %v5338
    %v5714 = vunpack.c.h.bf16 %v5338
    %v5715 = vmul.f32 %v5699, %v5683
    %v5716 = vmul.f32 %v5700, %v5684
    %v5717 = vmul.f32 %v5701, %v5685
    %v5718 = vmul.f32 %v5702, %v5686
    %v5719 = vmul.f32 %v5703, %v5687
    %v5720 = vmul.f32 %v5704, %v5688
    %v5721 = vmul.f32 %v5705, %v5689
    %v5722 = vmul.f32 %v5706, %v5690
    %v5723 = vmul.f32 %v5707, %v5691
    %v5724 = vmul.f32 %v5708, %v5692
    %v5725 = vmul.f32 %v5709, %v5693
    %v5726 = vmul.f32 %v5710, %v5694
    %v5727 = vmul.f32 %v5711, %v5695
    %v5728 = vmul.f32 %v5712, %v5696
    %v5729 = vmul.f32 %v5713, %v5697
    %v5730 = vmul.f32 %v5714, %v5698
    %v5731 = vadd.f32 %v5619, %v5715
    %v5732 = vadd.f32 %v5620, %v5716
    %v5733 = vadd.f32 %v5621, %v5717
    %v5734 = vadd.f32 %v5622, %v5718
    %v5735 = vadd.f32 %v5623, %v5719
    %v5736 = vadd.f32 %v5624, %v5720
    %v5737 = vadd.f32 %v5625, %v5721
    %v5738 = vadd.f32 %v5626, %v5722
    %v5739 = vadd.f32 %v5627, %v5723
    %v5740 = vadd.f32 %v5628, %v5724
    %v5741 = vadd.f32 %v5629, %v5725
    %v5742 = vadd.f32 %v5630, %v5726
    %v5743 = vadd.f32 %v5631, %v5727
    %v5744 = vadd.f32 %v5632, %v5728
    %v5745 = vadd.f32 %v5633, %v5729
    %v5746 = vadd.f32 %v5634, %v5730
    %v5749 = vrot.slane %v3767, 7
    %v5750 = vrot.slane %v3770, 7
    %v5751 = vsel %vm5385, %v5749, %v5750
    %v5752 = vrot.slane %v3775, 7
    %v5753 = vsel %vm5385, %v5750, %v5752
    %v5754 = vrot.slane %v3778, 7
    %v5755 = vsel %vm5385, %v5752, %v5754
    %v5756 = vrot.slane %v3783, 7
    %v5757 = vsel %vm5385, %v5754, %v5756
    %v5758 = vrot.slane %v3786, 7
    %v5759 = vsel %vm5385, %v5756, %v5758
    %v5760 = vrot.slane %v3791, 7
    %v5761 = vsel %vm5385, %v5758, %v5760
    %v5762 = vrot.slane %v3794, 7
    %v5763 = vsel %vm5385, %v5760, %v5762
    %v5764 = vrot.slane %v3799, 7
    %v5765 = vrot.slane %v3802, 7
    %v5766 = vsel %vm5385, %v5764, %v5765
    %v5767 = vrot.slane %v3807, 7
    %v5768 = vsel %vm5385, %v5765, %v5767
    %v5769 = vrot.slane %v3810, 7
    %v5770 = vsel %vm5385, %v5767, %v5769
    %v5771 = vrot.slane %v3815, 7
    %v5772 = vsel %vm5385, %v5769, %v5771
    %v5773 = vrot.slane %v3818, 7
    %v5774 = vsel %vm5385, %v5771, %v5773
    %v5775 = vrot.slane %v3823, 7
    %v5776 = vsel %vm5385, %v5773, %v5775
    %v5777 = vrot.slane %v3826, 7
    %v5778 = vsel %vm5385, %v5775, %v5777
    %5779 = vrot.lane.b32.xlu0 %v5749, 64
    %v5780 = vpop.permute.xlu0 %5779
    %5781 = vrot.lane.b32.xlu0 %v5751, 64
    %v5782 = vpop.permute.xlu0 %5781
    %5783 = vrot.lane.b32.xlu0 %v5753, 64
    %v5784 = vpop.permute.xlu0 %5783
    %5785 = vrot.lane.b32.xlu0 %v5755, 64
    %v5786 = vpop.permute.xlu0 %5785
    %5787 = vrot.lane.b32.xlu0 %v5757, 64
    %v5788 = vpop.permute.xlu0 %5787
    %5789 = vrot.lane.b32.xlu0 %v5759, 64
    %v5790 = vpop.permute.xlu0 %5789
    %5791 = vrot.lane.b32.xlu0 %v5761, 64
    %v5792 = vpop.permute.xlu0 %5791
    %5793 = vrot.lane.b32.xlu0 %v5763, 64
    %v5794 = vpop.permute.xlu0 %5793
    %5795 = vrot.lane.b32.xlu0 %v5764, 64
    %v5796 = vpop.permute.xlu0 %5795
    %5797 = vrot.lane.b32.xlu0 %v5766, 64
    %v5798 = vpop.permute.xlu0 %5797
    %5799 = vrot.lane.b32.xlu0 %v5768, 64
    %v5800 = vpop.permute.xlu0 %5799
    %5801 = vrot.lane.b32.xlu0 %v5770, 64
    %v5802 = vpop.permute.xlu0 %5801
    %5803 = vrot.lane.b32.xlu0 %v5772, 64
    %v5804 = vpop.permute.xlu0 %5803
    %5805 = vrot.lane.b32.xlu0 %v5774, 64
    %v5806 = vpop.permute.xlu0 %5805
    %5807 = vrot.lane.b32.xlu0 %v5776, 64
    %v5808 = vpop.permute.xlu0 %5807
    %5809 = vrot.lane.b32.xlu0 %v5778, 64
    %v5810 = vpop.permute.xlu0 %5809
    %v5827 = vsel %vm5385, 0.0, %v5780
    %v5828 = vsel %vm5385, 0.0, %v5796
    %v5829 = vsel %vm486, %v5827, 0.0
    %v5830 = vsel %vm487, %v5782, 0.0
    %v5831 = vsel %vm488, %v5784, 0.0
    %v5832 = vsel %vm489, %v5786, 0.0
    %v5833 = vsel %vm490, %v5788, 0.0
    %v5834 = vsel %vm491, %v5790, 0.0
    %v5835 = vsel %vm492, %v5792, 0.0
    %v5836 = vsel %vm493, %v5794, 0.0
    %v5837 = vsel %vm486, %v5828, 0.0
    %v5838 = vsel %vm487, %v5798, 0.0
    %v5839 = vsel %vm488, %v5800, 0.0
    %v5840 = vsel %vm489, %v5802, 0.0
    %v5841 = vsel %vm490, %v5804, 0.0
    %v5842 = vsel %vm491, %v5806, 0.0
    %v5843 = vsel %vm492, %v5808, 0.0
    %v5844 = vsel %vm493, %v5810, 0.0
    %5861 = vrot.lane.b32.xlu0 %v5829, 64
    %v5862 = vpop.permute.xlu0 %5861
    %5863 = vrot.lane.b32.xlu0 %v5830, 64
    %v5864 = vpop.permute.xlu0 %5863
    %5865 = vrot.lane.b32.xlu0 %v5831, 64
    %v5866 = vpop.permute.xlu0 %5865
    %5867 = vrot.lane.b32.xlu0 %v5832, 64
    %v5868 = vpop.permute.xlu0 %5867
    %5869 = vrot.lane.b32.xlu0 %v5833, 64
    %v5870 = vpop.permute.xlu0 %5869
    %5871 = vrot.lane.b32.xlu0 %v5834, 64
    %v5872 = vpop.permute.xlu0 %5871
    %5873 = vrot.lane.b32.xlu0 %v5835, 64
    %v5874 = vpop.permute.xlu0 %5873
    %5875 = vrot.lane.b32.xlu0 %v5836, 64
    %v5876 = vpop.permute.xlu0 %5875
    %5877 = vrot.lane.b32.xlu0 %v5837, 64
    %v5878 = vpop.permute.xlu0 %5877
    %5879 = vrot.lane.b32.xlu0 %v5838, 64
    %v5880 = vpop.permute.xlu0 %5879
    %5881 = vrot.lane.b32.xlu0 %v5839, 64
    %v5882 = vpop.permute.xlu0 %5881
    %5883 = vrot.lane.b32.xlu0 %v5840, 64
    %v5884 = vpop.permute.xlu0 %5883
    %5885 = vrot.lane.b32.xlu0 %v5841, 64
    %v5886 = vpop.permute.xlu0 %5885
    %5887 = vrot.lane.b32.xlu0 %v5842, 64
    %v5888 = vpop.permute.xlu0 %5887
    %5889 = vrot.lane.b32.xlu0 %v5843, 64
    %v5890 = vpop.permute.xlu0 %5889
    %5891 = vrot.lane.b32.xlu0 %v5844, 64
    %v5892 = vpop.permute.xlu0 %5891
    %v5909 = vmul.f32 %v5699, %v5862
    %v5910 = vmul.f32 %v5700, %v5864
    %v5911 = vmul.f32 %v5701, %v5866
    %v5912 = vmul.f32 %v5702, %v5868
    %v5913 = vmul.f32 %v5703, %v5870
    %v5914 = vmul.f32 %v5704, %v5872
    %v5915 = vmul.f32 %v5705, %v5874
    %v5916 = vmul.f32 %v5706, %v5876
    %v5917 = vmul.f32 %v5707, %v5878
    %v5918 = vmul.f32 %v5708, %v5880
    %v5919 = vmul.f32 %v5709, %v5882
    %v5920 = vmul.f32 %v5710, %v5884
    %v5921 = vmul.f32 %v5711, %v5886
    %v5922 = vmul.f32 %v5712, %v5888
    %v5923 = vmul.f32 %v5713, %v5890
    %v5924 = vmul.f32 %v5714, %v5892
    %5941 = vrot.lane.b32.xlu0 %v5909, 64
    %v5942 = vpop.permute.xlu0 %5941
    %5943 = vrot.lane.b32.xlu0 %v5910, 64
    %v5944 = vpop.permute.xlu0 %5943
    %5945 = vrot.lane.b32.xlu0 %v5911, 64
    %v5946 = vpop.permute.xlu0 %5945
    %5947 = vrot.lane.b32.xlu0 %v5912, 64
    %v5948 = vpop.permute.xlu0 %5947
    %5949 = vrot.lane.b32.xlu0 %v5913, 64
    %v5950 = vpop.permute.xlu0 %5949
    %5951 = vrot.lane.b32.xlu0 %v5914, 64
    %v5952 = vpop.permute.xlu0 %5951
    %5953 = vrot.lane.b32.xlu0 %v5915, 64
    %v5954 = vpop.permute.xlu0 %5953
    %5955 = vrot.lane.b32.xlu0 %v5916, 64
    %v5956 = vpop.permute.xlu0 %5955
    %5957 = vrot.lane.b32.xlu0 %v5917, 64
    %v5958 = vpop.permute.xlu0 %5957
    %5959 = vrot.lane.b32.xlu0 %v5918, 64
    %v5960 = vpop.permute.xlu0 %5959
    %5961 = vrot.lane.b32.xlu0 %v5919, 64
    %v5962 = vpop.permute.xlu0 %5961
    %5963 = vrot.lane.b32.xlu0 %v5920, 64
    %v5964 = vpop.permute.xlu0 %5963
    %5965 = vrot.lane.b32.xlu0 %v5921, 64
    %v5966 = vpop.permute.xlu0 %5965
    %5967 = vrot.lane.b32.xlu0 %v5922, 64
    %v5968 = vpop.permute.xlu0 %5967
    %5969 = vrot.lane.b32.xlu0 %v5923, 64
    %v5970 = vpop.permute.xlu0 %5969
    %5971 = vrot.lane.b32.xlu0 %v5924, 64
    %v5972 = vpop.permute.xlu0 %5971
    %v5989 = vadd.f32 %v5731, %v5942
    %v5990 = vadd.f32 %v5732, %v5944
    %v5991 = vadd.f32 %v5733, %v5946
    %v5992 = vadd.f32 %v5734, %v5948
    %v5993 = vadd.f32 %v5735, %v5950
    %v5994 = vadd.f32 %v5736, %v5952
    %v5995 = vadd.f32 %v5737, %v5954
    %v5996 = vadd.f32 %v5738, %v5956
    %v5997 = vadd.f32 %v5739, %v5958
    %v5998 = vadd.f32 %v5740, %v5960
    %v5999 = vadd.f32 %v5741, %v5962
    %v6000 = vadd.f32 %v5742, %v5964
    %v6001 = vadd.f32 %v5743, %v5966
    %v6002 = vadd.f32 %v5744, %v5968
    %v6003 = vadd.f32 %v5745, %v5970
    %v6004 = vadd.f32 %v5746, %v5972
    %v6005 = vunpack.c.l.bf16 %v5304
    %v6006 = vunpack.c.h.bf16 %v5304
    %v6007 = vunpack.c.l.bf16 %v5309
    %v6008 = vunpack.c.h.bf16 %v5309
    %v6009 = vunpack.c.l.bf16 %v5314
    %v6010 = vunpack.c.h.bf16 %v5314
    %v6011 = vunpack.c.l.bf16 %v5319
    %v6012 = vunpack.c.h.bf16 %v5319
    %v6013 = vunpack.c.l.bf16 %v5324
    %v6014 = vunpack.c.h.bf16 %v5324
    %v6015 = vunpack.c.l.bf16 %v5329
    %v6016 = vunpack.c.h.bf16 %v5329
    %v6017 = vunpack.c.l.bf16 %v5334
    %v6018 = vunpack.c.h.bf16 %v5334
    %v6019 = vunpack.c.l.bf16 %v5339
    %v6020 = vunpack.c.h.bf16 %v5339
    %6021 = vrot.lane.b32.xlu0 %v3794, 64
    %v6022 = vpop.permute.xlu0 %6021
    %6023 = vrot.lane.b32.xlu0 %v3826, 64
    %v6024 = vpop.permute.xlu0 %6023
    %v6041 = vmul.f32 %v6005, %v5357
    %v6042 = vmul.f32 %v6006, %v5359
    %v6043 = vmul.f32 %v6007, %v5361
    %v6044 = vmul.f32 %v6008, %v5363
    %v6045 = vmul.f32 %v6009, %v5365
    %v6046 = vmul.f32 %v6010, %v5367
    %v6047 = vmul.f32 %v6011, %v5369
    %v6048 = vmul.f32 %v6012, %v6022
    %v6049 = vmul.f32 %v6013, %v5371
    %v6050 = vmul.f32 %v6014, %v5373
    %v6051 = vmul.f32 %v6015, %v5375
    %v6052 = vmul.f32 %v6016, %v5377
    %v6053 = vmul.f32 %v6017, %v5379
    %v6054 = vmul.f32 %v6018, %v5381
    %v6055 = vmul.f32 %v6019, %v5383
    %v6056 = vmul.f32 %v6020, %v6024
    %v6057 = vadd.f32 %v5989, %v6041
    %v6058 = vadd.f32 %v5990, %v6042
    %v6059 = vadd.f32 %v5991, %v6043
    %v6060 = vadd.f32 %v5992, %v6044
    %v6061 = vadd.f32 %v5993, %v6045
    %v6062 = vadd.f32 %v5994, %v6046
    %v6063 = vadd.f32 %v5995, %v6047
    %v6064 = vadd.f32 %v5996, %v6048
    %v6065 = vadd.f32 %v5997, %v6049
    %v6066 = vadd.f32 %v5998, %v6050
    %v6067 = vadd.f32 %v5999, %v6051
    %v6068 = vadd.f32 %v6000, %v6052
    %v6069 = vadd.f32 %v6001, %v6053
    %v6070 = vadd.f32 %v6002, %v6054
    %v6071 = vadd.f32 %v6003, %v6055
    %v6072 = vadd.f32 %v6004, %v6056
    %v6073 = vrot.slane %v3767, 1
    %v6074 = vrot.slane %v3770, 1
    %v6075 = vsel %vm5635, %v6073, %v6074
    %v6076 = vrot.slane %v3775, 1
    %v6077 = vsel %vm5635, %v6074, %v6076
    %v6078 = vrot.slane %v3778, 1
    %v6079 = vsel %vm5635, %v6076, %v6078
    %v6080 = vrot.slane %v3783, 1
    %v6081 = vsel %vm5635, %v6078, %v6080
    %v6082 = vrot.slane %v3786, 1
    %v6083 = vsel %vm5635, %v6080, %v6082
    %v6084 = vrot.slane %v3791, 1
    %v6085 = vsel %vm5635, %v6082, %v6084
    %v6086 = vrot.slane %v3794, 1
    %v6087 = vsel %vm5635, %v6084, %v6086
    %v6088 = vrot.slane %v3799, 1
    %v6089 = vrot.slane %v3802, 1
    %v6090 = vsel %vm5635, %v6088, %v6089
    %v6091 = vrot.slane %v3807, 1
    %v6092 = vsel %vm5635, %v6089, %v6091
    %v6093 = vrot.slane %v3810, 1
    %v6094 = vsel %vm5635, %v6091, %v6093
    %v6095 = vrot.slane %v3815, 1
    %v6096 = vsel %vm5635, %v6093, %v6095
    %v6097 = vrot.slane %v3818, 1
    %v6098 = vsel %vm5635, %v6095, %v6097
    %v6099 = vrot.slane %v3823, 1
    %v6100 = vsel %vm5635, %v6097, %v6099
    %v6101 = vrot.slane %v3826, 1
    %v6102 = vsel %vm5635, %v6099, %v6101
    %v6119 = vsel %vm5635, %v6086, 0.0
    %v6120 = vsel %vm5635, %v6101, 0.0
    %v6121 = vsel %vm577, %v6075, 0.0
    %v6122 = vsel %vm578, %v6077, 0.0
    %v6123 = vsel %vm579, %v6079, 0.0
    %v6124 = vsel %vm580, %v6081, 0.0
    %v6125 = vsel %vm581, %v6083, 0.0
    %v6126 = vsel %vm582, %v6085, 0.0
    %v6127 = vsel %vm583, %v6087, 0.0
    %v6128 = vsel %vm584, %v6119, 0.0
    %v6129 = vsel %vm577, %v6090, 0.0
    %v6130 = vsel %vm578, %v6092, 0.0
    %v6131 = vsel %vm579, %v6094, 0.0
    %v6132 = vsel %vm580, %v6096, 0.0
    %v6133 = vsel %vm581, %v6098, 0.0
    %v6134 = vsel %vm582, %v6100, 0.0
    %v6135 = vsel %vm583, %v6102, 0.0
    %v6136 = vsel %vm584, %v6120, 0.0
    %v6137 = vmul.f32 %v6005, %v6121
    %v6138 = vmul.f32 %v6006, %v6122
    %v6139 = vmul.f32 %v6007, %v6123
    %v6140 = vmul.f32 %v6008, %v6124
    %v6141 = vmul.f32 %v6009, %v6125
    %v6142 = vmul.f32 %v6010, %v6126
    %v6143 = vmul.f32 %v6011, %v6127
    %v6144 = vmul.f32 %v6012, %v6128
    %v6145 = vmul.f32 %v6013, %v6129
    %v6146 = vmul.f32 %v6014, %v6130
    %v6147 = vmul.f32 %v6015, %v6131
    %v6148 = vmul.f32 %v6016, %v6132
    %v6149 = vmul.f32 %v6017, %v6133
    %v6150 = vmul.f32 %v6018, %v6134
    %v6151 = vmul.f32 %v6019, %v6135
    %v6152 = vmul.f32 %v6020, %v6136
    %6169 = vrot.lane.b32.xlu0 %v6137, 64
    %v6170 = vpop.permute.xlu0 %6169
    %6171 = vrot.lane.b32.xlu0 %v6138, 64
    %v6172 = vpop.permute.xlu0 %6171
    %6173 = vrot.lane.b32.xlu0 %v6139, 64
    %v6174 = vpop.permute.xlu0 %6173
    %6175 = vrot.lane.b32.xlu0 %v6140, 64
    %v6176 = vpop.permute.xlu0 %6175
    %6177 = vrot.lane.b32.xlu0 %v6141, 64
    %v6178 = vpop.permute.xlu0 %6177
    %6179 = vrot.lane.b32.xlu0 %v6142, 64
    %v6180 = vpop.permute.xlu0 %6179
    %6181 = vrot.lane.b32.xlu0 %v6143, 64
    %v6182 = vpop.permute.xlu0 %6181
    %6183 = vrot.lane.b32.xlu0 %v6144, 64
    %v6184 = vpop.permute.xlu0 %6183
    %6185 = vrot.lane.b32.xlu0 %v6145, 64
    %v6186 = vpop.permute.xlu0 %6185
    %6187 = vrot.lane.b32.xlu0 %v6146, 64
    %v6188 = vpop.permute.xlu0 %6187
    %6189 = vrot.lane.b32.xlu0 %v6147, 64
    %v6190 = vpop.permute.xlu0 %6189
    %6191 = vrot.lane.b32.xlu0 %v6148, 64
    %v6192 = vpop.permute.xlu0 %6191
    %6193 = vrot.lane.b32.xlu0 %v6149, 64
    %v6194 = vpop.permute.xlu0 %6193
    %6195 = vrot.lane.b32.xlu0 %v6150, 64
    %v6196 = vpop.permute.xlu0 %6195
    %6197 = vrot.lane.b32.xlu0 %v6151, 64
    %v6198 = vpop.permute.xlu0 %6197
    %6199 = vrot.lane.b32.xlu0 %v6152, 64
    %v6200 = vpop.permute.xlu0 %6199
    %v6217 = vadd.f32 %v6057, %v6170
    %v6218 = vadd.f32 %v6058, %v6172
    %v6219 = vadd.f32 %v6059, %v6174
    %v6220 = vadd.f32 %v6060, %v6176
    %v6221 = vadd.f32 %v6061, %v6178
    %v6222 = vadd.f32 %v6062, %v6180
    %v6223 = vadd.f32 %v6063, %v6182
    %v6224 = vadd.f32 %v6064, %v6184
    %v6225 = vadd.f32 %v6065, %v6186
    %v6226 = vadd.f32 %v6066, %v6188
    %v6227 = vadd.f32 %v6067, %v6190
    %v6228 = vadd.f32 %v6068, %v6192
    %v6229 = vadd.f32 %v6069, %v6194
    %v6230 = vadd.f32 %v6070, %v6196
    %v6231 = vadd.f32 %v6071, %v6198
    %v6232 = vadd.f32 %v6072, %v6200
    %v6233 = vsel %vm5385, %v5762, %v5386
    %v6234 = vsel %vm5385, %v5777, %v5386
    %6235 = vrot.lane.b32.xlu0 %v5750, 64
    %v6236 = vpop.permute.xlu0 %6235
    %6237 = vrot.lane.b32.xlu0 %v6233, 64
    %v6238 = vpop.permute.xlu0 %6237
    %6239 = vrot.lane.b32.xlu0 %v5765, 64
    %v6240 = vpop.permute.xlu0 %6239
    %6241 = vrot.lane.b32.xlu0 %v6234, 64
    %v6242 = vpop.permute.xlu0 %6241
    %v6247 = vsel %vm5385, 0.0, %v6236
    %v6248 = vsel %vm5385, 0.0, %v6240
    %v6249 = vsel %vm486, %v6247, 0.0
    %v6250 = vsel %vm487, %v5784, 0.0
    %v6251 = vsel %vm488, %v5786, 0.0
    %v6252 = vsel %vm489, %v5788, 0.0
    %v6253 = vsel %vm490, %v5790, 0.0
    %v6254 = vsel %vm491, %v5792, 0.0
    %v6255 = vsel %vm492, %v5794, 0.0
    %v6256 = vsel %vm493, %v6238, 0.0
    %v6257 = vsel %vm486, %v6248, 0.0
    %v6258 = vsel %vm487, %v5800, 0.0
    %v6259 = vsel %vm488, %v5802, 0.0
    %v6260 = vsel %vm489, %v5804, 0.0
    %v6261 = vsel %vm490, %v5806, 0.0
    %v6262 = vsel %vm491, %v5808, 0.0
    %v6263 = vsel %vm492, %v5810, 0.0
    %v6264 = vsel %vm493, %v6242, 0.0
    %v6265 = vunpack.c.l.bf16 %v5305
    %v6266 = vunpack.c.h.bf16 %v5305
    %v6267 = vunpack.c.l.bf16 %v5310
    %v6268 = vunpack.c.h.bf16 %v5310
    %v6269 = vunpack.c.l.bf16 %v5315
    %v6270 = vunpack.c.h.bf16 %v5315
    %v6271 = vunpack.c.l.bf16 %v5320
    %v6272 = vunpack.c.h.bf16 %v5320
    %v6273 = vunpack.c.l.bf16 %v5325
    %v6274 = vunpack.c.h.bf16 %v5325
    %v6275 = vunpack.c.l.bf16 %v5330
    %v6276 = vunpack.c.h.bf16 %v5330
    %v6277 = vunpack.c.l.bf16 %v5335
    %v6278 = vunpack.c.h.bf16 %v5335
    %v6279 = vunpack.c.l.bf16 %v5340
    %v6280 = vunpack.c.h.bf16 %v5340
    %v6281 = vmul.f32 %v6265, %v6249
    %v6282 = vmul.f32 %v6266, %v6250
    %v6283 = vmul.f32 %v6267, %v6251
    %v6284 = vmul.f32 %v6268, %v6252
    %v6285 = vmul.f32 %v6269, %v6253
    %v6286 = vmul.f32 %v6270, %v6254
    %v6287 = vmul.f32 %v6271, %v6255
    %v6288 = vmul.f32 %v6272, %v6256
    %v6289 = vmul.f32 %v6273, %v6257
    %v6290 = vmul.f32 %v6274, %v6258
    %v6291 = vmul.f32 %v6275, %v6259
    %v6292 = vmul.f32 %v6276, %v6260
    %v6293 = vmul.f32 %v6277, %v6261
    %v6294 = vmul.f32 %v6278, %v6262
    %v6295 = vmul.f32 %v6279, %v6263
    %v6296 = vmul.f32 %v6280, %v6264
    %v6297 = vadd.f32 %v6217, %v6281
    %v6298 = vadd.f32 %v6218, %v6282
    %v6299 = vadd.f32 %v6219, %v6283
    %v6300 = vadd.f32 %v6220, %v6284
    %v6301 = vadd.f32 %v6221, %v6285
    %v6302 = vadd.f32 %v6222, %v6286
    %v6303 = vadd.f32 %v6223, %v6287
    %v6304 = vadd.f32 %v6224, %v6288
    %v6305 = vadd.f32 %v6225, %v6289
    %v6306 = vadd.f32 %v6226, %v6290
    %v6307 = vadd.f32 %v6227, %v6291
    %v6308 = vadd.f32 %v6228, %v6292
    %v6309 = vadd.f32 %v6229, %v6293
    %v6310 = vadd.f32 %v6230, %v6294
    %v6311 = vadd.f32 %v6231, %v6295
    %v6312 = vadd.f32 %v6232, %v6296
    %v6313 = vmul.f32 %v6265, %v3770
    %v6314 = vmul.f32 %v6266, %v3775
    %v6315 = vmul.f32 %v6267, %v3778
    %v6316 = vmul.f32 %v6268, %v3783
    %v6317 = vmul.f32 %v6269, %v3786
    %v6318 = vmul.f32 %v6270, %v3791
    %v6319 = vmul.f32 %v6271, %v3794
    %v6320 = vmul.f32 %v6272, 0.0
    %v6321 = vmul.f32 %v6273, %v3802
    %v6322 = vmul.f32 %v6274, %v3807
    %v6323 = vmul.f32 %v6275, %v3810
    %v6324 = vmul.f32 %v6276, %v3815
    %v6325 = vmul.f32 %v6277, %v3818
    %v6326 = vmul.f32 %v6278, %v3823
    %v6327 = vmul.f32 %v6279, %v3826
    %v6328 = vmul.f32 %v6280, 0.0
    %6345 = vrot.lane.b32.xlu0 %v6313, 64
    %v6346 = vpop.permute.xlu0 %6345
    %6347 = vrot.lane.b32.xlu0 %v6314, 64
    %v6348 = vpop.permute.xlu0 %6347
    %6349 = vrot.lane.b32.xlu0 %v6315, 64
    %v6350 = vpop.permute.xlu0 %6349
    %6351 = vrot.lane.b32.xlu0 %v6316, 64
    %v6352 = vpop.permute.xlu0 %6351
    %6353 = vrot.lane.b32.xlu0 %v6317, 64
    %v6354 = vpop.permute.xlu0 %6353
    %6355 = vrot.lane.b32.xlu0 %v6318, 64
    %v6356 = vpop.permute.xlu0 %6355
    %6357 = vrot.lane.b32.xlu0 %v6319, 64
    %v6358 = vpop.permute.xlu0 %6357
    %6359 = vrot.lane.b32.xlu0 %v6320, 64
    %v6360 = vpop.permute.xlu0 %6359
    %6361 = vrot.lane.b32.xlu0 %v6321, 64
    %v6362 = vpop.permute.xlu0 %6361
    %6363 = vrot.lane.b32.xlu0 %v6322, 64
    %v6364 = vpop.permute.xlu0 %6363
    %6365 = vrot.lane.b32.xlu0 %v6323, 64
    %v6366 = vpop.permute.xlu0 %6365
    %6367 = vrot.lane.b32.xlu0 %v6324, 64
    %v6368 = vpop.permute.xlu0 %6367
    %6369 = vrot.lane.b32.xlu0 %v6325, 64
    %v6370 = vpop.permute.xlu0 %6369
    %6371 = vrot.lane.b32.xlu0 %v6326, 64
    %v6372 = vpop.permute.xlu0 %6371
    %6373 = vrot.lane.b32.xlu0 %v6327, 64
    %v6374 = vpop.permute.xlu0 %6373
    %6375 = vrot.lane.b32.xlu0 %v6328, 64
    %v6376 = vpop.permute.xlu0 %6375
    %v6393 = vadd.f32 %v6297, %v6346
    %v6394 = vadd.f32 %v6298, %v6348
    %v6395 = vadd.f32 %v6299, %v6350
    %v6396 = vadd.f32 %v6300, %v6352
    %v6397 = vadd.f32 %v6301, %v6354
    %v6398 = vadd.f32 %v6302, %v6356
    %v6399 = vadd.f32 %v6303, %v6358
    %v6400 = vadd.f32 %v6304, %v6360
    %v6401 = vadd.f32 %v6305, %v6362
    %v6402 = vadd.f32 %v6306, %v6364
    %v6403 = vadd.f32 %v6307, %v6366
    %v6404 = vadd.f32 %v6308, %v6368
    %v6405 = vadd.f32 %v6309, %v6370
    %v6406 = vadd.f32 %v6310, %v6372
    %v6407 = vadd.f32 %v6311, %v6374
    %v6408 = vadd.f32 %v6312, %v6376
    %v6409 = vsel %vm5635, %v6086, %v5636
    %v6410 = vsel %vm5635, %v6101, %v5636
    %v6414 = vsel %vm5635, %v5636, 0.0
    %v6415 = vsel %vm577, %v6077, 0.0
    %v6416 = vsel %vm578, %v6079, 0.0
    %v6417 = vsel %vm579, %v6081, 0.0
    %v6418 = vsel %vm580, %v6083, 0.0
    %v6419 = vsel %vm581, %v6085, 0.0
    %v6420 = vsel %vm582, %v6087, 0.0
    %v6421 = vsel %vm583, %v6409, 0.0
    %v6422 = vsel %vm584, %v6414, 0.0
    %v6423 = vsel %vm577, %v6092, 0.0
    %v6424 = vsel %vm578, %v6094, 0.0
    %v6425 = vsel %vm579, %v6096, 0.0
    %v6426 = vsel %vm580, %v6098, 0.0
    %v6427 = vsel %vm581, %v6100, 0.0
    %v6428 = vsel %vm582, %v6102, 0.0
    %v6429 = vsel %vm583, %v6410, 0.0
    %v6430 = vunpack.c.l.bf16 %v5306
    %v6431 = vunpack.c.h.bf16 %v5306
    %v6432 = vunpack.c.l.bf16 %v5311
    %v6433 = vunpack.c.h.bf16 %v5311
    %v6434 = vunpack.c.l.bf16 %v5316
    %v6435 = vunpack.c.h.bf16 %v5316
    %v6436 = vunpack.c.l.bf16 %v5321
    %v6437 = vunpack.c.h.bf16 %v5321
    %v6438 = vunpack.c.l.bf16 %v5326
    %v6439 = vunpack.c.h.bf16 %v5326
    %v6440 = vunpack.c.l.bf16 %v5331
    %v6441 = vunpack.c.h.bf16 %v5331
    %v6442 = vunpack.c.l.bf16 %v5336
    %v6443 = vunpack.c.h.bf16 %v5336
    %v6444 = vunpack.c.l.bf16 %v5341
    %v6445 = vunpack.c.h.bf16 %v5341
    %6461 = vrot.lane.b32.xlu0 %v6415, 64
    %v6462 = vpop.permute.xlu0 %6461
    %6463 = vrot.lane.b32.xlu0 %v6416, 64
    %v6464 = vpop.permute.xlu0 %6463
    %6465 = vrot.lane.b32.xlu0 %v6417, 64
    %v6466 = vpop.permute.xlu0 %6465
    %6467 = vrot.lane.b32.xlu0 %v6418, 64
    %v6468 = vpop.permute.xlu0 %6467
    %6469 = vrot.lane.b32.xlu0 %v6419, 64
    %v6470 = vpop.permute.xlu0 %6469
    %6471 = vrot.lane.b32.xlu0 %v6420, 64
    %v6472 = vpop.permute.xlu0 %6471
    %6473 = vrot.lane.b32.xlu0 %v6421, 64
    %v6474 = vpop.permute.xlu0 %6473
    %6475 = vrot.lane.b32.xlu0 %v6422, 64
    %v6476 = vpop.permute.xlu0 %6475
    %6477 = vrot.lane.b32.xlu0 %v6423, 64
    %v6478 = vpop.permute.xlu0 %6477
    %6479 = vrot.lane.b32.xlu0 %v6424, 64
    %v6480 = vpop.permute.xlu0 %6479
    %6481 = vrot.lane.b32.xlu0 %v6425, 64
    %v6482 = vpop.permute.xlu0 %6481
    %6483 = vrot.lane.b32.xlu0 %v6426, 64
    %v6484 = vpop.permute.xlu0 %6483
    %6485 = vrot.lane.b32.xlu0 %v6427, 64
    %v6486 = vpop.permute.xlu0 %6485
    %6487 = vrot.lane.b32.xlu0 %v6428, 64
    %v6488 = vpop.permute.xlu0 %6487
    %6489 = vrot.lane.b32.xlu0 %v6429, 64
    %v6490 = vpop.permute.xlu0 %6489
    %v6506 = vmul.f32 %v6430, %v6462
    %v6507 = vmul.f32 %v6431, %v6464
    %v6508 = vmul.f32 %v6432, %v6466
    %v6509 = vmul.f32 %v6433, %v6468
    %v6510 = vmul.f32 %v6434, %v6470
    %v6511 = vmul.f32 %v6435, %v6472
    %v6512 = vmul.f32 %v6436, %v6474
    %v6513 = vmul.f32 %v6437, %v6476
    %v6514 = vmul.f32 %v6438, %v6478
    %v6515 = vmul.f32 %v6439, %v6480
    %v6516 = vmul.f32 %v6440, %v6482
    %v6517 = vmul.f32 %v6441, %v6484
    %v6518 = vmul.f32 %v6442, %v6486
    %v6519 = vmul.f32 %v6443, %v6488
    %v6520 = vmul.f32 %v6444, %v6490
    %v6521 = vmul.f32 %v6445, %v6476
    %v6522 = vadd.f32 %v6393, %v6506
    %v6523 = vadd.f32 %v6394, %v6507
    %v6524 = vadd.f32 %v6395, %v6508
    %v6525 = vadd.f32 %v6396, %v6509
    %v6526 = vadd.f32 %v6397, %v6510
    %v6527 = vadd.f32 %v6398, %v6511
    %v6528 = vadd.f32 %v6399, %v6512
    %v6529 = vadd.f32 %v6400, %v6513
    %v6530 = vadd.f32 %v6401, %v6514
    %v6531 = vadd.f32 %v6402, %v6515
    %v6532 = vadd.f32 %v6403, %v6516
    %v6533 = vadd.f32 %v6404, %v6517
    %v6534 = vadd.f32 %v6405, %v6518
    %v6535 = vadd.f32 %v6406, %v6519
    %v6536 = vadd.f32 %v6407, %v6520
    %v6537 = vadd.f32 %v6408, %v6521
    %v6538 = vsel %vm869, %v6522, 0.0
    %v6539 = vsel %vm869, %v6523, 0.0
    %v6540 = vadd.f32 %v6538, %v6539
    %v6541 = vsel %vm869, %v6524, 0.0
    %v6542 = vadd.f32 %v6540, %v6541
    %v6543 = vsel %vm869, %v6525, 0.0
    %v6544 = vadd.f32 %v6542, %v6543
    %v6545 = vsel %vm869, %v6526, 0.0
    %v6546 = vadd.f32 %v6544, %v6545
    %v6547 = vsel %vm869, %v6527, 0.0
    %v6548 = vadd.f32 %v6546, %v6547
    %v6549 = vsel %vm869, %v6528, 0.0
    %v6550 = vadd.f32 %v6548, %v6549
    %v6551 = vsel %vm869, %v6529, 0.0
    %v6552 = vadd.f32 %v6550, %v6551
    %v6553 = vrot.slane %v6552, 4
    %v6554 = vadd.f32 %v6552, %v6553
    %v6555 = vrot.slane %v6554, 2
    %v6556 = vadd.f32 %v6554, %v6555
    %v6557 = vrot.slane %v6556, 1
    %v6558 = vadd.f32 %v6556, %v6557
    %v6559 = vsel %vm869, %v6530, 0.0
    %v6560 = vsel %vm869, %v6531, 0.0
    %v6561 = vadd.f32 %v6559, %v6560
    %v6562 = vsel %vm869, %v6532, 0.0
    %v6563 = vadd.f32 %v6561, %v6562
    %v6564 = vsel %vm869, %v6533, 0.0
    %v6565 = vadd.f32 %v6563, %v6564
    %v6566 = vsel %vm869, %v6534, 0.0
    %v6567 = vadd.f32 %v6565, %v6566
    %v6568 = vsel %vm869, %v6535, 0.0
    %v6569 = vadd.f32 %v6567, %v6568
    %v6570 = vsel %vm869, %v6536, 0.0
    %v6571 = vadd.f32 %v6569, %v6570
    %v6572 = vsel %vm869, %v6537, 0.0
    %v6573 = vadd.f32 %v6571, %v6572
    %v6574 = vrot.slane %v6573, 4
    %v6575 = vadd.f32 %v6573, %v6574
    %v6576 = vrot.slane %v6575, 2
    %v6577 = vadd.f32 %v6575, %v6576
    %v6578 = vrot.slane %v6577, 1
    %v6579 = vadd.f32 %v6577, %v6578
    %v6580 = vrcp.pop 64.0
    %v6581 = vmul.f32 %v6558, %v6580
    %v6582 = vmul.f32 %v6579, %v6580
    %v6583 = vld [vmem:[#allocation22] sm:$0xff]
    %v6584 = vld [vmem:[#allocation22 + $0x8] sm:$0xff]
    %v6585 = vld [vmem:[#allocation22 + $0x10] sm:$0xff]
    %v6586 = vld [vmem:[#allocation22 + $0x18] sm:$0xff]
    %v6587 = vld [vmem:[#allocation22 + $0x20] sm:$0xff]
    %v6588 = vld [vmem:[#allocation22 + $0x28] sm:$0xff]
    %v6589 = vld [vmem:[#allocation22 + $0x30] sm:$0xff]
    %v6590 = vld [vmem:[#allocation22 + $0x38] sm:$0xff]
    %v6593 = vsel %vm4285, %v6582, %v6581
    %v6594 = vsel %vm869, %v6593, 0
    %6596 = vmatprep.subr.mxu0 0.0
    %6597 = vmatpush1.msra.mxu0 %v6583
    %6598 = vmatprep.subr.mxu0 0.0
    %6599 = vmatpush1.msra.mxu0 %v6584
    %6600 = vmatprep.subr.mxu0 0.0
    %6601 = vmatpush1.msra.mxu0 %v6585
    %6602 = vmatprep.subr.mxu0 0.0
    %6603 = vmatpush1.msra.mxu0 %v6586
    %6604 = vmatprep.subr.mxu0 0.0
    %6605 = vmatpush1.msra.mxu0 %v6587
    %6606 = vmatprep.subr.mxu0 0.0
    %6607 = vmatpush1.msra.mxu0 %v6588
    %6608 = vmatprep.subr.mxu0 0.0
    %6609 = vmatpush1.msra.mxu0 %v6589
    %6610 = vmatprep.subr.mxu0 0.0
    %6611 = vmatpush1.msra.mxu0 %v6590
    %6612 = vmatprep.subr.mxu0 0.0
    %6613 = vmatpush1.msra.mxu0 0.0
    %6614 = vmatprep.subr.mxu0 0.0
    %6615 = vmatpush1.msra.mxu0 0.0
    %6616 = vmatprep.subr.mxu0 0.0
    %6617 = vmatpush1.msra.mxu0 0.0
    %6618 = vmatprep.subr.mxu0 0.0
    %6619 = vmatpush1.msra.mxu0 0.0
    %6620 = vmatprep.subr.mxu0 0.0
    %6621 = vmatpush1.msra.mxu0 0.0
    %6622 = vmatprep.subr.mxu0 0.0
    %6623 = vmatpush1.msra.mxu0 0.0
    %6624 = vmatprep.subr.mxu0 0.0
    %6625 = vmatpush1.msra.mxu0 0.0
    %6626 = vmatprep.subr.mxu0 0.0
    %6627 = vmatpush1.msra.mxu0 0.0
    %6628 = vmatprep.subr.mxu0 0.0
    %6629 = vmatpush1.msra.mxu0 0.0
    %6630 = vmatprep.subr.mxu0 0.0
    %6631 = vmatpush1.msra.mxu0 0.0
    %6632 = vmatprep.subr.mxu0 0.0
    %6633 = vmatpush1.msra.mxu0 0.0
    %6634 = vmatprep.subr.mxu0 0.0
    %6635 = vmatpush1.msra.mxu0 0.0
    %6636 = vmatprep.subr.mxu0 0.0
    %6637 = vmatpush1.msra.mxu0 0.0
    %6638 = vmatprep.subr.mxu0 0.0
    %6639 = vmatpush1.msra.mxu0 0.0
    %6640 = vmatprep.subr.mxu0 0.0
    %6641 = vmatpush1.msra.mxu0 0.0
    %6642 = vmatprep.subr.mxu0 0.0
    %6643 = vmatpush1.msra.mxu0 0.0
    %6644 = vmatprep.subr.mxu0 0.0
    %6645 = vmatpush1.msra.mxu0 0.0
    %6646 = vmatprep.subr.mxu0 0.0
    %6647 = vmatpush1.msra.mxu0 0.0
    %6648 = vmatprep.subr.mxu0 0.0
    %6649 = vmatpush1.msra.mxu0 0.0
    %6650 = vmatprep.subr.mxu0 0.0
    %6651 = vmatpush1.msra.mxu0 0.0
    %6652 = vmatprep.subr.mxu0 0.0
    %6653 = vmatpush1.msra.mxu0 0.0
    %6654 = vmatprep.subr.mxu0 0.0
    %6655 = vmatpush1.msra.mxu0 0.0
    %6656 = vmatprep.subr.mxu0 0.0
    %6657 = vmatpush1.msra.mxu0 0.0
    %6658 = vmatprep.subr.mxu0 0.0
    %6659 = vmatpush1.msra.mxu0 0.0
    %6660 = vmatprep.mubr.f32.mxu0 0.0
    %6661 = vmatmul.mubr.f32.gmra.mrb[0].mxu0 %v6594
    %v6662 = vpop.f32.mrb[0].mxu0
    %v6663 = vadd.f32 0.0, %v6662
    %v6664 = vpop.f32.mrb[0].mxu0
    %6665 = vdwg.mxu0
    %v6666 = vmax.f32 %v6663, 0.0
    %v6667 = vld [vmem:[#allocation23] sm:$0xf]
    %vm6668 = vcmask 31744
    %v6670 = vsel %vm6668, %v6666, 0
    %v6673 = vsel %vm399, %v6667, 0
    %6675 = vmatprep.subr.mxu0 0.0
    %6676 = vmatpush1.msra.mxu0 %v6673
    %6677 = vmatprep.subr.mxu0 0.0
    %6678 = vmatpush1.msra.mxu0 0.0
    %6679 = vmatprep.subr.mxu0 0.0
    %6680 = vmatpush1.msra.mxu0 0.0
    %6681 = vmatprep.subr.mxu0 0.0
    %6682 = vmatpush1.msra.mxu0 0.0
    %6683 = vmatprep.subr.mxu0 0.0
    %6684 = vmatpush1.msra.mxu0 0.0
    %6685 = vmatprep.subr.mxu0 0.0
    %6686 = vmatpush1.msra.mxu0 0.0
    %6687 = vmatprep.subr.mxu0 0.0
    %6688 = vmatpush1.msra.mxu0 0.0
    %6689 = vmatprep.subr.mxu0 0.0
    %6690 = vmatpush1.msra.mxu0 0.0
    %6691 = vmatprep.subr.mxu0 0.0
    %6692 = vmatpush1.msra.mxu0 0.0
    %6693 = vmatprep.subr.mxu0 0.0
    %6694 = vmatpush1.msra.mxu0 0.0
    %6695 = vmatprep.subr.mxu0 0.0
    %6696 = vmatpush1.msra.mxu0 0.0
    %6697 = vmatprep.subr.mxu0 0.0
    %6698 = vmatpush1.msra.mxu0 0.0
    %6699 = vmatprep.subr.mxu0 0.0
    %6700 = vmatpush1.msra.mxu0 0.0
    %6701 = vmatprep.subr.mxu0 0.0
    %6702 = vmatpush1.msra.mxu0 0.0
    %6703 = vmatprep.subr.mxu0 0.0
    %6704 = vmatpush1.msra.mxu0 0.0
    %6705 = vmatprep.subr.mxu0 0.0
    %6706 = vmatpush1.msra.mxu0 0.0
    %6707 = vmatprep.subr.mxu0 0.0
    %6708 = vmatpush1.msra.mxu0 0.0
    %6709 = vmatprep.subr.mxu0 0.0
    %6710 = vmatpush1.msra.mxu0 0.0
    %6711 = vmatprep.subr.mxu0 0.0
    %6712 = vmatpush1.msra.mxu0 0.0
    %6713 = vmatprep.subr.mxu0 0.0
    %6714 = vmatpush1.msra.mxu0 0.0
    %6715 = vmatprep.subr.mxu0 0.0
    %6716 = vmatpush1.msra.mxu0 0.0
    %6717 = vmatprep.subr.mxu0 0.0
    %6718 = vmatpush1.msra.mxu0 0.0
    %6719 = vmatprep.subr.mxu0 0.0
    %6720 = vmatpush1.msra.mxu0 0.0
    %6721 = vmatprep.subr.mxu0 0.0
    %6722 = vmatpush1.msra.mxu0 0.0
    %6723 = vmatprep.subr.mxu0 0.0
    %6724 = vmatpush1.msra.mxu0 0.0
    %6725 = vmatprep.subr.mxu0 0.0
    %6726 = vmatpush1.msra.mxu0 0.0
    %6727 = vmatprep.subr.mxu0 0.0
    %6728 = vmatpush1.msra.mxu0 0.0
    %6729 = vmatprep.subr.mxu0 0.0
    %6730 = vmatpush1.msra.mxu0 0.0
    %6731 = vmatprep.subr.mxu0 0.0
    %6732 = vmatpush1.msra.mxu0 0.0
    %6733 = vmatprep.subr.mxu0 0.0
    %6734 = vmatpush1.msra.mxu0 0.0
    %6735 = vmatprep.subr.mxu0 0.0
    %6736 = vmatpush1.msra.mxu0 0.0
    %6737 = vmatprep.subr.mxu0 0.0
    %6738 = vmatpush1.msra.mxu0 0.0
    %6739 = vmatprep.mubr.f32.mxu0 0.0
    %6740 = vmatmul.mubr.f32.gmra.mrb[0].mxu0 %v6670
    %v6741 = vpop.f32.mrb[0].mxu0
    %v6742 = vadd.f32 0.0, %v6741
    %v6743 = vpop.f32.mrb[0].mxu0
    %6744 = vdwg.mxu0
    %v6745 = vsub.f32 0.0, %v6742
    %v6746 = vmul.f32 %v6745, 1.442695
    %v6747 = vpow.pop %v6746
    %v6748 = vadd.f32 %v6747, 1.0
    %v6749 = vrcp.pop %v6748
    %v6752 = vunpack.c.l.s4 1966171168
    %v6753 = vunpack.c.0.s8 %v6752
    %v6754 = vlaneseq
    %v6755 = vshrl.u32 %v6754, 7
    %v6756 = vsub.s32 %v6753, %v6755
    %v6757 = vrot.slane %v6749, %v6756
    %v6758 = vcombine.high %v6757, %v6757
    %v6760 = vunpack.c.l.s4 1966171168
    %v6761 = vunpack.c.0.s8 %v6760
    %v6762 = vlaneseq
    %v6763 = vshrl.u32 %v6762, 7
    %v6764 = vsub.s32 %v6761, %v6763
    %v6765 = vrot.slane %v6757, %v6764
    %v6767 = vunpack.c.l.s4 1966171168
    %v6768 = vunpack.c.0.s8 %v6767
    %v6769 = vlaneseq
    %v6770 = vshrl.u32 %v6769, 7
    %v6771 = vsub.s32 %v6768, %v6770
    %v6772 = vrot.slane %v6758, %v6771
    %v6773 = vlaneseq
    %v6774 = vshrl.u32 %v6773, 7
    %v6775 = vsub.s32 0, %v6774
    %v6776 = vrot.slane %v6765, %v6775
    %v6777 = vlaneseq
    %v6778 = vshrl.u32 %v6777, 7
    %v6779 = vsub.s32 0, %v6778
    %v6780 = vrot.slane %v6772, %v6779
    %v6783 = vmul.f32 %v6522, %v6776
    %v6784 = vmul.f32 %v6523, %v6776
    %v6785 = vmul.f32 %v6524, %v6776
    %v6786 = vmul.f32 %v6525, %v6776
    %v6787 = vmul.f32 %v6526, %v6776
    %v6788 = vmul.f32 %v6527, %v6776
    %v6789 = vmul.f32 %v6528, %v6776
    %v6790 = vmul.f32 %v6529, %v6776
    %v6791 = vmul.f32 %v6530, %v6780
    %v6792 = vmul.f32 %v6531, %v6780
    %v6793 = vmul.f32 %v6532, %v6780
    %v6794 = vmul.f32 %v6533, %v6780
    %v6795 = vmul.f32 %v6534, %v6780
    %v6796 = vmul.f32 %v6535, %v6780
    %v6797 = vmul.f32 %v6536, %v6780
    %v6798 = vmul.f32 %v6537, %v6780
    %v6799 = vadd.f32 %v6783, %v231
    %v6800 = vadd.f32 %v6784, %v232
    %v6801 = vadd.f32 %v6785, %v233
    %v6802 = vadd.f32 %v6786, %v234
    %v6803 = vadd.f32 %v6787, %v235
    %v6804 = vadd.f32 %v6788, %v236
    %v6805 = vadd.f32 %v6789, %v237
    %v6806 = vadd.f32 %v6790, %v238
    %v6807 = vadd.f32 %v6791, %v239
    %v6808 = vadd.f32 %v6792, %v240
    %v6809 = vadd.f32 %v6793, %v241
    %v6810 = vadd.f32 %v6794, %v242
    %v6811 = vadd.f32 %v6795, %v243
    %v6812 = vadd.f32 %v6796, %v244
    %v6813 = vadd.f32 %v6797, %v245
    %v6814 = vadd.f32 %v6798, %v246
    %6815 = vst.msk [vmem:[#allocation25] sm:$0xff] %vm869, %v6799
    %6816 = vst.msk [vmem:[#allocation25 + $0x8] sm:$0xff] %vm869, %v6800
    %6817 = vst.msk [vmem:[#allocation25 + $0x10] sm:$0xff] %vm869, %v6801
    %6818 = vst.msk [vmem:[#allocation25 + $0x18] sm:$0xff] %vm869, %v6802
    %6819 = vst.msk [vmem:[#allocation25 + $0x20] sm:$0xff] %vm869, %v6803
    %6820 = vst.msk [vmem:[#allocation25 + $0x28] sm:$0xff] %vm869, %v6804
    %6821 = vst.msk [vmem:[#allocation25 + $0x30] sm:$0xff] %vm869, %v6805
    %6822 = vst.msk [vmem:[#allocation25 + $0x38] sm:$0xff] %vm869, %v6806
    %6823 = vst.msk [vmem:[#allocation25 + $0x40] sm:$0xff] %vm869, %v6807
    %6824 = vst.msk [vmem:[#allocation25 + $0x48] sm:$0xff] %vm869, %v6808
    %6825 = vst.msk [vmem:[#allocation25 + $0x50] sm:$0xff] %vm869, %v6809
    %6826 = vst.msk [vmem:[#allocation25 + $0x58] sm:$0xff] %vm869, %v6810
    %6827 = vst.msk [vmem:[#allocation25 + $0x60] sm:$0xff] %vm869, %v6811
    %6828 = vst.msk [vmem:[#allocation25 + $0x68] sm:$0xff] %vm869, %v6812
    %6829 = vst.msk [vmem:[#allocation25 + $0x70] sm:$0xff] %vm869, %v6813
    %6830 = vst.msk [vmem:[#allocation25 + $0x78] sm:$0xff] %vm869, %v6814
    // Predicated region
    $region114: #{tpu_custom_call.1} parent=1 // pred_check
      _
    $region115: #{tpu_custom_call.1} parent=1 // pred_check_branch
      %6832 = sbr.rel (0) target = $region117
    $region116: #{tpu_custom_call.1} parent=1 // pred_region
      %s6834 = ssub.s32 2048, 2048
      %6835 = vsyncadd [#allocation4], %s6834
      %s6836 = sshll.u32 [#allocation25], 4
      %s6837 = int_to_ptr.vmem [resolvable:$true] %s6836
      %6842 = dma.vmem_to_hbm [thread:$0]  %s6837, 2048, %s14, [#allocation4], 128, 128, 8
    $region117: #{tpu_custom_call.1} parent=1 // pred_fallthru
      _
    // Predicated region
    $region118: #{tpu_custom_call.1} parent=1 // pred_check
      _
    $region119: #{tpu_custom_call.1} parent=1 // pred_check_branch
      %6844 = sbr.rel (0) target = $region121
    $region120: #{tpu_custom_call.1} parent=1 // pred_region
      %6845 = dma.done [#allocation4], 2048
    $region121: #{tpu_custom_call.1} parent=1 // pred_fallthru
      _
    %6846 = vsyncpa [#allocation3], 1
    %6847 = vsyncpa [#allocation6], 1
    %6848 = vsyncpa [#allocation9], 1
    %6849 = vsyncpa [#allocation12], 1
    %6850 = vsyncpa [#allocation15], 1
    %6851 = vsyncpa [#allocation18], 1
    %6852 = vsyncpa [#allocation21], 1
    %6853 = vsyncpa [#allocation24], 1
    %6854 = vsyncpa [#allocation4], 1

</llo_original>
